<compile_context>
chip_gen: v7x
topology: tpu7x:2x2x1
jax: 0.10.0
libtpu: 0.0.40
codegen_flags: <defaults>
</compile_context>

<pallas_src>
import functools

import numpy as np
import jax
import jax.numpy as jnp
from jax import lax
from jax.experimental import pallas as pl
from jax.experimental.pallas import tpu as pltpu


_BCOL = {
    'conv1': 0,
    'l1b0_1': 1, 'l1b0_2': 2, 'l1b1_1': 3, 'l1b1_2': 4,
    'l2b0_1': 5, 'l2b0_d': 6, 'l2b0_2': 7, 'l2b1_1': 8, 'l2b1_2': 9,
}

_PARAM_NAMES = (
    'w1',
    'l1b0_w1', 'l1b0_w2', 'l1b1_w1', 'l1b1_w2',
    'l2b0_w1', 'l2b0_wd', 'l2b0_w2', 'l2b1_w1', 'l2b1_w2',
    'w_last', 'bias',
    'g_mp', 'g_l1', 'g_l2a', 'g_ds', 'g_l2b', 'g_last',
)


# ---------------------------------------------------------------------------
# Fused Pallas kernel: the whole truncated ResNet for one block of NB images.
# ---------------------------------------------------------------------------
def _fused_kernel(names, bcol, lanes, x_ref, *rest):
    np1, np2, np3 = lanes                                   # NB*16, NB*4, NB*1 lanes
    xcol_ref = rest[-1]                                     # VMEM scratch (9*128, np1) bf16
    out_ref = rest[-2]
    R = dict(zip(names, rest[:-2]))
    bias_ref = R['bias']                                    # (128, n_bias) f32

    def bias_act(y, name, relu=True, res=None):
        c = bcol[name]
        y = y + bias_ref[0:y.shape[0], c:c + 1]             # (Cout,1) broadcast over lanes
        if res is not None:
            y = y + res
        if relu:
            y = jnp.maximum(y, 0.0)
        return y

    def conv(x, gname, wname, kk, npo):
        # x: (Cin, NPin) bf16.  Gcat: (NPin, kk*npo) 0/1 bf16.  W: (Cout, kk*Cin) bf16.
        g_ref, w_ref = R[gname], R[wname]
        cin = x.shape[0]
        xg = jnp.dot(x, g_ref[...], preferred_element_type=jnp.float32)   # 1 gather matmul
        xg = xg.astype(jnp.bfloat16)                        # exact: 0/1 gather of bf16 vals
        for t in range(kk):                                 # im2col: stack taps on sublanes
            xcol_ref[t * cin:(t + 1) * cin, 0:npo] = xg[:, t * npo:(t + 1) * npo]
        return jnp.dot(w_ref[...], xcol_ref[0:kk * cin, 0:npo],
                       preferred_element_type=jnp.float32)  # 1 weight matmul, (Cout, npo)

    def maxpool(x, gname, npo, kk=9):
        # One gather matmul + VPU maxes.  Correct ONLY because x >= 0 (post-ReLU),
        # so all-zero padding taps can never win the max.
        xg = jnp.dot(x, R[gname][...], preferred_element_type=jnp.float32)
        m = xg[:, 0:npo]
        for t in range(1, kk):
            m = jnp.maximum(m, xg[:, t * npo:(t + 1) * npo])
        return m                                            # (C, npo) f32

    def basic_block(a, pre, g1, g2, npo, gdown=None):
        y = conv(a, g1, pre + '_w1', 9, npo)
        y = bias_act(y, pre + '_1').astype(jnp.bfloat16)
        if gdown is not None:
            idn = bias_act(conv(a, gdown, pre + '_wd', 1, npo), pre + '_d', relu=False)
        else:
            idn = a.astype(jnp.float32)
        y = conv(y, g2, pre + '_w2', 9, npo)
        y = bias_act(y, pre + '_2', res=idn)
        return y.astype(jnp.bfloat16)

    # layer0: 7x7/s2 conv (+BN+ReLU); im2col of the raw input comes from the wrapper,
    # so it is a single dense matmul here.
    y = jnp.dot(R['w1'][...], x_ref[0], preferred_element_type=jnp.float32)
    a = bias_act(y, 'conv1').astype(jnp.bfloat16)           # (64, NB*64)   8x8 per image
    # layer1: maxpool 3x3/s2 + two basic blocks.
    a = maxpool(a, 'g_mp', np1).astype(jnp.bfloat16)        # (64, NB*16)   4x4
    a = basic_block(a, 'l1b0', 'g_l1', 'g_l1', np1)
    a = basic_block(a, 'l1b1', 'g_l1', 'g_l1', np1)
    # layer2: strided block with downsample + identity block.
    a = basic_block(a, 'l2b0', 'g_l2a', 'g_l2b', np2, gdown='g_ds')   # (128, NB*4) 2x2
    a = basic_block(a, 'l2b1', 'g_l2b', 'g_l2b', np2)
    # conv_last: 3x3/s2 conv, bias=False (matches the spec).
    y = conv(a, 'g_last', 'w_last', 9, np3)                 # (Cout, NB*1)
    out_ref[0] = y.astype(out_ref.dtype)


# ---------------------------------------------------------------------------
# Wrapper (one pallas_call per forward)
# ---------------------------------------------------------------------------
def _const_map(ndim, i):
    return (0,) * ndim


def _osz(s, k, stride, pad):
    return (s + 2 * pad - k) // stride + 1


def _conv1_patches(x_nchw):
    """im2col of the raw input for the 7x7/s2/p3 conv: (N, 49*Cin, OH*OW), tap-major."""
    n, c, h, w = x_nchw.shape
    k, s, p = 7, 2, 3
    oh = (h + 2 * p - k) // s + 1
    ow = (w + 2 * p - k) // s + 1
    xp = jnp.pad(x_nchw, ((0, 0), (0, 0), (p, p), (p, p)))
    taps = [xp[:, :, i:i + s * oh:s, j:j + s * ow:s]
            for i in range(k) for j in range(k)]
    pt = jnp.stack(taps, axis=1)                            # (N, 49, Cin, OH, OW)
    return pt.reshape(n, k * k * c, oh * ow).astype(jnp.bfloat16)


def map_encoder_forward(prep, x_nchw):
    n, c_in, h, w = x_nchw.shape
    h0, w0 = _osz(h, 7, 2, 3), _osz(w, 7, 2, 3)             # after conv1
    h1, w1 = _osz(h0, 3, 2, 1), _osz(w0, 3, 2, 1)           # after maxpool / layer1
    h2, w2 = _osz(h1, 3, 2, 1), _osz(w1, 3, 2, 1)           # after layer2
    h3, w3 = _osz(h2, 3, 2, 1), _osz(w2, 3, 2, 1)           # after conv_last
    p0, p1, p2, p3 = h0 * w0, h1 * w1, h2 * w2, h3 * w3
    nb = prep['g_mp'].shape[0] // p0                        # images packed per grid step
    nblk = -(-n // nb)                                      # cdiv
    n_pad = nblk * nb
    cout = prep['w_last'].shape[0]

    patches = _conv1_patches(x_nchw)                        # (N, 49*Cin, p0) bf16
    if n_pad != n:
        patches = jnp.pad(patches, ((0, n_pad - n), (0, 0), (0, 0)))
    kdim = patches.shape[1]
    patches = patches.reshape(nblk, nb, kdim, p0).transpose(0, 2, 1, 3)
    patches = patches.reshape(nblk, kdim, nb * p0)          # lanes = batch-major p0 blocks

    flat = [prep[k] for k in _PARAM_NAMES]
    in_specs = [pl.BlockSpec((1, kdim, nb * p0), lambda i: (i, 0, 0))]
    in_specs += [pl.BlockSpec(a.shape, functools.partial(_const_map, a.ndim))
                 for a in flat]                             # weights/gathers/bias resident

    lanes = (nb * p1, nb * p2, nb * p3)
    out = pl.pallas_call(
        functools.partial(_fused_kernel, _PARAM_NAMES, _BCOL, lanes),
        out_shape=jax.ShapeDtypeStruct((nblk, cout, nb * p3), jnp.float32),
        grid_spec=pltpu.PrefetchScalarGridSpec(
            num_scalar_prefetch=0,
            grid=(nblk,),                                   # one NB-image block per step
            in_specs=in_specs,
            out_specs=pl.BlockSpec((1, cout, nb * p3), lambda i: (i, 0, 0)),
            scratch_shapes=[pltpu.VMEM((9 * 128, nb * p1), jnp.bfloat16)]),  # im2col Xcol
        compiler_params=pltpu.CompilerParams(
            dimension_semantics=("parallel",),
            vmem_limit_bytes=32 * 1024 * 1024),
    )(patches, *flat)

    out = out.reshape(nblk, cout, nb, p3).transpose(0, 2, 1, 3)
    out = out.reshape(n_pad, cout, p3)[:n]
    return out.reshape(n, cout, h3, w3)


# ---------------------------------------------------------------------------
# One-time parameter preparation (BN fold, weight reshape, batched gather mats)
# ---------------------------------------------------------------------------
def _gather_cat(h, w, k, stride, pad, nb):
    """Concatenated, batch-block-diagonal 0/1 gather matrix (nb*h*w, k*k*nb*oh*ow):
    column (t*nb + b)*pout + o reads input lane b*pin + i of tap t for output o;
    taps falling into the zero padding stay all-zero columns."""
    oh = (h + 2 * pad - k) // stride + 1
    ow = (w + 2 * pad - k) // stride + 1
    pin, pout = h * w, oh * ow
    g = np.zeros((nb * pin, k * k * nb * pout), np.float32)
    for di in range(k):
        for dj in range(k):
            t = di * k + dj
            for oy in range(oh):
                for ox in range(ow):
                    iy = oy * stride - pad + di
                    ix = ox * stride - pad + dj
                    if 0 <= iy < h and 0 <= ix < w:
                        src, dst = iy * w + ix, oy * ow + ox
                        for b in range(nb):
                            g[b * pin + src, (t * nb + b) * pout + dst] = 1.0
    return jnp.asarray(g, jnp.bfloat16)


def prepare_params(params, h=16, w=16, nb=8):
    def conv_mat(wt, scale=None):
        cout, cin, kh, kw = wt.shape
        m = jnp.transpose(wt, (0, 2, 3, 1)).reshape(cout, kh * kw * cin)  # tap-major cols
        if scale is not None:
            m = m * scale[:, None]                          # fold BN scale into weights
        return m.astype(jnp.bfloat16)

    bias_mat = jnp.zeros((128, len(_BCOL)), jnp.float32)

    def set_bias(bm, name, b):
        return bm.at[:b.shape[0], _BCOL[name]].set(b.astype(jnp.float32))

    p = {}
    s, b = params['bn1']
    p['w1'] = conv_mat(params['conv1_w'], s)
    bias_mat = set_bias(bias_mat, 'conv1', b)

    for lname, blocks in (('l1', params['layer1']), ('l2', params['layer2'])):
        for bi, bp in enumerate(blocks):
            pre = f'{lname}b{bi}'
            s1, b1 = bp['bn1']
            s2, b2 = bp['bn2']
            p[pre + '_w1'] = conv_mat(bp['w1'], s1)
            p[pre + '_w2'] = conv_mat(bp['w2'], s2)
            bias_mat = set_bias(bias_mat, pre + '_1', b1)
            bias_mat = set_bias(bias_mat, pre + '_2', b2)
            if 'wd' in bp:
                sd, bd = bp['bnd']
                p[pre + '_wd'] = conv_mat(bp['wd'], sd)
                bias_mat = set_bias(bias_mat, pre + '_d', bd)

    p['w_last'] = conv_mat(params['conv_last_w'])           # conv_last: bias=False
    p['bias'] = bias_mat

    h0, w0 = _osz(h, 7, 2, 3), _osz(w, 7, 2, 3)             # after conv1   (8x8)
    h1, w1_ = _osz(h0, 3, 2, 1), _osz(w0, 3, 2, 1)          # after maxpool (4x4)
    h2, w2_ = _osz(h1, 3, 2, 1), _osz(w1_, 3, 2, 1)         # after layer2  (2x2)
    p['g_mp'] = _gather_cat(h0, w0, 3, 2, 1, nb)
    p['g_l1'] = _gather_cat(h1, w1_, 3, 1, 1, nb)
    p['g_l2a'] = _gather_cat(h1, w1_, 3, 2, 1, nb)
    p['g_ds'] = _gather_cat(h1, w1_, 1, 2, 0, nb)
    p['g_l2b'] = _gather_cat(h2, w2_, 3, 1, 1, nb)
    p['g_last'] = _gather_cat(h2, w2_, 3, 2, 1, nb)
    return p


# ---------------------------------------------------------------------------
# Deterministic synthetic parameters (shapes from the module __init__)
# TODO(synk): pretrained ImageNet ResNet-18 weights are not loaded; synthetic init used.
# ---------------------------------------------------------------------------
def fold_bn(gamma, beta, mean, var, eps=1e-5):
    scale = gamma / jnp.sqrt(var + eps)
    return scale, beta - mean * scale


def init_params(key, c_in, c_out):
    keys = iter(jax.random.split(key, 64))

    def conv_w(cout, cin, k):
        fan = cin * k * k
        return jax.random.normal(next(keys), (cout, cin, k, k),
                                 jnp.float32) * (0.5 / np.sqrt(fan))

    def bn(c):
        gamma = jax.random.uniform(next(keys), (c,), minval=0.5, maxval=1.5)
        beta = jax.random.normal(next(keys), (c,)) * 0.1
        mean = jax.random.normal(next(keys), (c,)) * 0.1
        var = jax.random.uniform(next(keys), (c,), minval=0.5, maxval=1.5)
        return fold_bn(gamma, beta, mean, var)

    def block(cin, cout, downsample):
        b = {'w1': conv_w(cout, cin, 3), 'bn1': bn(cout),
             'w2': conv_w(cout, cout, 3), 'bn2': bn(cout)}
        if downsample:
            b['wd'] = conv_w(cout, cin, 1)
            b['bnd'] = bn(cout)
        return b

    return {
        'conv1_w': conv_w(64, c_in, 7), 'bn1': bn(64),
        'layer1': [block(64, 64, False), block(64, 64, False)],
        'layer2': [block(64, 128, True), block(128, 128, False)],
        'conv_last_w': conv_w(c_out, 128, 3),
    }


# ---------------------------------------------------------------------------
# Plain-JAX reference (numerical sanity check)
# ---------------------------------------------------------------------------
def _ref_conv(x, w, stride, pad):
    return lax.conv_general_dilated(
        x, jnp.transpose(w, (2, 3, 1, 0)), (stride, stride),
        [(pad, pad), (pad, pad)],
        dimension_numbers=('NHWC', 'HWIO', 'NHWC'),
        precision=lax.Precision.HIGHEST)


def ref_forward(params, x_nchw):
    def cba(x, w, sb, stride, pad, relu, residual=None):
        y = _ref_conv(x, w, stride, pad) * sb[0] + sb[1]
        if residual is not None:
            y = y + residual
        return jnp.maximum(y, 0.0) if relu else y

    def block(x, bp, stride):
        identity = x
        y = cba(x, bp['w1'], bp['bn1'], stride, 1, True)
        if 'wd' in bp:
            identity = cba(x, bp['wd'], bp['bnd'], stride, 0, False)
        return cba(y, bp['w2'], bp['bn2'], 1, 1, True, residual=identity)

    x = jnp.transpose(x_nchw, (0, 2, 3, 1))
    x = cba(x, params['conv1_w'], params['bn1'], 2, 3, True)
    x = lax.reduce_window(x, -jnp.inf, lax.max, (1, 3, 3, 1), (1, 2, 2, 1),
                          ((0, 0), (1, 1), (1, 1), (0, 0)))
    x = block(x, params['layer1'][0], 1)
    x = block(x, params['layer1'][1], 1)
    x = block(x, params['layer2'][0], 2)
    x = block(x, params['layer2'][1], 1)
    x = _ref_conv(x, params['conv_last_w'], 2, 1)           # bias=False, no activation
    return jnp.transpose(x, (0, 3, 1, 2))


if __name__ == "__main__":
    key = jax.random.PRNGKey(0)
    kx, kp = jax.random.split(key)
    n_channel_in, n_channel_out = 4, 32
    x = jax.random.normal(kx, (2, n_channel_in, 16, 16), jnp.float32)  # NCHW like PyTorch
    params = init_params(kp, n_channel_in, n_channel_out)
    # nb = images packed into the lane dim per grid step (whole batch here; use 8+ in prod).
    prep = prepare_params(params, h=16, w=16, nb=2)

    fwd = jax.jit(map_encoder_forward)
    out = jax.block_until_ready(fwd(prep, x))
    assert out.shape == (2, n_channel_out, 1, 1), out.shape

    ref = jax.block_until_ready(ref_forward(params, x))
    np.testing.assert_allclose(np.asarray(out), np.asarray(ref),
                               rtol=1e-2, atol=1e-2)
    print("KERNEL_OK")
</pallas_src>

<mosaic_0001>
module attributes {stable_mosaic.version = 11 : i64} {
  func.func @_fused_kernel(%arg0: i32, %arg1: memref<1x196x128xbf16, #tpu.memory_space<vmem>>, %arg2: memref<64x196xbf16, #tpu.memory_space<vmem>>, %arg3: memref<64x576xbf16, #tpu.memory_space<vmem>>, %arg4: memref<64x576xbf16, #tpu.memory_space<vmem>>, %arg5: memref<64x576xbf16, #tpu.memory_space<vmem>>, %arg6: memref<64x576xbf16, #tpu.memory_space<vmem>>, %arg7: memref<128x576xbf16, #tpu.memory_space<vmem>>, %arg8: memref<128x64xbf16, #tpu.memory_space<vmem>>, %arg9: memref<128x1152xbf16, #tpu.memory_space<vmem>>, %arg10: memref<128x1152xbf16, #tpu.memory_space<vmem>>, %arg11: memref<128x1152xbf16, #tpu.memory_space<vmem>>, %arg12: memref<32x1152xbf16, #tpu.memory_space<vmem>>, %arg13: memref<128x10xf32, #tpu.memory_space<vmem>>, %arg14: memref<128x288xbf16, #tpu.memory_space<vmem>>, %arg15: memref<32x288xbf16, #tpu.memory_space<vmem>>, %arg16: memref<32x72xbf16, #tpu.memory_space<vmem>>, %arg17: memref<32x8xbf16, #tpu.memory_space<vmem>>, %arg18: memref<8x72xbf16, #tpu.memory_space<vmem>>, %arg19: memref<8x18xbf16, #tpu.memory_space<vmem>>, %arg20: memref<1x32x2xf32, #tpu.memory_space<vmem>>, %arg21: memref<1152x32xbf16, #tpu.memory_space<vmem>>) attributes {dimension_semantics = [#tpu.dimension_semantics<parallel>], iteration_bounds = array<i64: 1>, scalar_prefetch = 0 : i64, scratch_operands = 1 : i64, tpu.core_type = #tpu.core_type<tc>, window_params = [{transform_indices = @transform_0, window_bounds = array<i64: 1, 196, 128>}, {pipeline_mode = #tpu.pipeline_mode<synchronous>, transform_indices = @transform_1, window_bounds = array<i64: 64, 196>}, {pipeline_mode = #tpu.pipeline_mode<synchronous>, transform_indices = @transform_2, window_bounds = array<i64: 64, 576>}, {pipeline_mode = #tpu.pipeline_mode<synchronous>, transform_indices = @transform_3, window_bounds = array<i64: 64, 576>}, {pipeline_mode = #tpu.pipeline_mode<synchronous>, transform_indices = @transform_4, window_bounds = array<i64: 64, 576>}, {pipeline_mode = #tpu.pipeline_mode<synchronous>, transform_indices = @transform_5, window_bounds = array<i64: 64, 576>}, {pipeline_mode = #tpu.pipeline_mode<synchronous>, transform_indices = @transform_6, window_bounds = array<i64: 128, 576>}, {pipeline_mode = #tpu.pipeline_mode<synchronous>, transform_indices = @transform_7, window_bounds = array<i64: 128, 64>}, {pipeline_mode = #tpu.pipeline_mode<synchronous>, transform_indices = @transform_8, window_bounds = array<i64: 128, 1152>}, {pipeline_mode = #tpu.pipeline_mode<synchronous>, transform_indices = @transform_9, window_bounds = array<i64: 128, 1152>}, {pipeline_mode = #tpu.pipeline_mode<synchronous>, transform_indices = @transform_10, window_bounds = array<i64: 128, 1152>}, {pipeline_mode = #tpu.pipeline_mode<synchronous>, transform_indices = @transform_11, window_bounds = array<i64: 32, 1152>}, {pipeline_mode = #tpu.pipeline_mode<synchronous>, transform_indices = @transform_12, window_bounds = array<i64: 128, 10>}, {pipeline_mode = #tpu.pipeline_mode<synchronous>, transform_indices = @transform_13, window_bounds = array<i64: 128, 288>}, {pipeline_mode = #tpu.pipeline_mode<synchronous>, transform_indices = @transform_14, window_bounds = array<i64: 32, 288>}, {pipeline_mode = #tpu.pipeline_mode<synchronous>, transform_indices = @transform_15, window_bounds = array<i64: 32, 72>}, {pipeline_mode = #tpu.pipeline_mode<synchronous>, transform_indices = @transform_16, window_bounds = array<i64: 32, 8>}, {pipeline_mode = #tpu.pipeline_mode<synchronous>, transform_indices = @transform_17, window_bounds = array<i64: 8, 72>}, {pipeline_mode = #tpu.pipeline_mode<synchronous>, transform_indices = @transform_18, window_bounds = array<i64: 8, 18>}, {transform_indices = @transform_19, window_bounds = array<i64: 1, 32, 2>}]} {
    %c0 = arith.constant 0 : index
    %c0_0 = arith.constant 0 : index
    %0 = vector.load %arg2[%c0, %c0_0] : memref<64x196xbf16, #tpu.memory_space<vmem>>, vector<64x196xbf16>
    %c0_1 = arith.constant 0 : index
    %c0_2 = arith.constant 0 : index
    %c0_3 = arith.constant 0 : index
    %1 = vector.load %arg1[%c0_1, %c0_2, %c0_3] : memref<1x196x128xbf16, #tpu.memory_space<vmem>>, vector<1x196x128xbf16>
    %2 = vector.shape_cast %1 : vector<1x196x128xbf16> to vector<196x128xbf16>
    %cst = arith.constant dense<0.000000e+00> : vector<64x128xf32>
    %3 = tpu.matmul %0, %2, %cst {dimension_numbers = #tpu.dot_dimension_numbers<[1], [0], [0], [1], [0, 0, 1, 1], [], []>} : vector<64x196xbf16>, vector<196x128xbf16>, vector<64x128xf32> -> vector<64x128xf32>
    %c0_4 = arith.constant 0 : index
    %c0_5 = arith.constant 0 : index
    %4 = vector.load %arg13[%c0_4, %c0_5] : memref<128x10xf32, #tpu.memory_space<vmem>>, vector<64x1xf32>
    %5 = vector.broadcast %4 : vector<64x1xf32> to vector<64x128xf32>
    %6 = arith.addf %3, %5 : vector<64x128xf32>
    %cst_6 = arith.constant 0.000000e+00 : f32
    %7 = vector.broadcast %cst_6 : f32 to vector<64x128xf32>
    %8 = arith.maximumf %6, %7 : vector<64x128xf32>
    %9 = arith.truncf %8 : vector<64x128xf32> to vector<64x128xbf16>
    %c0_7 = arith.constant 0 : index
    %c0_8 = arith.constant 0 : index
    %10 = vector.load %arg14[%c0_7, %c0_8] : memref<128x288xbf16, #tpu.memory_space<vmem>>, vector<128x288xbf16>
    %cst_9 = arith.constant dense<0.000000e+00> : vector<64x288xf32>
    %11 = tpu.matmul %9, %10, %cst_9 {dimension_numbers = #tpu.dot_dimension_numbers<[1], [0], [0], [1], [0, 0, 1, 1], [], []>} : vector<64x128xbf16>, vector<128x288xbf16>, vector<64x288xf32> -> vector<64x288xf32>
    %12 = vector.extract_strided_slice %11 {offsets = [0, 0], sizes = [64, 32], strides = [1, 1]} : vector<64x288xf32> to vector<64x32xf32>
    %13 = vector.extract_strided_slice %11 {offsets = [0, 32], sizes = [64, 32], strides = [1, 1]} : vector<64x288xf32> to vector<64x32xf32>
    %14 = arith.maximumf %12, %13 : vector<64x32xf32>
    %15 = vector.extract_strided_slice %11 {offsets = [0, 64], sizes = [64, 32], strides = [1, 1]} : vector<64x288xf32> to vector<64x32xf32>
    %16 = arith.maximumf %14, %15 : vector<64x32xf32>
    %17 = vector.extract_strided_slice %11 {offsets = [0, 96], sizes = [64, 32], strides = [1, 1]} : vector<64x288xf32> to vector<64x32xf32>
    %18 = arith.maximumf %16, %17 : vector<64x32xf32>
    %19 = vector.extract_strided_slice %11 {offsets = [0, 128], sizes = [64, 32], strides = [1, 1]} : vector<64x288xf32> to vector<64x32xf32>
    %20 = arith.maximumf %18, %19 : vector<64x32xf32>
    %21 = vector.extract_strided_slice %11 {offsets = [0, 160], sizes = [64, 32], strides = [1, 1]} : vector<64x288xf32> to vector<64x32xf32>
    %22 = arith.maximumf %20, %21 : vector<64x32xf32>
    %23 = vector.extract_strided_slice %11 {offsets = [0, 192], sizes = [64, 32], strides = [1, 1]} : vector<64x288xf32> to vector<64x32xf32>
    %24 = arith.maximumf %22, %23 : vector<64x32xf32>
    %25 = vector.extract_strided_slice %11 {offsets = [0, 224], sizes = [64, 32], strides = [1, 1]} : vector<64x288xf32> to vector<64x32xf32>
    %26 = arith.maximumf %24, %25 : vector<64x32xf32>
    %27 = vector.extract_strided_slice %11 {offsets = [0, 256], sizes = [64, 32], strides = [1, 1]} : vector<64x288xf32> to vector<64x32xf32>
    %28 = arith.maximumf %26, %27 : vector<64x32xf32>
    %29 = arith.truncf %28 : vector<64x32xf32> to vector<64x32xbf16>
    %c0_10 = arith.constant 0 : index
    %c0_11 = arith.constant 0 : index
    %30 = vector.load %arg15[%c0_10, %c0_11] : memref<32x288xbf16, #tpu.memory_space<vmem>>, vector<32x288xbf16>
    %cst_12 = arith.constant dense<0.000000e+00> : vector<64x288xf32>
    %31 = tpu.matmul %29, %30, %cst_12 {dimension_numbers = #tpu.dot_dimension_numbers<[1], [0], [0], [1], [0, 0, 1, 1], [], []>} : vector<64x32xbf16>, vector<32x288xbf16>, vector<64x288xf32> -> vector<64x288xf32>
    %32 = arith.truncf %31 : vector<64x288xf32> to vector<64x288xbf16>
    %33 = vector.extract_strided_slice %32 {offsets = [0, 0], sizes = [64, 32], strides = [1, 1]} : vector<64x288xbf16> to vector<64x32xbf16>
    %c0_13 = arith.constant 0 : index
    %c0_14 = arith.constant 0 : index
    %34 = vector.load %arg21[%c0_13, %c0_14] : memref<1152x32xbf16, #tpu.memory_space<vmem>>, vector<64x32xbf16>
    tpu.vector_store %arg21[%c0_13, %c0_14], %33 {strides = array<i32>} : memref<1152x32xbf16, #tpu.memory_space<vmem>>, vector<64x32xbf16>,
    %35 = vector.extract_strided_slice %32 {offsets = [0, 32], sizes = [64, 32], strides = [1, 1]} : vector<64x288xbf16> to vector<64x32xbf16>
    %c64 = arith.constant 64 : index
    %c0_15 = arith.constant 0 : index
    %36 = vector.load %arg21[%c64, %c0_15] : memref<1152x32xbf16, #tpu.memory_space<vmem>>, vector<64x32xbf16>
    tpu.vector_store %arg21[%c64, %c0_15], %35 {strides = array<i32>} : memref<1152x32xbf16, #tpu.memory_space<vmem>>, vector<64x32xbf16>,
    %37 = vector.extract_strided_slice %32 {offsets = [0, 64], sizes = [64, 32], strides = [1, 1]} : vector<64x288xbf16> to vector<64x32xbf16>
    %c128 = arith.constant 128 : index
    %c0_16 = arith.constant 0 : index
    %38 = vector.load %arg21[%c128, %c0_16] : memref<1152x32xbf16, #tpu.memory_space<vmem>>, vector<64x32xbf16>
    tpu.vector_store %arg21[%c128, %c0_16], %37 {strides = array<i32>} : memref<1152x32xbf16, #tpu.memory_space<vmem>>, vector<64x32xbf16>,
    %39 = vector.extract_strided_slice %32 {offsets = [0, 96], sizes = [64, 32], strides = [1, 1]} : vector<64x288xbf16> to vector<64x32xbf16>
    %c192 = arith.constant 192 : index
    %c0_17 = arith.constant 0 : index
    %40 = vector.load %arg21[%c192, %c0_17] : memref<1152x32xbf16, #tpu.memory_space<vmem>>, vector<64x32xbf16>
    tpu.vector_store %arg21[%c192, %c0_17], %39 {strides = array<i32>} : memref<1152x32xbf16, #tpu.memory_space<vmem>>, vector<64x32xbf16>,
    %41 = vector.extract_strided_slice %32 {offsets = [0, 128], sizes = [64, 32], strides = [1, 1]} : vector<64x288xbf16> to vector<64x32xbf16>
    %c256 = arith.constant 256 : index
    %c0_18 = arith.constant 0 : index
    %42 = vector.load %arg21[%c256, %c0_18] : memref<1152x32xbf16, #tpu.memory_space<vmem>>, vector<64x32xbf16>
    tpu.vector_store %arg21[%c256, %c0_18], %41 {strides = array<i32>} : memref<1152x32xbf16, #tpu.memory_space<vmem>>, vector<64x32xbf16>,
    %43 = vector.extract_strided_slice %32 {offsets = [0, 160], sizes = [64, 32], strides = [1, 1]} : vector<64x288xbf16> to vector<64x32xbf16>
    %c320 = arith.constant 320 : index
    %c0_19 = arith.constant 0 : index
    %44 = vector.load %arg21[%c320, %c0_19] : memref<1152x32xbf16, #tpu.memory_space<vmem>>, vector<64x32xbf16>
    tpu.vector_store %arg21[%c320, %c0_19], %43 {strides = array<i32>} : memref<1152x32xbf16, #tpu.memory_space<vmem>>, vector<64x32xbf16>,
    %45 = vector.extract_strided_slice %32 {offsets = [0, 192], sizes = [64, 32], strides = [1, 1]} : vector<64x288xbf16> to vector<64x32xbf16>
    %c384 = arith.constant 384 : index
    %c0_20 = arith.constant 0 : index
    %46 = vector.load %arg21[%c384, %c0_20] : memref<1152x32xbf16, #tpu.memory_space<vmem>>, vector<64x32xbf16>
    tpu.vector_store %arg21[%c384, %c0_20], %45 {strides = array<i32>} : memref<1152x32xbf16, #tpu.memory_space<vmem>>, vector<64x32xbf16>,
    %47 = vector.extract_strided_slice %32 {offsets = [0, 224], sizes = [64, 32], strides = [1, 1]} : vector<64x288xbf16> to vector<64x32xbf16>
    %c448 = arith.constant 448 : index
    %c0_21 = arith.constant 0 : index
    %48 = vector.load %arg21[%c448, %c0_21] : memref<1152x32xbf16, #tpu.memory_space<vmem>>, vector<64x32xbf16>
    tpu.vector_store %arg21[%c448, %c0_21], %47 {strides = array<i32>} : memref<1152x32xbf16, #tpu.memory_space<vmem>>, vector<64x32xbf16>,
    %49 = vector.extract_strided_slice %32 {offsets = [0, 256], sizes = [64, 32], strides = [1, 1]} : vector<64x288xbf16> to vector<64x32xbf16>
    %c512 = arith.constant 512 : index
    %c0_22 = arith.constant 0 : index
    %50 = vector.load %arg21[%c512, %c0_22] : memref<1152x32xbf16, #tpu.memory_space<vmem>>, vector<64x32xbf16>
    tpu.vector_store %arg21[%c512, %c0_22], %49 {strides = array<i32>} : memref<1152x32xbf16, #tpu.memory_space<vmem>>, vector<64x32xbf16>,
    %c0_23 = arith.constant 0 : index
    %c0_24 = arith.constant 0 : index
    %51 = vector.load %arg3[%c0_23, %c0_24] : memref<64x576xbf16, #tpu.memory_space<vmem>>, vector<64x576xbf16>
    %c0_25 = arith.constant 0 : index
    %c0_26 = arith.constant 0 : index
    %52 = vector.load %arg21[%c0_25, %c0_26] : memref<1152x32xbf16, #tpu.memory_space<vmem>>, vector<576x32xbf16>
    %cst_27 = arith.constant dense<0.000000e+00> : vector<64x32xf32>
    %53 = tpu.matmul %51, %52, %cst_27 {dimension_numbers = #tpu.dot_dimension_numbers<[1], [0], [0], [1], [0, 0, 1, 1], [], []>} : vector<64x576xbf16>, vector<576x32xbf16>, vector<64x32xf32> -> vector<64x32xf32>
    %c0_28 = arith.constant 0 : index
    %c1 = arith.constant 1 : index
    %54 = vector.load %arg13[%c0_28, %c1] : memref<128x10xf32, #tpu.memory_space<vmem>>, vector<64x1xf32>
    %55 = vector.broadcast %54 : vector<64x1xf32> to vector<64x32xf32>
    %56 = arith.addf %53, %55 : vector<64x32xf32>
    %cst_29 = arith.constant 0.000000e+00 : f32
    %57 = vector.broadcast %cst_29 : f32 to vector<64x32xf32>
    %58 = arith.maximumf %56, %57 : vector<64x32xf32>
    %59 = arith.truncf %58 : vector<64x32xf32> to vector<64x32xbf16>
    %60 = arith.extf %29 : vector<64x32xbf16> to vector<64x32xf32>
    %c0_30 = arith.constant 0 : index
    %c0_31 = arith.constant 0 : index
    %61 = vector.load %arg15[%c0_30, %c0_31] : memref<32x288xbf16, #tpu.memory_space<vmem>>, vector<32x288xbf16>
    %cst_32 = arith.constant dense<0.000000e+00> : vector<64x288xf32>
    %62 = tpu.matmul %59, %61, %cst_32 {dimension_numbers = #tpu.dot_dimension_numbers<[1], [0], [0], [1], [0, 0, 1, 1], [], []>} : vector<64x32xbf16>, vector<32x288xbf16>, vector<64x288xf32> -> vector<64x288xf32>
    %63 = arith.truncf %62 : vector<64x288xf32> to vector<64x288xbf16>
    %64 = vector.extract_strided_slice %63 {offsets = [0, 0], sizes = [64, 32], strides = [1, 1]} : vector<64x288xbf16> to vector<64x32xbf16>
    %c0_33 = arith.constant 0 : index
    %c0_34 = arith.constant 0 : index
    %65 = vector.load %arg21[%c0_33, %c0_34] : memref<1152x32xbf16, #tpu.memory_space<vmem>>, vector<64x32xbf16>
    tpu.vector_store %arg21[%c0_33, %c0_34], %64 {strides = array<i32>} : memref<1152x32xbf16, #tpu.memory_space<vmem>>, vector<64x32xbf16>,
    %66 = vector.extract_strided_slice %63 {offsets = [0, 32], sizes = [64, 32], strides = [1, 1]} : vector<64x288xbf16> to vector<64x32xbf16>
    %c64_35 = arith.constant 64 : index
    %c0_36 = arith.constant 0 : index
    %67 = vector.load %arg21[%c64_35, %c0_36] : memref<1152x32xbf16, #tpu.memory_space<vmem>>, vector<64x32xbf16>
    tpu.vector_store %arg21[%c64_35, %c0_36], %66 {strides = array<i32>} : memref<1152x32xbf16, #tpu.memory_space<vmem>>, vector<64x32xbf16>,
    %68 = vector.extract_strided_slice %63 {offsets = [0, 64], sizes = [64, 32], strides = [1, 1]} : vector<64x288xbf16> to vector<64x32xbf16>
    %c128_37 = arith.constant 128 : index
    %c0_38 = arith.constant 0 : index
    %69 = vector.load %arg21[%c128_37, %c0_38] : memref<1152x32xbf16, #tpu.memory_space<vmem>>, vector<64x32xbf16>
    tpu.vector_store %arg21[%c128_37, %c0_38], %68 {strides = array<i32>} : memref<1152x32xbf16, #tpu.memory_space<vmem>>, vector<64x32xbf16>,
    %70 = vector.extract_strided_slice %63 {offsets = [0, 96], sizes = [64, 32], strides = [1, 1]} : vector<64x288xbf16> to vector<64x32xbf16>
    %c192_39 = arith.constant 192 : index
    %c0_40 = arith.constant 0 : index
    %71 = vector.load %arg21[%c192_39, %c0_40] : memref<1152x32xbf16, #tpu.memory_space<vmem>>, vector<64x32xbf16>
    tpu.vector_store %arg21[%c192_39, %c0_40], %70 {strides = array<i32>} : memref<1152x32xbf16, #tpu.memory_space<vmem>>, vector<64x32xbf16>,
    %72 = vector.extract_strided_slice %63 {offsets = [0, 128], sizes = [64, 32], strides = [1, 1]} : vector<64x288xbf16> to vector<64x32xbf16>
    %c256_41 = arith.constant 256 : index
    %c0_42 = arith.constant 0 : index
    %73 = vector.load %arg21[%c256_41, %c0_42] : memref<1152x32xbf16, #tpu.memory_space<vmem>>, vector<64x32xbf16>
    tpu.vector_store %arg21[%c256_41, %c0_42], %72 {strides = array<i32>} : memref<1152x32xbf16, #tpu.memory_space<vmem>>, vector<64x32xbf16>,
    %74 = vector.extract_strided_slice %63 {offsets = [0, 160], sizes = [64, 32], strides = [1, 1]} : vector<64x288xbf16> to vector<64x32xbf16>
    %c320_43 = arith.constant 320 : index
    %c0_44 = arith.constant 0 : index
    %75 = vector.load %arg21[%c320_43, %c0_44] : memref<1152x32xbf16, #tpu.memory_space<vmem>>, vector<64x32xbf16>
    tpu.vector_store %arg21[%c320_43, %c0_44], %74 {strides = array<i32>} : memref<1152x32xbf16, #tpu.memory_space<vmem>>, vector<64x32xbf16>,
    %76 = vector.extract_strided_slice %63 {offsets = [0, 192], sizes = [64, 32], strides = [1, 1]} : vector<64x288xbf16> to vector<64x32xbf16>
    %c384_45 = arith.constant 384 : index
    %c0_46 = arith.constant 0 : index
    %77 = vector.load %arg21[%c384_45, %c0_46] : memref<1152x32xbf16, #tpu.memory_space<vmem>>, vector<64x32xbf16>
    tpu.vector_store %arg21[%c384_45, %c0_46], %76 {strides = array<i32>} : memref<1152x32xbf16, #tpu.memory_space<vmem>>, vector<64x32xbf16>,
    %78 = vector.extract_strided_slice %63 {offsets = [0, 224], sizes = [64, 32], strides = [1, 1]} : vector<64x288xbf16> to vector<64x32xbf16>
    %c448_47 = arith.constant 448 : index
    %c0_48 = arith.constant 0 : index
    %79 = vector.load %arg21[%c448_47, %c0_48] : memref<1152x32xbf16, #tpu.memory_space<vmem>>, vector<64x32xbf16>
    tpu.vector_store %arg21[%c448_47, %c0_48], %78 {strides = array<i32>} : memref<1152x32xbf16, #tpu.memory_space<vmem>>, vector<64x32xbf16>,
    %80 = vector.extract_strided_slice %63 {offsets = [0, 256], sizes = [64, 32], strides = [1, 1]} : vector<64x288xbf16> to vector<64x32xbf16>
    %c512_49 = arith.constant 512 : index
    %c0_50 = arith.constant 0 : index
    %81 = vector.load %arg21[%c512_49, %c0_50] : memref<1152x32xbf16, #tpu.memory_space<vmem>>, vector<64x32xbf16>
    tpu.vector_store %arg21[%c512_49, %c0_50], %80 {strides = array<i32>} : memref<1152x32xbf16, #tpu.memory_space<vmem>>, vector<64x32xbf16>,
    %c0_51 = arith.constant 0 : index
    %c0_52 = arith.constant 0 : index
    %82 = vector.load %arg4[%c0_51, %c0_52] : memref<64x576xbf16, #tpu.memory_space<vmem>>, vector<64x576xbf16>
    %c0_53 = arith.constant 0 : index
    %c0_54 = arith.constant 0 : index
    %83 = vector.load %arg21[%c0_53, %c0_54] : memref<1152x32xbf16, #tpu.memory_space<vmem>>, vector<576x32xbf16>
    %cst_55 = arith.constant dense<0.000000e+00> : vector<64x32xf32>
    %84 = tpu.matmul %82, %83, %cst_55 {dimension_numbers = #tpu.dot_dimension_numbers<[1], [0], [0], [1], [0, 0, 1, 1], [], []>} : vector<64x576xbf16>, vector<576x32xbf16>, vector<64x32xf32> -> vector<64x32xf32>
    %c0_56 = arith.constant 0 : index
    %c2 = arith.constant 2 : index
    %85 = vector.load %arg13[%c0_56, %c2] : memref<128x10xf32, #tpu.memory_space<vmem>>, vector<64x1xf32>
    %86 = vector.broadcast %85 : vector<64x1xf32> to vector<64x32xf32>
    %87 = arith.addf %84, %86 : vector<64x32xf32>
    %88 = arith.addf %87, %60 : vector<64x32xf32>
    %cst_57 = arith.constant 0.000000e+00 : f32
    %89 = vector.broadcast %cst_57 : f32 to vector<64x32xf32>
    %90 = arith.maximumf %88, %89 : vector<64x32xf32>
    %91 = arith.truncf %90 : vector<64x32xf32> to vector<64x32xbf16>
    %c0_58 = arith.constant 0 : index
    %c0_59 = arith.constant 0 : index
    %92 = vector.load %arg15[%c0_58, %c0_59] : memref<32x288xbf16, #tpu.memory_space<vmem>>, vector<32x288xbf16>
    %cst_60 = arith.constant dense<0.000000e+00> : vector<64x288xf32>
    %93 = tpu.matmul %91, %92, %cst_60 {dimension_numbers = #tpu.dot_dimension_numbers<[1], [0], [0], [1], [0, 0, 1, 1], [], []>} : vector<64x32xbf16>, vector<32x288xbf16>, vector<64x288xf32> -> vector<64x288xf32>
    %94 = arith.truncf %93 : vector<64x288xf32> to vector<64x288xbf16>
    %95 = vector.extract_strided_slice %94 {offsets = [0, 0], sizes = [64, 32], strides = [1, 1]} : vector<64x288xbf16> to vector<64x32xbf16>
    %c0_61 = arith.constant 0 : index
    %c0_62 = arith.constant 0 : index
    %96 = vector.load %arg21[%c0_61, %c0_62] : memref<1152x32xbf16, #tpu.memory_space<vmem>>, vector<64x32xbf16>
    tpu.vector_store %arg21[%c0_61, %c0_62], %95 {strides = array<i32>} : memref<1152x32xbf16, #tpu.memory_space<vmem>>, vector<64x32xbf16>,
    %97 = vector.extract_strided_slice %94 {offsets = [0, 32], sizes = [64, 32], strides = [1, 1]} : vector<64x288xbf16> to vector<64x32xbf16>
    %c64_63 = arith.constant 64 : index
    %c0_64 = arith.constant 0 : index
    %98 = vector.load %arg21[%c64_63, %c0_64] : memref<1152x32xbf16, #tpu.memory_space<vmem>>, vector<64x32xbf16>
    tpu.vector_store %arg21[%c64_63, %c0_64], %97 {strides = array<i32>} : memref<1152x32xbf16, #tpu.memory_space<vmem>>, vector<64x32xbf16>,
    %99 = vector.extract_strided_slice %94 {offsets = [0, 64], sizes = [64, 32], strides = [1, 1]} : vector<64x288xbf16> to vector<64x32xbf16>
    %c128_65 = arith.constant 128 : index
    %c0_66 = arith.constant 0 : index
    %100 = vector.load %arg21[%c128_65, %c0_66] : memref<1152x32xbf16, #tpu.memory_space<vmem>>, vector<64x32xbf16>
    tpu.vector_store %arg21[%c128_65, %c0_66], %99 {strides = array<i32>} : memref<1152x32xbf16, #tpu.memory_space<vmem>>, vector<64x32xbf16>,
    %101 = vector.extract_strided_slice %94 {offsets = [0, 96], sizes = [64, 32], strides = [1, 1]} : vector<64x288xbf16> to vector<64x32xbf16>
    %c192_67 = arith.constant 192 : index
    %c0_68 = arith.constant 0 : index
    %102 = vector.load %arg21[%c192_67, %c0_68] : memref<1152x32xbf16, #tpu.memory_space<vmem>>, vector<64x32xbf16>
    tpu.vector_store %arg21[%c192_67, %c0_68], %101 {strides = array<i32>} : memref<1152x32xbf16, #tpu.memory_space<vmem>>, vector<64x32xbf16>,
    %103 = vector.extract_strided_slice %94 {offsets = [0, 128], sizes = [64, 32], strides = [1, 1]} : vector<64x288xbf16> to vector<64x32xbf16>
    %c256_69 = arith.constant 256 : index
    %c0_70 = arith.constant 0 : index
    %104 = vector.load %arg21[%c256_69, %c0_70] : memref<1152x32xbf16, #tpu.memory_space<vmem>>, vector<64x32xbf16>
    tpu.vector_store %arg21[%c256_69, %c0_70], %103 {strides = array<i32>} : memref<1152x32xbf16, #tpu.memory_space<vmem>>, vector<64x32xbf16>,
    %105 = vector.extract_strided_slice %94 {offsets = [0, 160], sizes = [64, 32], strides = [1, 1]} : vector<64x288xbf16> to vector<64x32xbf16>
    %c320_71 = arith.constant 320 : index
    %c0_72 = arith.constant 0 : index
    %106 = vector.load %arg21[%c320_71, %c0_72] : memref<1152x32xbf16, #tpu.memory_space<vmem>>, vector<64x32xbf16>
    tpu.vector_store %arg21[%c320_71, %c0_72], %105 {strides = array<i32>} : memref<1152x32xbf16, #tpu.memory_space<vmem>>, vector<64x32xbf16>,
    %107 = vector.extract_strided_slice %94 {offsets = [0, 192], sizes = [64, 32], strides = [1, 1]} : vector<64x288xbf16> to vector<64x32xbf16>
    %c384_73 = arith.constant 384 : index
    %c0_74 = arith.constant 0 : index
    %108 = vector.load %arg21[%c384_73, %c0_74] : memref<1152x32xbf16, #tpu.memory_space<vmem>>, vector<64x32xbf16>
    tpu.vector_store %arg21[%c384_73, %c0_74], %107 {strides = array<i32>} : memref<1152x32xbf16, #tpu.memory_space<vmem>>, vector<64x32xbf16>,
    %109 = vector.extract_strided_slice %94 {offsets = [0, 224], sizes = [64, 32], strides = [1, 1]} : vector<64x288xbf16> to vector<64x32xbf16>
    %c448_75 = arith.constant 448 : index
    %c0_76 = arith.constant 0 : index
    %110 = vector.load %arg21[%c448_75, %c0_76] : memref<1152x32xbf16, #tpu.memory_space<vmem>>, vector<64x32xbf16>
    tpu.vector_store %arg21[%c448_75, %c0_76], %109 {strides = array<i32>} : memref<1152x32xbf16, #tpu.memory_space<vmem>>, vector<64x32xbf16>,
    %111 = vector.extract_strided_slice %94 {offsets = [0, 256], sizes = [64, 32], strides = [1, 1]} : vector<64x288xbf16> to vector<64x32xbf16>
    %c512_77 = arith.constant 512 : index
    %c0_78 = arith.constant 0 : index
    %112 = vector.load %arg21[%c512_77, %c0_78] : memref<1152x32xbf16, #tpu.memory_space<vmem>>, vector<64x32xbf16>
    tpu.vector_store %arg21[%c512_77, %c0_78], %111 {strides = array<i32>} : memref<1152x32xbf16, #tpu.memory_space<vmem>>, vector<64x32xbf16>,
    %c0_79 = arith.constant 0 : index
    %c0_80 = arith.constant 0 : index
    %113 = vector.load %arg5[%c0_79, %c0_80] : memref<64x576xbf16, #tpu.memory_space<vmem>>, vector<64x576xbf16>
    %c0_81 = arith.constant 0 : index
    %c0_82 = arith.constant 0 : index
    %114 = vector.load %arg21[%c0_81, %c0_82] : memref<1152x32xbf16, #tpu.memory_space<vmem>>, vector<576x32xbf16>
    %cst_83 = arith.constant dense<0.000000e+00> : vector<64x32xf32>
    %115 = tpu.matmul %113, %114, %cst_83 {dimension_numbers = #tpu.dot_dimension_numbers<[1], [0], [0], [1], [0, 0, 1, 1], [], []>} : vector<64x576xbf16>, vector<576x32xbf16>, vector<64x32xf32> -> vector<64x32xf32>
    %c0_84 = arith.constant 0 : index
    %c3 = arith.constant 3 : index
    %116 = vector.load %arg13[%c0_84, %c3] : memref<128x10xf32, #tpu.memory_space<vmem>>, vector<64x1xf32>
    %117 = vector.broadcast %116 : vector<64x1xf32> to vector<64x32xf32>
    %118 = arith.addf %115, %117 : vector<64x32xf32>
    %cst_85 = arith.constant 0.000000e+00 : f32
    %119 = vector.broadcast %cst_85 : f32 to vector<64x32xf32>
    %120 = arith.maximumf %118, %119 : vector<64x32xf32>
    %121 = arith.truncf %120 : vector<64x32xf32> to vector<64x32xbf16>
    %122 = arith.extf %91 : vector<64x32xbf16> to vector<64x32xf32>
    %c0_86 = arith.constant 0 : index
    %c0_87 = arith.constant 0 : index
    %123 = vector.load %arg15[%c0_86, %c0_87] : memref<32x288xbf16, #tpu.memory_space<vmem>>, vector<32x288xbf16>
    %cst_88 = arith.constant dense<0.000000e+00> : vector<64x288xf32>
    %124 = tpu.matmul %121, %123, %cst_88 {dimension_numbers = #tpu.dot_dimension_numbers<[1], [0], [0], [1], [0, 0, 1, 1], [], []>} : vector<64x32xbf16>, vector<32x288xbf16>, vector<64x288xf32> -> vector<64x288xf32>
    %125 = arith.truncf %124 : vector<64x288xf32> to vector<64x288xbf16>
    %126 = vector.extract_strided_slice %125 {offsets = [0, 0], sizes = [64, 32], strides = [1, 1]} : vector<64x288xbf16> to vector<64x32xbf16>
    %c0_89 = arith.constant 0 : index
    %c0_90 = arith.constant 0 : index
    %127 = vector.load %arg21[%c0_89, %c0_90] : memref<1152x32xbf16, #tpu.memory_space<vmem>>, vector<64x32xbf16>
    tpu.vector_store %arg21[%c0_89, %c0_90], %126 {strides = array<i32>} : memref<1152x32xbf16, #tpu.memory_space<vmem>>, vector<64x32xbf16>,
    %128 = vector.extract_strided_slice %125 {offsets = [0, 32], sizes = [64, 32], strides = [1, 1]} : vector<64x288xbf16> to vector<64x32xbf16>
    %c64_91 = arith.constant 64 : index
    %c0_92 = arith.constant 0 : index
    %129 = vector.load %arg21[%c64_91, %c0_92] : memref<1152x32xbf16, #tpu.memory_space<vmem>>, vector<64x32xbf16>
    tpu.vector_store %arg21[%c64_91, %c0_92], %128 {strides = array<i32>} : memref<1152x32xbf16, #tpu.memory_space<vmem>>, vector<64x32xbf16>,
    %130 = vector.extract_strided_slice %125 {offsets = [0, 64], sizes = [64, 32], strides = [1, 1]} : vector<64x288xbf16> to vector<64x32xbf16>
    %c128_93 = arith.constant 128 : index
    %c0_94 = arith.constant 0 : index
    %131 = vector.load %arg21[%c128_93, %c0_94] : memref<1152x32xbf16, #tpu.memory_space<vmem>>, vector<64x32xbf16>
    tpu.vector_store %arg21[%c128_93, %c0_94], %130 {strides = array<i32>} : memref<1152x32xbf16, #tpu.memory_space<vmem>>, vector<64x32xbf16>,
    %132 = vector.extract_strided_slice %125 {offsets = [0, 96], sizes = [64, 32], strides = [1, 1]} : vector<64x288xbf16> to vector<64x32xbf16>
    %c192_95 = arith.constant 192 : index
    %c0_96 = arith.constant 0 : index
    %133 = vector.load %arg21[%c192_95, %c0_96] : memref<1152x32xbf16, #tpu.memory_space<vmem>>, vector<64x32xbf16>
    tpu.vector_store %arg21[%c192_95, %c0_96], %132 {strides = array<i32>} : memref<1152x32xbf16, #tpu.memory_space<vmem>>, vector<64x32xbf16>,
    %134 = vector.extract_strided_slice %125 {offsets = [0, 128], sizes = [64, 32], strides = [1, 1]} : vector<64x288xbf16> to vector<64x32xbf16>
    %c256_97 = arith.constant 256 : index
    %c0_98 = arith.constant 0 : index
    %135 = vector.load %arg21[%c256_97, %c0_98] : memref<1152x32xbf16, #tpu.memory_space<vmem>>, vector<64x32xbf16>
    tpu.vector_store %arg21[%c256_97, %c0_98], %134 {strides = array<i32>} : memref<1152x32xbf16, #tpu.memory_space<vmem>>, vector<64x32xbf16>,
    %136 = vector.extract_strided_slice %125 {offsets = [0, 160], sizes = [64, 32], strides = [1, 1]} : vector<64x288xbf16> to vector<64x32xbf16>
    %c320_99 = arith.constant 320 : index
    %c0_100 = arith.constant 0 : index
    %137 = vector.load %arg21[%c320_99, %c0_100] : memref<1152x32xbf16, #tpu.memory_space<vmem>>, vector<64x32xbf16>
    tpu.vector_store %arg21[%c320_99, %c0_100], %136 {strides = array<i32>} : memref<1152x32xbf16, #tpu.memory_space<vmem>>, vector<64x32xbf16>,
    %138 = vector.extract_strided_slice %125 {offsets = [0, 192], sizes = [64, 32], strides = [1, 1]} : vector<64x288xbf16> to vector<64x32xbf16>
    %c384_101 = arith.constant 384 : index
    %c0_102 = arith.constant 0 : index
    %139 = vector.load %arg21[%c384_101, %c0_102] : memref<1152x32xbf16, #tpu.memory_space<vmem>>, vector<64x32xbf16>
    tpu.vector_store %arg21[%c384_101, %c0_102], %138 {strides = array<i32>} : memref<1152x32xbf16, #tpu.memory_space<vmem>>, vector<64x32xbf16>,
    %140 = vector.extract_strided_slice %125 {offsets = [0, 224], sizes = [64, 32], strides = [1, 1]} : vector<64x288xbf16> to vector<64x32xbf16>
    %c448_103 = arith.constant 448 : index
    %c0_104 = arith.constant 0 : index
    %141 = vector.load %arg21[%c448_103, %c0_104] : memref<1152x32xbf16, #tpu.memory_space<vmem>>, vector<64x32xbf16>
    tpu.vector_store %arg21[%c448_103, %c0_104], %140 {strides = array<i32>} : memref<1152x32xbf16, #tpu.memory_space<vmem>>, vector<64x32xbf16>,
    %142 = vector.extract_strided_slice %125 {offsets = [0, 256], sizes = [64, 32], strides = [1, 1]} : vector<64x288xbf16> to vector<64x32xbf16>
    %c512_105 = arith.constant 512 : index
    %c0_106 = arith.constant 0 : index
    %143 = vector.load %arg21[%c512_105, %c0_106] : memref<1152x32xbf16, #tpu.memory_space<vmem>>, vector<64x32xbf16>
    tpu.vector_store %arg21[%c512_105, %c0_106], %142 {strides = array<i32>} : memref<1152x32xbf16, #tpu.memory_space<vmem>>, vector<64x32xbf16>,
    %c0_107 = arith.constant 0 : index
    %c0_108 = arith.constant 0 : index
    %144 = vector.load %arg6[%c0_107, %c0_108] : memref<64x576xbf16, #tpu.memory_space<vmem>>, vector<64x576xbf16>
    %c0_109 = arith.constant 0 : index
    %c0_110 = arith.constant 0 : index
    %145 = vector.load %arg21[%c0_109, %c0_110] : memref<1152x32xbf16, #tpu.memory_space<vmem>>, vector<576x32xbf16>
    %cst_111 = arith.constant dense<0.000000e+00> : vector<64x32xf32>
    %146 = tpu.matmul %144, %145, %cst_111 {dimension_numbers = #tpu.dot_dimension_numbers<[1], [0], [0], [1], [0, 0, 1, 1], [], []>} : vector<64x576xbf16>, vector<576x32xbf16>, vector<64x32xf32> -> vector<64x32xf32>
    %c0_112 = arith.constant 0 : index
    %c4 = arith.constant 4 : index
    %147 = vector.load %arg13[%c0_112, %c4] : memref<128x10xf32, #tpu.memory_space<vmem>>, vector<64x1xf32>
    %148 = vector.broadcast %147 : vector<64x1xf32> to vector<64x32xf32>
    %149 = arith.addf %146, %148 : vector<64x32xf32>
    %150 = arith.addf %149, %122 : vector<64x32xf32>
    %cst_113 = arith.constant 0.000000e+00 : f32
    %151 = vector.broadcast %cst_113 : f32 to vector<64x32xf32>
    %152 = arith.maximumf %150, %151 : vector<64x32xf32>
    %153 = arith.truncf %152 : vector<64x32xf32> to vector<64x32xbf16>
    %c0_114 = arith.constant 0 : index
    %c0_115 = arith.constant 0 : index
    %154 = vector.load %arg16[%c0_114, %c0_115] : memref<32x72xbf16, #tpu.memory_space<vmem>>, vector<32x72xbf16>
    %cst_116 = arith.constant dense<0.000000e+00> : vector<64x72xf32>
    %155 = tpu.matmul %153, %154, %cst_116 {dimension_numbers = #tpu.dot_dimension_numbers<[1], [0], [0], [1], [0, 0, 1, 1], [], []>} : vector<64x32xbf16>, vector<32x72xbf16>, vector<64x72xf32> -> vector<64x72xf32>
    %156 = arith.truncf %155 : vector<64x72xf32> to vector<64x72xbf16>
    %157 = vector.extract_strided_slice %156 {offsets = [0, 0], sizes = [64, 8], strides = [1, 1]} : vector<64x72xbf16> to vector<64x8xbf16>
    %c0_117 = arith.constant 0 : index
    %c0_118 = arith.constant 0 : index
    %158 = vector.load %arg21[%c0_117, %c0_118] : memref<1152x32xbf16, #tpu.memory_space<vmem>>, vector<64x8xbf16>
    tpu.vector_store %arg21[%c0_117, %c0_118], %157 {strides = array<i32>} : memref<1152x32xbf16, #tpu.memory_space<vmem>>, vector<64x8xbf16>,
    %159 = vector.extract_strided_slice %156 {offsets = [0, 8], sizes = [64, 8], strides = [1, 1]} : vector<64x72xbf16> to vector<64x8xbf16>
    %c64_119 = arith.constant 64 : index
    %c0_120 = arith.constant 0 : index
    %160 = vector.load %arg21[%c64_119, %c0_120] : memref<1152x32xbf16, #tpu.memory_space<vmem>>, vector<64x8xbf16>
    tpu.vector_store %arg21[%c64_119, %c0_120], %159 {strides = array<i32>} : memref<1152x32xbf16, #tpu.memory_space<vmem>>, vector<64x8xbf16>,
    %161 = vector.extract_strided_slice %156 {offsets = [0, 16], sizes = [64, 8], strides = [1, 1]} : vector<64x72xbf16> to vector<64x8xbf16>
    %c128_121 = arith.constant 128 : index
    %c0_122 = arith.constant 0 : index
    %162 = vector.load %arg21[%c128_121, %c0_122] : memref<1152x32xbf16, #tpu.memory_space<vmem>>, vector<64x8xbf16>
    tpu.vector_store %arg21[%c128_121, %c0_122], %161 {strides = array<i32>} : memref<1152x32xbf16, #tpu.memory_space<vmem>>, vector<64x8xbf16>,
    %163 = vector.extract_strided_slice %156 {offsets = [0, 24], sizes = [64, 8], strides = [1, 1]} : vector<64x72xbf16> to vector<64x8xbf16>
    %c192_123 = arith.constant 192 : index
    %c0_124 = arith.constant 0 : index
    %164 = vector.load %arg21[%c192_123, %c0_124] : memref<1152x32xbf16, #tpu.memory_space<vmem>>, vector<64x8xbf16>
    tpu.vector_store %arg21[%c192_123, %c0_124], %163 {strides = array<i32>} : memref<1152x32xbf16, #tpu.memory_space<vmem>>, vector<64x8xbf16>,
    %165 = vector.extract_strided_slice %156 {offsets = [0, 32], sizes = [64, 8], strides = [1, 1]} : vector<64x72xbf16> to vector<64x8xbf16>
    %c256_125 = arith.constant 256 : index
    %c0_126 = arith.constant 0 : index
    %166 = vector.load %arg21[%c256_125, %c0_126] : memref<1152x32xbf16, #tpu.memory_space<vmem>>, vector<64x8xbf16>
    tpu.vector_store %arg21[%c256_125, %c0_126], %165 {strides = array<i32>} : memref<1152x32xbf16, #tpu.memory_space<vmem>>, vector<64x8xbf16>,
    %167 = vector.extract_strided_slice %156 {offsets = [0, 40], sizes = [64, 8], strides = [1, 1]} : vector<64x72xbf16> to vector<64x8xbf16>
    %c320_127 = arith.constant 320 : index
    %c0_128 = arith.constant 0 : index
    %168 = vector.load %arg21[%c320_127, %c0_128] : memref<1152x32xbf16, #tpu.memory_space<vmem>>, vector<64x8xbf16>
    tpu.vector_store %arg21[%c320_127, %c0_128], %167 {strides = array<i32>} : memref<1152x32xbf16, #tpu.memory_space<vmem>>, vector<64x8xbf16>,
    %169 = vector.extract_strided_slice %156 {offsets = [0, 48], sizes = [64, 8], strides = [1, 1]} : vector<64x72xbf16> to vector<64x8xbf16>
    %c384_129 = arith.constant 384 : index
    %c0_130 = arith.constant 0 : index
    %170 = vector.load %arg21[%c384_129, %c0_130] : memref<1152x32xbf16, #tpu.memory_space<vmem>>, vector<64x8xbf16>
    tpu.vector_store %arg21[%c384_129, %c0_130], %169 {strides = array<i32>} : memref<1152x32xbf16, #tpu.memory_space<vmem>>, vector<64x8xbf16>,
    %171 = vector.extract_strided_slice %156 {offsets = [0, 56], sizes = [64, 8], strides = [1, 1]} : vector<64x72xbf16> to vector<64x8xbf16>
    %c448_131 = arith.constant 448 : index
    %c0_132 = arith.constant 0 : index
    %172 = vector.load %arg21[%c448_131, %c0_132] : memref<1152x32xbf16, #tpu.memory_space<vmem>>, vector<64x8xbf16>
    tpu.vector_store %arg21[%c448_131, %c0_132], %171 {strides = array<i32>} : memref<1152x32xbf16, #tpu.memory_space<vmem>>, vector<64x8xbf16>,
    %173 = vector.extract_strided_slice %156 {offsets = [0, 64], sizes = [64, 8], strides = [1, 1]} : vector<64x72xbf16> to vector<64x8xbf16>
    %c512_133 = arith.constant 512 : index
    %c0_134 = arith.constant 0 : index
    %174 = vector.load %arg21[%c512_133, %c0_134] : memref<1152x32xbf16, #tpu.memory_space<vmem>>, vector<64x8xbf16>
    tpu.vector_store %arg21[%c512_133, %c0_134], %173 {strides = array<i32>} : memref<1152x32xbf16, #tpu.memory_space<vmem>>, vector<64x8xbf16>,
    %c0_135 = arith.constant 0 : index
    %c0_136 = arith.constant 0 : index
    %175 = vector.load %arg7[%c0_135, %c0_136] : memref<128x576xbf16, #tpu.memory_space<vmem>>, vector<128x576xbf16>
    %c0_137 = arith.constant 0 : index
    %c0_138 = arith.constant 0 : index
    %176 = vector.load %arg21[%c0_137, %c0_138] : memref<1152x32xbf16, #tpu.memory_space<vmem>>, vector<576x8xbf16>
    %cst_139 = arith.constant dense<0.000000e+00> : vector<128x8xf32>
    %177 = tpu.matmul %175, %176, %cst_139 {dimension_numbers = #tpu.dot_dimension_numbers<[1], [0], [0], [1], [0, 0, 1, 1], [], []>} : vector<128x576xbf16>, vector<576x8xbf16>, vector<128x8xf32> -> vector<128x8xf32>
    %c0_140 = arith.constant 0 : index
    %c5 = arith.constant 5 : index
    %178 = vector.load %arg13[%c0_140, %c5] : memref<128x10xf32, #tpu.memory_space<vmem>>, vector<128x1xf32>
    %179 = vector.broadcast %178 : vector<128x1xf32> to vector<128x8xf32>
    %180 = arith.addf %177, %179 : vector<128x8xf32>
    %cst_141 = arith.constant 0.000000e+00 : f32
    %181 = vector.broadcast %cst_141 : f32 to vector<128x8xf32>
    %182 = arith.maximumf %180, %181 : vector<128x8xf32>
    %183 = arith.truncf %182 : vector<128x8xf32> to vector<128x8xbf16>
    %c0_142 = arith.constant 0 : index
    %c0_143 = arith.constant 0 : index
    %184 = vector.load %arg17[%c0_142, %c0_143] : memref<32x8xbf16, #tpu.memory_space<vmem>>, vector<32x8xbf16>
    %cst_144 = arith.constant dense<0.000000e+00> : vector<64x8xf32>
    %185 = tpu.matmul %153, %184, %cst_144 {dimension_numbers = #tpu.dot_dimension_numbers<[1], [0], [0], [1], [0, 0, 1, 1], [], []>} : vector<64x32xbf16>, vector<32x8xbf16>, vector<64x8xf32> -> vector<64x8xf32>
    %186 = arith.truncf %185 : vector<64x8xf32> to vector<64x8xbf16>
    %c0_145 = arith.constant 0 : index
    %c0_146 = arith.constant 0 : index
    %187 = vector.load %arg21[%c0_145, %c0_146] : memref<1152x32xbf16, #tpu.memory_space<vmem>>, vector<64x8xbf16>
    tpu.vector_store %arg21[%c0_145, %c0_146], %186 {strides = array<i32>} : memref<1152x32xbf16, #tpu.memory_space<vmem>>, vector<64x8xbf16>,
    %c0_147 = arith.constant 0 : index
    %c0_148 = arith.constant 0 : index
    %188 = vector.load %arg8[%c0_147, %c0_148] : memref<128x64xbf16, #tpu.memory_space<vmem>>, vector<128x64xbf16>
    %c0_149 = arith.constant 0 : index
    %c0_150 = arith.constant 0 : index
    %189 = vector.load %arg21[%c0_149, %c0_150] : memref<1152x32xbf16, #tpu.memory_space<vmem>>, vector<64x8xbf16>
    %cst_151 = arith.constant dense<0.000000e+00> : vector<128x8xf32>
    %190 = tpu.matmul %188, %189, %cst_151 {dimension_numbers = #tpu.dot_dimension_numbers<[1], [0], [0], [1], [0, 0, 1, 1], [], []>} : vector<128x64xbf16>, vector<64x8xbf16>, vector<128x8xf32> -> vector<128x8xf32>
    %c0_152 = arith.constant 0 : index
    %c6 = arith.constant 6 : index
    %191 = vector.load %arg13[%c0_152, %c6] : memref<128x10xf32, #tpu.memory_space<vmem>>, vector<128x1xf32>
    %192 = vector.broadcast %191 : vector<128x1xf32> to vector<128x8xf32>
    %193 = arith.addf %190, %192 : vector<128x8xf32>
    %c0_153 = arith.constant 0 : index
    %c0_154 = arith.constant 0 : index
    %194 = vector.load %arg18[%c0_153, %c0_154] : memref<8x72xbf16, #tpu.memory_space<vmem>>, vector<8x72xbf16>
    %cst_155 = arith.constant dense<0.000000e+00> : vector<128x72xf32>
    %195 = tpu.matmul %183, %194, %cst_155 {dimension_numbers = #tpu.dot_dimension_numbers<[1], [0], [0], [1], [0, 0, 1, 1], [], []>} : vector<128x8xbf16>, vector<8x72xbf16>, vector<128x72xf32> -> vector<128x72xf32>
    %196 = arith.truncf %195 : vector<128x72xf32> to vector<128x72xbf16>
    %197 = vector.extract_strided_slice %196 {offsets = [0, 0], sizes = [128, 8], strides = [1, 1]} : vector<128x72xbf16> to vector<128x8xbf16>
    %c0_156 = arith.constant 0 : index
    %c0_157 = arith.constant 0 : index
    %198 = vector.load %arg21[%c0_156, %c0_157] : memref<1152x32xbf16, #tpu.memory_space<vmem>>, vector<128x8xbf16>
    tpu.vector_store %arg21[%c0_156, %c0_157], %197 {strides = array<i32>} : memref<1152x32xbf16, #tpu.memory_space<vmem>>, vector<128x8xbf16>,
    %199 = vector.extract_strided_slice %196 {offsets = [0, 8], sizes = [128, 8], strides = [1, 1]} : vector<128x72xbf16> to vector<128x8xbf16>
    %c128_158 = arith.constant 128 : index
    %c0_159 = arith.constant 0 : index
    %200 = vector.load %arg21[%c128_158, %c0_159] : memref<1152x32xbf16, #tpu.memory_space<vmem>>, vector<128x8xbf16>
    tpu.vector_store %arg21[%c128_158, %c0_159], %199 {strides = array<i32>} : memref<1152x32xbf16, #tpu.memory_space<vmem>>, vector<128x8xbf16>,
    %201 = vector.extract_strided_slice %196 {offsets = [0, 16], sizes = [128, 8], strides = [1, 1]} : vector<128x72xbf16> to vector<128x8xbf16>
    %c256_160 = arith.constant 256 : index
    %c0_161 = arith.constant 0 : index
    %202 = vector.load %arg21[%c256_160, %c0_161] : memref<1152x32xbf16, #tpu.memory_space<vmem>>, vector<128x8xbf16>
    tpu.vector_store %arg21[%c256_160, %c0_161], %201 {strides = array<i32>} : memref<1152x32xbf16, #tpu.memory_space<vmem>>, vector<128x8xbf16>,
    %203 = vector.extract_strided_slice %196 {offsets = [0, 24], sizes = [128, 8], strides = [1, 1]} : vector<128x72xbf16> to vector<128x8xbf16>
    %c384_162 = arith.constant 384 : index
    %c0_163 = arith.constant 0 : index
    %204 = vector.load %arg21[%c384_162, %c0_163] : memref<1152x32xbf16, #tpu.memory_space<vmem>>, vector<128x8xbf16>
    tpu.vector_store %arg21[%c384_162, %c0_163], %203 {strides = array<i32>} : memref<1152x32xbf16, #tpu.memory_space<vmem>>, vector<128x8xbf16>,
    %205 = vector.extract_strided_slice %196 {offsets = [0, 32], sizes = [128, 8], strides = [1, 1]} : vector<128x72xbf16> to vector<128x8xbf16>
    %c512_164 = arith.constant 512 : index
    %c0_165 = arith.constant 0 : index
    %206 = vector.load %arg21[%c512_164, %c0_165] : memref<1152x32xbf16, #tpu.memory_space<vmem>>, vector<128x8xbf16>
    tpu.vector_store %arg21[%c512_164, %c0_165], %205 {strides = array<i32>} : memref<1152x32xbf16, #tpu.memory_space<vmem>>, vector<128x8xbf16>,
    %207 = vector.extract_strided_slice %196 {offsets = [0, 40], sizes = [128, 8], strides = [1, 1]} : vector<128x72xbf16> to vector<128x8xbf16>
    %c640 = arith.constant 640 : index
    %c0_166 = arith.constant 0 : index
    %208 = vector.load %arg21[%c640, %c0_166] : memref<1152x32xbf16, #tpu.memory_space<vmem>>, vector<128x8xbf16>
    tpu.vector_store %arg21[%c640, %c0_166], %207 {strides = array<i32>} : memref<1152x32xbf16, #tpu.memory_space<vmem>>, vector<128x8xbf16>,
    %209 = vector.extract_strided_slice %196 {offsets = [0, 48], sizes = [128, 8], strides = [1, 1]} : vector<128x72xbf16> to vector<128x8xbf16>
    %c768 = arith.constant 768 : index
    %c0_167 = arith.constant 0 : index
    %210 = vector.load %arg21[%c768, %c0_167] : memref<1152x32xbf16, #tpu.memory_space<vmem>>, vector<128x8xbf16>
    tpu.vector_store %arg21[%c768, %c0_167], %209 {strides = array<i32>} : memref<1152x32xbf16, #tpu.memory_space<vmem>>, vector<128x8xbf16>,
    %211 = vector.extract_strided_slice %196 {offsets = [0, 56], sizes = [128, 8], strides = [1, 1]} : vector<128x72xbf16> to vector<128x8xbf16>
    %c896 = arith.constant 896 : index
    %c0_168 = arith.constant 0 : index
    %212 = vector.load %arg21[%c896, %c0_168] : memref<1152x32xbf16, #tpu.memory_space<vmem>>, vector<128x8xbf16>
    tpu.vector_store %arg21[%c896, %c0_168], %211 {strides = array<i32>} : memref<1152x32xbf16, #tpu.memory_space<vmem>>, vector<128x8xbf16>,
    %213 = vector.extract_strided_slice %196 {offsets = [0, 64], sizes = [128, 8], strides = [1, 1]} : vector<128x72xbf16> to vector<128x8xbf16>
    %c1024 = arith.constant 1024 : index
    %c0_169 = arith.constant 0 : index
    %214 = vector.load %arg21[%c1024, %c0_169] : memref<1152x32xbf16, #tpu.memory_space<vmem>>, vector<128x8xbf16>
    tpu.vector_store %arg21[%c1024, %c0_169], %213 {strides = array<i32>} : memref<1152x32xbf16, #tpu.memory_space<vmem>>, vector<128x8xbf16>,
    %c0_170 = arith.constant 0 : index
    %c0_171 = arith.constant 0 : index
    %215 = vector.load %arg9[%c0_170, %c0_171] : memref<128x1152xbf16, #tpu.memory_space<vmem>>, vector<128x1152xbf16>
    %c0_172 = arith.constant 0 : index
    %c0_173 = arith.constant 0 : index
    %216 = vector.load %arg21[%c0_172, %c0_173] : memref<1152x32xbf16, #tpu.memory_space<vmem>>, vector<1152x8xbf16>
    %cst_174 = arith.constant dense<0.000000e+00> : vector<128x8xf32>
    %217 = tpu.matmul %215, %216, %cst_174 {dimension_numbers = #tpu.dot_dimension_numbers<[1], [0], [0], [1], [0, 0, 1, 1], [], []>} : vector<128x1152xbf16>, vector<1152x8xbf16>, vector<128x8xf32> -> vector<128x8xf32>
    %c0_175 = arith.constant 0 : index
    %c7 = arith.constant 7 : index
    %218 = vector.load %arg13[%c0_175, %c7] : memref<128x10xf32, #tpu.memory_space<vmem>>, vector<128x1xf32>
    %219 = vector.broadcast %218 : vector<128x1xf32> to vector<128x8xf32>
    %220 = arith.addf %217, %219 : vector<128x8xf32>
    %221 = arith.addf %220, %193 : vector<128x8xf32>
    %cst_176 = arith.constant 0.000000e+00 : f32
    %222 = vector.broadcast %cst_176 : f32 to vector<128x8xf32>
    %223 = arith.maximumf %221, %222 : vector<128x8xf32>
    %224 = arith.truncf %223 : vector<128x8xf32> to vector<128x8xbf16>
    %c0_177 = arith.constant 0 : index
    %c0_178 = arith.constant 0 : index
    %225 = vector.load %arg18[%c0_177, %c0_178] : memref<8x72xbf16, #tpu.memory_space<vmem>>, vector<8x72xbf16>
    %cst_179 = arith.constant dense<0.000000e+00> : vector<128x72xf32>
    %226 = tpu.matmul %224, %225, %cst_179 {dimension_numbers = #tpu.dot_dimension_numbers<[1], [0], [0], [1], [0, 0, 1, 1], [], []>} : vector<128x8xbf16>, vector<8x72xbf16>, vector<128x72xf32> -> vector<128x72xf32>
    %227 = arith.truncf %226 : vector<128x72xf32> to vector<128x72xbf16>
    %228 = vector.extract_strided_slice %227 {offsets = [0, 0], sizes = [128, 8], strides = [1, 1]} : vector<128x72xbf16> to vector<128x8xbf16>
    %c0_180 = arith.constant 0 : index
    %c0_181 = arith.constant 0 : index
    %229 = vector.load %arg21[%c0_180, %c0_181] : memref<1152x32xbf16, #tpu.memory_space<vmem>>, vector<128x8xbf16>
    tpu.vector_store %arg21[%c0_180, %c0_181], %228 {strides = array<i32>} : memref<1152x32xbf16, #tpu.memory_space<vmem>>, vector<128x8xbf16>,
    %230 = vector.extract_strided_slice %227 {offsets = [0, 8], sizes = [128, 8], strides = [1, 1]} : vector<128x72xbf16> to vector<128x8xbf16>
    %c128_182 = arith.constant 128 : index
    %c0_183 = arith.constant 0 : index
    %231 = vector.load %arg21[%c128_182, %c0_183] : memref<1152x32xbf16, #tpu.memory_space<vmem>>, vector<128x8xbf16>
    tpu.vector_store %arg21[%c128_182, %c0_183], %230 {strides = array<i32>} : memref<1152x32xbf16, #tpu.memory_space<vmem>>, vector<128x8xbf16>,
    %232 = vector.extract_strided_slice %227 {offsets = [0, 16], sizes = [128, 8], strides = [1, 1]} : vector<128x72xbf16> to vector<128x8xbf16>
    %c256_184 = arith.constant 256 : index
    %c0_185 = arith.constant 0 : index
    %233 = vector.load %arg21[%c256_184, %c0_185] : memref<1152x32xbf16, #tpu.memory_space<vmem>>, vector<128x8xbf16>
    tpu.vector_store %arg21[%c256_184, %c0_185], %232 {strides = array<i32>} : memref<1152x32xbf16, #tpu.memory_space<vmem>>, vector<128x8xbf16>,
    %234 = vector.extract_strided_slice %227 {offsets = [0, 24], sizes = [128, 8], strides = [1, 1]} : vector<128x72xbf16> to vector<128x8xbf16>
    %c384_186 = arith.constant 384 : index
    %c0_187 = arith.constant 0 : index
    %235 = vector.load %arg21[%c384_186, %c0_187] : memref<1152x32xbf16, #tpu.memory_space<vmem>>, vector<128x8xbf16>
    tpu.vector_store %arg21[%c384_186, %c0_187], %234 {strides = array<i32>} : memref<1152x32xbf16, #tpu.memory_space<vmem>>, vector<128x8xbf16>,
    %236 = vector.extract_strided_slice %227 {offsets = [0, 32], sizes = [128, 8], strides = [1, 1]} : vector<128x72xbf16> to vector<128x8xbf16>
    %c512_188 = arith.constant 512 : index
    %c0_189 = arith.constant 0 : index
    %237 = vector.load %arg21[%c512_188, %c0_189] : memref<1152x32xbf16, #tpu.memory_space<vmem>>, vector<128x8xbf16>
    tpu.vector_store %arg21[%c512_188, %c0_189], %236 {strides = array<i32>} : memref<1152x32xbf16, #tpu.memory_space<vmem>>, vector<128x8xbf16>,
    %238 = vector.extract_strided_slice %227 {offsets = [0, 40], sizes = [128, 8], strides = [1, 1]} : vector<128x72xbf16> to vector<128x8xbf16>
    %c640_190 = arith.constant 640 : index
    %c0_191 = arith.constant 0 : index
    %239 = vector.load %arg21[%c640_190, %c0_191] : memref<1152x32xbf16, #tpu.memory_space<vmem>>, vector<128x8xbf16>
    tpu.vector_store %arg21[%c640_190, %c0_191], %238 {strides = array<i32>} : memref<1152x32xbf16, #tpu.memory_space<vmem>>, vector<128x8xbf16>,
    %240 = vector.extract_strided_slice %227 {offsets = [0, 48], sizes = [128, 8], strides = [1, 1]} : vector<128x72xbf16> to vector<128x8xbf16>
    %c768_192 = arith.constant 768 : index
    %c0_193 = arith.constant 0 : index
    %241 = vector.load %arg21[%c768_192, %c0_193] : memref<1152x32xbf16, #tpu.memory_space<vmem>>, vector<128x8xbf16>
    tpu.vector_store %arg21[%c768_192, %c0_193], %240 {strides = array<i32>} : memref<1152x32xbf16, #tpu.memory_space<vmem>>, vector<128x8xbf16>,
    %242 = vector.extract_strided_slice %227 {offsets = [0, 56], sizes = [128, 8], strides = [1, 1]} : vector<128x72xbf16> to vector<128x8xbf16>
    %c896_194 = arith.constant 896 : index
    %c0_195 = arith.constant 0 : index
    %243 = vector.load %arg21[%c896_194, %c0_195] : memref<1152x32xbf16, #tpu.memory_space<vmem>>, vector<128x8xbf16>
    tpu.vector_store %arg21[%c896_194, %c0_195], %242 {strides = array<i32>} : memref<1152x32xbf16, #tpu.memory_space<vmem>>, vector<128x8xbf16>,
    %244 = vector.extract_strided_slice %227 {offsets = [0, 64], sizes = [128, 8], strides = [1, 1]} : vector<128x72xbf16> to vector<128x8xbf16>
    %c1024_196 = arith.constant 1024 : index
    %c0_197 = arith.constant 0 : index
    %245 = vector.load %arg21[%c1024_196, %c0_197] : memref<1152x32xbf16, #tpu.memory_space<vmem>>, vector<128x8xbf16>
    tpu.vector_store %arg21[%c1024_196, %c0_197], %244 {strides = array<i32>} : memref<1152x32xbf16, #tpu.memory_space<vmem>>, vector<128x8xbf16>,
    %c0_198 = arith.constant 0 : index
    %c0_199 = arith.constant 0 : index
    %246 = vector.load %arg10[%c0_198, %c0_199] : memref<128x1152xbf16, #tpu.memory_space<vmem>>, vector<128x1152xbf16>
    %c0_200 = arith.constant 0 : index
    %c0_201 = arith.constant 0 : index
    %247 = vector.load %arg21[%c0_200, %c0_201] : memref<1152x32xbf16, #tpu.memory_space<vmem>>, vector<1152x8xbf16>
    %cst_202 = arith.constant dense<0.000000e+00> : vector<128x8xf32>
    %248 = tpu.matmul %246, %247, %cst_202 {dimension_numbers = #tpu.dot_dimension_numbers<[1], [0], [0], [1], [0, 0, 1, 1], [], []>} : vector<128x1152xbf16>, vector<1152x8xbf16>, vector<128x8xf32> -> vector<128x8xf32>
    %c0_203 = arith.constant 0 : index
    %c8 = arith.constant 8 : index
    %249 = vector.load %arg13[%c0_203, %c8] : memref<128x10xf32, #tpu.memory_space<vmem>>, vector<128x1xf32>
    %250 = vector.broadcast %249 : vector<128x1xf32> to vector<128x8xf32>
    %251 = arith.addf %248, %250 : vector<128x8xf32>
    %cst_204 = arith.constant 0.000000e+00 : f32
    %252 = vector.broadcast %cst_204 : f32 to vector<128x8xf32>
    %253 = arith.maximumf %251, %252 : vector<128x8xf32>
    %254 = arith.truncf %253 : vector<128x8xf32> to vector<128x8xbf16>
    %255 = arith.extf %224 : vector<128x8xbf16> to vector<128x8xf32>
    %c0_205 = arith.constant 0 : index
    %c0_206 = arith.constant 0 : index
    %256 = vector.load %arg18[%c0_205, %c0_206] : memref<8x72xbf16, #tpu.memory_space<vmem>>, vector<8x72xbf16>
    %cst_207 = arith.constant dense<0.000000e+00> : vector<128x72xf32>
    %257 = tpu.matmul %254, %256, %cst_207 {dimension_numbers = #tpu.dot_dimension_numbers<[1], [0], [0], [1], [0, 0, 1, 1], [], []>} : vector<128x8xbf16>, vector<8x72xbf16>, vector<128x72xf32> -> vector<128x72xf32>
    %258 = arith.truncf %257 : vector<128x72xf32> to vector<128x72xbf16>
    %259 = vector.extract_strided_slice %258 {offsets = [0, 0], sizes = [128, 8], strides = [1, 1]} : vector<128x72xbf16> to vector<128x8xbf16>
    %c0_208 = arith.constant 0 : index
    %c0_209 = arith.constant 0 : index
    %260 = vector.load %arg21[%c0_208, %c0_209] : memref<1152x32xbf16, #tpu.memory_space<vmem>>, vector<128x8xbf16>
    tpu.vector_store %arg21[%c0_208, %c0_209], %259 {strides = array<i32>} : memref<1152x32xbf16, #tpu.memory_space<vmem>>, vector<128x8xbf16>,
    %261 = vector.extract_strided_slice %258 {offsets = [0, 8], sizes = [128, 8], strides = [1, 1]} : vector<128x72xbf16> to vector<128x8xbf16>
    %c128_210 = arith.constant 128 : index
    %c0_211 = arith.constant 0 : index
    %262 = vector.load %arg21[%c128_210, %c0_211] : memref<1152x32xbf16, #tpu.memory_space<vmem>>, vector<128x8xbf16>
    tpu.vector_store %arg21[%c128_210, %c0_211], %261 {strides = array<i32>} : memref<1152x32xbf16, #tpu.memory_space<vmem>>, vector<128x8xbf16>,
    %263 = vector.extract_strided_slice %258 {offsets = [0, 16], sizes = [128, 8], strides = [1, 1]} : vector<128x72xbf16> to vector<128x8xbf16>
    %c256_212 = arith.constant 256 : index
    %c0_213 = arith.constant 0 : index
    %264 = vector.load %arg21[%c256_212, %c0_213] : memref<1152x32xbf16, #tpu.memory_space<vmem>>, vector<128x8xbf16>
    tpu.vector_store %arg21[%c256_212, %c0_213], %263 {strides = array<i32>} : memref<1152x32xbf16, #tpu.memory_space<vmem>>, vector<128x8xbf16>,
    %265 = vector.extract_strided_slice %258 {offsets = [0, 24], sizes = [128, 8], strides = [1, 1]} : vector<128x72xbf16> to vector<128x8xbf16>
    %c384_214 = arith.constant 384 : index
    %c0_215 = arith.constant 0 : index
    %266 = vector.load %arg21[%c384_214, %c0_215] : memref<1152x32xbf16, #tpu.memory_space<vmem>>, vector<128x8xbf16>
    tpu.vector_store %arg21[%c384_214, %c0_215], %265 {strides = array<i32>} : memref<1152x32xbf16, #tpu.memory_space<vmem>>, vector<128x8xbf16>,
    %267 = vector.extract_strided_slice %258 {offsets = [0, 32], sizes = [128, 8], strides = [1, 1]} : vector<128x72xbf16> to vector<128x8xbf16>
    %c512_216 = arith.constant 512 : index
    %c0_217 = arith.constant 0 : index
    %268 = vector.load %arg21[%c512_216, %c0_217] : memref<1152x32xbf16, #tpu.memory_space<vmem>>, vector<128x8xbf16>
    tpu.vector_store %arg21[%c512_216, %c0_217], %267 {strides = array<i32>} : memref<1152x32xbf16, #tpu.memory_space<vmem>>, vector<128x8xbf16>,
    %269 = vector.extract_strided_slice %258 {offsets = [0, 40], sizes = [128, 8], strides = [1, 1]} : vector<128x72xbf16> to vector<128x8xbf16>
    %c640_218 = arith.constant 640 : index
    %c0_219 = arith.constant 0 : index
    %270 = vector.load %arg21[%c640_218, %c0_219] : memref<1152x32xbf16, #tpu.memory_space<vmem>>, vector<128x8xbf16>
    tpu.vector_store %arg21[%c640_218, %c0_219], %269 {strides = array<i32>} : memref<1152x32xbf16, #tpu.memory_space<vmem>>, vector<128x8xbf16>,
    %271 = vector.extract_strided_slice %258 {offsets = [0, 48], sizes = [128, 8], strides = [1, 1]} : vector<128x72xbf16> to vector<128x8xbf16>
    %c768_220 = arith.constant 768 : index
    %c0_221 = arith.constant 0 : index
    %272 = vector.load %arg21[%c768_220, %c0_221] : memref<1152x32xbf16, #tpu.memory_space<vmem>>, vector<128x8xbf16>
    tpu.vector_store %arg21[%c768_220, %c0_221], %271 {strides = array<i32>} : memref<1152x32xbf16, #tpu.memory_space<vmem>>, vector<128x8xbf16>,
    %273 = vector.extract_strided_slice %258 {offsets = [0, 56], sizes = [128, 8], strides = [1, 1]} : vector<128x72xbf16> to vector<128x8xbf16>
    %c896_222 = arith.constant 896 : index
    %c0_223 = arith.constant 0 : index
    %274 = vector.load %arg21[%c896_222, %c0_223] : memref<1152x32xbf16, #tpu.memory_space<vmem>>, vector<128x8xbf16>
    tpu.vector_store %arg21[%c896_222, %c0_223], %273 {strides = array<i32>} : memref<1152x32xbf16, #tpu.memory_space<vmem>>, vector<128x8xbf16>,
    %275 = vector.extract_strided_slice %258 {offsets = [0, 64], sizes = [128, 8], strides = [1, 1]} : vector<128x72xbf16> to vector<128x8xbf16>
    %c1024_224 = arith.constant 1024 : index
    %c0_225 = arith.constant 0 : index
    %276 = vector.load %arg21[%c1024_224, %c0_225] : memref<1152x32xbf16, #tpu.memory_space<vmem>>, vector<128x8xbf16>
    tpu.vector_store %arg21[%c1024_224, %c0_225], %275 {strides = array<i32>} : memref<1152x32xbf16, #tpu.memory_space<vmem>>, vector<128x8xbf16>,
    %c0_226 = arith.constant 0 : index
    %c0_227 = arith.constant 0 : index
    %277 = vector.load %arg11[%c0_226, %c0_227] : memref<128x1152xbf16, #tpu.memory_space<vmem>>, vector<128x1152xbf16>
    %c0_228 = arith.constant 0 : index
    %c0_229 = arith.constant 0 : index
    %278 = vector.load %arg21[%c0_228, %c0_229] : memref<1152x32xbf16, #tpu.memory_space<vmem>>, vector<1152x8xbf16>
    %cst_230 = arith.constant dense<0.000000e+00> : vector<128x8xf32>
    %279 = tpu.matmul %277, %278, %cst_230 {dimension_numbers = #tpu.dot_dimension_numbers<[1], [0], [0], [1], [0, 0, 1, 1], [], []>} : vector<128x1152xbf16>, vector<1152x8xbf16>, vector<128x8xf32> -> vector<128x8xf32>
    %c0_231 = arith.constant 0 : index
    %c9 = arith.constant 9 : index
    %280 = vector.load %arg13[%c0_231, %c9] : memref<128x10xf32, #tpu.memory_space<vmem>>, vector<128x1xf32>
    %281 = vector.broadcast %280 : vector<128x1xf32> to vector<128x8xf32>
    %282 = arith.addf %279, %281 : vector<128x8xf32>
    %283 = arith.addf %282, %255 : vector<128x8xf32>
    %cst_232 = arith.constant 0.000000e+00 : f32
    %284 = vector.broadcast %cst_232 : f32 to vector<128x8xf32>
    %285 = arith.maximumf %283, %284 : vector<128x8xf32>
    %286 = arith.truncf %285 : vector<128x8xf32> to vector<128x8xbf16>
    %c0_233 = arith.constant 0 : index
    %c0_234 = arith.constant 0 : index
    %287 = vector.load %arg19[%c0_233, %c0_234] : memref<8x18xbf16, #tpu.memory_space<vmem>>, vector<8x18xbf16>
    %cst_235 = arith.constant dense<0.000000e+00> : vector<128x18xf32>
    %288 = tpu.matmul %286, %287, %cst_235 {dimension_numbers = #tpu.dot_dimension_numbers<[1], [0], [0], [1], [0, 0, 1, 1], [], []>} : vector<128x8xbf16>, vector<8x18xbf16>, vector<128x18xf32> -> vector<128x18xf32>
    %289 = arith.truncf %288 : vector<128x18xf32> to vector<128x18xbf16>
    %290 = vector.extract_strided_slice %289 {offsets = [0, 0], sizes = [128, 2], strides = [1, 1]} : vector<128x18xbf16> to vector<128x2xbf16>
    %c0_236 = arith.constant 0 : index
    %c0_237 = arith.constant 0 : index
    %291 = vector.load %arg21[%c0_236, %c0_237] : memref<1152x32xbf16, #tpu.memory_space<vmem>>, vector<128x2xbf16>
    tpu.vector_store %arg21[%c0_236, %c0_237], %290 {strides = array<i32>} : memref<1152x32xbf16, #tpu.memory_space<vmem>>, vector<128x2xbf16>,
    %292 = vector.extract_strided_slice %289 {offsets = [0, 2], sizes = [128, 2], strides = [1, 1]} : vector<128x18xbf16> to vector<128x2xbf16>
    %c128_238 = arith.constant 128 : index
    %c0_239 = arith.constant 0 : index
    %293 = vector.load %arg21[%c128_238, %c0_239] : memref<1152x32xbf16, #tpu.memory_space<vmem>>, vector<128x2xbf16>
    tpu.vector_store %arg21[%c128_238, %c0_239], %292 {strides = array<i32>} : memref<1152x32xbf16, #tpu.memory_space<vmem>>, vector<128x2xbf16>,
    %294 = vector.extract_strided_slice %289 {offsets = [0, 4], sizes = [128, 2], strides = [1, 1]} : vector<128x18xbf16> to vector<128x2xbf16>
    %c256_240 = arith.constant 256 : index
    %c0_241 = arith.constant 0 : index
    %295 = vector.load %arg21[%c256_240, %c0_241] : memref<1152x32xbf16, #tpu.memory_space<vmem>>, vector<128x2xbf16>
    tpu.vector_store %arg21[%c256_240, %c0_241], %294 {strides = array<i32>} : memref<1152x32xbf16, #tpu.memory_space<vmem>>, vector<128x2xbf16>,
    %296 = vector.extract_strided_slice %289 {offsets = [0, 6], sizes = [128, 2], strides = [1, 1]} : vector<128x18xbf16> to vector<128x2xbf16>
    %c384_242 = arith.constant 384 : index
    %c0_243 = arith.constant 0 : index
    %297 = vector.load %arg21[%c384_242, %c0_243] : memref<1152x32xbf16, #tpu.memory_space<vmem>>, vector<128x2xbf16>
    tpu.vector_store %arg21[%c384_242, %c0_243], %296 {strides = array<i32>} : memref<1152x32xbf16, #tpu.memory_space<vmem>>, vector<128x2xbf16>,
    %298 = vector.extract_strided_slice %289 {offsets = [0, 8], sizes = [128, 2], strides = [1, 1]} : vector<128x18xbf16> to vector<128x2xbf16>
    %c512_244 = arith.constant 512 : index
    %c0_245 = arith.constant 0 : index
    %299 = vector.load %arg21[%c512_244, %c0_245] : memref<1152x32xbf16, #tpu.memory_space<vmem>>, vector<128x2xbf16>
    tpu.vector_store %arg21[%c512_244, %c0_245], %298 {strides = array<i32>} : memref<1152x32xbf16, #tpu.memory_space<vmem>>, vector<128x2xbf16>,
    %300 = vector.extract_strided_slice %289 {offsets = [0, 10], sizes = [128, 2], strides = [1, 1]} : vector<128x18xbf16> to vector<128x2xbf16>
    %c640_246 = arith.constant 640 : index
    %c0_247 = arith.constant 0 : index
    %301 = vector.load %arg21[%c640_246, %c0_247] : memref<1152x32xbf16, #tpu.memory_space<vmem>>, vector<128x2xbf16>
    tpu.vector_store %arg21[%c640_246, %c0_247], %300 {strides = array<i32>} : memref<1152x32xbf16, #tpu.memory_space<vmem>>, vector<128x2xbf16>,
    %302 = vector.extract_strided_slice %289 {offsets = [0, 12], sizes = [128, 2], strides = [1, 1]} : vector<128x18xbf16> to vector<128x2xbf16>
    %c768_248 = arith.constant 768 : index
    %c0_249 = arith.constant 0 : index
    %303 = vector.load %arg21[%c768_248, %c0_249] : memref<1152x32xbf16, #tpu.memory_space<vmem>>, vector<128x2xbf16>
    tpu.vector_store %arg21[%c768_248, %c0_249], %302 {strides = array<i32>} : memref<1152x32xbf16, #tpu.memory_space<vmem>>, vector<128x2xbf16>,
    %304 = vector.extract_strided_slice %289 {offsets = [0, 14], sizes = [128, 2], strides = [1, 1]} : vector<128x18xbf16> to vector<128x2xbf16>
    %c896_250 = arith.constant 896 : index
    %c0_251 = arith.constant 0 : index
    %305 = vector.load %arg21[%c896_250, %c0_251] : memref<1152x32xbf16, #tpu.memory_space<vmem>>, vector<128x2xbf16>
    tpu.vector_store %arg21[%c896_250, %c0_251], %304 {strides = array<i32>} : memref<1152x32xbf16, #tpu.memory_space<vmem>>, vector<128x2xbf16>,
    %306 = vector.extract_strided_slice %289 {offsets = [0, 16], sizes = [128, 2], strides = [1, 1]} : vector<128x18xbf16> to vector<128x2xbf16>
    %c1024_252 = arith.constant 1024 : index
    %c0_253 = arith.constant 0 : index
    %307 = vector.load %arg21[%c1024_252, %c0_253] : memref<1152x32xbf16, #tpu.memory_space<vmem>>, vector<128x2xbf16>
    tpu.vector_store %arg21[%c1024_252, %c0_253], %306 {strides = array<i32>} : memref<1152x32xbf16, #tpu.memory_space<vmem>>, vector<128x2xbf16>,
    %c0_254 = arith.constant 0 : index
    %c0_255 = arith.constant 0 : index
    %308 = vector.load %arg12[%c0_254, %c0_255] : memref<32x1152xbf16, #tpu.memory_space<vmem>>, vector<32x1152xbf16>
    %c0_256 = arith.constant 0 : index
    %c0_257 = arith.constant 0 : index
    %309 = vector.load %arg21[%c0_256, %c0_257] : memref<1152x32xbf16, #tpu.memory_space<vmem>>, vector<1152x2xbf16>
    %cst_258 = arith.constant dense<0.000000e+00> : vector<32x2xf32>
    %310 = tpu.matmul %308, %309, %cst_258 {dimension_numbers = #tpu.dot_dimension_numbers<[1], [0], [0], [1], [0, 0, 1, 1], [], []>} : vector<32x1152xbf16>, vector<1152x2xbf16>, vector<32x2xf32> -> vector<32x2xf32>
    %c0_259 = arith.constant 0 : index
    %c0_260 = arith.constant 0 : index
    %c0_261 = arith.constant 0 : index
    %311 = vector.load %arg20[%c0_259, %c0_260, %c0_261] : memref<1x32x2xf32, #tpu.memory_space<vmem>>, vector<1x32x2xf32>
    %312 = vector.shape_cast %311 : vector<1x32x2xf32> to vector<32x2xf32>
    %313 = vector.shape_cast %310 : vector<32x2xf32> to vector<1x32x2xf32>
    tpu.vector_store %arg20[%c0_259, %c0_260, %c0_261], %313 {strides = array<i32>} : memref<1x32x2xf32, #tpu.memory_space<vmem>>, vector<1x32x2xf32>,
    return
  }
  func.func @transform_0(%arg0: i32) -> (i32, i32, i32) {
    %c0_i32 = arith.constant 0 : i32
    %c0_i32_0 = arith.constant 0 : i32
    %c0_i32_1 = arith.constant 0 : i32
    return %arg0, %c0_i32, %c0_i32_0 : i32, i32, i32
  }
  func.func @transform_1(%arg0: i32) -> (i32, i32) {
    %c0_i32 = arith.constant 0 : i32
    %c0_i32_0 = arith.constant 0 : i32
    %c0_i32_1 = arith.constant 0 : i32
    return %c0_i32, %c0_i32_0 : i32, i32
  }
  func.func @transform_2(%arg0: i32) -> (i32, i32) {
    %c0_i32 = arith.constant 0 : i32
    %c0_i32_0 = arith.constant 0 : i32
    %c0_i32_1 = arith.constant 0 : i32
    return %c0_i32, %c0_i32_0 : i32, i32
  }
  func.func @transform_3(%arg0: i32) -> (i32, i32) {
    %c0_i32 = arith.constant 0 : i32
    %c0_i32_0 = arith.constant 0 : i32
    %c0_i32_1 = arith.constant 0 : i32
    return %c0_i32, %c0_i32_0 : i32, i32
  }
  func.func @transform_4(%arg0: i32) -> (i32, i32) {
    %c0_i32 = arith.constant 0 : i32
    %c0_i32_0 = arith.constant 0 : i32
    %c0_i32_1 = arith.constant 0 : i32
    return %c0_i32, %c0_i32_0 : i32, i32
  }
  func.func @transform_5(%arg0: i32) -> (i32, i32) {
    %c0_i32 = arith.constant 0 : i32
    %c0_i32_0 = arith.constant 0 : i32
    %c0_i32_1 = arith.constant 0 : i32
    return %c0_i32, %c0_i32_0 : i32, i32
  }
  func.func @transform_6(%arg0: i32) -> (i32, i32) {
    %c0_i32 = arith.constant 0 : i32
    %c0_i32_0 = arith.constant 0 : i32
    %c0_i32_1 = arith.constant 0 : i32
    return %c0_i32, %c0_i32_0 : i32, i32
  }
  func.func @transform_7(%arg0: i32) -> (i32, i32) {
    %c0_i32 = arith.constant 0 : i32
    %c0_i32_0 = arith.constant 0 : i32
    %c0_i32_1 = arith.constant 0 : i32
    return %c0_i32, %c0_i32_0 : i32, i32
  }
  func.func @transform_8(%arg0: i32) -> (i32, i32) {
    %c0_i32 = arith.constant 0 : i32
    %c0_i32_0 = arith.constant 0 : i32
    %c0_i32_1 = arith.constant 0 : i32
    return %c0_i32, %c0_i32_0 : i32, i32
  }
  func.func @transform_9(%arg0: i32) -> (i32, i32) {
    %c0_i32 = arith.constant 0 : i32
    %c0_i32_0 = arith.constant 0 : i32
    %c0_i32_1 = arith.constant 0 : i32
    return %c0_i32, %c0_i32_0 : i32, i32
  }
  func.func @transform_10(%arg0: i32) -> (i32, i32) {
    %c0_i32 = arith.constant 0 : i32
    %c0_i32_0 = arith.constant 0 : i32
    %c0_i32_1 = arith.constant 0 : i32
    return %c0_i32, %c0_i32_0 : i32, i32
  }
  func.func @transform_11(%arg0: i32) -> (i32, i32) {
    %c0_i32 = arith.constant 0 : i32
    %c0_i32_0 = arith.constant 0 : i32
    %c0_i32_1 = arith.constant 0 : i32
    return %c0_i32, %c0_i32_0 : i32, i32
  }
  func.func @transform_12(%arg0: i32) -> (i32, i32) {
    %c0_i32 = arith.constant 0 : i32
    %c0_i32_0 = arith.constant 0 : i32
    %c0_i32_1 = arith.constant 0 : i32
    return %c0_i32, %c0_i32_0 : i32, i32
  }
  func.func @transform_13(%arg0: i32) -> (i32, i32) {
    %c0_i32 = arith.constant 0 : i32
    %c0_i32_0 = arith.constant 0 : i32
    %c0_i32_1 = arith.constant 0 : i32
    return %c0_i32, %c0_i32_0 : i32, i32
  }
  func.func @transform_14(%arg0: i32) -> (i32, i32) {
    %c0_i32 = arith.constant 0 : i32
    %c0_i32_0 = arith.constant 0 : i32
    %c0_i32_1 = arith.constant 0 : i32
    return %c0_i32, %c0_i32_0 : i32, i32
  }
  func.func @transform_15(%arg0: i32) -> (i32, i32) {
    %c0_i32 = arith.constant 0 : i32
    %c0_i32_0 = arith.constant 0 : i32
    %c0_i32_1 = arith.constant 0 : i32
    return %c0_i32, %c0_i32_0 : i32, i32
  }
  func.func @transform_16(%arg0: i32) -> (i32, i32) {
    %c0_i32 = arith.constant 0 : i32
    %c0_i32_0 = arith.constant 0 : i32
    %c0_i32_1 = arith.constant 0 : i32
    return %c0_i32, %c0_i32_0 : i32, i32
  }
  func.func @transform_17(%arg0: i32) -> (i32, i32) {
    %c0_i32 = arith.constant 0 : i32
    %c0_i32_0 = arith.constant 0 : i32
    %c0_i32_1 = arith.constant 0 : i32
    return %c0_i32, %c0_i32_0 : i32, i32
  }
  func.func @transform_18(%arg0: i32) -> (i32, i32) {
    %c0_i32 = arith.constant 0 : i32
    %c0_i32_0 = arith.constant 0 : i32
    %c0_i32_1 = arith.constant 0 : i32
    return %c0_i32, %c0_i32_0 : i32, i32
  }
  func.func @transform_19(%arg0: i32) -> (i32, i32, i32) {
    %c0_i32 = arith.constant 0 : i32
    %c0_i32_0 = arith.constant 0 : i32
    %c0_i32_1 = arith.constant 0 : i32
    return %arg0, %c0_i32, %c0_i32_0 : i32, i32, i32
  }
}

</mosaic_0001>

<llo_original>
// kernel: map_encoder_forward.1
$region0: #{map_encoder_forward.1}
  #allocation0 [shape = 'u32[]', space=smem, size = 0x4, offset = 0x4, fixed_abs, tag = 'smem constant byte address 0x4 - core index']
  #allocation1 [shape = 'u32[144,128]{1,0:T(1,128)}', space=vmem, size = 0x12000, scoped, tag = 'internal scratch']
  #allocation2 [shape = 'bf16[1152,32]{1,0:T(16,128)(2,1)}', space=vmem, size = 0x48000, scoped, tag = 'scratch operand']
  %s0 = inlined_call_operand.vmem [shape: bf16[1,196,128], index: 0, kind: input, shape index: {}]
  %s1 = inlined_call_operand.vmem [shape: bf16[64,196], index: 1, kind: input, shape index: {}]
  %s2 = inlined_call_operand.vmem [shape: bf16[64,576], index: 2, kind: input, shape index: {}]
  %s3 = inlined_call_operand.vmem [shape: bf16[64,576], index: 3, kind: input, shape index: {}]
  %s4 = inlined_call_operand.vmem [shape: bf16[64,576], index: 4, kind: input, shape index: {}]
  %s5 = inlined_call_operand.vmem [shape: bf16[64,576], index: 5, kind: input, shape index: {}]
  %s6 = inlined_call_operand.vmem [shape: bf16[128,576], index: 6, kind: input, shape index: {}]
  %s7 = inlined_call_operand.vmem [shape: bf16[128,64], index: 7, kind: input, shape index: {}]
  %s8 = inlined_call_operand.vmem [shape: bf16[128,1152], index: 8, kind: input, shape index: {}]
  %s9 = inlined_call_operand.vmem [shape: bf16[128,1152], index: 9, kind: input, shape index: {}]
  %s10 = inlined_call_operand.vmem [shape: bf16[128,1152], index: 10, kind: input, shape index: {}]
  %s11 = inlined_call_operand.vmem [shape: bf16[32,1152], index: 11, kind: input, shape index: {}]
  %s12 = inlined_call_operand.vmem [shape: f32[128,10], index: 12, kind: input, shape index: {}]
  %s13 = inlined_call_operand.vmem [shape: bf16[128,288], index: 13, kind: input, shape index: {}]
  %s14 = inlined_call_operand.vmem [shape: bf16[32,288], index: 14, kind: input, shape index: {}]
  %s15 = inlined_call_operand.vmem [shape: bf16[32,72], index: 15, kind: input, shape index: {}]
  %s16 = inlined_call_operand.vmem [shape: bf16[32,8], index: 16, kind: input, shape index: {}]
  %s17 = inlined_call_operand.vmem [shape: bf16[8,72], index: 17, kind: input, shape index: {}]
  %s18 = inlined_call_operand.vmem [shape: bf16[8,18], index: 18, kind: input, shape index: {}]
  %s19 = inlined_call_operand.vmem [shape: f32[1,32,2], index: 19, kind: output, shape index: {}]
  %s20 = sld [smem:[#allocation0]]
  $region86: #{map_encoder_forward.1} parent=0
    _
  %s22 = ssub.s32 1, %s20
  %s23 = scalar_select 0, %s22, %s20
  // Predicated region
  $region2: #{map_encoder_forward.1} parent=0 // pred_check
    _
  $region3: #{map_encoder_forward.1} parent=0 // pred_check_branch
    %25 = sbr.rel (0) target = $region5
  $region4: #{map_encoder_forward.1} parent=0 // pred_region
    _
  $region5: #{map_encoder_forward.1} parent=0 // pred_fallthru
    _
  // Predicated region
  $region6: #{map_encoder_forward.1} parent=0 // pred_check
    _
  $region7: #{map_encoder_forward.1} parent=0 // pred_check_branch
    %27 = sbr.rel (0) target = $region9
  $region8: #{map_encoder_forward.1} parent=0 // pred_region
    _
  $region9: #{map_encoder_forward.1} parent=0 // pred_fallthru
    _
  // Predicated region
  $region10: #{map_encoder_forward.1} parent=0 // pred_check
    _
  $region11: #{map_encoder_forward.1} parent=0 // pred_check_branch
    %29 = sbr.rel (0) target = $region13
  $region12: #{map_encoder_forward.1} parent=0 // pred_region
    _
  $region13: #{map_encoder_forward.1} parent=0 // pred_fallthru
    _
  // Predicated region
  $region14: #{map_encoder_forward.1} parent=0 // pred_check
    _
  $region15: #{map_encoder_forward.1} parent=0 // pred_check_branch
    %31 = sbr.rel (0) target = $region17
  $region16: #{map_encoder_forward.1} parent=0 // pred_region
    _
  $region17: #{map_encoder_forward.1} parent=0 // pred_fallthru
    _
  // Predicated region
  $region18: #{map_encoder_forward.1} parent=0 // pred_check
    _
  $region19: #{map_encoder_forward.1} parent=0 // pred_check_branch
    %33 = sbr.rel (0) target = $region21
  $region20: #{map_encoder_forward.1} parent=0 // pred_region
    _
  $region21: #{map_encoder_forward.1} parent=0 // pred_fallthru
    _
  // Predicated region
  $region22: #{map_encoder_forward.1} parent=0 // pred_check
    _
  $region23: #{map_encoder_forward.1} parent=0 // pred_check_branch
    %35 = sbr.rel (0) target = $region25
  $region24: #{map_encoder_forward.1} parent=0 // pred_region
    _
  $region25: #{map_encoder_forward.1} parent=0 // pred_fallthru
    _
  // Predicated region
  $region26: #{map_encoder_forward.1} parent=0 // pred_check
    _
  $region27: #{map_encoder_forward.1} parent=0 // pred_check_branch
    %37 = sbr.rel (0) target = $region29
  $region28: #{map_encoder_forward.1} parent=0 // pred_region
    _
  $region29: #{map_encoder_forward.1} parent=0 // pred_fallthru
    _
  // Predicated region
  $region30: #{map_encoder_forward.1} parent=0 // pred_check
    _
  $region31: #{map_encoder_forward.1} parent=0 // pred_check_branch
    %39 = sbr.rel (0) target = $region33
  $region32: #{map_encoder_forward.1} parent=0 // pred_region
    _
  $region33: #{map_encoder_forward.1} parent=0 // pred_fallthru
    _
  // Predicated region
  $region34: #{map_encoder_forward.1} parent=0 // pred_check
    _
  $region35: #{map_encoder_forward.1} parent=0 // pred_check_branch
    %41 = sbr.rel (0) target = $region37
  $region36: #{map_encoder_forward.1} parent=0 // pred_region
    _
  $region37: #{map_encoder_forward.1} parent=0 // pred_fallthru
    _
  // Predicated region
  $region38: #{map_encoder_forward.1} parent=0 // pred_check
    _
  $region39: #{map_encoder_forward.1} parent=0 // pred_check_branch
    %43 = sbr.rel (0) target = $region41
  $region40: #{map_encoder_forward.1} parent=0 // pred_region
    _
  $region41: #{map_encoder_forward.1} parent=0 // pred_fallthru
    _
  // Predicated region
  $region42: #{map_encoder_forward.1} parent=0 // pred_check
    _
  $region43: #{map_encoder_forward.1} parent=0 // pred_check_branch
    %45 = sbr.rel (0) target = $region45
  $region44: #{map_encoder_forward.1} parent=0 // pred_region
    _
  $region45: #{map_encoder_forward.1} parent=0 // pred_fallthru
    _
  // Predicated region
  $region46: #{map_encoder_forward.1} parent=0 // pred_check
    _
  $region47: #{map_encoder_forward.1} parent=0 // pred_check_branch
    %47 = sbr.rel (0) target = $region49
  $region48: #{map_encoder_forward.1} parent=0 // pred_region
    _
  $region49: #{map_encoder_forward.1} parent=0 // pred_fallthru
    _
  // Predicated region
  $region50: #{map_encoder_forward.1} parent=0 // pred_check
    _
  $region51: #{map_encoder_forward.1} parent=0 // pred_check_branch
    %49 = sbr.rel (0) target = $region53
  $region52: #{map_encoder_forward.1} parent=0 // pred_region
    _
  $region53: #{map_encoder_forward.1} parent=0 // pred_fallthru
    _
  // Predicated region
  $region54: #{map_encoder_forward.1} parent=0 // pred_check
    _
  $region55: #{map_encoder_forward.1} parent=0 // pred_check_branch
    %51 = sbr.rel (0) target = $region57
  $region56: #{map_encoder_forward.1} parent=0 // pred_region
    _
  $region57: #{map_encoder_forward.1} parent=0 // pred_fallthru
    _
  // Predicated region
  $region58: #{map_encoder_forward.1} parent=0 // pred_check
    _
  $region59: #{map_encoder_forward.1} parent=0 // pred_check_branch
    %53 = sbr.rel (0) target = $region61
  $region60: #{map_encoder_forward.1} parent=0 // pred_region
    _
  $region61: #{map_encoder_forward.1} parent=0 // pred_fallthru
    _
  // Predicated region
  $region62: #{map_encoder_forward.1} parent=0 // pred_check
    _
  $region63: #{map_encoder_forward.1} parent=0 // pred_check_branch
    %55 = sbr.rel (0) target = $region65
  $region64: #{map_encoder_forward.1} parent=0 // pred_region
    _
  $region65: #{map_encoder_forward.1} parent=0 // pred_fallthru
    _
  // Predicated region
  $region66: #{map_encoder_forward.1} parent=0 // pred_check
    _
  $region67: #{map_encoder_forward.1} parent=0 // pred_check_branch
    %57 = sbr.rel (0) target = $region69
  $region68: #{map_encoder_forward.1} parent=0 // pred_region
    _
  $region69: #{map_encoder_forward.1} parent=0 // pred_fallthru
    _
  // Predicated region
  $region70: #{map_encoder_forward.1} parent=0 // pred_check
    _
  $region71: #{map_encoder_forward.1} parent=0 // pred_check_branch
    %59 = sbr.rel (0) target = $region73
  $region72: #{map_encoder_forward.1} parent=0 // pred_region
    _
  $region73: #{map_encoder_forward.1} parent=0 // pred_fallthru
    _
  // Predicated region
  $region74: #{map_encoder_forward.1} parent=0 // pred_check
    _
  $region75: #{map_encoder_forward.1} parent=0 // pred_check_branch
    %61 = sbr.rel (0) target = $region77
  $region76: #{map_encoder_forward.1} parent=0 // pred_region
    _
  $region77: #{map_encoder_forward.1} parent=0 // pred_fallthru
    _
  %v63 = vld [vmem:[%s1] sm:$0xff]
  %v64 = vld [vmem:[%s1 + $0x8] sm:$0xff]
  %v65 = vld [vmem:[%s1 + $0x10] sm:$0xff]
  %v66 = vld [vmem:[%s1 + $0x18] sm:$0xff]
  %v67 = vld [vmem:[%s1 + $0x20] sm:$0xff]
  %v68 = vld [vmem:[%s1 + $0x28] sm:$0xff]
  %v69 = vld [vmem:[%s1 + $0x30] sm:$0xff]
  %v70 = vld [vmem:[%s1 + $0x38] sm:$0xff]
  %v71 = vld [vmem:[%s0] sm:$0xf]
  %v72 = vld [vmem:[%s0 + $0x4] sm:$0xf]
  %v73 = vld [vmem:[%s0 + $0x8] sm:$0xf]
  %v74 = vld [vmem:[%s0 + $0xc] sm:$0xf]
  %v75 = vld [vmem:[%s0 + $0x10] sm:$0xf]
  %v76 = vld [vmem:[%s0 + $0x14] sm:$0xf]
  %v77 = vld [vmem:[%s0 + $0x18] sm:$0xf]
  %v78 = vld [vmem:[%s0 + $0x1c] sm:$0xf]
  %v79 = vld [vmem:[%s0 + $0x20] sm:$0xf]
  %v80 = vld [vmem:[%s0 + $0x24] sm:$0xf]
  %v81 = vld [vmem:[%s0 + $0x28] sm:$0xf]
  %v82 = vld [vmem:[%s0 + $0x2c] sm:$0xf]
  %v83 = vld [vmem:[%s0 + $0x30] sm:$0xf]
  %v84 = vld [vmem:[%s0 + $0x34] sm:$0xf]
  %v85 = vld [vmem:[%s0 + $0x38] sm:$0xf]
  %v86 = vld [vmem:[%s0 + $0x3c] sm:$0xf]
  %v87 = vld [vmem:[%s0 + $0x40] sm:$0xf]
  %v88 = vld [vmem:[%s0 + $0x44] sm:$0xf]
  %v89 = vld [vmem:[%s0 + $0x48] sm:$0xf]
  %v90 = vld [vmem:[%s0 + $0x4c] sm:$0xf]
  %v91 = vld [vmem:[%s0 + $0x50] sm:$0xf]
  %v92 = vld [vmem:[%s0 + $0x54] sm:$0xf]
  %v93 = vld [vmem:[%s0 + $0x58] sm:$0xf]
  %v94 = vld [vmem:[%s0 + $0x5c] sm:$0xf]
  %v95 = vld [vmem:[%s0 + $0x60] sm:$0x3]
  %v96 = vld [vmem:[%s12] sm:$0xff]
  %v97 = vld [vmem:[%s12 + $0x8] sm:$0xff]
  %v98 = vld [vmem:[%s12 + $0x10] sm:$0xff]
  %v99 = vld [vmem:[%s12 + $0x18] sm:$0xff]
  %v100 = vld [vmem:[%s12 + $0x20] sm:$0xff]
  %v101 = vld [vmem:[%s12 + $0x28] sm:$0xff]
  %v102 = vld [vmem:[%s12 + $0x30] sm:$0xff]
  %v103 = vld [vmem:[%s12 + $0x38] sm:$0xff]
  %105 = vset.pattern.permute.xlu0 0
  %106 = vperm.xlu0 %105, %v96
  %v107 = vpop.permute.xlu0 %106
  %110 = vset.pattern.permute.xlu0 0
  %111 = vperm.xlu0 %110, %v97
  %v112 = vpop.permute.xlu0 %111
  %115 = vset.pattern.permute.xlu0 0
  %116 = vperm.xlu0 %115, %v98
  %v117 = vpop.permute.xlu0 %116
  %120 = vset.pattern.permute.xlu0 0
  %121 = vperm.xlu0 %120, %v99
  %v122 = vpop.permute.xlu0 %121
  %125 = vset.pattern.permute.xlu0 0
  %126 = vperm.xlu0 %125, %v100
  %v127 = vpop.permute.xlu0 %126
  %130 = vset.pattern.permute.xlu0 0
  %131 = vperm.xlu0 %130, %v101
  %v132 = vpop.permute.xlu0 %131
  %135 = vset.pattern.permute.xlu0 0
  %136 = vperm.xlu0 %135, %v102
  %v137 = vpop.permute.xlu0 %136
  %140 = vset.pattern.permute.xlu0 0
  %141 = vperm.xlu0 %140, %v103
  %v142 = vpop.permute.xlu0 %141
  %v152 = vunpack.c.l.b16 %v63
  %v153 = vunpack.c.h.b16 %v63
  %v154 = vunpack.c.l.b16 %v64
  %v155 = vunpack.c.h.b16 %v64
  %v156 = vunpack.c.l.b16 %v65
  %v157 = vunpack.c.h.b16 %v65
  %v158 = vunpack.c.l.b16 %v66
  %v159 = vunpack.c.h.b16 %v66
  %v160 = vunpack.c.l.b16 %v67
  %v161 = vunpack.c.h.b16 %v67
  %v162 = vunpack.c.l.b16 %v68
  %v163 = vunpack.c.h.b16 %v68
  %v164 = vunpack.c.l.b16 %v69
  %v165 = vunpack.c.h.b16 %v69
  %v166 = vunpack.c.l.b16 %v70
  %v167 = vunpack.c.h.b16 %v70
  %v168 = vpack.c.b16 %v154, %v152
  %v169 = vpack.c.b16 %v155, %v153
  %v170 = vpack.c.b16 %v158, %v156
  %v171 = vpack.c.b16 %v159, %v157
  %v172 = vpack.c.b16 %v162, %v160
  %v173 = vpack.c.b16 %v163, %v161
  %v174 = vpack.c.b16 %v166, %v164
  %v175 = vpack.c.b16 %v167, %v165
  %v205 = vunpack.c.l.b16 %v71
  %v206 = vunpack.c.l.b16 %v72
  %v207 = vunpack.c.l.b16 %v73
  %v208 = vunpack.c.l.b16 %v74
  %v209 = vunpack.c.l.b16 %v75
  %v210 = vunpack.c.l.b16 %v76
  %v211 = vunpack.c.l.b16 %v77
  %v212 = vunpack.c.l.b16 %v78
  %v213 = vunpack.c.l.b16 %v79
  %v214 = vunpack.c.l.b16 %v80
  %v215 = vunpack.c.l.b16 %v81
  %v216 = vunpack.c.l.b16 %v82
  %v217 = vunpack.c.l.b16 %v83
  %v218 = vunpack.c.l.b16 %v84
  %v219 = vunpack.c.l.b16 %v85
  %v220 = vunpack.c.l.b16 %v86
  %v221 = vunpack.c.l.b16 %v87
  %v222 = vunpack.c.l.b16 %v88
  %v223 = vunpack.c.l.b16 %v89
  %v224 = vunpack.c.l.b16 %v90
  %v225 = vunpack.c.l.b16 %v91
  %v226 = vunpack.c.l.b16 %v92
  %v227 = vunpack.c.l.b16 %v93
  %v228 = vunpack.c.l.b16 %v94
  %v229 = vunpack.c.l.b16 %v95
  %v230 = vpack.c.b16 %v206, %v205
  %v231 = vpack.c.b16 %v208, %v207
  %v232 = vpack.c.b16 %v210, %v209
  %v233 = vpack.c.b16 %v212, %v211
  %v234 = vpack.c.b16 %v214, %v213
  %v235 = vpack.c.b16 %v216, %v215
  %v236 = vpack.c.b16 %v218, %v217
  %v237 = vpack.c.b16 %v220, %v219
  %v238 = vpack.c.b16 %v222, %v221
  %v239 = vpack.c.b16 %v224, %v223
  %v240 = vpack.c.b16 %v226, %v225
  %v241 = vpack.c.b16 %v228, %v227
  %v242 = vpack.c.b16 %v229, %v229
  %vm255 = vcmask 556032
  %v257 = vsel %vm255, %v169, 0
  %v260 = vsel %vm255, %v171, 0
  %v263 = vsel %vm255, %v173, 0
  %v266 = vsel %vm255, %v175, 0
  %vm268 = vcmask 1041408
  %v270 = vsel %vm268, %v242, 0
  %272 = vmatprep.subr.bf16.mxu0 0
  %273 = vmatpush1.bf16.msra.mxu0 %v230
  %274 = vmatprep.subr.bf16.mxu0 0
  %275 = vmatpush1.bf16.msra.mxu0 %v231
  %276 = vmatprep.subr.bf16.mxu0 0
  %277 = vmatpush1.bf16.msra.mxu0 %v232
  %278 = vmatprep.subr.bf16.mxu0 0
  %279 = vmatpush1.bf16.msra.mxu0 %v233
  %280 = vmatprep.subr.bf16.mxu0 0
  %281 = vmatpush1.bf16.msra.mxu0 %v234
  %282 = vmatprep.subr.bf16.mxu0 0
  %283 = vmatpush1.bf16.msra.mxu0 %v235
  %284 = vmatprep.subr.bf16.mxu0 0
  %285 = vmatpush1.bf16.msra.mxu0 %v236
  %286 = vmatprep.subr.bf16.mxu0 0
  %287 = vmatpush1.bf16.msra.mxu0 %v237
  %288 = vmatprep.subr.bf16.mxu0 0
  %289 = vmatpush1.bf16.msra.mxu0 %v238
  %290 = vmatprep.subr.bf16.mxu0 0
  %291 = vmatpush1.bf16.msra.mxu0 %v239
  %292 = vmatprep.subr.bf16.mxu0 0
  %293 = vmatpush1.bf16.msra.mxu0 %v240
  %294 = vmatprep.subr.bf16.mxu0 0
  %295 = vmatpush1.bf16.msra.mxu0 %v241
  %296 = vmatprep.subr.bf16.mxu0 0
  %297 = vmatpush1.bf16.msra.mxu0 %v270
  %298 = vmatprep.subr.bf16.mxu0 0
  %299 = vmatpush1.bf16.msra.mxu0 0
  %300 = vmatprep.subr.bf16.mxu0 0
  %301 = vmatpush1.bf16.msra.mxu0 0
  %302 = vmatprep.subr.bf16.mxu0 0
  %303 = vmatpush1.bf16.msra.mxu0 0
  %304 = vmatprep.mubr.bf16.mxu0 %v257
  %305 = vmatmul.mubr.bf16.gmra.mrb[0].mxu0 %v168
  %v306 = vpop.f32.mrb[0].mxu0
  %v307 = vadd.f32 %v107, %v306
  %v308 = vpop.f32.mrb[0].mxu0
  %v309 = vpop.f32.mrb[0].mxu0
  %v310 = vadd.f32 %v112, %v309
  %v311 = vpop.f32.mrb[0].mxu0
  %312 = vmatprep.mubr.bf16.mxu0 %v260
  %313 = vmatmul.mubr.bf16.gmra.mrb[0].mxu0 %v170
  %v314 = vpop.f32.mrb[0].mxu0
  %v315 = vadd.f32 %v117, %v314
  %v316 = vpop.f32.mrb[0].mxu0
  %v317 = vpop.f32.mrb[0].mxu0
  %v318 = vadd.f32 %v122, %v317
  %v319 = vpop.f32.mrb[0].mxu0
  %320 = vmatprep.mubr.bf16.mxu0 %v263
  %321 = vmatmul.mubr.bf16.gmra.mrb[0].mxu0 %v172
  %v322 = vpop.f32.mrb[0].mxu0
  %v323 = vadd.f32 %v127, %v322
  %v324 = vpop.f32.mrb[0].mxu0
  %v325 = vpop.f32.mrb[0].mxu0
  %v326 = vadd.f32 %v132, %v325
  %v327 = vpop.f32.mrb[0].mxu0
  %328 = vmatprep.mubr.bf16.mxu0 %v266
  %329 = vmatmul.mubr.bf16.gmra.mrb[0].mxu0 %v174
  %v330 = vpop.f32.mrb[0].mxu0
  %v331 = vadd.f32 %v137, %v330
  %v332 = vpop.f32.mrb[0].mxu0
  %v333 = vpop.f32.mrb[0].mxu0
  %v334 = vadd.f32 %v142, %v333
  %v335 = vpop.f32.mrb[0].mxu0
  %336 = vdwg.mxu0
  %v337 = vmax.f32 %v307, 0.0
  %v338 = vmax.f32 %v310, 0.0
  %v339 = vmax.f32 %v315, 0.0
  %v340 = vmax.f32 %v318, 0.0
  %v341 = vmax.f32 %v323, 0.0
  %v342 = vmax.f32 %v326, 0.0
  %v343 = vmax.f32 %v331, 0.0
  %v344 = vmax.f32 %v334, 0.0
  %v345 = vpack.c.bf16 %v338, %v337
  %v346 = vpack.c.bf16 %v340, %v339
  %v347 = vpack.c.bf16 %v342, %v341
  %v348 = vpack.c.bf16 %v344, %v343
  %v349 = vld [vmem:[%s13] sm:$0xff]
  %v350 = vld [vmem:[%s13 + $0x8] sm:$0xf]
  %v351 = vld [vmem:[%s13 + $0xc] sm:$0xff]
  %v352 = vld [vmem:[%s13 + $0x14] sm:$0xf]
  %v353 = vld [vmem:[%s13 + $0x18] sm:$0xff]
  %v354 = vld [vmem:[%s13 + $0x20] sm:$0xf]
  %v355 = vld [vmem:[%s13 + $0x24] sm:$0xff]
  %v356 = vld [vmem:[%s13 + $0x2c] sm:$0xf]
  %v357 = vld [vmem:[%s13 + $0x30] sm:$0xff]
  %v358 = vld [vmem:[%s13 + $0x38] sm:$0xf]
  %v359 = vld [vmem:[%s13 + $0x3c] sm:$0xff]
  %v360 = vld [vmem:[%s13 + $0x44] sm:$0xf]
  %v361 = vld [vmem:[%s13 + $0x48] sm:$0xff]
  %v362 = vld [vmem:[%s13 + $0x50] sm:$0xf]
  %v363 = vld [vmem:[%s13 + $0x54] sm:$0xff]
  %v364 = vld [vmem:[%s13 + $0x5c] sm:$0xf]
  %v365 = vld [vmem:[%s13 + $0x60] sm:$0xff]
  %v366 = vld [vmem:[%s13 + $0x68] sm:$0xf]
  %v367 = vld [vmem:[%s13 + $0x6c] sm:$0xff]
  %v368 = vld [vmem:[%s13 + $0x74] sm:$0xf]
  %v369 = vld [vmem:[%s13 + $0x78] sm:$0xff]
  %v370 = vld [vmem:[%s13 + $0x80] sm:$0xf]
  %v371 = vld [vmem:[%s13 + $0x84] sm:$0xff]
  %v372 = vld [vmem:[%s13 + $0x8c] sm:$0xf]
  %v373 = vld [vmem:[%s13 + $0x90] sm:$0xff]
  %v374 = vld [vmem:[%s13 + $0x98] sm:$0xf]
  %v375 = vld [vmem:[%s13 + $0x9c] sm:$0xff]
  %v376 = vld [vmem:[%s13 + $0xa4] sm:$0xf]
  %v377 = vld [vmem:[%s13 + $0xa8] sm:$0xff]
  %v378 = vld [vmem:[%s13 + $0xb0] sm:$0xf]
  %v379 = vld [vmem:[%s13 + $0xb4] sm:$0xff]
  %v380 = vld [vmem:[%s13 + $0xbc] sm:$0xf]
  %v413 = vunpack.c.l.b16 %v349
  %v414 = vunpack.c.h.b16 %v349
  %v415 = vunpack.c.l.b16 %v350
  %v416 = vunpack.c.l.b16 %v351
  %v417 = vunpack.c.h.b16 %v351
  %v418 = vunpack.c.l.b16 %v352
  %v419 = vunpack.c.l.b16 %v353
  %v420 = vunpack.c.h.b16 %v353
  %v421 = vunpack.c.l.b16 %v354
  %v422 = vunpack.c.l.b16 %v355
  %v423 = vunpack.c.h.b16 %v355
  %v424 = vunpack.c.l.b16 %v356
  %v425 = vunpack.c.l.b16 %v357
  %v426 = vunpack.c.h.b16 %v357
  %v427 = vunpack.c.l.b16 %v358
  %v428 = vunpack.c.l.b16 %v359
  %v429 = vunpack.c.h.b16 %v359
  %v430 = vunpack.c.l.b16 %v360
  %v431 = vunpack.c.l.b16 %v361
  %v432 = vunpack.c.h.b16 %v361
  %v433 = vunpack.c.l.b16 %v362
  %v434 = vunpack.c.l.b16 %v363
  %v435 = vunpack.c.h.b16 %v363
  %v436 = vunpack.c.l.b16 %v364
  %v437 = vunpack.c.l.b16 %v365
  %v438 = vunpack.c.h.b16 %v365
  %v439 = vunpack.c.l.b16 %v366
  %v440 = vunpack.c.l.b16 %v367
  %v441 = vunpack.c.h.b16 %v367
  %v442 = vunpack.c.l.b16 %v368
  %v443 = vunpack.c.l.b16 %v369
  %v444 = vunpack.c.h.b16 %v369
  %v445 = vunpack.c.l.b16 %v370
  %v446 = vunpack.c.l.b16 %v371
  %v447 = vunpack.c.h.b16 %v371
  %v448 = vunpack.c.l.b16 %v372
  %v449 = vunpack.c.l.b16 %v373
  %v450 = vunpack.c.h.b16 %v373
  %v451 = vunpack.c.l.b16 %v374
  %v452 = vunpack.c.l.b16 %v375
  %v453 = vunpack.c.h.b16 %v375
  %v454 = vunpack.c.l.b16 %v376
  %v455 = vunpack.c.l.b16 %v377
  %v456 = vunpack.c.h.b16 %v377
  %v457 = vunpack.c.l.b16 %v378
  %v458 = vunpack.c.l.b16 %v379
  %v459 = vunpack.c.h.b16 %v379
  %v460 = vunpack.c.l.b16 %v380
  %v461 = vpack.c.b16 %v416, %v413
  %v462 = vpack.c.b16 %v417, %v414
  %v463 = vpack.c.b16 %v418, %v415
  %v464 = vpack.c.b16 %v422, %v419
  %v465 = vpack.c.b16 %v423, %v420
  %v466 = vpack.c.b16 %v424, %v421
  %v467 = vpack.c.b16 %v428, %v425
  %v468 = vpack.c.b16 %v429, %v426
  %v469 = vpack.c.b16 %v430, %v427
  %v470 = vpack.c.b16 %v434, %v431
  %v471 = vpack.c.b16 %v435, %v432
  %v472 = vpack.c.b16 %v436, %v433
  %v473 = vpack.c.b16 %v440, %v437
  %v474 = vpack.c.b16 %v441, %v438
  %v475 = vpack.c.b16 %v442, %v439
  %v476 = vpack.c.b16 %v446, %v443
  %v477 = vpack.c.b16 %v447, %v444
  %v478 = vpack.c.b16 %v448, %v445
  %v479 = vpack.c.b16 %v452, %v449
  %v480 = vpack.c.b16 %v453, %v450
  %v481 = vpack.c.b16 %v454, %v451
  %v482 = vpack.c.b16 %v458, %v455
  %v483 = vpack.c.b16 %v459, %v456
  %v484 = vpack.c.b16 %v460, %v457
  %509 = vmatprep.subr.bf16.mxu0 %v462
  %510 = vmatpush1.bf16.msra.mxu0 %v461
  %511 = vmatprep.subr.bf16.mxu0 %v465
  %512 = vmatpush1.bf16.msra.mxu0 %v464
  %513 = vmatprep.subr.bf16.mxu0 %v468
  %514 = vmatpush1.bf16.msra.mxu0 %v467
  %515 = vmatprep.subr.bf16.mxu0 %v471
  %516 = vmatpush1.bf16.msra.mxu0 %v470
  %517 = vmatprep.subr.bf16.mxu0 %v474
  %518 = vmatpush1.bf16.msra.mxu0 %v473
  %519 = vmatprep.subr.bf16.mxu0 %v477
  %520 = vmatpush1.bf16.msra.mxu0 %v476
  %521 = vmatprep.subr.bf16.mxu0 %v480
  %522 = vmatpush1.bf16.msra.mxu0 %v479
  %523 = vmatprep.subr.bf16.mxu0 %v483
  %524 = vmatpush1.bf16.msra.mxu0 %v482
  %525 = vmatprep.subr.bf16.mxu0 0
  %526 = vmatpush1.bf16.msra.mxu0 0
  %527 = vmatprep.subr.bf16.mxu0 0
  %528 = vmatpush1.bf16.msra.mxu0 0
  %529 = vmatprep.subr.bf16.mxu0 0
  %530 = vmatpush1.bf16.msra.mxu0 0
  %531 = vmatprep.subr.bf16.mxu0 0
  %532 = vmatpush1.bf16.msra.mxu0 0
  %533 = vmatprep.subr.bf16.mxu0 0
  %534 = vmatpush1.bf16.msra.mxu0 0
  %535 = vmatprep.subr.bf16.mxu0 0
  %536 = vmatpush1.bf16.msra.mxu0 0
  %537 = vmatprep.subr.bf16.mxu0 0
  %538 = vmatpush1.bf16.msra.mxu0 0
  %539 = vmatprep.subr.bf16.mxu0 0
  %540 = vmatpush1.bf16.msra.mxu0 0
  %541 = vmatprep.mubr.bf16.mxu0 0
  %542 = vmatmul.mubr.bf16.gmra.mrb[0].mxu0 %v345
  %v543 = vpop.f32.mrb[0].mxu0
  %v544 = vadd.f32 0.0, %v543
  %v545 = vpop.f32.mrb[0].mxu0
  %v546 = vadd.f32 0.0, %v545
  %v547 = vpop.f32.mrb[0].mxu0
  %v548 = vadd.f32 0.0, %v547
  %v549 = vpop.f32.mrb[0].mxu0
  %v550 = vadd.f32 0.0, %v549
  %551 = vmatprep.mubr.bf16.mxu0 0
  %552 = vmatmul.mubr.bf16.gmra.mrb[0].mxu0 %v346
  %v553 = vpop.f32.mrb[0].mxu0
  %v554 = vadd.f32 0.0, %v553
  %v555 = vpop.f32.mrb[0].mxu0
  %v556 = vadd.f32 0.0, %v555
  %v557 = vpop.f32.mrb[0].mxu0
  %v558 = vadd.f32 0.0, %v557
  %v559 = vpop.f32.mrb[0].mxu0
  %v560 = vadd.f32 0.0, %v559
  %561 = vmatprep.mubr.bf16.mxu0 0
  %562 = vmatmul.mubr.bf16.gmra.mrb[0].mxu0 %v347
  %v563 = vpop.f32.mrb[0].mxu0
  %v564 = vadd.f32 0.0, %v563
  %v565 = vpop.f32.mrb[0].mxu0
  %v566 = vadd.f32 0.0, %v565
  %v567 = vpop.f32.mrb[0].mxu0
  %v568 = vadd.f32 0.0, %v567
  %v569 = vpop.f32.mrb[0].mxu0
  %v570 = vadd.f32 0.0, %v569
  %571 = vmatprep.mubr.bf16.mxu0 0
  %572 = vmatmul.mubr.bf16.gmra.mrb[0].mxu0 %v348
  %v573 = vpop.f32.mrb[0].mxu0
  %v574 = vadd.f32 0.0, %v573
  %v575 = vpop.f32.mrb[0].mxu0
  %v576 = vadd.f32 0.0, %v575
  %v577 = vpop.f32.mrb[0].mxu0
  %v578 = vadd.f32 0.0, %v577
  %v579 = vpop.f32.mrb[0].mxu0
  %v580 = vadd.f32 0.0, %v579
  %581 = vdwg.mxu0
  %582 = vmatprep.subr.bf16.mxu0 0
  %583 = vmatpush1.bf16.msra.mxu0 %v463
  %584 = vmatprep.subr.bf16.mxu0 0
  %585 = vmatpush1.bf16.msra.mxu0 %v466
  %586 = vmatprep.subr.bf16.mxu0 0
  %587 = vmatpush1.bf16.msra.mxu0 %v469
  %588 = vmatprep.subr.bf16.mxu0 0
  %589 = vmatpush1.bf16.msra.mxu0 %v472
  %590 = vmatprep.subr.bf16.mxu0 0
  %591 = vmatpush1.bf16.msra.mxu0 %v475
  %592 = vmatprep.subr.bf16.mxu0 0
  %593 = vmatpush1.bf16.msra.mxu0 %v478
  %594 = vmatprep.subr.bf16.mxu0 0
  %595 = vmatpush1.bf16.msra.mxu0 %v481
  %596 = vmatprep.subr.bf16.mxu0 0
  %597 = vmatpush1.bf16.msra.mxu0 %v484
  %598 = vmatprep.subr.bf16.mxu0 0
  %599 = vmatpush1.bf16.msra.mxu0 0
  %600 = vmatprep.subr.bf16.mxu0 0
  %601 = vmatpush1.bf16.msra.mxu0 0
  %602 = vmatprep.subr.bf16.mxu0 0
  %603 = vmatpush1.bf16.msra.mxu0 0
  %604 = vmatprep.subr.bf16.mxu0 0
  %605 = vmatpush1.bf16.msra.mxu0 0
  %606 = vmatprep.subr.bf16.mxu0 0
  %607 = vmatpush1.bf16.msra.mxu0 0
  %608 = vmatprep.subr.bf16.mxu0 0
  %609 = vmatpush1.bf16.msra.mxu0 0
  %610 = vmatprep.subr.bf16.mxu0 0
  %611 = vmatpush1.bf16.msra.mxu0 0
  %612 = vmatprep.subr.bf16.mxu0 0
  %613 = vmatpush1.bf16.msra.mxu0 0
  %614 = vmatprep.mubr.bf16.mxu0 0
  %615 = vmatmul.mubr.bf16.gmra.mrb[0].mxu0 %v345
  %v616 = vpop.f32.mrb[0].mxu0
  %v617 = vadd.f32 0.0, %v616
  %v618 = vpop.f32.mrb[0].mxu0
  %v619 = vpop.f32.mrb[0].mxu0
  %v620 = vadd.f32 0.0, %v619
  %v621 = vpop.f32.mrb[0].mxu0
  %622 = vmatprep.mubr.bf16.mxu0 0
  %623 = vmatmul.mubr.bf16.gmra.mrb[0].mxu0 %v346
  %v624 = vpop.f32.mrb[0].mxu0
  %v625 = vadd.f32 0.0, %v624
  %v626 = vpop.f32.mrb[0].mxu0
  %v627 = vpop.f32.mrb[0].mxu0
  %v628 = vadd.f32 0.0, %v627
  %v629 = vpop.f32.mrb[0].mxu0
  %630 = vmatprep.mubr.bf16.mxu0 0
  %631 = vmatmul.mubr.bf16.gmra.mrb[0].mxu0 %v347
  %v632 = vpop.f32.mrb[0].mxu0
  %v633 = vadd.f32 0.0, %v632
  %v634 = vpop.f32.mrb[0].mxu0
  %v635 = vpop.f32.mrb[0].mxu0
  %v636 = vadd.f32 0.0, %v635
  %v637 = vpop.f32.mrb[0].mxu0
  %638 = vmatprep.mubr.bf16.mxu0 0
  %639 = vmatmul.mubr.bf16.gmra.mrb[0].mxu0 %v348
  %v640 = vpop.f32.mrb[0].mxu0
  %v641 = vadd.f32 0.0, %v640
  %v642 = vpop.f32.mrb[0].mxu0
  %v643 = vpop.f32.mrb[0].mxu0
  %v644 = vadd.f32 0.0, %v643
  %v645 = vpop.f32.mrb[0].mxu0
  %646 = vdwg.mxu0
  %655 = vrot.lane.b32.xlu0 %v544, 96
  %v656 = vpop.permute.xlu0 %655
  %657 = vrot.lane.b32.xlu0 %v548, 96
  %v658 = vpop.permute.xlu0 %657
  %659 = vrot.lane.b32.xlu0 %v554, 96
  %v660 = vpop.permute.xlu0 %659
  %661 = vrot.lane.b32.xlu0 %v558, 96
  %v662 = vpop.permute.xlu0 %661
  %663 = vrot.lane.b32.xlu0 %v564, 96
  %v664 = vpop.permute.xlu0 %663
  %665 = vrot.lane.b32.xlu0 %v568, 96
  %v666 = vpop.permute.xlu0 %665
  %667 = vrot.lane.b32.xlu0 %v574, 96
  %v668 = vpop.permute.xlu0 %667
  %669 = vrot.lane.b32.xlu0 %v578, 96
  %v670 = vpop.permute.xlu0 %669
  %v679 = vmax.f32 %v544, %v656
  %v680 = vmax.f32 %v548, %v658
  %v681 = vmax.f32 %v554, %v660
  %v682 = vmax.f32 %v558, %v662
  %v683 = vmax.f32 %v564, %v664
  %v684 = vmax.f32 %v568, %v666
  %v685 = vmax.f32 %v574, %v668
  %v686 = vmax.f32 %v578, %v670
  %687 = vrot.lane.b32.xlu0 %v544, 64
  %v688 = vpop.permute.xlu0 %687
  %689 = vrot.lane.b32.xlu0 %v548, 64
  %v690 = vpop.permute.xlu0 %689
  %691 = vrot.lane.b32.xlu0 %v554, 64
  %v692 = vpop.permute.xlu0 %691
  %693 = vrot.lane.b32.xlu0 %v558, 64
  %v694 = vpop.permute.xlu0 %693
  %695 = vrot.lane.b32.xlu0 %v564, 64
  %v696 = vpop.permute.xlu0 %695
  %697 = vrot.lane.b32.xlu0 %v568, 64
  %v698 = vpop.permute.xlu0 %697
  %699 = vrot.lane.b32.xlu0 %v574, 64
  %v700 = vpop.permute.xlu0 %699
  %701 = vrot.lane.b32.xlu0 %v578, 64
  %v702 = vpop.permute.xlu0 %701
  %v711 = vmax.f32 %v679, %v688
  %v712 = vmax.f32 %v680, %v690
  %v713 = vmax.f32 %v681, %v692
  %v714 = vmax.f32 %v682, %v694
  %v715 = vmax.f32 %v683, %v696
  %v716 = vmax.f32 %v684, %v698
  %v717 = vmax.f32 %v685, %v700
  %v718 = vmax.f32 %v686, %v702
  %719 = vrot.lane.b32.xlu0 %v544, 32
  %v720 = vpop.permute.xlu0 %719
  %721 = vrot.lane.b32.xlu0 %v548, 32
  %v722 = vpop.permute.xlu0 %721
  %723 = vrot.lane.b32.xlu0 %v554, 32
  %v724 = vpop.permute.xlu0 %723
  %725 = vrot.lane.b32.xlu0 %v558, 32
  %v726 = vpop.permute.xlu0 %725
  %727 = vrot.lane.b32.xlu0 %v564, 32
  %v728 = vpop.permute.xlu0 %727
  %729 = vrot.lane.b32.xlu0 %v568, 32
  %v730 = vpop.permute.xlu0 %729
  %731 = vrot.lane.b32.xlu0 %v574, 32
  %v732 = vpop.permute.xlu0 %731
  %733 = vrot.lane.b32.xlu0 %v578, 32
  %v734 = vpop.permute.xlu0 %733
  %v743 = vmax.f32 %v711, %v720
  %v744 = vmax.f32 %v712, %v722
  %v745 = vmax.f32 %v713, %v724
  %v746 = vmax.f32 %v714, %v726
  %v747 = vmax.f32 %v715, %v728
  %v748 = vmax.f32 %v716, %v730
  %v749 = vmax.f32 %v717, %v732
  %v750 = vmax.f32 %v718, %v734
  %v751 = vmax.f32 %v743, %v546
  %v752 = vmax.f32 %v744, %v550
  %v753 = vmax.f32 %v745, %v556
  %v754 = vmax.f32 %v746, %v560
  %v755 = vmax.f32 %v747, %v566
  %v756 = vmax.f32 %v748, %v570
  %v757 = vmax.f32 %v749, %v576
  %v758 = vmax.f32 %v750, %v580
  %767 = vrot.lane.b32.xlu0 %v546, 96
  %v768 = vpop.permute.xlu0 %767
  %769 = vrot.lane.b32.xlu0 %v550, 96
  %v770 = vpop.permute.xlu0 %769
  %771 = vrot.lane.b32.xlu0 %v556, 96
  %v772 = vpop.permute.xlu0 %771
  %773 = vrot.lane.b32.xlu0 %v560, 96
  %v774 = vpop.permute.xlu0 %773
  %775 = vrot.lane.b32.xlu0 %v566, 96
  %v776 = vpop.permute.xlu0 %775
  %777 = vrot.lane.b32.xlu0 %v570, 96
  %v778 = vpop.permute.xlu0 %777
  %779 = vrot.lane.b32.xlu0 %v576, 96
  %v780 = vpop.permute.xlu0 %779
  %781 = vrot.lane.b32.xlu0 %v580, 96
  %v782 = vpop.permute.xlu0 %781
  %v791 = vmax.f32 %v751, %v768
  %v792 = vmax.f32 %v752, %v770
  %v793 = vmax.f32 %v753, %v772
  %v794 = vmax.f32 %v754, %v774
  %v795 = vmax.f32 %v755, %v776
  %v796 = vmax.f32 %v756, %v778
  %v797 = vmax.f32 %v757, %v780
  %v798 = vmax.f32 %v758, %v782
  %799 = vrot.lane.b32.xlu0 %v546, 64
  %v800 = vpop.permute.xlu0 %799
  %801 = vrot.lane.b32.xlu0 %v550, 64
  %v802 = vpop.permute.xlu0 %801
  %803 = vrot.lane.b32.xlu0 %v556, 64
  %v804 = vpop.permute.xlu0 %803
  %805 = vrot.lane.b32.xlu0 %v560, 64
  %v806 = vpop.permute.xlu0 %805
  %807 = vrot.lane.b32.xlu0 %v566, 64
  %v808 = vpop.permute.xlu0 %807
  %809 = vrot.lane.b32.xlu0 %v570, 64
  %v810 = vpop.permute.xlu0 %809
  %811 = vrot.lane.b32.xlu0 %v576, 64
  %v812 = vpop.permute.xlu0 %811
  %813 = vrot.lane.b32.xlu0 %v580, 64
  %v814 = vpop.permute.xlu0 %813
  %v823 = vmax.f32 %v791, %v800
  %v824 = vmax.f32 %v792, %v802
  %v825 = vmax.f32 %v793, %v804
  %v826 = vmax.f32 %v794, %v806
  %v827 = vmax.f32 %v795, %v808
  %v828 = vmax.f32 %v796, %v810
  %v829 = vmax.f32 %v797, %v812
  %v830 = vmax.f32 %v798, %v814
  %831 = vrot.lane.b32.xlu0 %v546, 32
  %v832 = vpop.permute.xlu0 %831
  %833 = vrot.lane.b32.xlu0 %v550, 32
  %v834 = vpop.permute.xlu0 %833
  %835 = vrot.lane.b32.xlu0 %v556, 32
  %v836 = vpop.permute.xlu0 %835
  %837 = vrot.lane.b32.xlu0 %v560, 32
  %v838 = vpop.permute.xlu0 %837
  %839 = vrot.lane.b32.xlu0 %v566, 32
  %v840 = vpop.permute.xlu0 %839
  %841 = vrot.lane.b32.xlu0 %v570, 32
  %v842 = vpop.permute.xlu0 %841
  %843 = vrot.lane.b32.xlu0 %v576, 32
  %v844 = vpop.permute.xlu0 %843
  %845 = vrot.lane.b32.xlu0 %v580, 32
  %v846 = vpop.permute.xlu0 %845
  %v855 = vmax.f32 %v823, %v832
  %v856 = vmax.f32 %v824, %v834
  %v857 = vmax.f32 %v825, %v836
  %v858 = vmax.f32 %v826, %v838
  %v859 = vmax.f32 %v827, %v840
  %v860 = vmax.f32 %v828, %v842
  %v861 = vmax.f32 %v829, %v844
  %v862 = vmax.f32 %v830, %v846
  %v863 = vmax.f32 %v855, %v617
  %v864 = vmax.f32 %v856, %v620
  %v865 = vmax.f32 %v857, %v625
  %v866 = vmax.f32 %v858, %v628
  %v867 = vmax.f32 %v859, %v633
  %v868 = vmax.f32 %v860, %v636
  %v869 = vmax.f32 %v861, %v641
  %v870 = vmax.f32 %v862, %v644
  %v871 = vpack.c.bf16 %v864, %v863
  %v872 = vpack.c.bf16 %v866, %v865
  %v873 = vpack.c.bf16 %v868, %v867
  %v874 = vpack.c.bf16 %v870, %v869
  %v875 = vld [vmem:[%s14] sm:$0xff]
  %v876 = vld [vmem:[%s14 + $0x8] sm:$0xf]
  %v877 = vld [vmem:[%s14 + $0xc] sm:$0xff]
  %v878 = vld [vmem:[%s14 + $0x14] sm:$0xf]
  %v879 = vld [vmem:[%s14 + $0x18] sm:$0xff]
  %v880 = vld [vmem:[%s14 + $0x20] sm:$0xf]
  %v881 = vld [vmem:[%s14 + $0x24] sm:$0xff]
  %v882 = vld [vmem:[%s14 + $0x2c] sm:$0xf]
  %v891 = vunpack.c.l.b16 %v875
  %v892 = vunpack.c.h.b16 %v875
  %v893 = vunpack.c.l.b16 %v876
  %v894 = vunpack.c.l.b16 %v877
  %v895 = vunpack.c.h.b16 %v877
  %v896 = vunpack.c.l.b16 %v878
  %v897 = vunpack.c.l.b16 %v879
  %v898 = vunpack.c.h.b16 %v879
  %v899 = vunpack.c.l.b16 %v880
  %v900 = vunpack.c.l.b16 %v881
  %v901 = vunpack.c.h.b16 %v881
  %v902 = vunpack.c.l.b16 %v882
  %v903 = vpack.c.b16 %v894, %v891
  %v904 = vpack.c.b16 %v895, %v892
  %v905 = vpack.c.b16 %v896, %v893
  %v906 = vpack.c.b16 %v900, %v897
  %v907 = vpack.c.b16 %v901, %v898
  %v908 = vpack.c.b16 %v902, %v899
  %vm915 = vcmask 261120
  %v917 = vsel %vm915, %v871, 0
  %v920 = vsel %vm915, %v872, 0
  %v923 = vsel %vm915, %v873, 0
  %v926 = vsel %vm915, %v874, 0
  %928 = vmatprep.subr.bf16.mxu0 %v904
  %929 = vmatpush1.bf16.msra.mxu0 %v903
  %930 = vmatprep.subr.bf16.mxu0 %v907
  %931 = vmatpush1.bf16.msra.mxu0 %v906
  %932 = vmatprep.subr.bf16.mxu0 0
  %933 = vmatpush1.bf16.msra.mxu0 0
  %934 = vmatprep.subr.bf16.mxu0 0
  %935 = vmatpush1.bf16.msra.mxu0 0
  %936 = vmatprep.subr.bf16.mxu0 0
  %937 = vmatpush1.bf16.msra.mxu0 0
  %938 = vmatprep.subr.bf16.mxu0 0
  %939 = vmatpush1.bf16.msra.mxu0 0
  %940 = vmatprep.subr.bf16.mxu0 0
  %941 = vmatpush1.bf16.msra.mxu0 0
  %942 = vmatprep.subr.bf16.mxu0 0
  %943 = vmatpush1.bf16.msra.mxu0 0
  %944 = vmatprep.subr.bf16.mxu0 0
  %945 = vmatpush1.bf16.msra.mxu0 0
  %946 = vmatprep.subr.bf16.mxu0 0
  %947 = vmatpush1.bf16.msra.mxu0 0
  %948 = vmatprep.subr.bf16.mxu0 0
  %949 = vmatpush1.bf16.msra.mxu0 0
  %950 = vmatprep.subr.bf16.mxu0 0
  %951 = vmatpush1.bf16.msra.mxu0 0
  %952 = vmatprep.subr.bf16.mxu0 0
  %953 = vmatpush1.bf16.msra.mxu0 0
  %954 = vmatprep.subr.bf16.mxu0 0
  %955 = vmatpush1.bf16.msra.mxu0 0
  %956 = vmatprep.subr.bf16.mxu0 0
  %957 = vmatpush1.bf16.msra.mxu0 0
  %958 = vmatprep.subr.bf16.mxu0 0
  %959 = vmatpush1.bf16.msra.mxu0 0
  %960 = vmatprep.mubr.bf16.mxu0 0
  %961 = vmatmul.mubr.bf16.gmra.mrb[0].mxu0 %v917
  %v962 = vpop.f32.mrb[0].mxu0
  %v963 = vadd.f32 0.0, %v962
  %v964 = vpop.f32.mrb[0].mxu0
  %v965 = vadd.f32 0.0, %v964
  %v966 = vpop.f32.mrb[0].mxu0
  %v967 = vadd.f32 0.0, %v966
  %v968 = vpop.f32.mrb[0].mxu0
  %v969 = vadd.f32 0.0, %v968
  %970 = vmatprep.mubr.bf16.mxu0 0
  %971 = vmatmul.mubr.bf16.gmra.mrb[0].mxu0 %v920
  %v972 = vpop.f32.mrb[0].mxu0
  %v973 = vadd.f32 0.0, %v972
  %v974 = vpop.f32.mrb[0].mxu0
  %v975 = vadd.f32 0.0, %v974
  %v976 = vpop.f32.mrb[0].mxu0
  %v977 = vadd.f32 0.0, %v976
  %v978 = vpop.f32.mrb[0].mxu0
  %v979 = vadd.f32 0.0, %v978
  %980 = vmatprep.mubr.bf16.mxu0 0
  %981 = vmatmul.mubr.bf16.gmra.mrb[0].mxu0 %v923
  %v982 = vpop.f32.mrb[0].mxu0
  %v983 = vadd.f32 0.0, %v982
  %v984 = vpop.f32.mrb[0].mxu0
  %v985 = vadd.f32 0.0, %v984
  %v986 = vpop.f32.mrb[0].mxu0
  %v987 = vadd.f32 0.0, %v986
  %v988 = vpop.f32.mrb[0].mxu0
  %v989 = vadd.f32 0.0, %v988
  %990 = vmatprep.mubr.bf16.mxu0 0
  %991 = vmatmul.mubr.bf16.gmra.mrb[0].mxu0 %v926
  %v992 = vpop.f32.mrb[0].mxu0
  %v993 = vadd.f32 0.0, %v992
  %v994 = vpop.f32.mrb[0].mxu0
  %v995 = vadd.f32 0.0, %v994
  %v996 = vpop.f32.mrb[0].mxu0
  %v997 = vadd.f32 0.0, %v996
  %v998 = vpop.f32.mrb[0].mxu0
  %v999 = vadd.f32 0.0, %v998
  %1000 = vdwg.mxu0
  %1001 = vmatprep.subr.bf16.mxu0 0
  %1002 = vmatpush1.bf16.msra.mxu0 %v905
  %1003 = vmatprep.subr.bf16.mxu0 0
  %1004 = vmatpush1.bf16.msra.mxu0 %v908
  %1005 = vmatprep.subr.bf16.mxu0 0
  %1006 = vmatpush1.bf16.msra.mxu0 0
  %1007 = vmatprep.subr.bf16.mxu0 0
  %1008 = vmatpush1.bf16.msra.mxu0 0
  %1009 = vmatprep.subr.bf16.mxu0 0
  %1010 = vmatpush1.bf16.msra.mxu0 0
  %1011 = vmatprep.subr.bf16.mxu0 0
  %1012 = vmatpush1.bf16.msra.mxu0 0
  %1013 = vmatprep.subr.bf16.mxu0 0
  %1014 = vmatpush1.bf16.msra.mxu0 0
  %1015 = vmatprep.subr.bf16.mxu0 0
  %1016 = vmatpush1.bf16.msra.mxu0 0
  %1017 = vmatprep.subr.bf16.mxu0 0
  %1018 = vmatpush1.bf16.msra.mxu0 0
  %1019 = vmatprep.subr.bf16.mxu0 0
  %1020 = vmatpush1.bf16.msra.mxu0 0
  %1021 = vmatprep.subr.bf16.mxu0 0
  %1022 = vmatpush1.bf16.msra.mxu0 0
  %1023 = vmatprep.subr.bf16.mxu0 0
  %1024 = vmatpush1.bf16.msra.mxu0 0
  %1025 = vmatprep.subr.bf16.mxu0 0
  %1026 = vmatpush1.bf16.msra.mxu0 0
  %1027 = vmatprep.subr.bf16.mxu0 0
  %1028 = vmatpush1.bf16.msra.mxu0 0
  %1029 = vmatprep.subr.bf16.mxu0 0
  %1030 = vmatpush1.bf16.msra.mxu0 0
  %1031 = vmatprep.subr.bf16.mxu0 0
  %1032 = vmatpush1.bf16.msra.mxu0 0
  %1033 = vmatprep.mubr.bf16.mxu0 0
  %1034 = vmatmul.mubr.bf16.gmra.mrb[0].mxu0 %v917
  %v1035 = vpop.f32.mrb[0].mxu0
  %v1036 = vadd.f32 0.0, %v1035
  %v1037 = vpop.f32.mrb[0].mxu0
  %v1038 = vpop.f32.mrb[0].mxu0
  %v1039 = vadd.f32 0.0, %v1038
  %v1040 = vpop.f32.mrb[0].mxu0
  %1041 = vmatprep.mubr.bf16.mxu0 0
  %1042 = vmatmul.mubr.bf16.gmra.mrb[0].mxu0 %v920
  %v1043 = vpop.f32.mrb[0].mxu0
  %v1044 = vadd.f32 0.0, %v1043
  %v1045 = vpop.f32.mrb[0].mxu0
  %v1046 = vpop.f32.mrb[0].mxu0
  %v1047 = vadd.f32 0.0, %v1046
  %v1048 = vpop.f32.mrb[0].mxu0
  %1049 = vmatprep.mubr.bf16.mxu0 0
  %1050 = vmatmul.mubr.bf16.gmra.mrb[0].mxu0 %v923
  %v1051 = vpop.f32.mrb[0].mxu0
  %v1052 = vadd.f32 0.0, %v1051
  %v1053 = vpop.f32.mrb[0].mxu0
  %v1054 = vpop.f32.mrb[0].mxu0
  %v1055 = vadd.f32 0.0, %v1054
  %v1056 = vpop.f32.mrb[0].mxu0
  %1057 = vmatprep.mubr.bf16.mxu0 0
  %1058 = vmatmul.mubr.bf16.gmra.mrb[0].mxu0 %v926
  %v1059 = vpop.f32.mrb[0].mxu0
  %v1060 = vadd.f32 0.0, %v1059
  %v1061 = vpop.f32.mrb[0].mxu0
  %v1062 = vpop.f32.mrb[0].mxu0
  %v1063 = vadd.f32 0.0, %v1062
  %v1064 = vpop.f32.mrb[0].mxu0
  %1065 = vdwg.mxu0
  %v1066 = vpack.c.bf16 %v967, %v963
  %v1067 = vpack.c.bf16 %v969, %v965
  %v1068 = vpack.c.bf16 %v1039, %v1036
  %v1069 = vpack.c.bf16 %v977, %v973
  %v1070 = vpack.c.bf16 %v979, %v975
  %v1071 = vpack.c.bf16 %v1047, %v1044
  %v1072 = vpack.c.bf16 %v987, %v983
  %v1073 = vpack.c.bf16 %v989, %v985
  %v1074 = vpack.c.bf16 %v1055, %v1052
  %v1075 = vpack.c.bf16 %v997, %v993
  %v1076 = vpack.c.bf16 %v999, %v995
  %v1077 = vpack.c.bf16 %v1063, %v1060
  %1078 = vst.msk [vmem:[#allocation2] sm:$0xff] %vm915, %v1066
  %1079 = vst.msk [vmem:[#allocation2 + $0x8] sm:$0xff] %vm915, %v1069
  %1080 = vst.msk [vmem:[#allocation2 + $0x10] sm:$0xff] %vm915, %v1072
  %1081 = vst.msk [vmem:[#allocation2 + $0x18] sm:$0xff] %vm915, %v1075
  %1086 = vrot.lane.b32.xlu0 %v1066, 96
  %v1087 = vpop.permute.xlu0 %1086
  %1088 = vrot.lane.b32.xlu0 %v1069, 96
  %v1089 = vpop.permute.xlu0 %1088
  %1090 = vrot.lane.b32.xlu0 %v1072, 96
  %v1091 = vpop.permute.xlu0 %1090
  %1092 = vrot.lane.b32.xlu0 %v1075, 96
  %v1093 = vpop.permute.xlu0 %1092
  %1098 = vst.msk [vmem:[#allocation2 + $0x20] sm:$0xff] %vm915, %v1087
  %1099 = vst.msk [vmem:[#allocation2 + $0x28] sm:$0xff] %vm915, %v1089
  %1100 = vst.msk [vmem:[#allocation2 + $0x30] sm:$0xff] %vm915, %v1091
  %1101 = vst.msk [vmem:[#allocation2 + $0x38] sm:$0xff] %vm915, %v1093
  %1102 = vrot.lane.b32.xlu0 %v1066, 64
  %v1103 = vpop.permute.xlu0 %1102
  %1104 = vrot.lane.b32.xlu0 %v1069, 64
  %v1105 = vpop.permute.xlu0 %1104
  %1106 = vrot.lane.b32.xlu0 %v1072, 64
  %v1107 = vpop.permute.xlu0 %1106
  %1108 = vrot.lane.b32.xlu0 %v1075, 64
  %v1109 = vpop.permute.xlu0 %1108
  %1114 = vst.msk [vmem:[#allocation2 + $0x40] sm:$0xff] %vm915, %v1103
  %1115 = vst.msk [vmem:[#allocation2 + $0x48] sm:$0xff] %vm915, %v1105
  %1116 = vst.msk [vmem:[#allocation2 + $0x50] sm:$0xff] %vm915, %v1107
  %1117 = vst.msk [vmem:[#allocation2 + $0x58] sm:$0xff] %vm915, %v1109
  %1118 = vrot.lane.b32.xlu0 %v1066, 32
  %v1119 = vpop.permute.xlu0 %1118
  %1120 = vrot.lane.b32.xlu0 %v1069, 32
  %v1121 = vpop.permute.xlu0 %1120
  %1122 = vrot.lane.b32.xlu0 %v1072, 32
  %v1123 = vpop.permute.xlu0 %1122
  %1124 = vrot.lane.b32.xlu0 %v1075, 32
  %v1125 = vpop.permute.xlu0 %1124
  %1130 = vst.msk [vmem:[#allocation2 + $0x60] sm:$0xff] %vm915, %v1119
  %1131 = vst.msk [vmem:[#allocation2 + $0x68] sm:$0xff] %vm915, %v1121
  %1132 = vst.msk [vmem:[#allocation2 + $0x70] sm:$0xff] %vm915, %v1123
  %1133 = vst.msk [vmem:[#allocation2 + $0x78] sm:$0xff] %vm915, %v1125
  %1134 = vst.msk [vmem:[#allocation2 + $0x80] sm:$0xff] %vm915, %v1067
  %1135 = vst.msk [vmem:[#allocation2 + $0x88] sm:$0xff] %vm915, %v1070
  %1136 = vst.msk [vmem:[#allocation2 + $0x90] sm:$0xff] %vm915, %v1073
  %1137 = vst.msk [vmem:[#allocation2 + $0x98] sm:$0xff] %vm915, %v1076
  %1142 = vrot.lane.b32.xlu0 %v1067, 96
  %v1143 = vpop.permute.xlu0 %1142
  %1144 = vrot.lane.b32.xlu0 %v1070, 96
  %v1145 = vpop.permute.xlu0 %1144
  %1146 = vrot.lane.b32.xlu0 %v1073, 96
  %v1147 = vpop.permute.xlu0 %1146
  %1148 = vrot.lane.b32.xlu0 %v1076, 96
  %v1149 = vpop.permute.xlu0 %1148
  %1154 = vst.msk [vmem:[#allocation2 + $0xa0] sm:$0xff] %vm915, %v1143
  %1155 = vst.msk [vmem:[#allocation2 + $0xa8] sm:$0xff] %vm915, %v1145
  %1156 = vst.msk [vmem:[#allocation2 + $0xb0] sm:$0xff] %vm915, %v1147
  %1157 = vst.msk [vmem:[#allocation2 + $0xb8] sm:$0xff] %vm915, %v1149
  %1158 = vrot.lane.b32.xlu0 %v1067, 64
  %v1159 = vpop.permute.xlu0 %1158
  %1160 = vrot.lane.b32.xlu0 %v1070, 64
  %v1161 = vpop.permute.xlu0 %1160
  %1162 = vrot.lane.b32.xlu0 %v1073, 64
  %v1163 = vpop.permute.xlu0 %1162
  %1164 = vrot.lane.b32.xlu0 %v1076, 64
  %v1165 = vpop.permute.xlu0 %1164
  %1170 = vst.msk [vmem:[#allocation2 + $0xc0] sm:$0xff] %vm915, %v1159
  %1171 = vst.msk [vmem:[#allocation2 + $0xc8] sm:$0xff] %vm915, %v1161
  %1172 = vst.msk [vmem:[#allocation2 + $0xd0] sm:$0xff] %vm915, %v1163
  %1173 = vst.msk [vmem:[#allocation2 + $0xd8] sm:$0xff] %vm915, %v1165
  %1174 = vrot.lane.b32.xlu0 %v1067, 32
  %v1175 = vpop.permute.xlu0 %1174
  %1176 = vrot.lane.b32.xlu0 %v1070, 32
  %v1177 = vpop.permute.xlu0 %1176
  %1178 = vrot.lane.b32.xlu0 %v1073, 32
  %v1179 = vpop.permute.xlu0 %1178
  %1180 = vrot.lane.b32.xlu0 %v1076, 32
  %v1181 = vpop.permute.xlu0 %1180
  %1186 = vst.msk [vmem:[#allocation2 + $0xe0] sm:$0xff] %vm915, %v1175
  %1187 = vst.msk [vmem:[#allocation2 + $0xe8] sm:$0xff] %vm915, %v1177
  %1188 = vst.msk [vmem:[#allocation2 + $0xf0] sm:$0xff] %vm915, %v1179
  %1189 = vst.msk [vmem:[#allocation2 + $0xf8] sm:$0xff] %vm915, %v1181
  %1190 = vst.msk [vmem:[#allocation2 + $0x100] sm:$0xff] %vm915, %v1068
  %1191 = vst.msk [vmem:[#allocation2 + $0x108] sm:$0xff] %vm915, %v1071
  %1192 = vst.msk [vmem:[#allocation2 + $0x110] sm:$0xff] %vm915, %v1074
  %1193 = vst.msk [vmem:[#allocation2 + $0x118] sm:$0xff] %vm915, %v1077
  %v1194 = vld [vmem:[%s2] sm:$0xff]
  %v1195 = vld [vmem:[%s2 + $0x8] sm:$0xff]
  %v1196 = vld [vmem:[%s2 + $0x10] sm:$0xf]
  %v1197 = vld [vmem:[%s2 + $0x14] sm:$0xff]
  %v1198 = vld [vmem:[%s2 + $0x1c] sm:$0xff]
  %v1199 = vld [vmem:[%s2 + $0x24] sm:$0xf]
  %v1200 = vld [vmem:[%s2 + $0x28] sm:$0xff]
  %v1201 = vld [vmem:[%s2 + $0x30] sm:$0xff]
  %v1202 = vld [vmem:[%s2 + $0x38] sm:$0xf]
  %v1203 = vld [vmem:[%s2 + $0x3c] sm:$0xff]
  %v1204 = vld [vmem:[%s2 + $0x44] sm:$0xff]
  %v1205 = vld [vmem:[%s2 + $0x4c] sm:$0xf]
  %v1206 = vld [vmem:[%s2 + $0x50] sm:$0xff]
  %v1207 = vld [vmem:[%s2 + $0x58] sm:$0xff]
  %v1208 = vld [vmem:[%s2 + $0x60] sm:$0xf]
  %v1209 = vld [vmem:[%s2 + $0x64] sm:$0xff]
  %v1210 = vld [vmem:[%s2 + $0x6c] sm:$0xff]
  %v1211 = vld [vmem:[%s2 + $0x74] sm:$0xf]
  %v1212 = vld [vmem:[%s2 + $0x78] sm:$0xff]
  %v1213 = vld [vmem:[%s2 + $0x80] sm:$0xff]
  %v1214 = vld [vmem:[%s2 + $0x88] sm:$0xf]
  %v1215 = vld [vmem:[%s2 + $0x8c] sm:$0xff]
  %v1216 = vld [vmem:[%s2 + $0x94] sm:$0xff]
  %v1217 = vld [vmem:[%s2 + $0x9c] sm:$0xf]
  %v1218 = vld [vmem:[#allocation2] sm:$0xff]
  %v1219 = vld [vmem:[#allocation2 + $0x8] sm:$0xff]
  %v1220 = vld [vmem:[#allocation2 + $0x10] sm:$0xff]
  %v1221 = vld [vmem:[#allocation2 + $0x18] sm:$0xff]
  %v1222 = vld [vmem:[#allocation2 + $0x20] sm:$0xff]
  %v1223 = vld [vmem:[#allocation2 + $0x28] sm:$0xff]
  %v1224 = vld [vmem:[#allocation2 + $0x30] sm:$0xff]
  %v1225 = vld [vmem:[#allocation2 + $0x38] sm:$0xff]
  %v1226 = vld [vmem:[#allocation2 + $0x40] sm:$0xff]
  %v1227 = vld [vmem:[#allocation2 + $0x48] sm:$0xff]
  %v1228 = vld [vmem:[#allocation2 + $0x50] sm:$0xff]
  %v1229 = vld [vmem:[#allocation2 + $0x58] sm:$0xff]
  %v1230 = vld [vmem:[#allocation2 + $0x60] sm:$0xff]
  %v1231 = vld [vmem:[#allocation2 + $0x68] sm:$0xff]
  %v1232 = vld [vmem:[#allocation2 + $0x70] sm:$0xff]
  %v1233 = vld [vmem:[#allocation2 + $0x78] sm:$0xff]
  %v1234 = vld [vmem:[#allocation2 + $0x80] sm:$0xff]
  %v1235 = vld [vmem:[#allocation2 + $0x88] sm:$0xff]
  %v1236 = vld [vmem:[#allocation2 + $0x90] sm:$0xff]
  %v1237 = vld [vmem:[#allocation2 + $0x98] sm:$0xff]
  %v1238 = vld [vmem:[#allocation2 + $0xa0] sm:$0xff]
  %v1239 = vld [vmem:[#allocation2 + $0xa8] sm:$0xff]
  %v1240 = vld [vmem:[#allocation2 + $0xb0] sm:$0xff]
  %v1241 = vld [vmem:[#allocation2 + $0xb8] sm:$0xff]
  %v1242 = vld [vmem:[#allocation2 + $0xc0] sm:$0xff]
  %v1243 = vld [vmem:[#allocation2 + $0xc8] sm:$0xff]
  %v1244 = vld [vmem:[#allocation2 + $0xd0] sm:$0xff]
  %v1245 = vld [vmem:[#allocation2 + $0xd8] sm:$0xff]
  %v1246 = vld [vmem:[#allocation2 + $0xe0] sm:$0xff]
  %v1247 = vld [vmem:[#allocation2 + $0xe8] sm:$0xff]
  %v1248 = vld [vmem:[#allocation2 + $0xf0] sm:$0xff]
  %v1249 = vld [vmem:[#allocation2 + $0xf8] sm:$0xff]
  %v1250 = vld [vmem:[#allocation2 + $0x100] sm:$0xff]
  %v1251 = vld [vmem:[#allocation2 + $0x108] sm:$0xff]
  %v1252 = vld [vmem:[#allocation2 + $0x110] sm:$0xff]
  %v1253 = vld [vmem:[#allocation2 + $0x118] sm:$0xff]
  %v1254 = vld [vmem:[%s12] sm:$0xff]
  %v1255 = vld [vmem:[%s12 + $0x8] sm:$0xff]
  %v1256 = vld [vmem:[%s12 + $0x10] sm:$0xff]
  %v1257 = vld [vmem:[%s12 + $0x18] sm:$0xff]
  %v1258 = vld [vmem:[%s12 + $0x20] sm:$0xff]
  %v1259 = vld [vmem:[%s12 + $0x28] sm:$0xff]
  %v1260 = vld [vmem:[%s12 + $0x30] sm:$0xff]
  %v1261 = vld [vmem:[%s12 + $0x38] sm:$0xff]
  %1263 = vset.pattern.permute.xlu0 1
  %1264 = vperm.xlu0 %1263, %v1254
  %v1265 = vpop.permute.xlu0 %1264
  %1268 = vset.pattern.permute.xlu0 1
  %1269 = vperm.xlu0 %1268, %v1255
  %v1270 = vpop.permute.xlu0 %1269
  %1273 = vset.pattern.permute.xlu0 1
  %1274 = vperm.xlu0 %1273, %v1256
  %v1275 = vpop.permute.xlu0 %1274
  %1278 = vset.pattern.permute.xlu0 1
  %1279 = vperm.xlu0 %1278, %v1257
  %v1280 = vpop.permute.xlu0 %1279
  %1283 = vset.pattern.permute.xlu0 1
  %1284 = vperm.xlu0 %1283, %v1258
  %v1285 = vpop.permute.xlu0 %1284
  %1288 = vset.pattern.permute.xlu0 1
  %1289 = vperm.xlu0 %1288, %v1259
  %v1290 = vpop.permute.xlu0 %1289
  %1293 = vset.pattern.permute.xlu0 1
  %1294 = vperm.xlu0 %1293, %v1260
  %v1295 = vpop.permute.xlu0 %1294
  %1298 = vset.pattern.permute.xlu0 1
  %1299 = vperm.xlu0 %1298, %v1261
  %v1300 = vpop.permute.xlu0 %1299
  %v1326 = vunpack.c.l.b16 %v1194
  %v1327 = vunpack.c.h.b16 %v1194
  %v1328 = vunpack.c.l.b16 %v1195
  %v1329 = vunpack.c.h.b16 %v1195
  %v1330 = vunpack.c.l.b16 %v1196
  %v1331 = vunpack.c.l.b16 %v1197
  %v1332 = vunpack.c.h.b16 %v1197
  %v1333 = vunpack.c.l.b16 %v1198
  %v1334 = vunpack.c.h.b16 %v1198
  %v1335 = vunpack.c.l.b16 %v1199
  %v1336 = vunpack.c.l.b16 %v1200
  %v1337 = vunpack.c.h.b16 %v1200
  %v1338 = vunpack.c.l.b16 %v1201
  %v1339 = vunpack.c.h.b16 %v1201
  %v1340 = vunpack.c.l.b16 %v1202
  %v1341 = vunpack.c.l.b16 %v1203
  %v1342 = vunpack.c.h.b16 %v1203
  %v1343 = vunpack.c.l.b16 %v1204
  %v1344 = vunpack.c.h.b16 %v1204
  %v1345 = vunpack.c.l.b16 %v1205
  %v1346 = vunpack.c.l.b16 %v1206
  %v1347 = vunpack.c.h.b16 %v1206
  %v1348 = vunpack.c.l.b16 %v1207
  %v1349 = vunpack.c.h.b16 %v1207
  %v1350 = vunpack.c.l.b16 %v1208
  %v1351 = vunpack.c.l.b16 %v1209
  %v1352 = vunpack.c.h.b16 %v1209
  %v1353 = vunpack.c.l.b16 %v1210
  %v1354 = vunpack.c.h.b16 %v1210
  %v1355 = vunpack.c.l.b16 %v1211
  %v1356 = vunpack.c.l.b16 %v1212
  %v1357 = vunpack.c.h.b16 %v1212
  %v1358 = vunpack.c.l.b16 %v1213
  %v1359 = vunpack.c.h.b16 %v1213
  %v1360 = vunpack.c.l.b16 %v1214
  %v1361 = vunpack.c.l.b16 %v1215
  %v1362 = vunpack.c.h.b16 %v1215
  %v1363 = vunpack.c.l.b16 %v1216
  %v1364 = vunpack.c.h.b16 %v1216
  %v1365 = vunpack.c.l.b16 %v1217
  %v1366 = vpack.c.b16 %v1331, %v1326
  %v1367 = vpack.c.b16 %v1332, %v1327
  %v1368 = vpack.c.b16 %v1333, %v1328
  %v1369 = vpack.c.b16 %v1334, %v1329
  %v1370 = vpack.c.b16 %v1335, %v1330
  %v1371 = vpack.c.b16 %v1341, %v1336
  %v1372 = vpack.c.b16 %v1342, %v1337
  %v1373 = vpack.c.b16 %v1343, %v1338
  %v1374 = vpack.c.b16 %v1344, %v1339
  %v1375 = vpack.c.b16 %v1345, %v1340
  %v1376 = vpack.c.b16 %v1351, %v1346
  %v1377 = vpack.c.b16 %v1352, %v1347
  %v1378 = vpack.c.b16 %v1353, %v1348
  %v1379 = vpack.c.b16 %v1354, %v1349
  %v1380 = vpack.c.b16 %v1355, %v1350
  %v1381 = vpack.c.b16 %v1361, %v1356
  %v1382 = vpack.c.b16 %v1362, %v1357
  %v1383 = vpack.c.b16 %v1363, %v1358
  %v1384 = vpack.c.b16 %v1364, %v1359
  %v1385 = vpack.c.b16 %v1365, %v1360
  %vm1402 = vcmask 523264
  %v1404 = vsel %vm1402, %v1370, 0
  %v1407 = vsel %vm1402, %v1375, 0
  %v1410 = vsel %vm1402, %v1380, 0
  %v1413 = vsel %vm1402, %v1385, 0
  %1415 = vmatprep.subr.bf16.mxu0 0
  %1416 = vmatpush1.bf16.msra.mxu0 %v1218
  %1417 = vmatprep.subr.bf16.mxu0 0
  %1418 = vmatpush1.bf16.msra.mxu0 %v1219
  %1419 = vmatprep.subr.bf16.mxu0 0
  %1420 = vmatpush1.bf16.msra.mxu0 %v1220
  %1421 = vmatprep.subr.bf16.mxu0 0
  %1422 = vmatpush1.bf16.msra.mxu0 %v1221
  %1423 = vmatprep.subr.bf16.mxu0 0
  %1424 = vmatpush1.bf16.msra.mxu0 %v1222
  %1425 = vmatprep.subr.bf16.mxu0 0
  %1426 = vmatpush1.bf16.msra.mxu0 %v1223
  %1427 = vmatprep.subr.bf16.mxu0 0
  %1428 = vmatpush1.bf16.msra.mxu0 %v1224
  %1429 = vmatprep.subr.bf16.mxu0 0
  %1430 = vmatpush1.bf16.msra.mxu0 %v1225
  %1431 = vmatprep.subr.bf16.mxu0 0
  %1432 = vmatpush1.bf16.msra.mxu0 %v1226
  %1433 = vmatprep.subr.bf16.mxu0 0
  %1434 = vmatpush1.bf16.msra.mxu0 %v1227
  %1435 = vmatprep.subr.bf16.mxu0 0
  %1436 = vmatpush1.bf16.msra.mxu0 %v1228
  %1437 = vmatprep.subr.bf16.mxu0 0
  %1438 = vmatpush1.bf16.msra.mxu0 %v1229
  %1439 = vmatprep.subr.bf16.mxu0 0
  %1440 = vmatpush1.bf16.msra.mxu0 %v1230
  %1441 = vmatprep.subr.bf16.mxu0 0
  %1442 = vmatpush1.bf16.msra.mxu0 %v1231
  %1443 = vmatprep.subr.bf16.mxu0 0
  %1444 = vmatpush1.bf16.msra.mxu0 %v1232
  %1445 = vmatprep.subr.bf16.mxu0 0
  %1446 = vmatpush1.bf16.msra.mxu0 %v1233
  %1447 = vmatprep.mubr.bf16.mxu0 %v1367
  %1448 = vmatmul.mubr.bf16.gmra.mrb[0].mxu0 %v1366
  %v1449 = vpop.f32.mrb[0].mxu0
  %v1450 = vadd.f32 %v1265, %v1449
  %v1451 = vpop.f32.mrb[0].mxu0
  %v1452 = vpop.f32.mrb[0].mxu0
  %v1453 = vadd.f32 %v1270, %v1452
  %v1454 = vpop.f32.mrb[0].mxu0
  %1455 = vmatprep.mubr.bf16.mxu0 %v1372
  %1456 = vmatmul.mubr.bf16.gmra.mrb[0].mxu0 %v1371
  %v1457 = vpop.f32.mrb[0].mxu0
  %v1458 = vadd.f32 %v1275, %v1457
  %v1459 = vpop.f32.mrb[0].mxu0
  %v1460 = vpop.f32.mrb[0].mxu0
  %v1461 = vadd.f32 %v1280, %v1460
  %v1462 = vpop.f32.mrb[0].mxu0
  %1463 = vmatprep.mubr.bf16.mxu0 %v1377
  %1464 = vmatmul.mubr.bf16.gmra.mrb[0].mxu0 %v1376
  %v1465 = vpop.f32.mrb[0].mxu0
  %v1466 = vadd.f32 %v1285, %v1465
  %v1467 = vpop.f32.mrb[0].mxu0
  %v1468 = vpop.f32.mrb[0].mxu0
  %v1469 = vadd.f32 %v1290, %v1468
  %v1470 = vpop.f32.mrb[0].mxu0
  %1471 = vmatprep.mubr.bf16.mxu0 %v1382
  %1472 = vmatmul.mubr.bf16.gmra.mrb[0].mxu0 %v1381
  %v1473 = vpop.f32.mrb[0].mxu0
  %v1474 = vadd.f32 %v1295, %v1473
  %v1475 = vpop.f32.mrb[0].mxu0
  %v1476 = vpop.f32.mrb[0].mxu0
  %v1477 = vadd.f32 %v1300, %v1476
  %v1478 = vpop.f32.mrb[0].mxu0
  %1479 = vdwg.mxu0
  %1480 = vmatprep.subr.bf16.mxu0 0
  %1481 = vmatpush1.bf16.msra.mxu0 %v1234
  %1482 = vmatprep.subr.bf16.mxu0 0
  %1483 = vmatpush1.bf16.msra.mxu0 %v1235
  %1484 = vmatprep.subr.bf16.mxu0 0
  %1485 = vmatpush1.bf16.msra.mxu0 %v1236
  %1486 = vmatprep.subr.bf16.mxu0 0
  %1487 = vmatpush1.bf16.msra.mxu0 %v1237
  %1488 = vmatprep.subr.bf16.mxu0 0
  %1489 = vmatpush1.bf16.msra.mxu0 %v1238
  %1490 = vmatprep.subr.bf16.mxu0 0
  %1491 = vmatpush1.bf16.msra.mxu0 %v1239
  %1492 = vmatprep.subr.bf16.mxu0 0
  %1493 = vmatpush1.bf16.msra.mxu0 %v1240
  %1494 = vmatprep.subr.bf16.mxu0 0
  %1495 = vmatpush1.bf16.msra.mxu0 %v1241
  %1496 = vmatprep.subr.bf16.mxu0 0
  %1497 = vmatpush1.bf16.msra.mxu0 %v1242
  %1498 = vmatprep.subr.bf16.mxu0 0
  %1499 = vmatpush1.bf16.msra.mxu0 %v1243
  %1500 = vmatprep.subr.bf16.mxu0 0
  %1501 = vmatpush1.bf16.msra.mxu0 %v1244
  %1502 = vmatprep.subr.bf16.mxu0 0
  %1503 = vmatpush1.bf16.msra.mxu0 %v1245
  %1504 = vmatprep.subr.bf16.mxu0 0
  %1505 = vmatpush1.bf16.msra.mxu0 %v1246
  %1506 = vmatprep.subr.bf16.mxu0 0
  %1507 = vmatpush1.bf16.msra.mxu0 %v1247
  %1508 = vmatprep.subr.bf16.mxu0 0
  %1509 = vmatpush1.bf16.msra.mxu0 %v1248
  %1510 = vmatprep.subr.bf16.mxu0 0
  %1511 = vmatpush1.bf16.msra.mxu0 %v1249
  %1512 = vmatprep.mubr.bf16.mxu0 %v1369
  %1513 = vmatmul.mubr.bf16.gmra.mrb[0].mxu0 %v1368
  %v1514 = vpop.f32.mrb[0].mxu0
  %v1515 = vadd.f32 %v1450, %v1514
  %v1516 = vpop.f32.mrb[0].mxu0
  %v1517 = vpop.f32.mrb[0].mxu0
  %v1518 = vadd.f32 %v1453, %v1517
  %v1519 = vpop.f32.mrb[0].mxu0
  %1520 = vmatprep.mubr.bf16.mxu0 %v1374
  %1521 = vmatmul.mubr.bf16.gmra.mrb[0].mxu0 %v1373
  %v1522 = vpop.f32.mrb[0].mxu0
  %v1523 = vadd.f32 %v1458, %v1522
  %v1524 = vpop.f32.mrb[0].mxu0
  %v1525 = vpop.f32.mrb[0].mxu0
  %v1526 = vadd.f32 %v1461, %v1525
  %v1527 = vpop.f32.mrb[0].mxu0
  %1528 = vmatprep.mubr.bf16.mxu0 %v1379
  %1529 = vmatmul.mubr.bf16.gmra.mrb[0].mxu0 %v1378
  %v1530 = vpop.f32.mrb[0].mxu0
  %v1531 = vadd.f32 %v1466, %v1530
  %v1532 = vpop.f32.mrb[0].mxu0
  %v1533 = vpop.f32.mrb[0].mxu0
  %v1534 = vadd.f32 %v1469, %v1533
  %v1535 = vpop.f32.mrb[0].mxu0
  %1536 = vmatprep.mubr.bf16.mxu0 %v1384
  %1537 = vmatmul.mubr.bf16.gmra.mrb[0].mxu0 %v1383
  %v1538 = vpop.f32.mrb[0].mxu0
  %v1539 = vadd.f32 %v1474, %v1538
  %v1540 = vpop.f32.mrb[0].mxu0
  %v1541 = vpop.f32.mrb[0].mxu0
  %v1542 = vadd.f32 %v1477, %v1541
  %v1543 = vpop.f32.mrb[0].mxu0
  %1544 = vdwg.mxu0
  %1545 = vmatprep.subr.bf16.mxu0 0
  %1546 = vmatpush1.bf16.msra.mxu0 %v1250
  %1547 = vmatprep.subr.bf16.mxu0 0
  %1548 = vmatpush1.bf16.msra.mxu0 %v1251
  %1549 = vmatprep.subr.bf16.mxu0 0
  %1550 = vmatpush1.bf16.msra.mxu0 %v1252
  %1551 = vmatprep.subr.bf16.mxu0 0
  %1552 = vmatpush1.bf16.msra.mxu0 %v1253
  %1553 = vmatprep.subr.bf16.mxu0 0
  %1554 = vmatpush1.bf16.msra.mxu0 0
  %1555 = vmatprep.subr.bf16.mxu0 0
  %1556 = vmatpush1.bf16.msra.mxu0 0
  %1557 = vmatprep.subr.bf16.mxu0 0
  %1558 = vmatpush1.bf16.msra.mxu0 0
  %1559 = vmatprep.subr.bf16.mxu0 0
  %1560 = vmatpush1.bf16.msra.mxu0 0
  %1561 = vmatprep.subr.bf16.mxu0 0
  %1562 = vmatpush1.bf16.msra.mxu0 0
  %1563 = vmatprep.subr.bf16.mxu0 0
  %1564 = vmatpush1.bf16.msra.mxu0 0
  %1565 = vmatprep.subr.bf16.mxu0 0
  %1566 = vmatpush1.bf16.msra.mxu0 0
  %1567 = vmatprep.subr.bf16.mxu0 0
  %1568 = vmatpush1.bf16.msra.mxu0 0
  %1569 = vmatprep.subr.bf16.mxu0 0
  %1570 = vmatpush1.bf16.msra.mxu0 0
  %1571 = vmatprep.subr.bf16.mxu0 0
  %1572 = vmatpush1.bf16.msra.mxu0 0
  %1573 = vmatprep.subr.bf16.mxu0 0
  %1574 = vmatpush1.bf16.msra.mxu0 0
  %1575 = vmatprep.subr.bf16.mxu0 0
  %1576 = vmatpush1.bf16.msra.mxu0 0
  %1577 = vmatprep.mubr.bf16.mxu0 0
  %1578 = vmatmul.mubr.bf16.gmra.mrb[0].mxu0 %v1404
  %v1579 = vpop.f32.mrb[0].mxu0
  %v1580 = vadd.f32 %v1515, %v1579
  %v1581 = vpop.f32.mrb[0].mxu0
  %v1582 = vpop.f32.mrb[0].mxu0
  %v1583 = vadd.f32 %v1518, %v1582
  %v1584 = vpop.f32.mrb[0].mxu0
  %1585 = vmatprep.mubr.bf16.mxu0 0
  %1586 = vmatmul.mubr.bf16.gmra.mrb[0].mxu0 %v1407
  %v1587 = vpop.f32.mrb[0].mxu0
  %v1588 = vadd.f32 %v1523, %v1587
  %v1589 = vpop.f32.mrb[0].mxu0
  %v1590 = vpop.f32.mrb[0].mxu0
  %v1591 = vadd.f32 %v1526, %v1590
  %v1592 = vpop.f32.mrb[0].mxu0
  %1593 = vmatprep.mubr.bf16.mxu0 0
  %1594 = vmatmul.mubr.bf16.gmra.mrb[0].mxu0 %v1410
  %v1595 = vpop.f32.mrb[0].mxu0
  %v1596 = vadd.f32 %v1531, %v1595
  %v1597 = vpop.f32.mrb[0].mxu0
  %v1598 = vpop.f32.mrb[0].mxu0
  %v1599 = vadd.f32 %v1534, %v1598
  %v1600 = vpop.f32.mrb[0].mxu0
  %1601 = vmatprep.mubr.bf16.mxu0 0
  %1602 = vmatmul.mubr.bf16.gmra.mrb[0].mxu0 %v1413
  %v1603 = vpop.f32.mrb[0].mxu0
  %v1604 = vadd.f32 %v1539, %v1603
  %v1605 = vpop.f32.mrb[0].mxu0
  %v1606 = vpop.f32.mrb[0].mxu0
  %v1607 = vadd.f32 %v1542, %v1606
  %v1608 = vpop.f32.mrb[0].mxu0
  %1609 = vdwg.mxu0
  %v1610 = vmax.f32 %v1580, 0.0
  %v1611 = vmax.f32 %v1583, 0.0
  %v1612 = vmax.f32 %v1588, 0.0
  %v1613 = vmax.f32 %v1591, 0.0
  %v1614 = vmax.f32 %v1596, 0.0
  %v1615 = vmax.f32 %v1599, 0.0
  %v1616 = vmax.f32 %v1604, 0.0
  %v1617 = vmax.f32 %v1607, 0.0
  %v1618 = vpack.c.bf16 %v1611, %v1610
  %v1619 = vpack.c.bf16 %v1613, %v1612
  %v1620 = vpack.c.bf16 %v1615, %v1614
  %v1621 = vpack.c.bf16 %v1617, %v1616
  %v1622 = vunpack.c.l.bf16 %v871
  %v1623 = vunpack.c.h.bf16 %v871
  %v1624 = vunpack.c.l.bf16 %v872
  %v1625 = vunpack.c.h.bf16 %v872
  %v1626 = vunpack.c.l.bf16 %v873
  %v1627 = vunpack.c.h.bf16 %v873
  %v1628 = vunpack.c.l.bf16 %v874
  %v1629 = vunpack.c.h.bf16 %v874
  %v1630 = vld [vmem:[%s14] sm:$0xff]
  %v1631 = vld [vmem:[%s14 + $0x8] sm:$0xf]
  %v1632 = vld [vmem:[%s14 + $0xc] sm:$0xff]
  %v1633 = vld [vmem:[%s14 + $0x14] sm:$0xf]
  %v1634 = vld [vmem:[%s14 + $0x18] sm:$0xff]
  %v1635 = vld [vmem:[%s14 + $0x20] sm:$0xf]
  %v1636 = vld [vmem:[%s14 + $0x24] sm:$0xff]
  %v1637 = vld [vmem:[%s14 + $0x2c] sm:$0xf]
  %v1646 = vunpack.c.l.b16 %v1630
  %v1647 = vunpack.c.h.b16 %v1630
  %v1648 = vunpack.c.l.b16 %v1631
  %v1649 = vunpack.c.l.b16 %v1632
  %v1650 = vunpack.c.h.b16 %v1632
  %v1651 = vunpack.c.l.b16 %v1633
  %v1652 = vunpack.c.l.b16 %v1634
  %v1653 = vunpack.c.h.b16 %v1634
  %v1654 = vunpack.c.l.b16 %v1635
  %v1655 = vunpack.c.l.b16 %v1636
  %v1656 = vunpack.c.h.b16 %v1636
  %v1657 = vunpack.c.l.b16 %v1637
  %v1658 = vpack.c.b16 %v1649, %v1646
  %v1659 = vpack.c.b16 %v1650, %v1647
  %v1660 = vpack.c.b16 %v1651, %v1648
  %v1661 = vpack.c.b16 %v1655, %v1652
  %v1662 = vpack.c.b16 %v1656, %v1653
  %v1663 = vpack.c.b16 %v1657, %v1654
  %v1671 = vsel %vm915, %v1618, 0
  %v1674 = vsel %vm915, %v1619, 0
  %v1677 = vsel %vm915, %v1620, 0
  %v1680 = vsel %vm915, %v1621, 0
  %1682 = vmatprep.subr.bf16.mxu0 %v1659
  %1683 = vmatpush1.bf16.msra.mxu0 %v1658
  %1684 = vmatprep.subr.bf16.mxu0 %v1662
  %1685 = vmatpush1.bf16.msra.mxu0 %v1661
  %1686 = vmatprep.subr.bf16.mxu0 0
  %1687 = vmatpush1.bf16.msra.mxu0 0
  %1688 = vmatprep.subr.bf16.mxu0 0
  %1689 = vmatpush1.bf16.msra.mxu0 0
  %1690 = vmatprep.subr.bf16.mxu0 0
  %1691 = vmatpush1.bf16.msra.mxu0 0
  %1692 = vmatprep.subr.bf16.mxu0 0
  %1693 = vmatpush1.bf16.msra.mxu0 0
  %1694 = vmatprep.subr.bf16.mxu0 0
  %1695 = vmatpush1.bf16.msra.mxu0 0
  %1696 = vmatprep.subr.bf16.mxu0 0
  %1697 = vmatpush1.bf16.msra.mxu0 0
  %1698 = vmatprep.subr.bf16.mxu0 0
  %1699 = vmatpush1.bf16.msra.mxu0 0
  %1700 = vmatprep.subr.bf16.mxu0 0
  %1701 = vmatpush1.bf16.msra.mxu0 0
  %1702 = vmatprep.subr.bf16.mxu0 0
  %1703 = vmatpush1.bf16.msra.mxu0 0
  %1704 = vmatprep.subr.bf16.mxu0 0
  %1705 = vmatpush1.bf16.msra.mxu0 0
  %1706 = vmatprep.subr.bf16.mxu0 0
  %1707 = vmatpush1.bf16.msra.mxu0 0
  %1708 = vmatprep.subr.bf16.mxu0 0
  %1709 = vmatpush1.bf16.msra.mxu0 0
  %1710 = vmatprep.subr.bf16.mxu0 0
  %1711 = vmatpush1.bf16.msra.mxu0 0
  %1712 = vmatprep.subr.bf16.mxu0 0
  %1713 = vmatpush1.bf16.msra.mxu0 0
  %1714 = vmatprep.mubr.bf16.mxu0 0
  %1715 = vmatmul.mubr.bf16.gmra.mrb[0].mxu0 %v1671
  %v1716 = vpop.f32.mrb[0].mxu0
  %v1717 = vadd.f32 0.0, %v1716
  %v1718 = vpop.f32.mrb[0].mxu0
  %v1719 = vadd.f32 0.0, %v1718
  %v1720 = vpop.f32.mrb[0].mxu0
  %v1721 = vadd.f32 0.0, %v1720
  %v1722 = vpop.f32.mrb[0].mxu0
  %v1723 = vadd.f32 0.0, %v1722
  %1724 = vmatprep.mubr.bf16.mxu0 0
  %1725 = vmatmul.mubr.bf16.gmra.mrb[0].mxu0 %v1674
  %v1726 = vpop.f32.mrb[0].mxu0
  %v1727 = vadd.f32 0.0, %v1726
  %v1728 = vpop.f32.mrb[0].mxu0
  %v1729 = vadd.f32 0.0, %v1728
  %v1730 = vpop.f32.mrb[0].mxu0
  %v1731 = vadd.f32 0.0, %v1730
  %v1732 = vpop.f32.mrb[0].mxu0
  %v1733 = vadd.f32 0.0, %v1732
  %1734 = vmatprep.mubr.bf16.mxu0 0
  %1735 = vmatmul.mubr.bf16.gmra.mrb[0].mxu0 %v1677
  %v1736 = vpop.f32.mrb[0].mxu0
  %v1737 = vadd.f32 0.0, %v1736
  %v1738 = vpop.f32.mrb[0].mxu0
  %v1739 = vadd.f32 0.0, %v1738
  %v1740 = vpop.f32.mrb[0].mxu0
  %v1741 = vadd.f32 0.0, %v1740
  %v1742 = vpop.f32.mrb[0].mxu0
  %v1743 = vadd.f32 0.0, %v1742
  %1744 = vmatprep.mubr.bf16.mxu0 0
  %1745 = vmatmul.mubr.bf16.gmra.mrb[0].mxu0 %v1680
  %v1746 = vpop.f32.mrb[0].mxu0
  %v1747 = vadd.f32 0.0, %v1746
  %v1748 = vpop.f32.mrb[0].mxu0
  %v1749 = vadd.f32 0.0, %v1748
  %v1750 = vpop.f32.mrb[0].mxu0
  %v1751 = vadd.f32 0.0, %v1750
  %v1752 = vpop.f32.mrb[0].mxu0
  %v1753 = vadd.f32 0.0, %v1752
  %1754 = vdwg.mxu0
  %1755 = vmatprep.subr.bf16.mxu0 0
  %1756 = vmatpush1.bf16.msra.mxu0 %v1660
  %1757 = vmatprep.subr.bf16.mxu0 0
  %1758 = vmatpush1.bf16.msra.mxu0 %v1663
  %1759 = vmatprep.subr.bf16.mxu0 0
  %1760 = vmatpush1.bf16.msra.mxu0 0
  %1761 = vmatprep.subr.bf16.mxu0 0
  %1762 = vmatpush1.bf16.msra.mxu0 0
  %1763 = vmatprep.subr.bf16.mxu0 0
  %1764 = vmatpush1.bf16.msra.mxu0 0
  %1765 = vmatprep.subr.bf16.mxu0 0
  %1766 = vmatpush1.bf16.msra.mxu0 0
  %1767 = vmatprep.subr.bf16.mxu0 0
  %1768 = vmatpush1.bf16.msra.mxu0 0
  %1769 = vmatprep.subr.bf16.mxu0 0
  %1770 = vmatpush1.bf16.msra.mxu0 0
  %1771 = vmatprep.subr.bf16.mxu0 0
  %1772 = vmatpush1.bf16.msra.mxu0 0
  %1773 = vmatprep.subr.bf16.mxu0 0
  %1774 = vmatpush1.bf16.msra.mxu0 0
  %1775 = vmatprep.subr.bf16.mxu0 0
  %1776 = vmatpush1.bf16.msra.mxu0 0
  %1777 = vmatprep.subr.bf16.mxu0 0
  %1778 = vmatpush1.bf16.msra.mxu0 0
  %1779 = vmatprep.subr.bf16.mxu0 0
  %1780 = vmatpush1.bf16.msra.mxu0 0
  %1781 = vmatprep.subr.bf16.mxu0 0
  %1782 = vmatpush1.bf16.msra.mxu0 0
  %1783 = vmatprep.subr.bf16.mxu0 0
  %1784 = vmatpush1.bf16.msra.mxu0 0
  %1785 = vmatprep.subr.bf16.mxu0 0
  %1786 = vmatpush1.bf16.msra.mxu0 0
  %1787 = vmatprep.mubr.bf16.mxu0 0
  %1788 = vmatmul.mubr.bf16.gmra.mrb[0].mxu0 %v1671
  %v1789 = vpop.f32.mrb[0].mxu0
  %v1790 = vadd.f32 0.0, %v1789
  %v1791 = vpop.f32.mrb[0].mxu0
  %v1792 = vpop.f32.mrb[0].mxu0
  %v1793 = vadd.f32 0.0, %v1792
  %v1794 = vpop.f32.mrb[0].mxu0
  %1795 = vmatprep.mubr.bf16.mxu0 0
  %1796 = vmatmul.mubr.bf16.gmra.mrb[0].mxu0 %v1674
  %v1797 = vpop.f32.mrb[0].mxu0
  %v1798 = vadd.f32 0.0, %v1797
  %v1799 = vpop.f32.mrb[0].mxu0
  %v1800 = vpop.f32.mrb[0].mxu0
  %v1801 = vadd.f32 0.0, %v1800
  %v1802 = vpop.f32.mrb[0].mxu0
  %1803 = vmatprep.mubr.bf16.mxu0 0
  %1804 = vmatmul.mubr.bf16.gmra.mrb[0].mxu0 %v1677
  %v1805 = vpop.f32.mrb[0].mxu0
  %v1806 = vadd.f32 0.0, %v1805
  %v1807 = vpop.f32.mrb[0].mxu0
  %v1808 = vpop.f32.mrb[0].mxu0
  %v1809 = vadd.f32 0.0, %v1808
  %v1810 = vpop.f32.mrb[0].mxu0
  %1811 = vmatprep.mubr.bf16.mxu0 0
  %1812 = vmatmul.mubr.bf16.gmra.mrb[0].mxu0 %v1680
  %v1813 = vpop.f32.mrb[0].mxu0
  %v1814 = vadd.f32 0.0, %v1813
  %v1815 = vpop.f32.mrb[0].mxu0
  %v1816 = vpop.f32.mrb[0].mxu0
  %v1817 = vadd.f32 0.0, %v1816
  %v1818 = vpop.f32.mrb[0].mxu0
  %1819 = vdwg.mxu0
  %v1820 = vpack.c.bf16 %v1721, %v1717
  %v1821 = vpack.c.bf16 %v1723, %v1719
  %v1822 = vpack.c.bf16 %v1793, %v1790
  %v1823 = vpack.c.bf16 %v1731, %v1727
  %v1824 = vpack.c.bf16 %v1733, %v1729
  %v1825 = vpack.c.bf16 %v1801, %v1798
  %v1826 = vpack.c.bf16 %v1741, %v1737
  %v1827 = vpack.c.bf16 %v1743, %v1739
  %v1828 = vpack.c.bf16 %v1809, %v1806
  %v1829 = vpack.c.bf16 %v1751, %v1747
  %v1830 = vpack.c.bf16 %v1753, %v1749
  %v1831 = vpack.c.bf16 %v1817, %v1814
  %1832 = vst.msk [vmem:[#allocation2] sm:$0xff] %vm915, %v1820
  %1833 = vst.msk [vmem:[#allocation2 + $0x8] sm:$0xff] %vm915, %v1823
  %1834 = vst.msk [vmem:[#allocation2 + $0x10] sm:$0xff] %vm915, %v1826
  %1835 = vst.msk [vmem:[#allocation2 + $0x18] sm:$0xff] %vm915, %v1829
  %1840 = vrot.lane.b32.xlu0 %v1820, 96
  %v1841 = vpop.permute.xlu0 %1840
  %1842 = vrot.lane.b32.xlu0 %v1823, 96
  %v1843 = vpop.permute.xlu0 %1842
  %1844 = vrot.lane.b32.xlu0 %v1826, 96
  %v1845 = vpop.permute.xlu0 %1844
  %1846 = vrot.lane.b32.xlu0 %v1829, 96
  %v1847 = vpop.permute.xlu0 %1846
  %1852 = vst.msk [vmem:[#allocation2 + $0x20] sm:$0xff] %vm915, %v1841
  %1853 = vst.msk [vmem:[#allocation2 + $0x28] sm:$0xff] %vm915, %v1843
  %1854 = vst.msk [vmem:[#allocation2 + $0x30] sm:$0xff] %vm915, %v1845
  %1855 = vst.msk [vmem:[#allocation2 + $0x38] sm:$0xff] %vm915, %v1847
  %1856 = vrot.lane.b32.xlu0 %v1820, 64
  %v1857 = vpop.permute.xlu0 %1856
  %1858 = vrot.lane.b32.xlu0 %v1823, 64
  %v1859 = vpop.permute.xlu0 %1858
  %1860 = vrot.lane.b32.xlu0 %v1826, 64
  %v1861 = vpop.permute.xlu0 %1860
  %1862 = vrot.lane.b32.xlu0 %v1829, 64
  %v1863 = vpop.permute.xlu0 %1862
  %1868 = vst.msk [vmem:[#allocation2 + $0x40] sm:$0xff] %vm915, %v1857
  %1869 = vst.msk [vmem:[#allocation2 + $0x48] sm:$0xff] %vm915, %v1859
  %1870 = vst.msk [vmem:[#allocation2 + $0x50] sm:$0xff] %vm915, %v1861
  %1871 = vst.msk [vmem:[#allocation2 + $0x58] sm:$0xff] %vm915, %v1863
  %1872 = vrot.lane.b32.xlu0 %v1820, 32
  %v1873 = vpop.permute.xlu0 %1872
  %1874 = vrot.lane.b32.xlu0 %v1823, 32
  %v1875 = vpop.permute.xlu0 %1874
  %1876 = vrot.lane.b32.xlu0 %v1826, 32
  %v1877 = vpop.permute.xlu0 %1876
  %1878 = vrot.lane.b32.xlu0 %v1829, 32
  %v1879 = vpop.permute.xlu0 %1878
  %1884 = vst.msk [vmem:[#allocation2 + $0x60] sm:$0xff] %vm915, %v1873
  %1885 = vst.msk [vmem:[#allocation2 + $0x68] sm:$0xff] %vm915, %v1875
  %1886 = vst.msk [vmem:[#allocation2 + $0x70] sm:$0xff] %vm915, %v1877
  %1887 = vst.msk [vmem:[#allocation2 + $0x78] sm:$0xff] %vm915, %v1879
  %1888 = vst.msk [vmem:[#allocation2 + $0x80] sm:$0xff] %vm915, %v1821
  %1889 = vst.msk [vmem:[#allocation2 + $0x88] sm:$0xff] %vm915, %v1824
  %1890 = vst.msk [vmem:[#allocation2 + $0x90] sm:$0xff] %vm915, %v1827
  %1891 = vst.msk [vmem:[#allocation2 + $0x98] sm:$0xff] %vm915, %v1830
  %1896 = vrot.lane.b32.xlu0 %v1821, 96
  %v1897 = vpop.permute.xlu0 %1896
  %1898 = vrot.lane.b32.xlu0 %v1824, 96
  %v1899 = vpop.permute.xlu0 %1898
  %1900 = vrot.lane.b32.xlu0 %v1827, 96
  %v1901 = vpop.permute.xlu0 %1900
  %1902 = vrot.lane.b32.xlu0 %v1830, 96
  %v1903 = vpop.permute.xlu0 %1902
  %1908 = vst.msk [vmem:[#allocation2 + $0xa0] sm:$0xff] %vm915, %v1897
  %1909 = vst.msk [vmem:[#allocation2 + $0xa8] sm:$0xff] %vm915, %v1899
  %1910 = vst.msk [vmem:[#allocation2 + $0xb0] sm:$0xff] %vm915, %v1901
  %1911 = vst.msk [vmem:[#allocation2 + $0xb8] sm:$0xff] %vm915, %v1903
  %1912 = vrot.lane.b32.xlu0 %v1821, 64
  %v1913 = vpop.permute.xlu0 %1912
  %1914 = vrot.lane.b32.xlu0 %v1824, 64
  %v1915 = vpop.permute.xlu0 %1914
  %1916 = vrot.lane.b32.xlu0 %v1827, 64
  %v1917 = vpop.permute.xlu0 %1916
  %1918 = vrot.lane.b32.xlu0 %v1830, 64
  %v1919 = vpop.permute.xlu0 %1918
  %1924 = vst.msk [vmem:[#allocation2 + $0xc0] sm:$0xff] %vm915, %v1913
  %1925 = vst.msk [vmem:[#allocation2 + $0xc8] sm:$0xff] %vm915, %v1915
  %1926 = vst.msk [vmem:[#allocation2 + $0xd0] sm:$0xff] %vm915, %v1917
  %1927 = vst.msk [vmem:[#allocation2 + $0xd8] sm:$0xff] %vm915, %v1919
  %1928 = vrot.lane.b32.xlu0 %v1821, 32
  %v1929 = vpop.permute.xlu0 %1928
  %1930 = vrot.lane.b32.xlu0 %v1824, 32
  %v1931 = vpop.permute.xlu0 %1930
  %1932 = vrot.lane.b32.xlu0 %v1827, 32
  %v1933 = vpop.permute.xlu0 %1932
  %1934 = vrot.lane.b32.xlu0 %v1830, 32
  %v1935 = vpop.permute.xlu0 %1934
  %1940 = vst.msk [vmem:[#allocation2 + $0xe0] sm:$0xff] %vm915, %v1929
  %1941 = vst.msk [vmem:[#allocation2 + $0xe8] sm:$0xff] %vm915, %v1931
  %1942 = vst.msk [vmem:[#allocation2 + $0xf0] sm:$0xff] %vm915, %v1933
  %1943 = vst.msk [vmem:[#allocation2 + $0xf8] sm:$0xff] %vm915, %v1935
  %1944 = vst.msk [vmem:[#allocation2 + $0x100] sm:$0xff] %vm915, %v1822
  %1945 = vst.msk [vmem:[#allocation2 + $0x108] sm:$0xff] %vm915, %v1825
  %1946 = vst.msk [vmem:[#allocation2 + $0x110] sm:$0xff] %vm915, %v1828
  %1947 = vst.msk [vmem:[#allocation2 + $0x118] sm:$0xff] %vm915, %v1831
  %v1948 = vld [vmem:[%s3] sm:$0xff]
  %v1949 = vld [vmem:[%s3 + $0x8] sm:$0xff]
  %v1950 = vld [vmem:[%s3 + $0x10] sm:$0xf]
  %v1951 = vld [vmem:[%s3 + $0x14] sm:$0xff]
  %v1952 = vld [vmem:[%s3 + $0x1c] sm:$0xff]
  %v1953 = vld [vmem:[%s3 + $0x24] sm:$0xf]
  %v1954 = vld [vmem:[%s3 + $0x28] sm:$0xff]
  %v1955 = vld [vmem:[%s3 + $0x30] sm:$0xff]
  %v1956 = vld [vmem:[%s3 + $0x38] sm:$0xf]
  %v1957 = vld [vmem:[%s3 + $0x3c] sm:$0xff]
  %v1958 = vld [vmem:[%s3 + $0x44] sm:$0xff]
  %v1959 = vld [vmem:[%s3 + $0x4c] sm:$0xf]
  %v1960 = vld [vmem:[%s3 + $0x50] sm:$0xff]
  %v1961 = vld [vmem:[%s3 + $0x58] sm:$0xff]
  %v1962 = vld [vmem:[%s3 + $0x60] sm:$0xf]
  %v1963 = vld [vmem:[%s3 + $0x64] sm:$0xff]
  %v1964 = vld [vmem:[%s3 + $0x6c] sm:$0xff]
  %v1965 = vld [vmem:[%s3 + $0x74] sm:$0xf]
  %v1966 = vld [vmem:[%s3 + $0x78] sm:$0xff]
  %v1967 = vld [vmem:[%s3 + $0x80] sm:$0xff]
  %v1968 = vld [vmem:[%s3 + $0x88] sm:$0xf]
  %v1969 = vld [vmem:[%s3 + $0x8c] sm:$0xff]
  %v1970 = vld [vmem:[%s3 + $0x94] sm:$0xff]
  %v1971 = vld [vmem:[%s3 + $0x9c] sm:$0xf]
  %v1972 = vld [vmem:[#allocation2] sm:$0xff]
  %v1973 = vld [vmem:[#allocation2 + $0x8] sm:$0xff]
  %v1974 = vld [vmem:[#allocation2 + $0x10] sm:$0xff]
  %v1975 = vld [vmem:[#allocation2 + $0x18] sm:$0xff]
  %v1976 = vld [vmem:[#allocation2 + $0x20] sm:$0xff]
  %v1977 = vld [vmem:[#allocation2 + $0x28] sm:$0xff]
  %v1978 = vld [vmem:[#allocation2 + $0x30] sm:$0xff]
  %v1979 = vld [vmem:[#allocation2 + $0x38] sm:$0xff]
  %v1980 = vld [vmem:[#allocation2 + $0x40] sm:$0xff]
  %v1981 = vld [vmem:[#allocation2 + $0x48] sm:$0xff]
  %v1982 = vld [vmem:[#allocation2 + $0x50] sm:$0xff]
  %v1983 = vld [vmem:[#allocation2 + $0x58] sm:$0xff]
  %v1984 = vld [vmem:[#allocation2 + $0x60] sm:$0xff]
  %v1985 = vld [vmem:[#allocation2 + $0x68] sm:$0xff]
  %v1986 = vld [vmem:[#allocation2 + $0x70] sm:$0xff]
  %v1987 = vld [vmem:[#allocation2 + $0x78] sm:$0xff]
  %v1988 = vld [vmem:[#allocation2 + $0x80] sm:$0xff]
  %v1989 = vld [vmem:[#allocation2 + $0x88] sm:$0xff]
  %v1990 = vld [vmem:[#allocation2 + $0x90] sm:$0xff]
  %v1991 = vld [vmem:[#allocation2 + $0x98] sm:$0xff]
  %v1992 = vld [vmem:[#allocation2 + $0xa0] sm:$0xff]
  %v1993 = vld [vmem:[#allocation2 + $0xa8] sm:$0xff]
  %v1994 = vld [vmem:[#allocation2 + $0xb0] sm:$0xff]
  %v1995 = vld [vmem:[#allocation2 + $0xb8] sm:$0xff]
  %v1996 = vld [vmem:[#allocation2 + $0xc0] sm:$0xff]
  %v1997 = vld [vmem:[#allocation2 + $0xc8] sm:$0xff]
  %v1998 = vld [vmem:[#allocation2 + $0xd0] sm:$0xff]
  %v1999 = vld [vmem:[#allocation2 + $0xd8] sm:$0xff]
  %v2000 = vld [vmem:[#allocation2 + $0xe0] sm:$0xff]
  %v2001 = vld [vmem:[#allocation2 + $0xe8] sm:$0xff]
  %v2002 = vld [vmem:[#allocation2 + $0xf0] sm:$0xff]
  %v2003 = vld [vmem:[#allocation2 + $0xf8] sm:$0xff]
  %v2004 = vld [vmem:[#allocation2 + $0x100] sm:$0xff]
  %v2005 = vld [vmem:[#allocation2 + $0x108] sm:$0xff]
  %v2006 = vld [vmem:[#allocation2 + $0x110] sm:$0xff]
  %v2007 = vld [vmem:[#allocation2 + $0x118] sm:$0xff]
  %v2008 = vld [vmem:[%s12] sm:$0xff]
  %v2009 = vld [vmem:[%s12 + $0x8] sm:$0xff]
  %v2010 = vld [vmem:[%s12 + $0x10] sm:$0xff]
  %v2011 = vld [vmem:[%s12 + $0x18] sm:$0xff]
  %v2012 = vld [vmem:[%s12 + $0x20] sm:$0xff]
  %v2013 = vld [vmem:[%s12 + $0x28] sm:$0xff]
  %v2014 = vld [vmem:[%s12 + $0x30] sm:$0xff]
  %v2015 = vld [vmem:[%s12 + $0x38] sm:$0xff]
  %2017 = vset.pattern.permute.xlu0 2
  %2018 = vperm.xlu0 %2017, %v2008
  %v2019 = vpop.permute.xlu0 %2018
  %2022 = vset.pattern.permute.xlu0 2
  %2023 = vperm.xlu0 %2022, %v2009
  %v2024 = vpop.permute.xlu0 %2023
  %2027 = vset.pattern.permute.xlu0 2
  %2028 = vperm.xlu0 %2027, %v2010
  %v2029 = vpop.permute.xlu0 %2028
  %2032 = vset.pattern.permute.xlu0 2
  %2033 = vperm.xlu0 %2032, %v2011
  %v2034 = vpop.permute.xlu0 %2033
  %2037 = vset.pattern.permute.xlu0 2
  %2038 = vperm.xlu0 %2037, %v2012
  %v2039 = vpop.permute.xlu0 %2038
  %2042 = vset.pattern.permute.xlu0 2
  %2043 = vperm.xlu0 %2042, %v2013
  %v2044 = vpop.permute.xlu0 %2043
  %2047 = vset.pattern.permute.xlu0 2
  %2048 = vperm.xlu0 %2047, %v2014
  %v2049 = vpop.permute.xlu0 %2048
  %2052 = vset.pattern.permute.xlu0 2
  %2053 = vperm.xlu0 %2052, %v2015
  %v2054 = vpop.permute.xlu0 %2053
  %v2080 = vunpack.c.l.b16 %v1948
  %v2081 = vunpack.c.h.b16 %v1948
  %v2082 = vunpack.c.l.b16 %v1949
  %v2083 = vunpack.c.h.b16 %v1949
  %v2084 = vunpack.c.l.b16 %v1950
  %v2085 = vunpack.c.l.b16 %v1951
  %v2086 = vunpack.c.h.b16 %v1951
  %v2087 = vunpack.c.l.b16 %v1952
  %v2088 = vunpack.c.h.b16 %v1952
  %v2089 = vunpack.c.l.b16 %v1953
  %v2090 = vunpack.c.l.b16 %v1954
  %v2091 = vunpack.c.h.b16 %v1954
  %v2092 = vunpack.c.l.b16 %v1955
  %v2093 = vunpack.c.h.b16 %v1955
  %v2094 = vunpack.c.l.b16 %v1956
  %v2095 = vunpack.c.l.b16 %v1957
  %v2096 = vunpack.c.h.b16 %v1957
  %v2097 = vunpack.c.l.b16 %v1958
  %v2098 = vunpack.c.h.b16 %v1958
  %v2099 = vunpack.c.l.b16 %v1959
  %v2100 = vunpack.c.l.b16 %v1960
  %v2101 = vunpack.c.h.b16 %v1960
  %v2102 = vunpack.c.l.b16 %v1961
  %v2103 = vunpack.c.h.b16 %v1961
  %v2104 = vunpack.c.l.b16 %v1962
  %v2105 = vunpack.c.l.b16 %v1963
  %v2106 = vunpack.c.h.b16 %v1963
  %v2107 = vunpack.c.l.b16 %v1964
  %v2108 = vunpack.c.h.b16 %v1964
  %v2109 = vunpack.c.l.b16 %v1965
  %v2110 = vunpack.c.l.b16 %v1966
  %v2111 = vunpack.c.h.b16 %v1966
  %v2112 = vunpack.c.l.b16 %v1967
  %v2113 = vunpack.c.h.b16 %v1967
  %v2114 = vunpack.c.l.b16 %v1968
  %v2115 = vunpack.c.l.b16 %v1969
  %v2116 = vunpack.c.h.b16 %v1969
  %v2117 = vunpack.c.l.b16 %v1970
  %v2118 = vunpack.c.h.b16 %v1970
  %v2119 = vunpack.c.l.b16 %v1971
  %v2120 = vpack.c.b16 %v2085, %v2080
  %v2121 = vpack.c.b16 %v2086, %v2081
  %v2122 = vpack.c.b16 %v2087, %v2082
  %v2123 = vpack.c.b16 %v2088, %v2083
  %v2124 = vpack.c.b16 %v2089, %v2084
  %v2125 = vpack.c.b16 %v2095, %v2090
  %v2126 = vpack.c.b16 %v2096, %v2091
  %v2127 = vpack.c.b16 %v2097, %v2092
  %v2128 = vpack.c.b16 %v2098, %v2093
  %v2129 = vpack.c.b16 %v2099, %v2094
  %v2130 = vpack.c.b16 %v2105, %v2100
  %v2131 = vpack.c.b16 %v2106, %v2101
  %v2132 = vpack.c.b16 %v2107, %v2102
  %v2133 = vpack.c.b16 %v2108, %v2103
  %v2134 = vpack.c.b16 %v2109, %v2104
  %v2135 = vpack.c.b16 %v2115, %v2110
  %v2136 = vpack.c.b16 %v2116, %v2111
  %v2137 = vpack.c.b16 %v2117, %v2112
  %v2138 = vpack.c.b16 %v2118, %v2113
  %v2139 = vpack.c.b16 %v2119, %v2114
  %v2157 = vsel %vm1402, %v2124, 0
  %v2160 = vsel %vm1402, %v2129, 0
  %v2163 = vsel %vm1402, %v2134, 0
  %v2166 = vsel %vm1402, %v2139, 0
  %2168 = vmatprep.subr.bf16.mxu0 0
  %2169 = vmatpush1.bf16.msra.mxu0 %v1972
  %2170 = vmatprep.subr.bf16.mxu0 0
  %2171 = vmatpush1.bf16.msra.mxu0 %v1973
  %2172 = vmatprep.subr.bf16.mxu0 0
  %2173 = vmatpush1.bf16.msra.mxu0 %v1974
  %2174 = vmatprep.subr.bf16.mxu0 0
  %2175 = vmatpush1.bf16.msra.mxu0 %v1975
  %2176 = vmatprep.subr.bf16.mxu0 0
  %2177 = vmatpush1.bf16.msra.mxu0 %v1976
  %2178 = vmatprep.subr.bf16.mxu0 0
  %2179 = vmatpush1.bf16.msra.mxu0 %v1977
  %2180 = vmatprep.subr.bf16.mxu0 0
  %2181 = vmatpush1.bf16.msra.mxu0 %v1978
  %2182 = vmatprep.subr.bf16.mxu0 0
  %2183 = vmatpush1.bf16.msra.mxu0 %v1979
  %2184 = vmatprep.subr.bf16.mxu0 0
  %2185 = vmatpush1.bf16.msra.mxu0 %v1980
  %2186 = vmatprep.subr.bf16.mxu0 0
  %2187 = vmatpush1.bf16.msra.mxu0 %v1981
  %2188 = vmatprep.subr.bf16.mxu0 0
  %2189 = vmatpush1.bf16.msra.mxu0 %v1982
  %2190 = vmatprep.subr.bf16.mxu0 0
  %2191 = vmatpush1.bf16.msra.mxu0 %v1983
  %2192 = vmatprep.subr.bf16.mxu0 0
  %2193 = vmatpush1.bf16.msra.mxu0 %v1984
  %2194 = vmatprep.subr.bf16.mxu0 0
  %2195 = vmatpush1.bf16.msra.mxu0 %v1985
  %2196 = vmatprep.subr.bf16.mxu0 0
  %2197 = vmatpush1.bf16.msra.mxu0 %v1986
  %2198 = vmatprep.subr.bf16.mxu0 0
  %2199 = vmatpush1.bf16.msra.mxu0 %v1987
  %2200 = vmatprep.mubr.bf16.mxu0 %v2121
  %2201 = vmatmul.mubr.bf16.gmra.mrb[0].mxu0 %v2120
  %v2202 = vpop.f32.mrb[0].mxu0
  %v2203 = vadd.f32 %v2019, %v2202
  %v2204 = vpop.f32.mrb[0].mxu0
  %v2205 = vpop.f32.mrb[0].mxu0
  %v2206 = vadd.f32 %v2024, %v2205
  %v2207 = vpop.f32.mrb[0].mxu0
  %2208 = vmatprep.mubr.bf16.mxu0 %v2126
  %2209 = vmatmul.mubr.bf16.gmra.mrb[0].mxu0 %v2125
  %v2210 = vpop.f32.mrb[0].mxu0
  %v2211 = vadd.f32 %v2029, %v2210
  %v2212 = vpop.f32.mrb[0].mxu0
  %v2213 = vpop.f32.mrb[0].mxu0
  %v2214 = vadd.f32 %v2034, %v2213
  %v2215 = vpop.f32.mrb[0].mxu0
  %2216 = vmatprep.mubr.bf16.mxu0 %v2131
  %2217 = vmatmul.mubr.bf16.gmra.mrb[0].mxu0 %v2130
  %v2218 = vpop.f32.mrb[0].mxu0
  %v2219 = vadd.f32 %v2039, %v2218
  %v2220 = vpop.f32.mrb[0].mxu0
  %v2221 = vpop.f32.mrb[0].mxu0
  %v2222 = vadd.f32 %v2044, %v2221
  %v2223 = vpop.f32.mrb[0].mxu0
  %2224 = vmatprep.mubr.bf16.mxu0 %v2136
  %2225 = vmatmul.mubr.bf16.gmra.mrb[0].mxu0 %v2135
  %v2226 = vpop.f32.mrb[0].mxu0
  %v2227 = vadd.f32 %v2049, %v2226
  %v2228 = vpop.f32.mrb[0].mxu0
  %v2229 = vpop.f32.mrb[0].mxu0
  %v2230 = vadd.f32 %v2054, %v2229
  %v2231 = vpop.f32.mrb[0].mxu0
  %2232 = vdwg.mxu0
  %2233 = vmatprep.subr.bf16.mxu0 0
  %2234 = vmatpush1.bf16.msra.mxu0 %v1988
  %2235 = vmatprep.subr.bf16.mxu0 0
  %2236 = vmatpush1.bf16.msra.mxu0 %v1989
  %2237 = vmatprep.subr.bf16.mxu0 0
  %2238 = vmatpush1.bf16.msra.mxu0 %v1990
  %2239 = vmatprep.subr.bf16.mxu0 0
  %2240 = vmatpush1.bf16.msra.mxu0 %v1991
  %2241 = vmatprep.subr.bf16.mxu0 0
  %2242 = vmatpush1.bf16.msra.mxu0 %v1992
  %2243 = vmatprep.subr.bf16.mxu0 0
  %2244 = vmatpush1.bf16.msra.mxu0 %v1993
  %2245 = vmatprep.subr.bf16.mxu0 0
  %2246 = vmatpush1.bf16.msra.mxu0 %v1994
  %2247 = vmatprep.subr.bf16.mxu0 0
  %2248 = vmatpush1.bf16.msra.mxu0 %v1995
  %2249 = vmatprep.subr.bf16.mxu0 0
  %2250 = vmatpush1.bf16.msra.mxu0 %v1996
  %2251 = vmatprep.subr.bf16.mxu0 0
  %2252 = vmatpush1.bf16.msra.mxu0 %v1997
  %2253 = vmatprep.subr.bf16.mxu0 0
  %2254 = vmatpush1.bf16.msra.mxu0 %v1998
  %2255 = vmatprep.subr.bf16.mxu0 0
  %2256 = vmatpush1.bf16.msra.mxu0 %v1999
  %2257 = vmatprep.subr.bf16.mxu0 0
  %2258 = vmatpush1.bf16.msra.mxu0 %v2000
  %2259 = vmatprep.subr.bf16.mxu0 0
  %2260 = vmatpush1.bf16.msra.mxu0 %v2001
  %2261 = vmatprep.subr.bf16.mxu0 0
  %2262 = vmatpush1.bf16.msra.mxu0 %v2002
  %2263 = vmatprep.subr.bf16.mxu0 0
  %2264 = vmatpush1.bf16.msra.mxu0 %v2003
  %2265 = vmatprep.mubr.bf16.mxu0 %v2123
  %2266 = vmatmul.mubr.bf16.gmra.mrb[0].mxu0 %v2122
  %v2267 = vpop.f32.mrb[0].mxu0
  %v2268 = vadd.f32 %v2203, %v2267
  %v2269 = vpop.f32.mrb[0].mxu0
  %v2270 = vpop.f32.mrb[0].mxu0
  %v2271 = vadd.f32 %v2206, %v2270
  %v2272 = vpop.f32.mrb[0].mxu0
  %2273 = vmatprep.mubr.bf16.mxu0 %v2128
  %2274 = vmatmul.mubr.bf16.gmra.mrb[0].mxu0 %v2127
  %v2275 = vpop.f32.mrb[0].mxu0
  %v2276 = vadd.f32 %v2211, %v2275
  %v2277 = vpop.f32.mrb[0].mxu0
  %v2278 = vpop.f32.mrb[0].mxu0
  %v2279 = vadd.f32 %v2214, %v2278
  %v2280 = vpop.f32.mrb[0].mxu0
  %2281 = vmatprep.mubr.bf16.mxu0 %v2133
  %2282 = vmatmul.mubr.bf16.gmra.mrb[0].mxu0 %v2132
  %v2283 = vpop.f32.mrb[0].mxu0
  %v2284 = vadd.f32 %v2219, %v2283
  %v2285 = vpop.f32.mrb[0].mxu0
  %v2286 = vpop.f32.mrb[0].mxu0
  %v2287 = vadd.f32 %v2222, %v2286
  %v2288 = vpop.f32.mrb[0].mxu0
  %2289 = vmatprep.mubr.bf16.mxu0 %v2138
  %2290 = vmatmul.mubr.bf16.gmra.mrb[0].mxu0 %v2137
  %v2291 = vpop.f32.mrb[0].mxu0
  %v2292 = vadd.f32 %v2227, %v2291
  %v2293 = vpop.f32.mrb[0].mxu0
  %v2294 = vpop.f32.mrb[0].mxu0
  %v2295 = vadd.f32 %v2230, %v2294
  %v2296 = vpop.f32.mrb[0].mxu0
  %2297 = vdwg.mxu0
  %2298 = vmatprep.subr.bf16.mxu0 0
  %2299 = vmatpush1.bf16.msra.mxu0 %v2004
  %2300 = vmatprep.subr.bf16.mxu0 0
  %2301 = vmatpush1.bf16.msra.mxu0 %v2005
  %2302 = vmatprep.subr.bf16.mxu0 0
  %2303 = vmatpush1.bf16.msra.mxu0 %v2006
  %2304 = vmatprep.subr.bf16.mxu0 0
  %2305 = vmatpush1.bf16.msra.mxu0 %v2007
  %2306 = vmatprep.subr.bf16.mxu0 0
  %2307 = vmatpush1.bf16.msra.mxu0 0
  %2308 = vmatprep.subr.bf16.mxu0 0
  %2309 = vmatpush1.bf16.msra.mxu0 0
  %2310 = vmatprep.subr.bf16.mxu0 0
  %2311 = vmatpush1.bf16.msra.mxu0 0
  %2312 = vmatprep.subr.bf16.mxu0 0
  %2313 = vmatpush1.bf16.msra.mxu0 0
  %2314 = vmatprep.subr.bf16.mxu0 0
  %2315 = vmatpush1.bf16.msra.mxu0 0
  %2316 = vmatprep.subr.bf16.mxu0 0
  %2317 = vmatpush1.bf16.msra.mxu0 0
  %2318 = vmatprep.subr.bf16.mxu0 0
  %2319 = vmatpush1.bf16.msra.mxu0 0
  %2320 = vmatprep.subr.bf16.mxu0 0
  %2321 = vmatpush1.bf16.msra.mxu0 0
  %2322 = vmatprep.subr.bf16.mxu0 0
  %2323 = vmatpush1.bf16.msra.mxu0 0
  %2324 = vmatprep.subr.bf16.mxu0 0
  %2325 = vmatpush1.bf16.msra.mxu0 0
  %2326 = vmatprep.subr.bf16.mxu0 0
  %2327 = vmatpush1.bf16.msra.mxu0 0
  %2328 = vmatprep.subr.bf16.mxu0 0
  %2329 = vmatpush1.bf16.msra.mxu0 0
  %2330 = vmatprep.mubr.bf16.mxu0 0
  %2331 = vmatmul.mubr.bf16.gmra.mrb[0].mxu0 %v2157
  %v2332 = vpop.f32.mrb[0].mxu0
  %v2333 = vadd.f32 %v2268, %v2332
  %v2334 = vpop.f32.mrb[0].mxu0
  %v2335 = vpop.f32.mrb[0].mxu0
  %v2336 = vadd.f32 %v2271, %v2335
  %v2337 = vpop.f32.mrb[0].mxu0
  %2338 = vmatprep.mubr.bf16.mxu0 0
  %2339 = vmatmul.mubr.bf16.gmra.mrb[0].mxu0 %v2160
  %v2340 = vpop.f32.mrb[0].mxu0
  %v2341 = vadd.f32 %v2276, %v2340
  %v2342 = vpop.f32.mrb[0].mxu0
  %v2343 = vpop.f32.mrb[0].mxu0
  %v2344 = vadd.f32 %v2279, %v2343
  %v2345 = vpop.f32.mrb[0].mxu0
  %2346 = vmatprep.mubr.bf16.mxu0 0
  %2347 = vmatmul.mubr.bf16.gmra.mrb[0].mxu0 %v2163
  %v2348 = vpop.f32.mrb[0].mxu0
  %v2349 = vadd.f32 %v2284, %v2348
  %v2350 = vpop.f32.mrb[0].mxu0
  %v2351 = vpop.f32.mrb[0].mxu0
  %v2352 = vadd.f32 %v2287, %v2351
  %v2353 = vpop.f32.mrb[0].mxu0
  %2354 = vmatprep.mubr.bf16.mxu0 0
  %2355 = vmatmul.mubr.bf16.gmra.mrb[0].mxu0 %v2166
  %v2356 = vpop.f32.mrb[0].mxu0
  %v2357 = vadd.f32 %v2292, %v2356
  %v2358 = vpop.f32.mrb[0].mxu0
  %v2359 = vpop.f32.mrb[0].mxu0
  %v2360 = vadd.f32 %v2295, %v2359
  %v2361 = vpop.f32.mrb[0].mxu0
  %2362 = vdwg.mxu0
  %v2363 = vadd.f32 %v2333, %v1622
  %v2364 = vadd.f32 %v2336, %v1623
  %v2365 = vadd.f32 %v2341, %v1624
  %v2366 = vadd.f32 %v2344, %v1625
  %v2367 = vadd.f32 %v2349, %v1626
  %v2368 = vadd.f32 %v2352, %v1627
  %v2369 = vadd.f32 %v2357, %v1628
  %v2370 = vadd.f32 %v2360, %v1629
  %v2371 = vmax.f32 %v2363, 0.0
  %v2372 = vmax.f32 %v2364, 0.0
  %v2373 = vmax.f32 %v2365, 0.0
  %v2374 = vmax.f32 %v2366, 0.0
  %v2375 = vmax.f32 %v2367, 0.0
  %v2376 = vmax.f32 %v2368, 0.0
  %v2377 = vmax.f32 %v2369, 0.0
  %v2378 = vmax.f32 %v2370, 0.0
  %v2379 = vpack.c.bf16 %v2372, %v2371
  %v2380 = vpack.c.bf16 %v2374, %v2373
  %v2381 = vpack.c.bf16 %v2376, %v2375
  %v2382 = vpack.c.bf16 %v2378, %v2377
  %v2383 = vld [vmem:[%s14] sm:$0xff]
  %v2384 = vld [vmem:[%s14 + $0x8] sm:$0xf]
  %v2385 = vld [vmem:[%s14 + $0xc] sm:$0xff]
  %v2386 = vld [vmem:[%s14 + $0x14] sm:$0xf]
  %v2387 = vld [vmem:[%s14 + $0x18] sm:$0xff]
  %v2388 = vld [vmem:[%s14 + $0x20] sm:$0xf]
  %v2389 = vld [vmem:[%s14 + $0x24] sm:$0xff]
  %v2390 = vld [vmem:[%s14 + $0x2c] sm:$0xf]
  %v2399 = vunpack.c.l.b16 %v2383
  %v2400 = vunpack.c.h.b16 %v2383
  %v2401 = vunpack.c.l.b16 %v2384
  %v2402 = vunpack.c.l.b16 %v2385
  %v2403 = vunpack.c.h.b16 %v2385
  %v2404 = vunpack.c.l.b16 %v2386
  %v2405 = vunpack.c.l.b16 %v2387
  %v2406 = vunpack.c.h.b16 %v2387
  %v2407 = vunpack.c.l.b16 %v2388
  %v2408 = vunpack.c.l.b16 %v2389
  %v2409 = vunpack.c.h.b16 %v2389
  %v2410 = vunpack.c.l.b16 %v2390
  %v2411 = vpack.c.b16 %v2402, %v2399
  %v2412 = vpack.c.b16 %v2403, %v2400
  %v2413 = vpack.c.b16 %v2404, %v2401
  %v2414 = vpack.c.b16 %v2408, %v2405
  %v2415 = vpack.c.b16 %v2409, %v2406
  %v2416 = vpack.c.b16 %v2410, %v2407
  %v2424 = vsel %vm915, %v2379, 0
  %v2427 = vsel %vm915, %v2380, 0
  %v2430 = vsel %vm915, %v2381, 0
  %v2433 = vsel %vm915, %v2382, 0
  %2435 = vmatprep.subr.bf16.mxu0 %v2412
  %2436 = vmatpush1.bf16.msra.mxu0 %v2411
  %2437 = vmatprep.subr.bf16.mxu0 %v2415
  %2438 = vmatpush1.bf16.msra.mxu0 %v2414
  %2439 = vmatprep.subr.bf16.mxu0 0
  %2440 = vmatpush1.bf16.msra.mxu0 0
  %2441 = vmatprep.subr.bf16.mxu0 0
  %2442 = vmatpush1.bf16.msra.mxu0 0
  %2443 = vmatprep.subr.bf16.mxu0 0
  %2444 = vmatpush1.bf16.msra.mxu0 0
  %2445 = vmatprep.subr.bf16.mxu0 0
  %2446 = vmatpush1.bf16.msra.mxu0 0
  %2447 = vmatprep.subr.bf16.mxu0 0
  %2448 = vmatpush1.bf16.msra.mxu0 0
  %2449 = vmatprep.subr.bf16.mxu0 0
  %2450 = vmatpush1.bf16.msra.mxu0 0
  %2451 = vmatprep.subr.bf16.mxu0 0
  %2452 = vmatpush1.bf16.msra.mxu0 0
  %2453 = vmatprep.subr.bf16.mxu0 0
  %2454 = vmatpush1.bf16.msra.mxu0 0
  %2455 = vmatprep.subr.bf16.mxu0 0
  %2456 = vmatpush1.bf16.msra.mxu0 0
  %2457 = vmatprep.subr.bf16.mxu0 0
  %2458 = vmatpush1.bf16.msra.mxu0 0
  %2459 = vmatprep.subr.bf16.mxu0 0
  %2460 = vmatpush1.bf16.msra.mxu0 0
  %2461 = vmatprep.subr.bf16.mxu0 0
  %2462 = vmatpush1.bf16.msra.mxu0 0
  %2463 = vmatprep.subr.bf16.mxu0 0
  %2464 = vmatpush1.bf16.msra.mxu0 0
  %2465 = vmatprep.subr.bf16.mxu0 0
  %2466 = vmatpush1.bf16.msra.mxu0 0
  %2467 = vmatprep.mubr.bf16.mxu0 0
  %2468 = vmatmul.mubr.bf16.gmra.mrb[0].mxu0 %v2424
  %v2469 = vpop.f32.mrb[0].mxu0
  %v2470 = vadd.f32 0.0, %v2469
  %v2471 = vpop.f32.mrb[0].mxu0
  %v2472 = vadd.f32 0.0, %v2471
  %v2473 = vpop.f32.mrb[0].mxu0
  %v2474 = vadd.f32 0.0, %v2473
  %v2475 = vpop.f32.mrb[0].mxu0
  %v2476 = vadd.f32 0.0, %v2475
  %2477 = vmatprep.mubr.bf16.mxu0 0
  %2478 = vmatmul.mubr.bf16.gmra.mrb[0].mxu0 %v2427
  %v2479 = vpop.f32.mrb[0].mxu0
  %v2480 = vadd.f32 0.0, %v2479
  %v2481 = vpop.f32.mrb[0].mxu0
  %v2482 = vadd.f32 0.0, %v2481
  %v2483 = vpop.f32.mrb[0].mxu0
  %v2484 = vadd.f32 0.0, %v2483
  %v2485 = vpop.f32.mrb[0].mxu0
  %v2486 = vadd.f32 0.0, %v2485
  %2487 = vmatprep.mubr.bf16.mxu0 0
  %2488 = vmatmul.mubr.bf16.gmra.mrb[0].mxu0 %v2430
  %v2489 = vpop.f32.mrb[0].mxu0
  %v2490 = vadd.f32 0.0, %v2489
  %v2491 = vpop.f32.mrb[0].mxu0
  %v2492 = vadd.f32 0.0, %v2491
  %v2493 = vpop.f32.mrb[0].mxu0
  %v2494 = vadd.f32 0.0, %v2493
  %v2495 = vpop.f32.mrb[0].mxu0
  %v2496 = vadd.f32 0.0, %v2495
  %2497 = vmatprep.mubr.bf16.mxu0 0
  %2498 = vmatmul.mubr.bf16.gmra.mrb[0].mxu0 %v2433
  %v2499 = vpop.f32.mrb[0].mxu0
  %v2500 = vadd.f32 0.0, %v2499
  %v2501 = vpop.f32.mrb[0].mxu0
  %v2502 = vadd.f32 0.0, %v2501
  %v2503 = vpop.f32.mrb[0].mxu0
  %v2504 = vadd.f32 0.0, %v2503
  %v2505 = vpop.f32.mrb[0].mxu0
  %v2506 = vadd.f32 0.0, %v2505
  %2507 = vdwg.mxu0
  %2508 = vmatprep.subr.bf16.mxu0 0
  %2509 = vmatpush1.bf16.msra.mxu0 %v2413
  %2510 = vmatprep.subr.bf16.mxu0 0
  %2511 = vmatpush1.bf16.msra.mxu0 %v2416
  %2512 = vmatprep.subr.bf16.mxu0 0
  %2513 = vmatpush1.bf16.msra.mxu0 0
  %2514 = vmatprep.subr.bf16.mxu0 0
  %2515 = vmatpush1.bf16.msra.mxu0 0
  %2516 = vmatprep.subr.bf16.mxu0 0
  %2517 = vmatpush1.bf16.msra.mxu0 0
  %2518 = vmatprep.subr.bf16.mxu0 0
  %2519 = vmatpush1.bf16.msra.mxu0 0
  %2520 = vmatprep.subr.bf16.mxu0 0
  %2521 = vmatpush1.bf16.msra.mxu0 0
  %2522 = vmatprep.subr.bf16.mxu0 0
  %2523 = vmatpush1.bf16.msra.mxu0 0
  %2524 = vmatprep.subr.bf16.mxu0 0
  %2525 = vmatpush1.bf16.msra.mxu0 0
  %2526 = vmatprep.subr.bf16.mxu0 0
  %2527 = vmatpush1.bf16.msra.mxu0 0
  %2528 = vmatprep.subr.bf16.mxu0 0
  %2529 = vmatpush1.bf16.msra.mxu0 0
  %2530 = vmatprep.subr.bf16.mxu0 0
  %2531 = vmatpush1.bf16.msra.mxu0 0
  %2532 = vmatprep.subr.bf16.mxu0 0
  %2533 = vmatpush1.bf16.msra.mxu0 0
  %2534 = vmatprep.subr.bf16.mxu0 0
  %2535 = vmatpush1.bf16.msra.mxu0 0
  %2536 = vmatprep.subr.bf16.mxu0 0
  %2537 = vmatpush1.bf16.msra.mxu0 0
  %2538 = vmatprep.subr.bf16.mxu0 0
  %2539 = vmatpush1.bf16.msra.mxu0 0
  %2540 = vmatprep.mubr.bf16.mxu0 0
  %2541 = vmatmul.mubr.bf16.gmra.mrb[0].mxu0 %v2424
  %v2542 = vpop.f32.mrb[0].mxu0
  %v2543 = vadd.f32 0.0, %v2542
  %v2544 = vpop.f32.mrb[0].mxu0
  %v2545 = vpop.f32.mrb[0].mxu0
  %v2546 = vadd.f32 0.0, %v2545
  %v2547 = vpop.f32.mrb[0].mxu0
  %2548 = vmatprep.mubr.bf16.mxu0 0
  %2549 = vmatmul.mubr.bf16.gmra.mrb[0].mxu0 %v2427
  %v2550 = vpop.f32.mrb[0].mxu0
  %v2551 = vadd.f32 0.0, %v2550
  %v2552 = vpop.f32.mrb[0].mxu0
  %v2553 = vpop.f32.mrb[0].mxu0
  %v2554 = vadd.f32 0.0, %v2553
  %v2555 = vpop.f32.mrb[0].mxu0
  %2556 = vmatprep.mubr.bf16.mxu0 0
  %2557 = vmatmul.mubr.bf16.gmra.mrb[0].mxu0 %v2430
  %v2558 = vpop.f32.mrb[0].mxu0
  %v2559 = vadd.f32 0.0, %v2558
  %v2560 = vpop.f32.mrb[0].mxu0
  %v2561 = vpop.f32.mrb[0].mxu0
  %v2562 = vadd.f32 0.0, %v2561
  %v2563 = vpop.f32.mrb[0].mxu0
  %2564 = vmatprep.mubr.bf16.mxu0 0
  %2565 = vmatmul.mubr.bf16.gmra.mrb[0].mxu0 %v2433
  %v2566 = vpop.f32.mrb[0].mxu0
  %v2567 = vadd.f32 0.0, %v2566
  %v2568 = vpop.f32.mrb[0].mxu0
  %v2569 = vpop.f32.mrb[0].mxu0
  %v2570 = vadd.f32 0.0, %v2569
  %v2571 = vpop.f32.mrb[0].mxu0
  %2572 = vdwg.mxu0
  %v2573 = vpack.c.bf16 %v2474, %v2470
  %v2574 = vpack.c.bf16 %v2476, %v2472
  %v2575 = vpack.c.bf16 %v2546, %v2543
  %v2576 = vpack.c.bf16 %v2484, %v2480
  %v2577 = vpack.c.bf16 %v2486, %v2482
  %v2578 = vpack.c.bf16 %v2554, %v2551
  %v2579 = vpack.c.bf16 %v2494, %v2490
  %v2580 = vpack.c.bf16 %v2496, %v2492
  %v2581 = vpack.c.bf16 %v2562, %v2559
  %v2582 = vpack.c.bf16 %v2504, %v2500
  %v2583 = vpack.c.bf16 %v2506, %v2502
  %v2584 = vpack.c.bf16 %v2570, %v2567
  %2585 = vst.msk [vmem:[#allocation2] sm:$0xff] %vm915, %v2573
  %2586 = vst.msk [vmem:[#allocation2 + $0x8] sm:$0xff] %vm915, %v2576
  %2587 = vst.msk [vmem:[#allocation2 + $0x10] sm:$0xff] %vm915, %v2579
  %2588 = vst.msk [vmem:[#allocation2 + $0x18] sm:$0xff] %vm915, %v2582
  %2593 = vrot.lane.b32.xlu0 %v2573, 96
  %v2594 = vpop.permute.xlu0 %2593
  %2595 = vrot.lane.b32.xlu0 %v2576, 96
  %v2596 = vpop.permute.xlu0 %2595
  %2597 = vrot.lane.b32.xlu0 %v2579, 96
  %v2598 = vpop.permute.xlu0 %2597
  %2599 = vrot.lane.b32.xlu0 %v2582, 96
  %v2600 = vpop.permute.xlu0 %2599
  %2605 = vst.msk [vmem:[#allocation2 + $0x20] sm:$0xff] %vm915, %v2594
  %2606 = vst.msk [vmem:[#allocation2 + $0x28] sm:$0xff] %vm915, %v2596
  %2607 = vst.msk [vmem:[#allocation2 + $0x30] sm:$0xff] %vm915, %v2598
  %2608 = vst.msk [vmem:[#allocation2 + $0x38] sm:$0xff] %vm915, %v2600
  %2609 = vrot.lane.b32.xlu0 %v2573, 64
  %v2610 = vpop.permute.xlu0 %2609
  %2611 = vrot.lane.b32.xlu0 %v2576, 64
  %v2612 = vpop.permute.xlu0 %2611
  %2613 = vrot.lane.b32.xlu0 %v2579, 64
  %v2614 = vpop.permute.xlu0 %2613
  %2615 = vrot.lane.b32.xlu0 %v2582, 64
  %v2616 = vpop.permute.xlu0 %2615
  %2621 = vst.msk [vmem:[#allocation2 + $0x40] sm:$0xff] %vm915, %v2610
  %2622 = vst.msk [vmem:[#allocation2 + $0x48] sm:$0xff] %vm915, %v2612
  %2623 = vst.msk [vmem:[#allocation2 + $0x50] sm:$0xff] %vm915, %v2614
  %2624 = vst.msk [vmem:[#allocation2 + $0x58] sm:$0xff] %vm915, %v2616
  %2625 = vrot.lane.b32.xlu0 %v2573, 32
  %v2626 = vpop.permute.xlu0 %2625
  %2627 = vrot.lane.b32.xlu0 %v2576, 32
  %v2628 = vpop.permute.xlu0 %2627
  %2629 = vrot.lane.b32.xlu0 %v2579, 32
  %v2630 = vpop.permute.xlu0 %2629
  %2631 = vrot.lane.b32.xlu0 %v2582, 32
  %v2632 = vpop.permute.xlu0 %2631
  %2637 = vst.msk [vmem:[#allocation2 + $0x60] sm:$0xff] %vm915, %v2626
  %2638 = vst.msk [vmem:[#allocation2 + $0x68] sm:$0xff] %vm915, %v2628
  %2639 = vst.msk [vmem:[#allocation2 + $0x70] sm:$0xff] %vm915, %v2630
  %2640 = vst.msk [vmem:[#allocation2 + $0x78] sm:$0xff] %vm915, %v2632
  %2641 = vst.msk [vmem:[#allocation2 + $0x80] sm:$0xff] %vm915, %v2574
  %2642 = vst.msk [vmem:[#allocation2 + $0x88] sm:$0xff] %vm915, %v2577
  %2643 = vst.msk [vmem:[#allocation2 + $0x90] sm:$0xff] %vm915, %v2580
  %2644 = vst.msk [vmem:[#allocation2 + $0x98] sm:$0xff] %vm915, %v2583
  %2649 = vrot.lane.b32.xlu0 %v2574, 96
  %v2650 = vpop.permute.xlu0 %2649
  %2651 = vrot.lane.b32.xlu0 %v2577, 96
  %v2652 = vpop.permute.xlu0 %2651
  %2653 = vrot.lane.b32.xlu0 %v2580, 96
  %v2654 = vpop.permute.xlu0 %2653
  %2655 = vrot.lane.b32.xlu0 %v2583, 96
  %v2656 = vpop.permute.xlu0 %2655
  %2661 = vst.msk [vmem:[#allocation2 + $0xa0] sm:$0xff] %vm915, %v2650
  %2662 = vst.msk [vmem:[#allocation2 + $0xa8] sm:$0xff] %vm915, %v2652
  %2663 = vst.msk [vmem:[#allocation2 + $0xb0] sm:$0xff] %vm915, %v2654
  %2664 = vst.msk [vmem:[#allocation2 + $0xb8] sm:$0xff] %vm915, %v2656
  %2665 = vrot.lane.b32.xlu0 %v2574, 64
  %v2666 = vpop.permute.xlu0 %2665
  %2667 = vrot.lane.b32.xlu0 %v2577, 64
  %v2668 = vpop.permute.xlu0 %2667
  %2669 = vrot.lane.b32.xlu0 %v2580, 64
  %v2670 = vpop.permute.xlu0 %2669
  %2671 = vrot.lane.b32.xlu0 %v2583, 64
  %v2672 = vpop.permute.xlu0 %2671
  %2677 = vst.msk [vmem:[#allocation2 + $0xc0] sm:$0xff] %vm915, %v2666
  %2678 = vst.msk [vmem:[#allocation2 + $0xc8] sm:$0xff] %vm915, %v2668
  %2679 = vst.msk [vmem:[#allocation2 + $0xd0] sm:$0xff] %vm915, %v2670
  %2680 = vst.msk [vmem:[#allocation2 + $0xd8] sm:$0xff] %vm915, %v2672
  %2681 = vrot.lane.b32.xlu0 %v2574, 32
  %v2682 = vpop.permute.xlu0 %2681
  %2683 = vrot.lane.b32.xlu0 %v2577, 32
  %v2684 = vpop.permute.xlu0 %2683
  %2685 = vrot.lane.b32.xlu0 %v2580, 32
  %v2686 = vpop.permute.xlu0 %2685
  %2687 = vrot.lane.b32.xlu0 %v2583, 32
  %v2688 = vpop.permute.xlu0 %2687
  %2693 = vst.msk [vmem:[#allocation2 + $0xe0] sm:$0xff] %vm915, %v2682
  %2694 = vst.msk [vmem:[#allocation2 + $0xe8] sm:$0xff] %vm915, %v2684
  %2695 = vst.msk [vmem:[#allocation2 + $0xf0] sm:$0xff] %vm915, %v2686
  %2696 = vst.msk [vmem:[#allocation2 + $0xf8] sm:$0xff] %vm915, %v2688
  %2697 = vst.msk [vmem:[#allocation2 + $0x100] sm:$0xff] %vm915, %v2575
  %2698 = vst.msk [vmem:[#allocation2 + $0x108] sm:$0xff] %vm915, %v2578
  %2699 = vst.msk [vmem:[#allocation2 + $0x110] sm:$0xff] %vm915, %v2581
  %2700 = vst.msk [vmem:[#allocation2 + $0x118] sm:$0xff] %vm915, %v2584
  %v2701 = vld [vmem:[%s4] sm:$0xff]
  %v2702 = vld [vmem:[%s4 + $0x8] sm:$0xff]
  %v2703 = vld [vmem:[%s4 + $0x10] sm:$0xf]
  %v2704 = vld [vmem:[%s4 + $0x14] sm:$0xff]
  %v2705 = vld [vmem:[%s4 + $0x1c] sm:$0xff]
  %v2706 = vld [vmem:[%s4 + $0x24] sm:$0xf]
  %v2707 = vld [vmem:[%s4 + $0x28] sm:$0xff]
  %v2708 = vld [vmem:[%s4 + $0x30] sm:$0xff]
  %v2709 = vld [vmem:[%s4 + $0x38] sm:$0xf]
  %v2710 = vld [vmem:[%s4 + $0x3c] sm:$0xff]
  %v2711 = vld [vmem:[%s4 + $0x44] sm:$0xff]
  %v2712 = vld [vmem:[%s4 + $0x4c] sm:$0xf]
  %v2713 = vld [vmem:[%s4 + $0x50] sm:$0xff]
  %v2714 = vld [vmem:[%s4 + $0x58] sm:$0xff]
  %v2715 = vld [vmem:[%s4 + $0x60] sm:$0xf]
  %v2716 = vld [vmem:[%s4 + $0x64] sm:$0xff]
  %v2717 = vld [vmem:[%s4 + $0x6c] sm:$0xff]
  %v2718 = vld [vmem:[%s4 + $0x74] sm:$0xf]
  %v2719 = vld [vmem:[%s4 + $0x78] sm:$0xff]
  %v2720 = vld [vmem:[%s4 + $0x80] sm:$0xff]
  %v2721 = vld [vmem:[%s4 + $0x88] sm:$0xf]
  %v2722 = vld [vmem:[%s4 + $0x8c] sm:$0xff]
  %v2723 = vld [vmem:[%s4 + $0x94] sm:$0xff]
  %v2724 = vld [vmem:[%s4 + $0x9c] sm:$0xf]
  %v2725 = vld [vmem:[#allocation2] sm:$0xff]
  %v2726 = vld [vmem:[#allocation2 + $0x8] sm:$0xff]
  %v2727 = vld [vmem:[#allocation2 + $0x10] sm:$0xff]
  %v2728 = vld [vmem:[#allocation2 + $0x18] sm:$0xff]
  %v2729 = vld [vmem:[#allocation2 + $0x20] sm:$0xff]
  %v2730 = vld [vmem:[#allocation2 + $0x28] sm:$0xff]
  %v2731 = vld [vmem:[#allocation2 + $0x30] sm:$0xff]
  %v2732 = vld [vmem:[#allocation2 + $0x38] sm:$0xff]
  %v2733 = vld [vmem:[#allocation2 + $0x40] sm:$0xff]
  %v2734 = vld [vmem:[#allocation2 + $0x48] sm:$0xff]
  %v2735 = vld [vmem:[#allocation2 + $0x50] sm:$0xff]
  %v2736 = vld [vmem:[#allocation2 + $0x58] sm:$0xff]
  %v2737 = vld [vmem:[#allocation2 + $0x60] sm:$0xff]
  %v2738 = vld [vmem:[#allocation2 + $0x68] sm:$0xff]
  %v2739 = vld [vmem:[#allocation2 + $0x70] sm:$0xff]
  %v2740 = vld [vmem:[#allocation2 + $0x78] sm:$0xff]
  %v2741 = vld [vmem:[#allocation2 + $0x80] sm:$0xff]
  %v2742 = vld [vmem:[#allocation2 + $0x88] sm:$0xff]
  %v2743 = vld [vmem:[#allocation2 + $0x90] sm:$0xff]
  %v2744 = vld [vmem:[#allocation2 + $0x98] sm:$0xff]
  %v2745 = vld [vmem:[#allocation2 + $0xa0] sm:$0xff]
  %v2746 = vld [vmem:[#allocation2 + $0xa8] sm:$0xff]
  %v2747 = vld [vmem:[#allocation2 + $0xb0] sm:$0xff]
  %v2748 = vld [vmem:[#allocation2 + $0xb8] sm:$0xff]
  %v2749 = vld [vmem:[#allocation2 + $0xc0] sm:$0xff]
  %v2750 = vld [vmem:[#allocation2 + $0xc8] sm:$0xff]
  %v2751 = vld [vmem:[#allocation2 + $0xd0] sm:$0xff]
  %v2752 = vld [vmem:[#allocation2 + $0xd8] sm:$0xff]
  %v2753 = vld [vmem:[#allocation2 + $0xe0] sm:$0xff]
  %v2754 = vld [vmem:[#allocation2 + $0xe8] sm:$0xff]
  %v2755 = vld [vmem:[#allocation2 + $0xf0] sm:$0xff]
  %v2756 = vld [vmem:[#allocation2 + $0xf8] sm:$0xff]
  %v2757 = vld [vmem:[#allocation2 + $0x100] sm:$0xff]
  %v2758 = vld [vmem:[#allocation2 + $0x108] sm:$0xff]
  %v2759 = vld [vmem:[#allocation2 + $0x110] sm:$0xff]
  %v2760 = vld [vmem:[#allocation2 + $0x118] sm:$0xff]
  %v2761 = vld [vmem:[%s12] sm:$0xff]
  %v2762 = vld [vmem:[%s12 + $0x8] sm:$0xff]
  %v2763 = vld [vmem:[%s12 + $0x10] sm:$0xff]
  %v2764 = vld [vmem:[%s12 + $0x18] sm:$0xff]
  %v2765 = vld [vmem:[%s12 + $0x20] sm:$0xff]
  %v2766 = vld [vmem:[%s12 + $0x28] sm:$0xff]
  %v2767 = vld [vmem:[%s12 + $0x30] sm:$0xff]
  %v2768 = vld [vmem:[%s12 + $0x38] sm:$0xff]
  %2770 = vset.pattern.permute.xlu0 3
  %2771 = vperm.xlu0 %2770, %v2761
  %v2772 = vpop.permute.xlu0 %2771
  %2775 = vset.pattern.permute.xlu0 3
  %2776 = vperm.xlu0 %2775, %v2762
  %v2777 = vpop.permute.xlu0 %2776
  %2780 = vset.pattern.permute.xlu0 3
  %2781 = vperm.xlu0 %2780, %v2763
  %v2782 = vpop.permute.xlu0 %2781
  %2785 = vset.pattern.permute.xlu0 3
  %2786 = vperm.xlu0 %2785, %v2764
  %v2787 = vpop.permute.xlu0 %2786
  %2790 = vset.pattern.permute.xlu0 3
  %2791 = vperm.xlu0 %2790, %v2765
  %v2792 = vpop.permute.xlu0 %2791
  %2795 = vset.pattern.permute.xlu0 3
  %2796 = vperm.xlu0 %2795, %v2766
  %v2797 = vpop.permute.xlu0 %2796
  %2800 = vset.pattern.permute.xlu0 3
  %2801 = vperm.xlu0 %2800, %v2767
  %v2802 = vpop.permute.xlu0 %2801
  %2805 = vset.pattern.permute.xlu0 3
  %2806 = vperm.xlu0 %2805, %v2768
  %v2807 = vpop.permute.xlu0 %2806
  %v2833 = vunpack.c.l.b16 %v2701
  %v2834 = vunpack.c.h.b16 %v2701
  %v2835 = vunpack.c.l.b16 %v2702
  %v2836 = vunpack.c.h.b16 %v2702
  %v2837 = vunpack.c.l.b16 %v2703
  %v2838 = vunpack.c.l.b16 %v2704
  %v2839 = vunpack.c.h.b16 %v2704
  %v2840 = vunpack.c.l.b16 %v2705
  %v2841 = vunpack.c.h.b16 %v2705
  %v2842 = vunpack.c.l.b16 %v2706
  %v2843 = vunpack.c.l.b16 %v2707
  %v2844 = vunpack.c.h.b16 %v2707
  %v2845 = vunpack.c.l.b16 %v2708
  %v2846 = vunpack.c.h.b16 %v2708
  %v2847 = vunpack.c.l.b16 %v2709
  %v2848 = vunpack.c.l.b16 %v2710
  %v2849 = vunpack.c.h.b16 %v2710
  %v2850 = vunpack.c.l.b16 %v2711
  %v2851 = vunpack.c.h.b16 %v2711
  %v2852 = vunpack.c.l.b16 %v2712
  %v2853 = vunpack.c.l.b16 %v2713
  %v2854 = vunpack.c.h.b16 %v2713
  %v2855 = vunpack.c.l.b16 %v2714
  %v2856 = vunpack.c.h.b16 %v2714
  %v2857 = vunpack.c.l.b16 %v2715
  %v2858 = vunpack.c.l.b16 %v2716
  %v2859 = vunpack.c.h.b16 %v2716
  %v2860 = vunpack.c.l.b16 %v2717
  %v2861 = vunpack.c.h.b16 %v2717
  %v2862 = vunpack.c.l.b16 %v2718
  %v2863 = vunpack.c.l.b16 %v2719
  %v2864 = vunpack.c.h.b16 %v2719
  %v2865 = vunpack.c.l.b16 %v2720
  %v2866 = vunpack.c.h.b16 %v2720
  %v2867 = vunpack.c.l.b16 %v2721
  %v2868 = vunpack.c.l.b16 %v2722
  %v2869 = vunpack.c.h.b16 %v2722
  %v2870 = vunpack.c.l.b16 %v2723
  %v2871 = vunpack.c.h.b16 %v2723
  %v2872 = vunpack.c.l.b16 %v2724
  %v2873 = vpack.c.b16 %v2838, %v2833
  %v2874 = vpack.c.b16 %v2839, %v2834
  %v2875 = vpack.c.b16 %v2840, %v2835
  %v2876 = vpack.c.b16 %v2841, %v2836
  %v2877 = vpack.c.b16 %v2842, %v2837
  %v2878 = vpack.c.b16 %v2848, %v2843
  %v2879 = vpack.c.b16 %v2849, %v2844
  %v2880 = vpack.c.b16 %v2850, %v2845
  %v2881 = vpack.c.b16 %v2851, %v2846
  %v2882 = vpack.c.b16 %v2852, %v2847
  %v2883 = vpack.c.b16 %v2858, %v2853
  %v2884 = vpack.c.b16 %v2859, %v2854
  %v2885 = vpack.c.b16 %v2860, %v2855
  %v2886 = vpack.c.b16 %v2861, %v2856
  %v2887 = vpack.c.b16 %v2862, %v2857
  %v2888 = vpack.c.b16 %v2868, %v2863
  %v2889 = vpack.c.b16 %v2869, %v2864
  %v2890 = vpack.c.b16 %v2870, %v2865
  %v2891 = vpack.c.b16 %v2871, %v2866
  %v2892 = vpack.c.b16 %v2872, %v2867
  %v2910 = vsel %vm1402, %v2877, 0
  %v2913 = vsel %vm1402, %v2882, 0
  %v2916 = vsel %vm1402, %v2887, 0
  %v2919 = vsel %vm1402, %v2892, 0
  %2921 = vmatprep.subr.bf16.mxu0 0
  %2922 = vmatpush1.bf16.msra.mxu0 %v2725
  %2923 = vmatprep.subr.bf16.mxu0 0
  %2924 = vmatpush1.bf16.msra.mxu0 %v2726
  %2925 = vmatprep.subr.bf16.mxu0 0
  %2926 = vmatpush1.bf16.msra.mxu0 %v2727
  %2927 = vmatprep.subr.bf16.mxu0 0
  %2928 = vmatpush1.bf16.msra.mxu0 %v2728
  %2929 = vmatprep.subr.bf16.mxu0 0
  %2930 = vmatpush1.bf16.msra.mxu0 %v2729
  %2931 = vmatprep.subr.bf16.mxu0 0
  %2932 = vmatpush1.bf16.msra.mxu0 %v2730
  %2933 = vmatprep.subr.bf16.mxu0 0
  %2934 = vmatpush1.bf16.msra.mxu0 %v2731
  %2935 = vmatprep.subr.bf16.mxu0 0
  %2936 = vmatpush1.bf16.msra.mxu0 %v2732
  %2937 = vmatprep.subr.bf16.mxu0 0
  %2938 = vmatpush1.bf16.msra.mxu0 %v2733
  %2939 = vmatprep.subr.bf16.mxu0 0
  %2940 = vmatpush1.bf16.msra.mxu0 %v2734
  %2941 = vmatprep.subr.bf16.mxu0 0
  %2942 = vmatpush1.bf16.msra.mxu0 %v2735
  %2943 = vmatprep.subr.bf16.mxu0 0
  %2944 = vmatpush1.bf16.msra.mxu0 %v2736
  %2945 = vmatprep.subr.bf16.mxu0 0
  %2946 = vmatpush1.bf16.msra.mxu0 %v2737
  %2947 = vmatprep.subr.bf16.mxu0 0
  %2948 = vmatpush1.bf16.msra.mxu0 %v2738
  %2949 = vmatprep.subr.bf16.mxu0 0
  %2950 = vmatpush1.bf16.msra.mxu0 %v2739
  %2951 = vmatprep.subr.bf16.mxu0 0
  %2952 = vmatpush1.bf16.msra.mxu0 %v2740
  %2953 = vmatprep.mubr.bf16.mxu0 %v2874
  %2954 = vmatmul.mubr.bf16.gmra.mrb[0].mxu0 %v2873
  %v2955 = vpop.f32.mrb[0].mxu0
  %v2956 = vadd.f32 %v2772, %v2955
  %v2957 = vpop.f32.mrb[0].mxu0
  %v2958 = vpop.f32.mrb[0].mxu0
  %v2959 = vadd.f32 %v2777, %v2958
  %v2960 = vpop.f32.mrb[0].mxu0
  %2961 = vmatprep.mubr.bf16.mxu0 %v2879
  %2962 = vmatmul.mubr.bf16.gmra.mrb[0].mxu0 %v2878
  %v2963 = vpop.f32.mrb[0].mxu0
  %v2964 = vadd.f32 %v2782, %v2963
  %v2965 = vpop.f32.mrb[0].mxu0
  %v2966 = vpop.f32.mrb[0].mxu0
  %v2967 = vadd.f32 %v2787, %v2966
  %v2968 = vpop.f32.mrb[0].mxu0
  %2969 = vmatprep.mubr.bf16.mxu0 %v2884
  %2970 = vmatmul.mubr.bf16.gmra.mrb[0].mxu0 %v2883
  %v2971 = vpop.f32.mrb[0].mxu0
  %v2972 = vadd.f32 %v2792, %v2971
  %v2973 = vpop.f32.mrb[0].mxu0
  %v2974 = vpop.f32.mrb[0].mxu0
  %v2975 = vadd.f32 %v2797, %v2974
  %v2976 = vpop.f32.mrb[0].mxu0
  %2977 = vmatprep.mubr.bf16.mxu0 %v2889
  %2978 = vmatmul.mubr.bf16.gmra.mrb[0].mxu0 %v2888
  %v2979 = vpop.f32.mrb[0].mxu0
  %v2980 = vadd.f32 %v2802, %v2979
  %v2981 = vpop.f32.mrb[0].mxu0
  %v2982 = vpop.f32.mrb[0].mxu0
  %v2983 = vadd.f32 %v2807, %v2982
  %v2984 = vpop.f32.mrb[0].mxu0
  %2985 = vdwg.mxu0
  %2986 = vmatprep.subr.bf16.mxu0 0
  %2987 = vmatpush1.bf16.msra.mxu0 %v2741
  %2988 = vmatprep.subr.bf16.mxu0 0
  %2989 = vmatpush1.bf16.msra.mxu0 %v2742
  %2990 = vmatprep.subr.bf16.mxu0 0
  %2991 = vmatpush1.bf16.msra.mxu0 %v2743
  %2992 = vmatprep.subr.bf16.mxu0 0
  %2993 = vmatpush1.bf16.msra.mxu0 %v2744
  %2994 = vmatprep.subr.bf16.mxu0 0
  %2995 = vmatpush1.bf16.msra.mxu0 %v2745
  %2996 = vmatprep.subr.bf16.mxu0 0
  %2997 = vmatpush1.bf16.msra.mxu0 %v2746
  %2998 = vmatprep.subr.bf16.mxu0 0
  %2999 = vmatpush1.bf16.msra.mxu0 %v2747
  %3000 = vmatprep.subr.bf16.mxu0 0
  %3001 = vmatpush1.bf16.msra.mxu0 %v2748
  %3002 = vmatprep.subr.bf16.mxu0 0
  %3003 = vmatpush1.bf16.msra.mxu0 %v2749
  %3004 = vmatprep.subr.bf16.mxu0 0
  %3005 = vmatpush1.bf16.msra.mxu0 %v2750
  %3006 = vmatprep.subr.bf16.mxu0 0
  %3007 = vmatpush1.bf16.msra.mxu0 %v2751
  %3008 = vmatprep.subr.bf16.mxu0 0
  %3009 = vmatpush1.bf16.msra.mxu0 %v2752
  %3010 = vmatprep.subr.bf16.mxu0 0
  %3011 = vmatpush1.bf16.msra.mxu0 %v2753
  %3012 = vmatprep.subr.bf16.mxu0 0
  %3013 = vmatpush1.bf16.msra.mxu0 %v2754
  %3014 = vmatprep.subr.bf16.mxu0 0
  %3015 = vmatpush1.bf16.msra.mxu0 %v2755
  %3016 = vmatprep.subr.bf16.mxu0 0
  %3017 = vmatpush1.bf16.msra.mxu0 %v2756
  %3018 = vmatprep.mubr.bf16.mxu0 %v2876
  %3019 = vmatmul.mubr.bf16.gmra.mrb[0].mxu0 %v2875
  %v3020 = vpop.f32.mrb[0].mxu0
  %v3021 = vadd.f32 %v2956, %v3020
  %v3022 = vpop.f32.mrb[0].mxu0
  %v3023 = vpop.f32.mrb[0].mxu0
  %v3024 = vadd.f32 %v2959, %v3023
  %v3025 = vpop.f32.mrb[0].mxu0
  %3026 = vmatprep.mubr.bf16.mxu0 %v2881
  %3027 = vmatmul.mubr.bf16.gmra.mrb[0].mxu0 %v2880
  %v3028 = vpop.f32.mrb[0].mxu0
  %v3029 = vadd.f32 %v2964, %v3028
  %v3030 = vpop.f32.mrb[0].mxu0
  %v3031 = vpop.f32.mrb[0].mxu0
  %v3032 = vadd.f32 %v2967, %v3031
  %v3033 = vpop.f32.mrb[0].mxu0
  %3034 = vmatprep.mubr.bf16.mxu0 %v2886
  %3035 = vmatmul.mubr.bf16.gmra.mrb[0].mxu0 %v2885
  %v3036 = vpop.f32.mrb[0].mxu0
  %v3037 = vadd.f32 %v2972, %v3036
  %v3038 = vpop.f32.mrb[0].mxu0
  %v3039 = vpop.f32.mrb[0].mxu0
  %v3040 = vadd.f32 %v2975, %v3039
  %v3041 = vpop.f32.mrb[0].mxu0
  %3042 = vmatprep.mubr.bf16.mxu0 %v2891
  %3043 = vmatmul.mubr.bf16.gmra.mrb[0].mxu0 %v2890
  %v3044 = vpop.f32.mrb[0].mxu0
  %v3045 = vadd.f32 %v2980, %v3044
  %v3046 = vpop.f32.mrb[0].mxu0
  %v3047 = vpop.f32.mrb[0].mxu0
  %v3048 = vadd.f32 %v2983, %v3047
  %v3049 = vpop.f32.mrb[0].mxu0
  %3050 = vdwg.mxu0
  %3051 = vmatprep.subr.bf16.mxu0 0
  %3052 = vmatpush1.bf16.msra.mxu0 %v2757
  %3053 = vmatprep.subr.bf16.mxu0 0
  %3054 = vmatpush1.bf16.msra.mxu0 %v2758
  %3055 = vmatprep.subr.bf16.mxu0 0
  %3056 = vmatpush1.bf16.msra.mxu0 %v2759
  %3057 = vmatprep.subr.bf16.mxu0 0
  %3058 = vmatpush1.bf16.msra.mxu0 %v2760
  %3059 = vmatprep.subr.bf16.mxu0 0
  %3060 = vmatpush1.bf16.msra.mxu0 0
  %3061 = vmatprep.subr.bf16.mxu0 0
  %3062 = vmatpush1.bf16.msra.mxu0 0
  %3063 = vmatprep.subr.bf16.mxu0 0
  %3064 = vmatpush1.bf16.msra.mxu0 0
  %3065 = vmatprep.subr.bf16.mxu0 0
  %3066 = vmatpush1.bf16.msra.mxu0 0
  %3067 = vmatprep.subr.bf16.mxu0 0
  %3068 = vmatpush1.bf16.msra.mxu0 0
  %3069 = vmatprep.subr.bf16.mxu0 0
  %3070 = vmatpush1.bf16.msra.mxu0 0
  %3071 = vmatprep.subr.bf16.mxu0 0
  %3072 = vmatpush1.bf16.msra.mxu0 0
  %3073 = vmatprep.subr.bf16.mxu0 0
  %3074 = vmatpush1.bf16.msra.mxu0 0
  %3075 = vmatprep.subr.bf16.mxu0 0
  %3076 = vmatpush1.bf16.msra.mxu0 0
  %3077 = vmatprep.subr.bf16.mxu0 0
  %3078 = vmatpush1.bf16.msra.mxu0 0
  %3079 = vmatprep.subr.bf16.mxu0 0
  %3080 = vmatpush1.bf16.msra.mxu0 0
  %3081 = vmatprep.subr.bf16.mxu0 0
  %3082 = vmatpush1.bf16.msra.mxu0 0
  %3083 = vmatprep.mubr.bf16.mxu0 0
  %3084 = vmatmul.mubr.bf16.gmra.mrb[0].mxu0 %v2910
  %v3085 = vpop.f32.mrb[0].mxu0
  %v3086 = vadd.f32 %v3021, %v3085
  %v3087 = vpop.f32.mrb[0].mxu0
  %v3088 = vpop.f32.mrb[0].mxu0
  %v3089 = vadd.f32 %v3024, %v3088
  %v3090 = vpop.f32.mrb[0].mxu0
  %3091 = vmatprep.mubr.bf16.mxu0 0
  %3092 = vmatmul.mubr.bf16.gmra.mrb[0].mxu0 %v2913
  %v3093 = vpop.f32.mrb[0].mxu0
  %v3094 = vadd.f32 %v3029, %v3093
  %v3095 = vpop.f32.mrb[0].mxu0
  %v3096 = vpop.f32.mrb[0].mxu0
  %v3097 = vadd.f32 %v3032, %v3096
  %v3098 = vpop.f32.mrb[0].mxu0
  %3099 = vmatprep.mubr.bf16.mxu0 0
  %3100 = vmatmul.mubr.bf16.gmra.mrb[0].mxu0 %v2916
  %v3101 = vpop.f32.mrb[0].mxu0
  %v3102 = vadd.f32 %v3037, %v3101
  %v3103 = vpop.f32.mrb[0].mxu0
  %v3104 = vpop.f32.mrb[0].mxu0
  %v3105 = vadd.f32 %v3040, %v3104
  %v3106 = vpop.f32.mrb[0].mxu0
  %3107 = vmatprep.mubr.bf16.mxu0 0
  %3108 = vmatmul.mubr.bf16.gmra.mrb[0].mxu0 %v2919
  %v3109 = vpop.f32.mrb[0].mxu0
  %v3110 = vadd.f32 %v3045, %v3109
  %v3111 = vpop.f32.mrb[0].mxu0
  %v3112 = vpop.f32.mrb[0].mxu0
  %v3113 = vadd.f32 %v3048, %v3112
  %v3114 = vpop.f32.mrb[0].mxu0
  %3115 = vdwg.mxu0
  %v3116 = vmax.f32 %v3086, 0.0
  %v3117 = vmax.f32 %v3089, 0.0
  %v3118 = vmax.f32 %v3094, 0.0
  %v3119 = vmax.f32 %v3097, 0.0
  %v3120 = vmax.f32 %v3102, 0.0
  %v3121 = vmax.f32 %v3105, 0.0
  %v3122 = vmax.f32 %v3110, 0.0
  %v3123 = vmax.f32 %v3113, 0.0
  %v3124 = vpack.c.bf16 %v3117, %v3116
  %v3125 = vpack.c.bf16 %v3119, %v3118
  %v3126 = vpack.c.bf16 %v3121, %v3120
  %v3127 = vpack.c.bf16 %v3123, %v3122
  %v3128 = vunpack.c.l.bf16 %v2379
  %v3129 = vunpack.c.h.bf16 %v2379
  %v3130 = vunpack.c.l.bf16 %v2380
  %v3131 = vunpack.c.h.bf16 %v2380
  %v3132 = vunpack.c.l.bf16 %v2381
  %v3133 = vunpack.c.h.bf16 %v2381
  %v3134 = vunpack.c.l.bf16 %v2382
  %v3135 = vunpack.c.h.bf16 %v2382
  %v3136 = vld [vmem:[%s14] sm:$0xff]
  %v3137 = vld [vmem:[%s14 + $0x8] sm:$0xf]
  %v3138 = vld [vmem:[%s14 + $0xc] sm:$0xff]
  %v3139 = vld [vmem:[%s14 + $0x14] sm:$0xf]
  %v3140 = vld [vmem:[%s14 + $0x18] sm:$0xff]
  %v3141 = vld [vmem:[%s14 + $0x20] sm:$0xf]
  %v3142 = vld [vmem:[%s14 + $0x24] sm:$0xff]
  %v3143 = vld [vmem:[%s14 + $0x2c] sm:$0xf]
  %v3152 = vunpack.c.l.b16 %v3136
  %v3153 = vunpack.c.h.b16 %v3136
  %v3154 = vunpack.c.l.b16 %v3137
  %v3155 = vunpack.c.l.b16 %v3138
  %v3156 = vunpack.c.h.b16 %v3138
  %v3157 = vunpack.c.l.b16 %v3139
  %v3158 = vunpack.c.l.b16 %v3140
  %v3159 = vunpack.c.h.b16 %v3140
  %v3160 = vunpack.c.l.b16 %v3141
  %v3161 = vunpack.c.l.b16 %v3142
  %v3162 = vunpack.c.h.b16 %v3142
  %v3163 = vunpack.c.l.b16 %v3143
  %v3164 = vpack.c.b16 %v3155, %v3152
  %v3165 = vpack.c.b16 %v3156, %v3153
  %v3166 = vpack.c.b16 %v3157, %v3154
  %v3167 = vpack.c.b16 %v3161, %v3158
  %v3168 = vpack.c.b16 %v3162, %v3159
  %v3169 = vpack.c.b16 %v3163, %v3160
  %v3177 = vsel %vm915, %v3124, 0
  %v3180 = vsel %vm915, %v3125, 0
  %v3183 = vsel %vm915, %v3126, 0
  %v3186 = vsel %vm915, %v3127, 0
  %3188 = vmatprep.subr.bf16.mxu0 %v3165
  %3189 = vmatpush1.bf16.msra.mxu0 %v3164
  %3190 = vmatprep.subr.bf16.mxu0 %v3168
  %3191 = vmatpush1.bf16.msra.mxu0 %v3167
  %3192 = vmatprep.subr.bf16.mxu0 0
  %3193 = vmatpush1.bf16.msra.mxu0 0
  %3194 = vmatprep.subr.bf16.mxu0 0
  %3195 = vmatpush1.bf16.msra.mxu0 0
  %3196 = vmatprep.subr.bf16.mxu0 0
  %3197 = vmatpush1.bf16.msra.mxu0 0
  %3198 = vmatprep.subr.bf16.mxu0 0
  %3199 = vmatpush1.bf16.msra.mxu0 0
  %3200 = vmatprep.subr.bf16.mxu0 0
  %3201 = vmatpush1.bf16.msra.mxu0 0
  %3202 = vmatprep.subr.bf16.mxu0 0
  %3203 = vmatpush1.bf16.msra.mxu0 0
  %3204 = vmatprep.subr.bf16.mxu0 0
  %3205 = vmatpush1.bf16.msra.mxu0 0
  %3206 = vmatprep.subr.bf16.mxu0 0
  %3207 = vmatpush1.bf16.msra.mxu0 0
  %3208 = vmatprep.subr.bf16.mxu0 0
  %3209 = vmatpush1.bf16.msra.mxu0 0
  %3210 = vmatprep.subr.bf16.mxu0 0
  %3211 = vmatpush1.bf16.msra.mxu0 0
  %3212 = vmatprep.subr.bf16.mxu0 0
  %3213 = vmatpush1.bf16.msra.mxu0 0
  %3214 = vmatprep.subr.bf16.mxu0 0
  %3215 = vmatpush1.bf16.msra.mxu0 0
  %3216 = vmatprep.subr.bf16.mxu0 0
  %3217 = vmatpush1.bf16.msra.mxu0 0
  %3218 = vmatprep.subr.bf16.mxu0 0
  %3219 = vmatpush1.bf16.msra.mxu0 0
  %3220 = vmatprep.mubr.bf16.mxu0 0
  %3221 = vmatmul.mubr.bf16.gmra.mrb[0].mxu0 %v3177
  %v3222 = vpop.f32.mrb[0].mxu0
  %v3223 = vadd.f32 0.0, %v3222
  %v3224 = vpop.f32.mrb[0].mxu0
  %v3225 = vadd.f32 0.0, %v3224
  %v3226 = vpop.f32.mrb[0].mxu0
  %v3227 = vadd.f32 0.0, %v3226
  %v3228 = vpop.f32.mrb[0].mxu0
  %v3229 = vadd.f32 0.0, %v3228
  %3230 = vmatprep.mubr.bf16.mxu0 0
  %3231 = vmatmul.mubr.bf16.gmra.mrb[0].mxu0 %v3180
  %v3232 = vpop.f32.mrb[0].mxu0
  %v3233 = vadd.f32 0.0, %v3232
  %v3234 = vpop.f32.mrb[0].mxu0
  %v3235 = vadd.f32 0.0, %v3234
  %v3236 = vpop.f32.mrb[0].mxu0
  %v3237 = vadd.f32 0.0, %v3236
  %v3238 = vpop.f32.mrb[0].mxu0
  %v3239 = vadd.f32 0.0, %v3238
  %3240 = vmatprep.mubr.bf16.mxu0 0
  %3241 = vmatmul.mubr.bf16.gmra.mrb[0].mxu0 %v3183
  %v3242 = vpop.f32.mrb[0].mxu0
  %v3243 = vadd.f32 0.0, %v3242
  %v3244 = vpop.f32.mrb[0].mxu0
  %v3245 = vadd.f32 0.0, %v3244
  %v3246 = vpop.f32.mrb[0].mxu0
  %v3247 = vadd.f32 0.0, %v3246
  %v3248 = vpop.f32.mrb[0].mxu0
  %v3249 = vadd.f32 0.0, %v3248
  %3250 = vmatprep.mubr.bf16.mxu0 0
  %3251 = vmatmul.mubr.bf16.gmra.mrb[0].mxu0 %v3186
  %v3252 = vpop.f32.mrb[0].mxu0
  %v3253 = vadd.f32 0.0, %v3252
  %v3254 = vpop.f32.mrb[0].mxu0
  %v3255 = vadd.f32 0.0, %v3254
  %v3256 = vpop.f32.mrb[0].mxu0
  %v3257 = vadd.f32 0.0, %v3256
  %v3258 = vpop.f32.mrb[0].mxu0
  %v3259 = vadd.f32 0.0, %v3258
  %3260 = vdwg.mxu0
  %3261 = vmatprep.subr.bf16.mxu0 0
  %3262 = vmatpush1.bf16.msra.mxu0 %v3166
  %3263 = vmatprep.subr.bf16.mxu0 0
  %3264 = vmatpush1.bf16.msra.mxu0 %v3169
  %3265 = vmatprep.subr.bf16.mxu0 0
  %3266 = vmatpush1.bf16.msra.mxu0 0
  %3267 = vmatprep.subr.bf16.mxu0 0
  %3268 = vmatpush1.bf16.msra.mxu0 0
  %3269 = vmatprep.subr.bf16.mxu0 0
  %3270 = vmatpush1.bf16.msra.mxu0 0
  %3271 = vmatprep.subr.bf16.mxu0 0
  %3272 = vmatpush1.bf16.msra.mxu0 0
  %3273 = vmatprep.subr.bf16.mxu0 0
  %3274 = vmatpush1.bf16.msra.mxu0 0
  %3275 = vmatprep.subr.bf16.mxu0 0
  %3276 = vmatpush1.bf16.msra.mxu0 0
  %3277 = vmatprep.subr.bf16.mxu0 0
  %3278 = vmatpush1.bf16.msra.mxu0 0
  %3279 = vmatprep.subr.bf16.mxu0 0
  %3280 = vmatpush1.bf16.msra.mxu0 0
  %3281 = vmatprep.subr.bf16.mxu0 0
  %3282 = vmatpush1.bf16.msra.mxu0 0
  %3283 = vmatprep.subr.bf16.mxu0 0
  %3284 = vmatpush1.bf16.msra.mxu0 0
  %3285 = vmatprep.subr.bf16.mxu0 0
  %3286 = vmatpush1.bf16.msra.mxu0 0
  %3287 = vmatprep.subr.bf16.mxu0 0
  %3288 = vmatpush1.bf16.msra.mxu0 0
  %3289 = vmatprep.subr.bf16.mxu0 0
  %3290 = vmatpush1.bf16.msra.mxu0 0
  %3291 = vmatprep.subr.bf16.mxu0 0
  %3292 = vmatpush1.bf16.msra.mxu0 0
  %3293 = vmatprep.mubr.bf16.mxu0 0
  %3294 = vmatmul.mubr.bf16.gmra.mrb[0].mxu0 %v3177
  %v3295 = vpop.f32.mrb[0].mxu0
  %v3296 = vadd.f32 0.0, %v3295
  %v3297 = vpop.f32.mrb[0].mxu0
  %v3298 = vpop.f32.mrb[0].mxu0
  %v3299 = vadd.f32 0.0, %v3298
  %v3300 = vpop.f32.mrb[0].mxu0
  %3301 = vmatprep.mubr.bf16.mxu0 0
  %3302 = vmatmul.mubr.bf16.gmra.mrb[0].mxu0 %v3180
  %v3303 = vpop.f32.mrb[0].mxu0
  %v3304 = vadd.f32 0.0, %v3303
  %v3305 = vpop.f32.mrb[0].mxu0
  %v3306 = vpop.f32.mrb[0].mxu0
  %v3307 = vadd.f32 0.0, %v3306
  %v3308 = vpop.f32.mrb[0].mxu0
  %3309 = vmatprep.mubr.bf16.mxu0 0
  %3310 = vmatmul.mubr.bf16.gmra.mrb[0].mxu0 %v3183
  %v3311 = vpop.f32.mrb[0].mxu0
  %v3312 = vadd.f32 0.0, %v3311
  %v3313 = vpop.f32.mrb[0].mxu0
  %v3314 = vpop.f32.mrb[0].mxu0
  %v3315 = vadd.f32 0.0, %v3314
  %v3316 = vpop.f32.mrb[0].mxu0
  %3317 = vmatprep.mubr.bf16.mxu0 0
  %3318 = vmatmul.mubr.bf16.gmra.mrb[0].mxu0 %v3186
  %v3319 = vpop.f32.mrb[0].mxu0
  %v3320 = vadd.f32 0.0, %v3319
  %v3321 = vpop.f32.mrb[0].mxu0
  %v3322 = vpop.f32.mrb[0].mxu0
  %v3323 = vadd.f32 0.0, %v3322
  %v3324 = vpop.f32.mrb[0].mxu0
  %3325 = vdwg.mxu0
  %v3326 = vpack.c.bf16 %v3227, %v3223
  %v3327 = vpack.c.bf16 %v3229, %v3225
  %v3328 = vpack.c.bf16 %v3299, %v3296
  %v3329 = vpack.c.bf16 %v3237, %v3233
  %v3330 = vpack.c.bf16 %v3239, %v3235
  %v3331 = vpack.c.bf16 %v3307, %v3304
  %v3332 = vpack.c.bf16 %v3247, %v3243
  %v3333 = vpack.c.bf16 %v3249, %v3245
  %v3334 = vpack.c.bf16 %v3315, %v3312
  %v3335 = vpack.c.bf16 %v3257, %v3253
  %v3336 = vpack.c.bf16 %v3259, %v3255
  %v3337 = vpack.c.bf16 %v3323, %v3320
  %3338 = vst.msk [vmem:[#allocation2] sm:$0xff] %vm915, %v3326
  %3339 = vst.msk [vmem:[#allocation2 + $0x8] sm:$0xff] %vm915, %v3329
  %3340 = vst.msk [vmem:[#allocation2 + $0x10] sm:$0xff] %vm915, %v3332
  %3341 = vst.msk [vmem:[#allocation2 + $0x18] sm:$0xff] %vm915, %v3335
  %3346 = vrot.lane.b32.xlu0 %v3326, 96
  %v3347 = vpop.permute.xlu0 %3346
  %3348 = vrot.lane.b32.xlu0 %v3329, 96
  %v3349 = vpop.permute.xlu0 %3348
  %3350 = vrot.lane.b32.xlu0 %v3332, 96
  %v3351 = vpop.permute.xlu0 %3350
  %3352 = vrot.lane.b32.xlu0 %v3335, 96
  %v3353 = vpop.permute.xlu0 %3352
  %3358 = vst.msk [vmem:[#allocation2 + $0x20] sm:$0xff] %vm915, %v3347
  %3359 = vst.msk [vmem:[#allocation2 + $0x28] sm:$0xff] %vm915, %v3349
  %3360 = vst.msk [vmem:[#allocation2 + $0x30] sm:$0xff] %vm915, %v3351
  %3361 = vst.msk [vmem:[#allocation2 + $0x38] sm:$0xff] %vm915, %v3353
  %3362 = vrot.lane.b32.xlu0 %v3326, 64
  %v3363 = vpop.permute.xlu0 %3362
  %3364 = vrot.lane.b32.xlu0 %v3329, 64
  %v3365 = vpop.permute.xlu0 %3364
  %3366 = vrot.lane.b32.xlu0 %v3332, 64
  %v3367 = vpop.permute.xlu0 %3366
  %3368 = vrot.lane.b32.xlu0 %v3335, 64
  %v3369 = vpop.permute.xlu0 %3368
  %3374 = vst.msk [vmem:[#allocation2 + $0x40] sm:$0xff] %vm915, %v3363
  %3375 = vst.msk [vmem:[#allocation2 + $0x48] sm:$0xff] %vm915, %v3365
  %3376 = vst.msk [vmem:[#allocation2 + $0x50] sm:$0xff] %vm915, %v3367
  %3377 = vst.msk [vmem:[#allocation2 + $0x58] sm:$0xff] %vm915, %v3369
  %3378 = vrot.lane.b32.xlu0 %v3326, 32
  %v3379 = vpop.permute.xlu0 %3378
  %3380 = vrot.lane.b32.xlu0 %v3329, 32
  %v3381 = vpop.permute.xlu0 %3380
  %3382 = vrot.lane.b32.xlu0 %v3332, 32
  %v3383 = vpop.permute.xlu0 %3382
  %3384 = vrot.lane.b32.xlu0 %v3335, 32
  %v3385 = vpop.permute.xlu0 %3384
  %3390 = vst.msk [vmem:[#allocation2 + $0x60] sm:$0xff] %vm915, %v3379
  %3391 = vst.msk [vmem:[#allocation2 + $0x68] sm:$0xff] %vm915, %v3381
  %3392 = vst.msk [vmem:[#allocation2 + $0x70] sm:$0xff] %vm915, %v3383
  %3393 = vst.msk [vmem:[#allocation2 + $0x78] sm:$0xff] %vm915, %v3385
  %3394 = vst.msk [vmem:[#allocation2 + $0x80] sm:$0xff] %vm915, %v3327
  %3395 = vst.msk [vmem:[#allocation2 + $0x88] sm:$0xff] %vm915, %v3330
  %3396 = vst.msk [vmem:[#allocation2 + $0x90] sm:$0xff] %vm915, %v3333
  %3397 = vst.msk [vmem:[#allocation2 + $0x98] sm:$0xff] %vm915, %v3336
  %3402 = vrot.lane.b32.xlu0 %v3327, 96
  %v3403 = vpop.permute.xlu0 %3402
  %3404 = vrot.lane.b32.xlu0 %v3330, 96
  %v3405 = vpop.permute.xlu0 %3404
  %3406 = vrot.lane.b32.xlu0 %v3333, 96
  %v3407 = vpop.permute.xlu0 %3406
  %3408 = vrot.lane.b32.xlu0 %v3336, 96
  %v3409 = vpop.permute.xlu0 %3408
  %3414 = vst.msk [vmem:[#allocation2 + $0xa0] sm:$0xff] %vm915, %v3403
  %3415 = vst.msk [vmem:[#allocation2 + $0xa8] sm:$0xff] %vm915, %v3405
  %3416 = vst.msk [vmem:[#allocation2 + $0xb0] sm:$0xff] %vm915, %v3407
  %3417 = vst.msk [vmem:[#allocation2 + $0xb8] sm:$0xff] %vm915, %v3409
  %3418 = vrot.lane.b32.xlu0 %v3327, 64
  %v3419 = vpop.permute.xlu0 %3418
  %3420 = vrot.lane.b32.xlu0 %v3330, 64
  %v3421 = vpop.permute.xlu0 %3420
  %3422 = vrot.lane.b32.xlu0 %v3333, 64
  %v3423 = vpop.permute.xlu0 %3422
  %3424 = vrot.lane.b32.xlu0 %v3336, 64
  %v3425 = vpop.permute.xlu0 %3424
  %3430 = vst.msk [vmem:[#allocation2 + $0xc0] sm:$0xff] %vm915, %v3419
  %3431 = vst.msk [vmem:[#allocation2 + $0xc8] sm:$0xff] %vm915, %v3421
  %3432 = vst.msk [vmem:[#allocation2 + $0xd0] sm:$0xff] %vm915, %v3423
  %3433 = vst.msk [vmem:[#allocation2 + $0xd8] sm:$0xff] %vm915, %v3425
  %3434 = vrot.lane.b32.xlu0 %v3327, 32
  %v3435 = vpop.permute.xlu0 %3434
  %3436 = vrot.lane.b32.xlu0 %v3330, 32
  %v3437 = vpop.permute.xlu0 %3436
  %3438 = vrot.lane.b32.xlu0 %v3333, 32
  %v3439 = vpop.permute.xlu0 %3438
  %3440 = vrot.lane.b32.xlu0 %v3336, 32
  %v3441 = vpop.permute.xlu0 %3440
  %3446 = vst.msk [vmem:[#allocation2 + $0xe0] sm:$0xff] %vm915, %v3435
  %3447 = vst.msk [vmem:[#allocation2 + $0xe8] sm:$0xff] %vm915, %v3437
  %3448 = vst.msk [vmem:[#allocation2 + $0xf0] sm:$0xff] %vm915, %v3439
  %3449 = vst.msk [vmem:[#allocation2 + $0xf8] sm:$0xff] %vm915, %v3441
  %3450 = vst.msk [vmem:[#allocation2 + $0x100] sm:$0xff] %vm915, %v3328
  %3451 = vst.msk [vmem:[#allocation2 + $0x108] sm:$0xff] %vm915, %v3331
  %3452 = vst.msk [vmem:[#allocation2 + $0x110] sm:$0xff] %vm915, %v3334
  %3453 = vst.msk [vmem:[#allocation2 + $0x118] sm:$0xff] %vm915, %v3337
  %v3454 = vld [vmem:[%s5] sm:$0xff]
  %v3455 = vld [vmem:[%s5 + $0x8] sm:$0xff]
  %v3456 = vld [vmem:[%s5 + $0x10] sm:$0xf]
  %v3457 = vld [vmem:[%s5 + $0x14] sm:$0xff]
  %v3458 = vld [vmem:[%s5 + $0x1c] sm:$0xff]
  %v3459 = vld [vmem:[%s5 + $0x24] sm:$0xf]
  %v3460 = vld [vmem:[%s5 + $0x28] sm:$0xff]
  %v3461 = vld [vmem:[%s5 + $0x30] sm:$0xff]
  %v3462 = vld [vmem:[%s5 + $0x38] sm:$0xf]
  %v3463 = vld [vmem:[%s5 + $0x3c] sm:$0xff]
  %v3464 = vld [vmem:[%s5 + $0x44] sm:$0xff]
  %v3465 = vld [vmem:[%s5 + $0x4c] sm:$0xf]
  %v3466 = vld [vmem:[%s5 + $0x50] sm:$0xff]
  %v3467 = vld [vmem:[%s5 + $0x58] sm:$0xff]
  %v3468 = vld [vmem:[%s5 + $0x60] sm:$0xf]
  %v3469 = vld [vmem:[%s5 + $0x64] sm:$0xff]
  %v3470 = vld [vmem:[%s5 + $0x6c] sm:$0xff]
  %v3471 = vld [vmem:[%s5 + $0x74] sm:$0xf]
  %v3472 = vld [vmem:[%s5 + $0x78] sm:$0xff]
  %v3473 = vld [vmem:[%s5 + $0x80] sm:$0xff]
  %v3474 = vld [vmem:[%s5 + $0x88] sm:$0xf]
  %v3475 = vld [vmem:[%s5 + $0x8c] sm:$0xff]
  %v3476 = vld [vmem:[%s5 + $0x94] sm:$0xff]
  %v3477 = vld [vmem:[%s5 + $0x9c] sm:$0xf]
  %v3478 = vld [vmem:[#allocation2] sm:$0xff]
  %v3479 = vld [vmem:[#allocation2 + $0x8] sm:$0xff]
  %v3480 = vld [vmem:[#allocation2 + $0x10] sm:$0xff]
  %v3481 = vld [vmem:[#allocation2 + $0x18] sm:$0xff]
  %v3482 = vld [vmem:[#allocation2 + $0x20] sm:$0xff]
  %v3483 = vld [vmem:[#allocation2 + $0x28] sm:$0xff]
  %v3484 = vld [vmem:[#allocation2 + $0x30] sm:$0xff]
  %v3485 = vld [vmem:[#allocation2 + $0x38] sm:$0xff]
  %v3486 = vld [vmem:[#allocation2 + $0x40] sm:$0xff]
  %v3487 = vld [vmem:[#allocation2 + $0x48] sm:$0xff]
  %v3488 = vld [vmem:[#allocation2 + $0x50] sm:$0xff]
  %v3489 = vld [vmem:[#allocation2 + $0x58] sm:$0xff]
  %v3490 = vld [vmem:[#allocation2 + $0x60] sm:$0xff]
  %v3491 = vld [vmem:[#allocation2 + $0x68] sm:$0xff]
  %v3492 = vld [vmem:[#allocation2 + $0x70] sm:$0xff]
  %v3493 = vld [vmem:[#allocation2 + $0x78] sm:$0xff]
  %v3494 = vld [vmem:[#allocation2 + $0x80] sm:$0xff]
  %v3495 = vld [vmem:[#allocation2 + $0x88] sm:$0xff]
  %v3496 = vld [vmem:[#allocation2 + $0x90] sm:$0xff]
  %v3497 = vld [vmem:[#allocation2 + $0x98] sm:$0xff]
  %v3498 = vld [vmem:[#allocation2 + $0xa0] sm:$0xff]
  %v3499 = vld [vmem:[#allocation2 + $0xa8] sm:$0xff]
  %v3500 = vld [vmem:[#allocation2 + $0xb0] sm:$0xff]
  %v3501 = vld [vmem:[#allocation2 + $0xb8] sm:$0xff]
  %v3502 = vld [vmem:[#allocation2 + $0xc0] sm:$0xff]
  %v3503 = vld [vmem:[#allocation2 + $0xc8] sm:$0xff]
  %v3504 = vld [vmem:[#allocation2 + $0xd0] sm:$0xff]
  %v3505 = vld [vmem:[#allocation2 + $0xd8] sm:$0xff]
  %v3506 = vld [vmem:[#allocation2 + $0xe0] sm:$0xff]
  %v3507 = vld [vmem:[#allocation2 + $0xe8] sm:$0xff]
  %v3508 = vld [vmem:[#allocation2 + $0xf0] sm:$0xff]
  %v3509 = vld [vmem:[#allocation2 + $0xf8] sm:$0xff]
  %v3510 = vld [vmem:[#allocation2 + $0x100] sm:$0xff]
  %v3511 = vld [vmem:[#allocation2 + $0x108] sm:$0xff]
  %v3512 = vld [vmem:[#allocation2 + $0x110] sm:$0xff]
  %v3513 = vld [vmem:[#allocation2 + $0x118] sm:$0xff]
  %v3514 = vld [vmem:[%s12] sm:$0xff]
  %v3515 = vld [vmem:[%s12 + $0x8] sm:$0xff]
  %v3516 = vld [vmem:[%s12 + $0x10] sm:$0xff]
  %v3517 = vld [vmem:[%s12 + $0x18] sm:$0xff]
  %v3518 = vld [vmem:[%s12 + $0x20] sm:$0xff]
  %v3519 = vld [vmem:[%s12 + $0x28] sm:$0xff]
  %v3520 = vld [vmem:[%s12 + $0x30] sm:$0xff]
  %v3521 = vld [vmem:[%s12 + $0x38] sm:$0xff]
  %3523 = vset.pattern.permute.xlu0 4
  %3524 = vperm.xlu0 %3523, %v3514
  %v3525 = vpop.permute.xlu0 %3524
  %3528 = vset.pattern.permute.xlu0 4
  %3529 = vperm.xlu0 %3528, %v3515
  %v3530 = vpop.permute.xlu0 %3529
  %3533 = vset.pattern.permute.xlu0 4
  %3534 = vperm.xlu0 %3533, %v3516
  %v3535 = vpop.permute.xlu0 %3534
  %3538 = vset.pattern.permute.xlu0 4
  %3539 = vperm.xlu0 %3538, %v3517
  %v3540 = vpop.permute.xlu0 %3539
  %3543 = vset.pattern.permute.xlu0 4
  %3544 = vperm.xlu0 %3543, %v3518
  %v3545 = vpop.permute.xlu0 %3544
  %3548 = vset.pattern.permute.xlu0 4
  %3549 = vperm.xlu0 %3548, %v3519
  %v3550 = vpop.permute.xlu0 %3549
  %3553 = vset.pattern.permute.xlu0 4
  %3554 = vperm.xlu0 %3553, %v3520
  %v3555 = vpop.permute.xlu0 %3554
  %3558 = vset.pattern.permute.xlu0 4
  %3559 = vperm.xlu0 %3558, %v3521
  %v3560 = vpop.permute.xlu0 %3559
  %v3586 = vunpack.c.l.b16 %v3454
  %v3587 = vunpack.c.h.b16 %v3454
  %v3588 = vunpack.c.l.b16 %v3455
  %v3589 = vunpack.c.h.b16 %v3455
  %v3590 = vunpack.c.l.b16 %v3456
  %v3591 = vunpack.c.l.b16 %v3457
  %v3592 = vunpack.c.h.b16 %v3457
  %v3593 = vunpack.c.l.b16 %v3458
  %v3594 = vunpack.c.h.b16 %v3458
  %v3595 = vunpack.c.l.b16 %v3459
  %v3596 = vunpack.c.l.b16 %v3460
  %v3597 = vunpack.c.h.b16 %v3460
  %v3598 = vunpack.c.l.b16 %v3461
  %v3599 = vunpack.c.h.b16 %v3461
  %v3600 = vunpack.c.l.b16 %v3462
  %v3601 = vunpack.c.l.b16 %v3463
  %v3602 = vunpack.c.h.b16 %v3463
  %v3603 = vunpack.c.l.b16 %v3464
  %v3604 = vunpack.c.h.b16 %v3464
  %v3605 = vunpack.c.l.b16 %v3465
  %v3606 = vunpack.c.l.b16 %v3466
  %v3607 = vunpack.c.h.b16 %v3466
  %v3608 = vunpack.c.l.b16 %v3467
  %v3609 = vunpack.c.h.b16 %v3467
  %v3610 = vunpack.c.l.b16 %v3468
  %v3611 = vunpack.c.l.b16 %v3469
  %v3612 = vunpack.c.h.b16 %v3469
  %v3613 = vunpack.c.l.b16 %v3470
  %v3614 = vunpack.c.h.b16 %v3470
  %v3615 = vunpack.c.l.b16 %v3471
  %v3616 = vunpack.c.l.b16 %v3472
  %v3617 = vunpack.c.h.b16 %v3472
  %v3618 = vunpack.c.l.b16 %v3473
  %v3619 = vunpack.c.h.b16 %v3473
  %v3620 = vunpack.c.l.b16 %v3474
  %v3621 = vunpack.c.l.b16 %v3475
  %v3622 = vunpack.c.h.b16 %v3475
  %v3623 = vunpack.c.l.b16 %v3476
  %v3624 = vunpack.c.h.b16 %v3476
  %v3625 = vunpack.c.l.b16 %v3477
  %v3626 = vpack.c.b16 %v3591, %v3586
  %v3627 = vpack.c.b16 %v3592, %v3587
  %v3628 = vpack.c.b16 %v3593, %v3588
  %v3629 = vpack.c.b16 %v3594, %v3589
  %v3630 = vpack.c.b16 %v3595, %v3590
  %v3631 = vpack.c.b16 %v3601, %v3596
  %v3632 = vpack.c.b16 %v3602, %v3597
  %v3633 = vpack.c.b16 %v3603, %v3598
  %v3634 = vpack.c.b16 %v3604, %v3599
  %v3635 = vpack.c.b16 %v3605, %v3600
  %v3636 = vpack.c.b16 %v3611, %v3606
  %v3637 = vpack.c.b16 %v3612, %v3607
  %v3638 = vpack.c.b16 %v3613, %v3608
  %v3639 = vpack.c.b16 %v3614, %v3609
  %v3640 = vpack.c.b16 %v3615, %v3610
  %v3641 = vpack.c.b16 %v3621, %v3616
  %v3642 = vpack.c.b16 %v3622, %v3617
  %v3643 = vpack.c.b16 %v3623, %v3618
  %v3644 = vpack.c.b16 %v3624, %v3619
  %v3645 = vpack.c.b16 %v3625, %v3620
  %v3663 = vsel %vm1402, %v3630, 0
  %v3666 = vsel %vm1402, %v3635, 0
  %v3669 = vsel %vm1402, %v3640, 0
  %v3672 = vsel %vm1402, %v3645, 0
  %3674 = vmatprep.subr.bf16.mxu0 0
  %3675 = vmatpush1.bf16.msra.mxu0 %v3478
  %3676 = vmatprep.subr.bf16.mxu0 0
  %3677 = vmatpush1.bf16.msra.mxu0 %v3479
  %3678 = vmatprep.subr.bf16.mxu0 0
  %3679 = vmatpush1.bf16.msra.mxu0 %v3480
  %3680 = vmatprep.subr.bf16.mxu0 0
  %3681 = vmatpush1.bf16.msra.mxu0 %v3481
  %3682 = vmatprep.subr.bf16.mxu0 0
  %3683 = vmatpush1.bf16.msra.mxu0 %v3482
  %3684 = vmatprep.subr.bf16.mxu0 0
  %3685 = vmatpush1.bf16.msra.mxu0 %v3483
  %3686 = vmatprep.subr.bf16.mxu0 0
  %3687 = vmatpush1.bf16.msra.mxu0 %v3484
  %3688 = vmatprep.subr.bf16.mxu0 0
  %3689 = vmatpush1.bf16.msra.mxu0 %v3485
  %3690 = vmatprep.subr.bf16.mxu0 0
  %3691 = vmatpush1.bf16.msra.mxu0 %v3486
  %3692 = vmatprep.subr.bf16.mxu0 0
  %3693 = vmatpush1.bf16.msra.mxu0 %v3487
  %3694 = vmatprep.subr.bf16.mxu0 0
  %3695 = vmatpush1.bf16.msra.mxu0 %v3488
  %3696 = vmatprep.subr.bf16.mxu0 0
  %3697 = vmatpush1.bf16.msra.mxu0 %v3489
  %3698 = vmatprep.subr.bf16.mxu0 0
  %3699 = vmatpush1.bf16.msra.mxu0 %v3490
  %3700 = vmatprep.subr.bf16.mxu0 0
  %3701 = vmatpush1.bf16.msra.mxu0 %v3491
  %3702 = vmatprep.subr.bf16.mxu0 0
  %3703 = vmatpush1.bf16.msra.mxu0 %v3492
  %3704 = vmatprep.subr.bf16.mxu0 0
  %3705 = vmatpush1.bf16.msra.mxu0 %v3493
  %3706 = vmatprep.mubr.bf16.mxu0 %v3627
  %3707 = vmatmul.mubr.bf16.gmra.mrb[0].mxu0 %v3626
  %v3708 = vpop.f32.mrb[0].mxu0
  %v3709 = vadd.f32 %v3525, %v3708
  %v3710 = vpop.f32.mrb[0].mxu0
  %v3711 = vpop.f32.mrb[0].mxu0
  %v3712 = vadd.f32 %v3530, %v3711
  %v3713 = vpop.f32.mrb[0].mxu0
  %3714 = vmatprep.mubr.bf16.mxu0 %v3632
  %3715 = vmatmul.mubr.bf16.gmra.mrb[0].mxu0 %v3631
  %v3716 = vpop.f32.mrb[0].mxu0
  %v3717 = vadd.f32 %v3535, %v3716
  %v3718 = vpop.f32.mrb[0].mxu0
  %v3719 = vpop.f32.mrb[0].mxu0
  %v3720 = vadd.f32 %v3540, %v3719
  %v3721 = vpop.f32.mrb[0].mxu0
  %3722 = vmatprep.mubr.bf16.mxu0 %v3637
  %3723 = vmatmul.mubr.bf16.gmra.mrb[0].mxu0 %v3636
  %v3724 = vpop.f32.mrb[0].mxu0
  %v3725 = vadd.f32 %v3545, %v3724
  %v3726 = vpop.f32.mrb[0].mxu0
  %v3727 = vpop.f32.mrb[0].mxu0
  %v3728 = vadd.f32 %v3550, %v3727
  %v3729 = vpop.f32.mrb[0].mxu0
  %3730 = vmatprep.mubr.bf16.mxu0 %v3642
  %3731 = vmatmul.mubr.bf16.gmra.mrb[0].mxu0 %v3641
  %v3732 = vpop.f32.mrb[0].mxu0
  %v3733 = vadd.f32 %v3555, %v3732
  %v3734 = vpop.f32.mrb[0].mxu0
  %v3735 = vpop.f32.mrb[0].mxu0
  %v3736 = vadd.f32 %v3560, %v3735
  %v3737 = vpop.f32.mrb[0].mxu0
  %3738 = vdwg.mxu0
  %3739 = vmatprep.subr.bf16.mxu0 0
  %3740 = vmatpush1.bf16.msra.mxu0 %v3494
  %3741 = vmatprep.subr.bf16.mxu0 0
  %3742 = vmatpush1.bf16.msra.mxu0 %v3495
  %3743 = vmatprep.subr.bf16.mxu0 0
  %3744 = vmatpush1.bf16.msra.mxu0 %v3496
  %3745 = vmatprep.subr.bf16.mxu0 0
  %3746 = vmatpush1.bf16.msra.mxu0 %v3497
  %3747 = vmatprep.subr.bf16.mxu0 0
  %3748 = vmatpush1.bf16.msra.mxu0 %v3498
  %3749 = vmatprep.subr.bf16.mxu0 0
  %3750 = vmatpush1.bf16.msra.mxu0 %v3499
  %3751 = vmatprep.subr.bf16.mxu0 0
  %3752 = vmatpush1.bf16.msra.mxu0 %v3500
  %3753 = vmatprep.subr.bf16.mxu0 0
  %3754 = vmatpush1.bf16.msra.mxu0 %v3501
  %3755 = vmatprep.subr.bf16.mxu0 0
  %3756 = vmatpush1.bf16.msra.mxu0 %v3502
  %3757 = vmatprep.subr.bf16.mxu0 0
  %3758 = vmatpush1.bf16.msra.mxu0 %v3503
  %3759 = vmatprep.subr.bf16.mxu0 0
  %3760 = vmatpush1.bf16.msra.mxu0 %v3504
  %3761 = vmatprep.subr.bf16.mxu0 0
  %3762 = vmatpush1.bf16.msra.mxu0 %v3505
  %3763 = vmatprep.subr.bf16.mxu0 0
  %3764 = vmatpush1.bf16.msra.mxu0 %v3506
  %3765 = vmatprep.subr.bf16.mxu0 0
  %3766 = vmatpush1.bf16.msra.mxu0 %v3507
  %3767 = vmatprep.subr.bf16.mxu0 0
  %3768 = vmatpush1.bf16.msra.mxu0 %v3508
  %3769 = vmatprep.subr.bf16.mxu0 0
  %3770 = vmatpush1.bf16.msra.mxu0 %v3509
  %3771 = vmatprep.mubr.bf16.mxu0 %v3629
  %3772 = vmatmul.mubr.bf16.gmra.mrb[0].mxu0 %v3628
  %v3773 = vpop.f32.mrb[0].mxu0
  %v3774 = vadd.f32 %v3709, %v3773
  %v3775 = vpop.f32.mrb[0].mxu0
  %v3776 = vpop.f32.mrb[0].mxu0
  %v3777 = vadd.f32 %v3712, %v3776
  %v3778 = vpop.f32.mrb[0].mxu0
  %3779 = vmatprep.mubr.bf16.mxu0 %v3634
  %3780 = vmatmul.mubr.bf16.gmra.mrb[0].mxu0 %v3633
  %v3781 = vpop.f32.mrb[0].mxu0
  %v3782 = vadd.f32 %v3717, %v3781
  %v3783 = vpop.f32.mrb[0].mxu0
  %v3784 = vpop.f32.mrb[0].mxu0
  %v3785 = vadd.f32 %v3720, %v3784
  %v3786 = vpop.f32.mrb[0].mxu0
  %3787 = vmatprep.mubr.bf16.mxu0 %v3639
  %3788 = vmatmul.mubr.bf16.gmra.mrb[0].mxu0 %v3638
  %v3789 = vpop.f32.mrb[0].mxu0
  %v3790 = vadd.f32 %v3725, %v3789
  %v3791 = vpop.f32.mrb[0].mxu0
  %v3792 = vpop.f32.mrb[0].mxu0
  %v3793 = vadd.f32 %v3728, %v3792
  %v3794 = vpop.f32.mrb[0].mxu0
  %3795 = vmatprep.mubr.bf16.mxu0 %v3644
  %3796 = vmatmul.mubr.bf16.gmra.mrb[0].mxu0 %v3643
  %v3797 = vpop.f32.mrb[0].mxu0
  %v3798 = vadd.f32 %v3733, %v3797
  %v3799 = vpop.f32.mrb[0].mxu0
  %v3800 = vpop.f32.mrb[0].mxu0
  %v3801 = vadd.f32 %v3736, %v3800
  %v3802 = vpop.f32.mrb[0].mxu0
  %3803 = vdwg.mxu0
  %3804 = vmatprep.subr.bf16.mxu0 0
  %3805 = vmatpush1.bf16.msra.mxu0 %v3510
  %3806 = vmatprep.subr.bf16.mxu0 0
  %3807 = vmatpush1.bf16.msra.mxu0 %v3511
  %3808 = vmatprep.subr.bf16.mxu0 0
  %3809 = vmatpush1.bf16.msra.mxu0 %v3512
  %3810 = vmatprep.subr.bf16.mxu0 0
  %3811 = vmatpush1.bf16.msra.mxu0 %v3513
  %3812 = vmatprep.subr.bf16.mxu0 0
  %3813 = vmatpush1.bf16.msra.mxu0 0
  %3814 = vmatprep.subr.bf16.mxu0 0
  %3815 = vmatpush1.bf16.msra.mxu0 0
  %3816 = vmatprep.subr.bf16.mxu0 0
  %3817 = vmatpush1.bf16.msra.mxu0 0
  %3818 = vmatprep.subr.bf16.mxu0 0
  %3819 = vmatpush1.bf16.msra.mxu0 0
  %3820 = vmatprep.subr.bf16.mxu0 0
  %3821 = vmatpush1.bf16.msra.mxu0 0
  %3822 = vmatprep.subr.bf16.mxu0 0
  %3823 = vmatpush1.bf16.msra.mxu0 0
  %3824 = vmatprep.subr.bf16.mxu0 0
  %3825 = vmatpush1.bf16.msra.mxu0 0
  %3826 = vmatprep.subr.bf16.mxu0 0
  %3827 = vmatpush1.bf16.msra.mxu0 0
  %3828 = vmatprep.subr.bf16.mxu0 0
  %3829 = vmatpush1.bf16.msra.mxu0 0
  %3830 = vmatprep.subr.bf16.mxu0 0
  %3831 = vmatpush1.bf16.msra.mxu0 0
  %3832 = vmatprep.subr.bf16.mxu0 0
  %3833 = vmatpush1.bf16.msra.mxu0 0
  %3834 = vmatprep.subr.bf16.mxu0 0
  %3835 = vmatpush1.bf16.msra.mxu0 0
  %3836 = vmatprep.mubr.bf16.mxu0 0
  %3837 = vmatmul.mubr.bf16.gmra.mrb[0].mxu0 %v3663
  %v3838 = vpop.f32.mrb[0].mxu0
  %v3839 = vadd.f32 %v3774, %v3838
  %v3840 = vpop.f32.mrb[0].mxu0
  %v3841 = vpop.f32.mrb[0].mxu0
  %v3842 = vadd.f32 %v3777, %v3841
  %v3843 = vpop.f32.mrb[0].mxu0
  %3844 = vmatprep.mubr.bf16.mxu0 0
  %3845 = vmatmul.mubr.bf16.gmra.mrb[0].mxu0 %v3666
  %v3846 = vpop.f32.mrb[0].mxu0
  %v3847 = vadd.f32 %v3782, %v3846
  %v3848 = vpop.f32.mrb[0].mxu0
  %v3849 = vpop.f32.mrb[0].mxu0
  %v3850 = vadd.f32 %v3785, %v3849
  %v3851 = vpop.f32.mrb[0].mxu0
  %3852 = vmatprep.mubr.bf16.mxu0 0
  %3853 = vmatmul.mubr.bf16.gmra.mrb[0].mxu0 %v3669
  %v3854 = vpop.f32.mrb[0].mxu0
  %v3855 = vadd.f32 %v3790, %v3854
  %v3856 = vpop.f32.mrb[0].mxu0
  %v3857 = vpop.f32.mrb[0].mxu0
  %v3858 = vadd.f32 %v3793, %v3857
  %v3859 = vpop.f32.mrb[0].mxu0
  %3860 = vmatprep.mubr.bf16.mxu0 0
  %3861 = vmatmul.mubr.bf16.gmra.mrb[0].mxu0 %v3672
  %v3862 = vpop.f32.mrb[0].mxu0
  %v3863 = vadd.f32 %v3798, %v3862
  %v3864 = vpop.f32.mrb[0].mxu0
  %v3865 = vpop.f32.mrb[0].mxu0
  %v3866 = vadd.f32 %v3801, %v3865
  %v3867 = vpop.f32.mrb[0].mxu0
  %3868 = vdwg.mxu0
  %v3869 = vadd.f32 %v3839, %v3128
  %v3870 = vadd.f32 %v3842, %v3129
  %v3871 = vadd.f32 %v3847, %v3130
  %v3872 = vadd.f32 %v3850, %v3131
  %v3873 = vadd.f32 %v3855, %v3132
  %v3874 = vadd.f32 %v3858, %v3133
  %v3875 = vadd.f32 %v3863, %v3134
  %v3876 = vadd.f32 %v3866, %v3135
  %v3877 = vmax.f32 %v3869, 0.0
  %v3878 = vmax.f32 %v3870, 0.0
  %v3879 = vmax.f32 %v3871, 0.0
  %v3880 = vmax.f32 %v3872, 0.0
  %v3881 = vmax.f32 %v3873, 0.0
  %v3882 = vmax.f32 %v3874, 0.0
  %v3883 = vmax.f32 %v3875, 0.0
  %v3884 = vmax.f32 %v3876, 0.0
  %v3885 = vpack.c.bf16 %v3878, %v3877
  %v3886 = vpack.c.bf16 %v3880, %v3879
  %v3887 = vpack.c.bf16 %v3882, %v3881
  %v3888 = vpack.c.bf16 %v3884, %v3883
  %v3889 = vld [vmem:[%s15] sm:$0xf]
  %v3890 = vld [vmem:[%s15 + $0x4] sm:$0xf]
  %v3891 = vld [vmem:[%s15 + $0x8] sm:$0xf]
  %v3892 = vld [vmem:[%s15 + $0xc] sm:$0xf]
  %v3897 = vunpack.c.l.b16 %v3889
  %v3898 = vunpack.c.l.b16 %v3890
  %v3899 = vunpack.c.l.b16 %v3891
  %v3900 = vunpack.c.l.b16 %v3892
  %v3901 = vpack.c.b16 %v3898, %v3897
  %v3902 = vpack.c.b16 %v3900, %v3899
  %v3906 = vsel %vm915, %v3885, 0
  %v3909 = vsel %vm915, %v3886, 0
  %v3912 = vsel %vm915, %v3887, 0
  %v3915 = vsel %vm915, %v3888, 0
  %3917 = vmatprep.subr.bf16.mxu0 0
  %3918 = vmatpush1.bf16.msra.mxu0 %v3901
  %3919 = vmatprep.subr.bf16.mxu0 0
  %3920 = vmatpush1.bf16.msra.mxu0 %v3902
  %3921 = vmatprep.subr.bf16.mxu0 0
  %3922 = vmatpush1.bf16.msra.mxu0 0
  %3923 = vmatprep.subr.bf16.mxu0 0
  %3924 = vmatpush1.bf16.msra.mxu0 0
  %3925 = vmatprep.subr.bf16.mxu0 0
  %3926 = vmatpush1.bf16.msra.mxu0 0
  %3927 = vmatprep.subr.bf16.mxu0 0
  %3928 = vmatpush1.bf16.msra.mxu0 0
  %3929 = vmatprep.subr.bf16.mxu0 0
  %3930 = vmatpush1.bf16.msra.mxu0 0
  %3931 = vmatprep.subr.bf16.mxu0 0
  %3932 = vmatpush1.bf16.msra.mxu0 0
  %3933 = vmatprep.subr.bf16.mxu0 0
  %3934 = vmatpush1.bf16.msra.mxu0 0
  %3935 = vmatprep.subr.bf16.mxu0 0
  %3936 = vmatpush1.bf16.msra.mxu0 0
  %3937 = vmatprep.subr.bf16.mxu0 0
  %3938 = vmatpush1.bf16.msra.mxu0 0
  %3939 = vmatprep.subr.bf16.mxu0 0
  %3940 = vmatpush1.bf16.msra.mxu0 0
  %3941 = vmatprep.subr.bf16.mxu0 0
  %3942 = vmatpush1.bf16.msra.mxu0 0
  %3943 = vmatprep.subr.bf16.mxu0 0
  %3944 = vmatpush1.bf16.msra.mxu0 0
  %3945 = vmatprep.subr.bf16.mxu0 0
  %3946 = vmatpush1.bf16.msra.mxu0 0
  %3947 = vmatprep.subr.bf16.mxu0 0
  %3948 = vmatpush1.bf16.msra.mxu0 0
  %3949 = vmatprep.mubr.bf16.mxu0 0
  %3950 = vmatmul.mubr.bf16.gmra.mrb[0].mxu0 %v3906
  %v3951 = vpop.f32.mrb[0].mxu0
  %v3952 = vadd.f32 0.0, %v3951
  %v3953 = vpop.f32.mrb[0].mxu0
  %v3954 = vpop.f32.mrb[0].mxu0
  %v3955 = vadd.f32 0.0, %v3954
  %v3956 = vpop.f32.mrb[0].mxu0
  %3957 = vmatprep.mubr.bf16.mxu0 0
  %3958 = vmatmul.mubr.bf16.gmra.mrb[0].mxu0 %v3909
  %v3959 = vpop.f32.mrb[0].mxu0
  %v3960 = vadd.f32 0.0, %v3959
  %v3961 = vpop.f32.mrb[0].mxu0
  %v3962 = vpop.f32.mrb[0].mxu0
  %v3963 = vadd.f32 0.0, %v3962
  %v3964 = vpop.f32.mrb[0].mxu0
  %3965 = vmatprep.mubr.bf16.mxu0 0
  %3966 = vmatmul.mubr.bf16.gmra.mrb[0].mxu0 %v3912
  %v3967 = vpop.f32.mrb[0].mxu0
  %v3968 = vadd.f32 0.0, %v3967
  %v3969 = vpop.f32.mrb[0].mxu0
  %v3970 = vpop.f32.mrb[0].mxu0
  %v3971 = vadd.f32 0.0, %v3970
  %v3972 = vpop.f32.mrb[0].mxu0
  %3973 = vmatprep.mubr.bf16.mxu0 0
  %3974 = vmatmul.mubr.bf16.gmra.mrb[0].mxu0 %v3915
  %v3975 = vpop.f32.mrb[0].mxu0
  %v3976 = vadd.f32 0.0, %v3975
  %v3977 = vpop.f32.mrb[0].mxu0
  %v3978 = vpop.f32.mrb[0].mxu0
  %v3979 = vadd.f32 0.0, %v3978
  %v3980 = vpop.f32.mrb[0].mxu0
  %3981 = vdwg.mxu0
  %v3982 = vpack.c.bf16 %v3955, %v3952
  %v3983 = vpack.c.bf16 %v3963, %v3960
  %v3984 = vpack.c.bf16 %v3971, %v3968
  %v3985 = vpack.c.bf16 %v3979, %v3976
  %vm3986 = vcmask 64512
  %3987 = vst.msk [vmem:[#allocation2] sm:$0xff] %vm3986, %v3982
  %3988 = vst.msk [vmem:[#allocation2 + $0x8] sm:$0xff] %vm3986, %v3983
  %3989 = vst.msk [vmem:[#allocation2 + $0x10] sm:$0xff] %vm3986, %v3984
  %3990 = vst.msk [vmem:[#allocation2 + $0x18] sm:$0xff] %vm3986, %v3985
  %3995 = vrot.lane.b32.xlu0 %v3982, 120
  %v3996 = vpop.permute.xlu0 %3995
  %3997 = vrot.lane.b32.xlu0 %v3983, 120
  %v3998 = vpop.permute.xlu0 %3997
  %3999 = vrot.lane.b32.xlu0 %v3984, 120
  %v4000 = vpop.permute.xlu0 %3999
  %4001 = vrot.lane.b32.xlu0 %v3985, 120
  %v4002 = vpop.permute.xlu0 %4001
  %4007 = vst.msk [vmem:[#allocation2 + $0x20] sm:$0xff] %vm3986, %v3996
  %4008 = vst.msk [vmem:[#allocation2 + $0x28] sm:$0xff] %vm3986, %v3998
  %4009 = vst.msk [vmem:[#allocation2 + $0x30] sm:$0xff] %vm3986, %v4000
  %4010 = vst.msk [vmem:[#allocation2 + $0x38] sm:$0xff] %vm3986, %v4002
  %4011 = vrot.lane.b32.xlu0 %v3982, 112
  %v4012 = vpop.permute.xlu0 %4011
  %4013 = vrot.lane.b32.xlu0 %v3983, 112
  %v4014 = vpop.permute.xlu0 %4013
  %4015 = vrot.lane.b32.xlu0 %v3984, 112
  %v4016 = vpop.permute.xlu0 %4015
  %4017 = vrot.lane.b32.xlu0 %v3985, 112
  %v4018 = vpop.permute.xlu0 %4017
  %4023 = vst.msk [vmem:[#allocation2 + $0x40] sm:$0xff] %vm3986, %v4012
  %4024 = vst.msk [vmem:[#allocation2 + $0x48] sm:$0xff] %vm3986, %v4014
  %4025 = vst.msk [vmem:[#allocation2 + $0x50] sm:$0xff] %vm3986, %v4016
  %4026 = vst.msk [vmem:[#allocation2 + $0x58] sm:$0xff] %vm3986, %v4018
  %4027 = vrot.lane.b32.xlu0 %v3982, 104
  %v4028 = vpop.permute.xlu0 %4027
  %4029 = vrot.lane.b32.xlu0 %v3983, 104
  %v4030 = vpop.permute.xlu0 %4029
  %4031 = vrot.lane.b32.xlu0 %v3984, 104
  %v4032 = vpop.permute.xlu0 %4031
  %4033 = vrot.lane.b32.xlu0 %v3985, 104
  %v4034 = vpop.permute.xlu0 %4033
  %4039 = vst.msk [vmem:[#allocation2 + $0x60] sm:$0xff] %vm3986, %v4028
  %4040 = vst.msk [vmem:[#allocation2 + $0x68] sm:$0xff] %vm3986, %v4030
  %4041 = vst.msk [vmem:[#allocation2 + $0x70] sm:$0xff] %vm3986, %v4032
  %4042 = vst.msk [vmem:[#allocation2 + $0x78] sm:$0xff] %vm3986, %v4034
  %4043 = vrot.lane.b32.xlu0 %v3982, 96
  %v4044 = vpop.permute.xlu0 %4043
  %4045 = vrot.lane.b32.xlu0 %v3983, 96
  %v4046 = vpop.permute.xlu0 %4045
  %4047 = vrot.lane.b32.xlu0 %v3984, 96
  %v4048 = vpop.permute.xlu0 %4047
  %4049 = vrot.lane.b32.xlu0 %v3985, 96
  %v4050 = vpop.permute.xlu0 %4049
  %4055 = vst.msk [vmem:[#allocation2 + $0x80] sm:$0xff] %vm3986, %v4044
  %4056 = vst.msk [vmem:[#allocation2 + $0x88] sm:$0xff] %vm3986, %v4046
  %4057 = vst.msk [vmem:[#allocation2 + $0x90] sm:$0xff] %vm3986, %v4048
  %4058 = vst.msk [vmem:[#allocation2 + $0x98] sm:$0xff] %vm3986, %v4050
  %4059 = vrot.lane.b32.xlu0 %v3982, 88
  %v4060 = vpop.permute.xlu0 %4059
  %4061 = vrot.lane.b32.xlu0 %v3983, 88
  %v4062 = vpop.permute.xlu0 %4061
  %4063 = vrot.lane.b32.xlu0 %v3984, 88
  %v4064 = vpop.permute.xlu0 %4063
  %4065 = vrot.lane.b32.xlu0 %v3985, 88
  %v4066 = vpop.permute.xlu0 %4065
  %4071 = vst.msk [vmem:[#allocation2 + $0xa0] sm:$0xff] %vm3986, %v4060
  %4072 = vst.msk [vmem:[#allocation2 + $0xa8] sm:$0xff] %vm3986, %v4062
  %4073 = vst.msk [vmem:[#allocation2 + $0xb0] sm:$0xff] %vm3986, %v4064
  %4074 = vst.msk [vmem:[#allocation2 + $0xb8] sm:$0xff] %vm3986, %v4066
  %4075 = vrot.lane.b32.xlu0 %v3982, 80
  %v4076 = vpop.permute.xlu0 %4075
  %4077 = vrot.lane.b32.xlu0 %v3983, 80
  %v4078 = vpop.permute.xlu0 %4077
  %4079 = vrot.lane.b32.xlu0 %v3984, 80
  %v4080 = vpop.permute.xlu0 %4079
  %4081 = vrot.lane.b32.xlu0 %v3985, 80
  %v4082 = vpop.permute.xlu0 %4081
  %4087 = vst.msk [vmem:[#allocation2 + $0xc0] sm:$0xff] %vm3986, %v4076
  %4088 = vst.msk [vmem:[#allocation2 + $0xc8] sm:$0xff] %vm3986, %v4078
  %4089 = vst.msk [vmem:[#allocation2 + $0xd0] sm:$0xff] %vm3986, %v4080
  %4090 = vst.msk [vmem:[#allocation2 + $0xd8] sm:$0xff] %vm3986, %v4082
  %4091 = vrot.lane.b32.xlu0 %v3982, 72
  %v4092 = vpop.permute.xlu0 %4091
  %4093 = vrot.lane.b32.xlu0 %v3983, 72
  %v4094 = vpop.permute.xlu0 %4093
  %4095 = vrot.lane.b32.xlu0 %v3984, 72
  %v4096 = vpop.permute.xlu0 %4095
  %4097 = vrot.lane.b32.xlu0 %v3985, 72
  %v4098 = vpop.permute.xlu0 %4097
  %4103 = vst.msk [vmem:[#allocation2 + $0xe0] sm:$0xff] %vm3986, %v4092
  %4104 = vst.msk [vmem:[#allocation2 + $0xe8] sm:$0xff] %vm3986, %v4094
  %4105 = vst.msk [vmem:[#allocation2 + $0xf0] sm:$0xff] %vm3986, %v4096
  %4106 = vst.msk [vmem:[#allocation2 + $0xf8] sm:$0xff] %vm3986, %v4098
  %4107 = vrot.lane.b32.xlu0 %v3982, 64
  %v4108 = vpop.permute.xlu0 %4107
  %4109 = vrot.lane.b32.xlu0 %v3983, 64
  %v4110 = vpop.permute.xlu0 %4109
  %4111 = vrot.lane.b32.xlu0 %v3984, 64
  %v4112 = vpop.permute.xlu0 %4111
  %4113 = vrot.lane.b32.xlu0 %v3985, 64
  %v4114 = vpop.permute.xlu0 %4113
  %4119 = vst.msk [vmem:[#allocation2 + $0x100] sm:$0xff] %vm3986, %v4108
  %4120 = vst.msk [vmem:[#allocation2 + $0x108] sm:$0xff] %vm3986, %v4110
  %4121 = vst.msk [vmem:[#allocation2 + $0x110] sm:$0xff] %vm3986, %v4112
  %4122 = vst.msk [vmem:[#allocation2 + $0x118] sm:$0xff] %vm3986, %v4114
  %v4123 = vld [vmem:[%s6] sm:$0xff]
  %v4124 = vld [vmem:[%s6 + $0x8] sm:$0xff]
  %v4125 = vld [vmem:[%s6 + $0x10] sm:$0xf]
  %v4126 = vld [vmem:[%s6 + $0x14] sm:$0xff]
  %v4127 = vld [vmem:[%s6 + $0x1c] sm:$0xff]
  %v4128 = vld [vmem:[%s6 + $0x24] sm:$0xf]
  %v4129 = vld [vmem:[%s6 + $0x28] sm:$0xff]
  %v4130 = vld [vmem:[%s6 + $0x30] sm:$0xff]
  %v4131 = vld [vmem:[%s6 + $0x38] sm:$0xf]
  %v4132 = vld [vmem:[%s6 + $0x3c] sm:$0xff]
  %v4133 = vld [vmem:[%s6 + $0x44] sm:$0xff]
  %v4134 = vld [vmem:[%s6 + $0x4c] sm:$0xf]
  %v4135 = vld [vmem:[%s6 + $0x50] sm:$0xff]
  %v4136 = vld [vmem:[%s6 + $0x58] sm:$0xff]
  %v4137 = vld [vmem:[%s6 + $0x60] sm:$0xf]
  %v4138 = vld [vmem:[%s6 + $0x64] sm:$0xff]
  %v4139 = vld [vmem:[%s6 + $0x6c] sm:$0xff]
  %v4140 = vld [vmem:[%s6 + $0x74] sm:$0xf]
  %v4141 = vld [vmem:[%s6 + $0x78] sm:$0xff]
  %v4142 = vld [vmem:[%s6 + $0x80] sm:$0xff]
  %v4143 = vld [vmem:[%s6 + $0x88] sm:$0xf]
  %v4144 = vld [vmem:[%s6 + $0x8c] sm:$0xff]
  %v4145 = vld [vmem:[%s6 + $0x94] sm:$0xff]
  %v4146 = vld [vmem:[%s6 + $0x9c] sm:$0xf]
  %v4147 = vld [vmem:[%s6 + $0xa0] sm:$0xff]
  %v4148 = vld [vmem:[%s6 + $0xa8] sm:$0xff]
  %v4149 = vld [vmem:[%s6 + $0xb0] sm:$0xf]
  %v4150 = vld [vmem:[%s6 + $0xb4] sm:$0xff]
  %v4151 = vld [vmem:[%s6 + $0xbc] sm:$0xff]
  %v4152 = vld [vmem:[%s6 + $0xc4] sm:$0xf]
  %v4153 = vld [vmem:[%s6 + $0xc8] sm:$0xff]
  %v4154 = vld [vmem:[%s6 + $0xd0] sm:$0xff]
  %v4155 = vld [vmem:[%s6 + $0xd8] sm:$0xf]
  %v4156 = vld [vmem:[%s6 + $0xdc] sm:$0xff]
  %v4157 = vld [vmem:[%s6 + $0xe4] sm:$0xff]
  %v4158 = vld [vmem:[%s6 + $0xec] sm:$0xf]
  %v4159 = vld [vmem:[%s6 + $0xf0] sm:$0xff]
  %v4160 = vld [vmem:[%s6 + $0xf8] sm:$0xff]
  %v4161 = vld [vmem:[%s6 + $0x100] sm:$0xf]
  %v4162 = vld [vmem:[%s6 + $0x104] sm:$0xff]
  %v4163 = vld [vmem:[%s6 + $0x10c] sm:$0xff]
  %v4164 = vld [vmem:[%s6 + $0x114] sm:$0xf]
  %v4165 = vld [vmem:[%s6 + $0x118] sm:$0xff]
  %v4166 = vld [vmem:[%s6 + $0x120] sm:$0xff]
  %v4167 = vld [vmem:[%s6 + $0x128] sm:$0xf]
  %v4168 = vld [vmem:[%s6 + $0x12c] sm:$0xff]
  %v4169 = vld [vmem:[%s6 + $0x134] sm:$0xff]
  %v4170 = vld [vmem:[%s6 + $0x13c] sm:$0xf]
  %v4171 = vld [vmem:[#allocation2] sm:$0xff]
  %v4172 = vld [vmem:[#allocation2 + $0x8] sm:$0xff]
  %v4173 = vld [vmem:[#allocation2 + $0x10] sm:$0xff]
  %v4174 = vld [vmem:[#allocation2 + $0x18] sm:$0xff]
  %v4175 = vld [vmem:[#allocation2 + $0x20] sm:$0xff]
  %v4176 = vld [vmem:[#allocation2 + $0x28] sm:$0xff]
  %v4177 = vld [vmem:[#allocation2 + $0x30] sm:$0xff]
  %v4178 = vld [vmem:[#allocation2 + $0x38] sm:$0xff]
  %v4179 = vld [vmem:[#allocation2 + $0x40] sm:$0xff]
  %v4180 = vld [vmem:[#allocation2 + $0x48] sm:$0xff]
  %v4181 = vld [vmem:[#allocation2 + $0x50] sm:$0xff]
  %v4182 = vld [vmem:[#allocation2 + $0x58] sm:$0xff]
  %v4183 = vld [vmem:[#allocation2 + $0x60] sm:$0xff]
  %v4184 = vld [vmem:[#allocation2 + $0x68] sm:$0xff]
  %v4185 = vld [vmem:[#allocation2 + $0x70] sm:$0xff]
  %v4186 = vld [vmem:[#allocation2 + $0x78] sm:$0xff]
  %v4187 = vld [vmem:[#allocation2 + $0x80] sm:$0xff]
  %v4188 = vld [vmem:[#allocation2 + $0x88] sm:$0xff]
  %v4189 = vld [vmem:[#allocation2 + $0x90] sm:$0xff]
  %v4190 = vld [vmem:[#allocation2 + $0x98] sm:$0xff]
  %v4191 = vld [vmem:[#allocation2 + $0xa0] sm:$0xff]
  %v4192 = vld [vmem:[#allocation2 + $0xa8] sm:$0xff]
  %v4193 = vld [vmem:[#allocation2 + $0xb0] sm:$0xff]
  %v4194 = vld [vmem:[#allocation2 + $0xb8] sm:$0xff]
  %v4195 = vld [vmem:[#allocation2 + $0xc0] sm:$0xff]
  %v4196 = vld [vmem:[#allocation2 + $0xc8] sm:$0xff]
  %v4197 = vld [vmem:[#allocation2 + $0xd0] sm:$0xff]
  %v4198 = vld [vmem:[#allocation2 + $0xd8] sm:$0xff]
  %v4199 = vld [vmem:[#allocation2 + $0xe0] sm:$0xff]
  %v4200 = vld [vmem:[#allocation2 + $0xe8] sm:$0xff]
  %v4201 = vld [vmem:[#allocation2 + $0xf0] sm:$0xff]
  %v4202 = vld [vmem:[#allocation2 + $0xf8] sm:$0xff]
  %v4203 = vld [vmem:[#allocation2 + $0x100] sm:$0xff]
  %v4204 = vld [vmem:[#allocation2 + $0x108] sm:$0xff]
  %v4205 = vld [vmem:[#allocation2 + $0x110] sm:$0xff]
  %v4206 = vld [vmem:[#allocation2 + $0x118] sm:$0xff]
  %v4207 = vld [vmem:[%s12] sm:$0xff]
  %v4208 = vld [vmem:[%s12 + $0x8] sm:$0xff]
  %v4209 = vld [vmem:[%s12 + $0x10] sm:$0xff]
  %v4210 = vld [vmem:[%s12 + $0x18] sm:$0xff]
  %v4211 = vld [vmem:[%s12 + $0x20] sm:$0xff]
  %v4212 = vld [vmem:[%s12 + $0x28] sm:$0xff]
  %v4213 = vld [vmem:[%s12 + $0x30] sm:$0xff]
  %v4214 = vld [vmem:[%s12 + $0x38] sm:$0xff]
  %v4215 = vld [vmem:[%s12 + $0x40] sm:$0xff]
  %v4216 = vld [vmem:[%s12 + $0x48] sm:$0xff]
  %v4217 = vld [vmem:[%s12 + $0x50] sm:$0xff]
  %v4218 = vld [vmem:[%s12 + $0x58] sm:$0xff]
  %v4219 = vld [vmem:[%s12 + $0x60] sm:$0xff]
  %v4220 = vld [vmem:[%s12 + $0x68] sm:$0xff]
  %v4221 = vld [vmem:[%s12 + $0x70] sm:$0xff]
  %v4222 = vld [vmem:[%s12 + $0x78] sm:$0xff]
  %4224 = vset.pattern.permute.xlu0 5
  %4225 = vperm.xlu0 %4224, %v4207
  %v4226 = vpop.permute.xlu0 %4225
  %4229 = vset.pattern.permute.xlu0 5
  %4230 = vperm.xlu0 %4229, %v4208
  %v4231 = vpop.permute.xlu0 %4230
  %4234 = vset.pattern.permute.xlu0 5
  %4235 = vperm.xlu0 %4234, %v4209
  %v4236 = vpop.permute.xlu0 %4235
  %4239 = vset.pattern.permute.xlu0 5
  %4240 = vperm.xlu0 %4239, %v4210
  %v4241 = vpop.permute.xlu0 %4240
  %4244 = vset.pattern.permute.xlu0 5
  %4245 = vperm.xlu0 %4244, %v4211
  %v4246 = vpop.permute.xlu0 %4245
  %4249 = vset.pattern.permute.xlu0 5
  %4250 = vperm.xlu0 %4249, %v4212
  %v4251 = vpop.permute.xlu0 %4250
  %4254 = vset.pattern.permute.xlu0 5
  %4255 = vperm.xlu0 %4254, %v4213
  %v4256 = vpop.permute.xlu0 %4255
  %4259 = vset.pattern.permute.xlu0 5
  %4260 = vperm.xlu0 %4259, %v4214
  %v4261 = vpop.permute.xlu0 %4260
  %4264 = vset.pattern.permute.xlu0 5
  %4265 = vperm.xlu0 %4264, %v4215
  %v4266 = vpop.permute.xlu0 %4265
  %4269 = vset.pattern.permute.xlu0 5
  %4270 = vperm.xlu0 %4269, %v4216
  %v4271 = vpop.permute.xlu0 %4270
  %4274 = vset.pattern.permute.xlu0 5
  %4275 = vperm.xlu0 %4274, %v4217
  %v4276 = vpop.permute.xlu0 %4275
  %4279 = vset.pattern.permute.xlu0 5
  %4280 = vperm.xlu0 %4279, %v4218
  %v4281 = vpop.permute.xlu0 %4280
  %4284 = vset.pattern.permute.xlu0 5
  %4285 = vperm.xlu0 %4284, %v4219
  %v4286 = vpop.permute.xlu0 %4285
  %4289 = vset.pattern.permute.xlu0 5
  %4290 = vperm.xlu0 %4289, %v4220
  %v4291 = vpop.permute.xlu0 %4290
  %4294 = vset.pattern.permute.xlu0 5
  %4295 = vperm.xlu0 %4294, %v4221
  %v4296 = vpop.permute.xlu0 %4295
  %4299 = vset.pattern.permute.xlu0 5
  %4300 = vperm.xlu0 %4299, %v4222
  %v4301 = vpop.permute.xlu0 %4300
  %v4351 = vunpack.c.l.b16 %v4123
  %v4352 = vunpack.c.h.b16 %v4123
  %v4353 = vunpack.c.l.b16 %v4124
  %v4354 = vunpack.c.h.b16 %v4124
  %v4355 = vunpack.c.l.b16 %v4125
  %v4356 = vunpack.c.l.b16 %v4126
  %v4357 = vunpack.c.h.b16 %v4126
  %v4358 = vunpack.c.l.b16 %v4127
  %v4359 = vunpack.c.h.b16 %v4127
  %v4360 = vunpack.c.l.b16 %v4128
  %v4361 = vunpack.c.l.b16 %v4129
  %v4362 = vunpack.c.h.b16 %v4129
  %v4363 = vunpack.c.l.b16 %v4130
  %v4364 = vunpack.c.h.b16 %v4130
  %v4365 = vunpack.c.l.b16 %v4131
  %v4366 = vunpack.c.l.b16 %v4132
  %v4367 = vunpack.c.h.b16 %v4132
  %v4368 = vunpack.c.l.b16 %v4133
  %v4369 = vunpack.c.h.b16 %v4133
  %v4370 = vunpack.c.l.b16 %v4134
  %v4371 = vunpack.c.l.b16 %v4135
  %v4372 = vunpack.c.h.b16 %v4135
  %v4373 = vunpack.c.l.b16 %v4136
  %v4374 = vunpack.c.h.b16 %v4136
  %v4375 = vunpack.c.l.b16 %v4137
  %v4376 = vunpack.c.l.b16 %v4138
  %v4377 = vunpack.c.h.b16 %v4138
  %v4378 = vunpack.c.l.b16 %v4139
  %v4379 = vunpack.c.h.b16 %v4139
  %v4380 = vunpack.c.l.b16 %v4140
  %v4381 = vunpack.c.l.b16 %v4141
  %v4382 = vunpack.c.h.b16 %v4141
  %v4383 = vunpack.c.l.b16 %v4142
  %v4384 = vunpack.c.h.b16 %v4142
  %v4385 = vunpack.c.l.b16 %v4143
  %v4386 = vunpack.c.l.b16 %v4144
  %v4387 = vunpack.c.h.b16 %v4144
  %v4388 = vunpack.c.l.b16 %v4145
  %v4389 = vunpack.c.h.b16 %v4145
  %v4390 = vunpack.c.l.b16 %v4146
  %v4391 = vunpack.c.l.b16 %v4147
  %v4392 = vunpack.c.h.b16 %v4147
  %v4393 = vunpack.c.l.b16 %v4148
  %v4394 = vunpack.c.h.b16 %v4148
  %v4395 = vunpack.c.l.b16 %v4149
  %v4396 = vunpack.c.l.b16 %v4150
  %v4397 = vunpack.c.h.b16 %v4150
  %v4398 = vunpack.c.l.b16 %v4151
  %v4399 = vunpack.c.h.b16 %v4151
  %v4400 = vunpack.c.l.b16 %v4152
  %v4401 = vunpack.c.l.b16 %v4153
  %v4402 = vunpack.c.h.b16 %v4153
  %v4403 = vunpack.c.l.b16 %v4154
  %v4404 = vunpack.c.h.b16 %v4154
  %v4405 = vunpack.c.l.b16 %v4155
  %v4406 = vunpack.c.l.b16 %v4156
  %v4407 = vunpack.c.h.b16 %v4156
  %v4408 = vunpack.c.l.b16 %v4157
  %v4409 = vunpack.c.h.b16 %v4157
  %v4410 = vunpack.c.l.b16 %v4158
  %v4411 = vunpack.c.l.b16 %v4159
  %v4412 = vunpack.c.h.b16 %v4159
  %v4413 = vunpack.c.l.b16 %v4160
  %v4414 = vunpack.c.h.b16 %v4160
  %v4415 = vunpack.c.l.b16 %v4161
  %v4416 = vunpack.c.l.b16 %v4162
  %v4417 = vunpack.c.h.b16 %v4162
  %v4418 = vunpack.c.l.b16 %v4163
  %v4419 = vunpack.c.h.b16 %v4163
  %v4420 = vunpack.c.l.b16 %v4164
  %v4421 = vunpack.c.l.b16 %v4165
  %v4422 = vunpack.c.h.b16 %v4165
  %v4423 = vunpack.c.l.b16 %v4166
  %v4424 = vunpack.c.h.b16 %v4166
  %v4425 = vunpack.c.l.b16 %v4167
  %v4426 = vunpack.c.l.b16 %v4168
  %v4427 = vunpack.c.h.b16 %v4168
  %v4428 = vunpack.c.l.b16 %v4169
  %v4429 = vunpack.c.h.b16 %v4169
  %v4430 = vunpack.c.l.b16 %v4170
  %v4431 = vpack.c.b16 %v4356, %v4351
  %v4432 = vpack.c.b16 %v4357, %v4352
  %v4433 = vpack.c.b16 %v4358, %v4353
  %v4434 = vpack.c.b16 %v4359, %v4354
  %v4435 = vpack.c.b16 %v4360, %v4355
  %v4436 = vpack.c.b16 %v4366, %v4361
  %v4437 = vpack.c.b16 %v4367, %v4362
  %v4438 = vpack.c.b16 %v4368, %v4363
  %v4439 = vpack.c.b16 %v4369, %v4364
  %v4440 = vpack.c.b16 %v4370, %v4365
  %v4441 = vpack.c.b16 %v4376, %v4371
  %v4442 = vpack.c.b16 %v4377, %v4372
  %v4443 = vpack.c.b16 %v4378, %v4373
  %v4444 = vpack.c.b16 %v4379, %v4374
  %v4445 = vpack.c.b16 %v4380, %v4375
  %v4446 = vpack.c.b16 %v4386, %v4381
  %v4447 = vpack.c.b16 %v4387, %v4382
  %v4448 = vpack.c.b16 %v4388, %v4383
  %v4449 = vpack.c.b16 %v4389, %v4384
  %v4450 = vpack.c.b16 %v4390, %v4385
  %v4451 = vpack.c.b16 %v4396, %v4391
  %v4452 = vpack.c.b16 %v4397, %v4392
  %v4453 = vpack.c.b16 %v4398, %v4393
  %v4454 = vpack.c.b16 %v4399, %v4394
  %v4455 = vpack.c.b16 %v4400, %v4395
  %v4456 = vpack.c.b16 %v4406, %v4401
  %v4457 = vpack.c.b16 %v4407, %v4402
  %v4458 = vpack.c.b16 %v4408, %v4403
  %v4459 = vpack.c.b16 %v4409, %v4404
  %v4460 = vpack.c.b16 %v4410, %v4405
  %v4461 = vpack.c.b16 %v4416, %v4411
  %v4462 = vpack.c.b16 %v4417, %v4412
  %v4463 = vpack.c.b16 %v4418, %v4413
  %v4464 = vpack.c.b16 %v4419, %v4414
  %v4465 = vpack.c.b16 %v4420, %v4415
  %v4466 = vpack.c.b16 %v4426, %v4421
  %v4467 = vpack.c.b16 %v4427, %v4422
  %v4468 = vpack.c.b16 %v4428, %v4423
  %v4469 = vpack.c.b16 %v4429, %v4424
  %v4470 = vpack.c.b16 %v4430, %v4425
  %v4504 = vsel %vm1402, %v4435, 0
  %v4507 = vsel %vm1402, %v4440, 0
  %v4510 = vsel %vm1402, %v4445, 0
  %v4513 = vsel %vm1402, %v4450, 0
  %v4516 = vsel %vm1402, %v4455, 0
  %v4519 = vsel %vm1402, %v4460, 0
  %v4522 = vsel %vm1402, %v4465, 0
  %v4525 = vsel %vm1402, %v4470, 0
  %4527 = vmatprep.subr.bf16.mxu0 0
  %4528 = vmatpush1.bf16.msra.mxu0 %v4171
  %4529 = vmatprep.subr.bf16.mxu0 0
  %4530 = vmatpush1.bf16.msra.mxu0 %v4172
  %4531 = vmatprep.subr.bf16.mxu0 0
  %4532 = vmatpush1.bf16.msra.mxu0 %v4173
  %4533 = vmatprep.subr.bf16.mxu0 0
  %4534 = vmatpush1.bf16.msra.mxu0 %v4174
  %4535 = vmatprep.subr.bf16.mxu0 0
  %4536 = vmatpush1.bf16.msra.mxu0 %v4175
  %4537 = vmatprep.subr.bf16.mxu0 0
  %4538 = vmatpush1.bf16.msra.mxu0 %v4176
  %4539 = vmatprep.subr.bf16.mxu0 0
  %4540 = vmatpush1.bf16.msra.mxu0 %v4177
  %4541 = vmatprep.subr.bf16.mxu0 0
  %4542 = vmatpush1.bf16.msra.mxu0 %v4178
  %4543 = vmatprep.subr.bf16.mxu0 0
  %4544 = vmatpush1.bf16.msra.mxu0 %v4179
  %4545 = vmatprep.subr.bf16.mxu0 0
  %4546 = vmatpush1.bf16.msra.mxu0 %v4180
  %4547 = vmatprep.subr.bf16.mxu0 0
  %4548 = vmatpush1.bf16.msra.mxu0 %v4181
  %4549 = vmatprep.subr.bf16.mxu0 0
  %4550 = vmatpush1.bf16.msra.mxu0 %v4182
  %4551 = vmatprep.subr.bf16.mxu0 0
  %4552 = vmatpush1.bf16.msra.mxu0 %v4183
  %4553 = vmatprep.subr.bf16.mxu0 0
  %4554 = vmatpush1.bf16.msra.mxu0 %v4184
  %4555 = vmatprep.subr.bf16.mxu0 0
  %4556 = vmatpush1.bf16.msra.mxu0 %v4185
  %4557 = vmatprep.subr.bf16.mxu0 0
  %4558 = vmatpush1.bf16.msra.mxu0 %v4186
  %4559 = vmatprep.mubr.bf16.mxu0 %v4432
  %4560 = vmatmul.mubr.bf16.gmra.mrb[0].mxu0 %v4431
  %v4561 = vpop.f32.mrb[0].mxu0
  %v4562 = vadd.f32 %v4226, %v4561
  %v4563 = vpop.f32.mrb[0].mxu0
  %v4564 = vpop.f32.mrb[0].mxu0
  %v4565 = vadd.f32 %v4231, %v4564
  %v4566 = vpop.f32.mrb[0].mxu0
  %4567 = vmatprep.mubr.bf16.mxu0 %v4437
  %4568 = vmatmul.mubr.bf16.gmra.mrb[0].mxu0 %v4436
  %v4569 = vpop.f32.mrb[0].mxu0
  %v4570 = vadd.f32 %v4236, %v4569
  %v4571 = vpop.f32.mrb[0].mxu0
  %v4572 = vpop.f32.mrb[0].mxu0
  %v4573 = vadd.f32 %v4241, %v4572
  %v4574 = vpop.f32.mrb[0].mxu0
  %4575 = vmatprep.mubr.bf16.mxu0 %v4442
  %4576 = vmatmul.mubr.bf16.gmra.mrb[0].mxu0 %v4441
  %v4577 = vpop.f32.mrb[0].mxu0
  %v4578 = vadd.f32 %v4246, %v4577
  %v4579 = vpop.f32.mrb[0].mxu0
  %v4580 = vpop.f32.mrb[0].mxu0
  %v4581 = vadd.f32 %v4251, %v4580
  %v4582 = vpop.f32.mrb[0].mxu0
  %4583 = vmatprep.mubr.bf16.mxu0 %v4447
  %4584 = vmatmul.mubr.bf16.gmra.mrb[0].mxu0 %v4446
  %v4585 = vpop.f32.mrb[0].mxu0
  %v4586 = vadd.f32 %v4256, %v4585
  %v4587 = vpop.f32.mrb[0].mxu0
  %v4588 = vpop.f32.mrb[0].mxu0
  %v4589 = vadd.f32 %v4261, %v4588
  %v4590 = vpop.f32.mrb[0].mxu0
  %4591 = vmatprep.mubr.bf16.mxu0 %v4452
  %4592 = vmatmul.mubr.bf16.gmra.mrb[0].mxu0 %v4451
  %v4593 = vpop.f32.mrb[0].mxu0
  %v4594 = vadd.f32 %v4266, %v4593
  %v4595 = vpop.f32.mrb[0].mxu0
  %v4596 = vpop.f32.mrb[0].mxu0
  %v4597 = vadd.f32 %v4271, %v4596
  %v4598 = vpop.f32.mrb[0].mxu0
  %4599 = vmatprep.mubr.bf16.mxu0 %v4457
  %4600 = vmatmul.mubr.bf16.gmra.mrb[0].mxu0 %v4456
  %v4601 = vpop.f32.mrb[0].mxu0
  %v4602 = vadd.f32 %v4276, %v4601
  %v4603 = vpop.f32.mrb[0].mxu0
  %v4604 = vpop.f32.mrb[0].mxu0
  %v4605 = vadd.f32 %v4281, %v4604
  %v4606 = vpop.f32.mrb[0].mxu0
  %4607 = vmatprep.mubr.bf16.mxu0 %v4462
  %4608 = vmatmul.mubr.bf16.gmra.mrb[0].mxu0 %v4461
  %v4609 = vpop.f32.mrb[0].mxu0
  %v4610 = vadd.f32 %v4286, %v4609
  %v4611 = vpop.f32.mrb[0].mxu0
  %v4612 = vpop.f32.mrb[0].mxu0
  %v4613 = vadd.f32 %v4291, %v4612
  %v4614 = vpop.f32.mrb[0].mxu0
  %4615 = vmatprep.mubr.bf16.mxu0 %v4467
  %4616 = vmatmul.mubr.bf16.gmra.mrb[0].mxu0 %v4466
  %v4617 = vpop.f32.mrb[0].mxu0
  %v4618 = vadd.f32 %v4296, %v4617
  %v4619 = vpop.f32.mrb[0].mxu0
  %v4620 = vpop.f32.mrb[0].mxu0
  %v4621 = vadd.f32 %v4301, %v4620
  %v4622 = vpop.f32.mrb[0].mxu0
  %4623 = vdwg.mxu0
  %4624 = vmatprep.subr.bf16.mxu0 0
  %4625 = vmatpush1.bf16.msra.mxu0 %v4187
  %4626 = vmatprep.subr.bf16.mxu0 0
  %4627 = vmatpush1.bf16.msra.mxu0 %v4188
  %4628 = vmatprep.subr.bf16.mxu0 0
  %4629 = vmatpush1.bf16.msra.mxu0 %v4189
  %4630 = vmatprep.subr.bf16.mxu0 0
  %4631 = vmatpush1.bf16.msra.mxu0 %v4190
  %4632 = vmatprep.subr.bf16.mxu0 0
  %4633 = vmatpush1.bf16.msra.mxu0 %v4191
  %4634 = vmatprep.subr.bf16.mxu0 0
  %4635 = vmatpush1.bf16.msra.mxu0 %v4192
  %4636 = vmatprep.subr.bf16.mxu0 0
  %4637 = vmatpush1.bf16.msra.mxu0 %v4193
  %4638 = vmatprep.subr.bf16.mxu0 0
  %4639 = vmatpush1.bf16.msra.mxu0 %v4194
  %4640 = vmatprep.subr.bf16.mxu0 0
  %4641 = vmatpush1.bf16.msra.mxu0 %v4195
  %4642 = vmatprep.subr.bf16.mxu0 0
  %4643 = vmatpush1.bf16.msra.mxu0 %v4196
  %4644 = vmatprep.subr.bf16.mxu0 0
  %4645 = vmatpush1.bf16.msra.mxu0 %v4197
  %4646 = vmatprep.subr.bf16.mxu0 0
  %4647 = vmatpush1.bf16.msra.mxu0 %v4198
  %4648 = vmatprep.subr.bf16.mxu0 0
  %4649 = vmatpush1.bf16.msra.mxu0 %v4199
  %4650 = vmatprep.subr.bf16.mxu0 0
  %4651 = vmatpush1.bf16.msra.mxu0 %v4200
  %4652 = vmatprep.subr.bf16.mxu0 0
  %4653 = vmatpush1.bf16.msra.mxu0 %v4201
  %4654 = vmatprep.subr.bf16.mxu0 0
  %4655 = vmatpush1.bf16.msra.mxu0 %v4202
  %4656 = vmatprep.mubr.bf16.mxu0 %v4434
  %4657 = vmatmul.mubr.bf16.gmra.mrb[0].mxu0 %v4433
  %v4658 = vpop.f32.mrb[0].mxu0
  %v4659 = vadd.f32 %v4562, %v4658
  %v4660 = vpop.f32.mrb[0].mxu0
  %v4661 = vpop.f32.mrb[0].mxu0
  %v4662 = vadd.f32 %v4565, %v4661
  %v4663 = vpop.f32.mrb[0].mxu0
  %4664 = vmatprep.mubr.bf16.mxu0 %v4439
  %4665 = vmatmul.mubr.bf16.gmra.mrb[0].mxu0 %v4438
  %v4666 = vpop.f32.mrb[0].mxu0
  %v4667 = vadd.f32 %v4570, %v4666
  %v4668 = vpop.f32.mrb[0].mxu0
  %v4669 = vpop.f32.mrb[0].mxu0
  %v4670 = vadd.f32 %v4573, %v4669
  %v4671 = vpop.f32.mrb[0].mxu0
  %4672 = vmatprep.mubr.bf16.mxu0 %v4444
  %4673 = vmatmul.mubr.bf16.gmra.mrb[0].mxu0 %v4443
  %v4674 = vpop.f32.mrb[0].mxu0
  %v4675 = vadd.f32 %v4578, %v4674
  %v4676 = vpop.f32.mrb[0].mxu0
  %v4677 = vpop.f32.mrb[0].mxu0
  %v4678 = vadd.f32 %v4581, %v4677
  %v4679 = vpop.f32.mrb[0].mxu0
  %4680 = vmatprep.mubr.bf16.mxu0 %v4449
  %4681 = vmatmul.mubr.bf16.gmra.mrb[0].mxu0 %v4448
  %v4682 = vpop.f32.mrb[0].mxu0
  %v4683 = vadd.f32 %v4586, %v4682
  %v4684 = vpop.f32.mrb[0].mxu0
  %v4685 = vpop.f32.mrb[0].mxu0
  %v4686 = vadd.f32 %v4589, %v4685
  %v4687 = vpop.f32.mrb[0].mxu0
  %4688 = vmatprep.mubr.bf16.mxu0 %v4454
  %4689 = vmatmul.mubr.bf16.gmra.mrb[0].mxu0 %v4453
  %v4690 = vpop.f32.mrb[0].mxu0
  %v4691 = vadd.f32 %v4594, %v4690
  %v4692 = vpop.f32.mrb[0].mxu0
  %v4693 = vpop.f32.mrb[0].mxu0
  %v4694 = vadd.f32 %v4597, %v4693
  %v4695 = vpop.f32.mrb[0].mxu0
  %4696 = vmatprep.mubr.bf16.mxu0 %v4459
  %4697 = vmatmul.mubr.bf16.gmra.mrb[0].mxu0 %v4458
  %v4698 = vpop.f32.mrb[0].mxu0
  %v4699 = vadd.f32 %v4602, %v4698
  %v4700 = vpop.f32.mrb[0].mxu0
  %v4701 = vpop.f32.mrb[0].mxu0
  %v4702 = vadd.f32 %v4605, %v4701
  %v4703 = vpop.f32.mrb[0].mxu0
  %4704 = vmatprep.mubr.bf16.mxu0 %v4464
  %4705 = vmatmul.mubr.bf16.gmra.mrb[0].mxu0 %v4463
  %v4706 = vpop.f32.mrb[0].mxu0
  %v4707 = vadd.f32 %v4610, %v4706
  %v4708 = vpop.f32.mrb[0].mxu0
  %v4709 = vpop.f32.mrb[0].mxu0
  %v4710 = vadd.f32 %v4613, %v4709
  %v4711 = vpop.f32.mrb[0].mxu0
  %4712 = vmatprep.mubr.bf16.mxu0 %v4469
  %4713 = vmatmul.mubr.bf16.gmra.mrb[0].mxu0 %v4468
  %v4714 = vpop.f32.mrb[0].mxu0
  %v4715 = vadd.f32 %v4618, %v4714
  %v4716 = vpop.f32.mrb[0].mxu0
  %v4717 = vpop.f32.mrb[0].mxu0
  %v4718 = vadd.f32 %v4621, %v4717
  %v4719 = vpop.f32.mrb[0].mxu0
  %4720 = vdwg.mxu0
  %4721 = vmatprep.subr.bf16.mxu0 0
  %4722 = vmatpush1.bf16.msra.mxu0 %v4203
  %4723 = vmatprep.subr.bf16.mxu0 0
  %4724 = vmatpush1.bf16.msra.mxu0 %v4204
  %4725 = vmatprep.subr.bf16.mxu0 0
  %4726 = vmatpush1.bf16.msra.mxu0 %v4205
  %4727 = vmatprep.subr.bf16.mxu0 0
  %4728 = vmatpush1.bf16.msra.mxu0 %v4206
  %4729 = vmatprep.subr.bf16.mxu0 0
  %4730 = vmatpush1.bf16.msra.mxu0 0
  %4731 = vmatprep.subr.bf16.mxu0 0
  %4732 = vmatpush1.bf16.msra.mxu0 0
  %4733 = vmatprep.subr.bf16.mxu0 0
  %4734 = vmatpush1.bf16.msra.mxu0 0
  %4735 = vmatprep.subr.bf16.mxu0 0
  %4736 = vmatpush1.bf16.msra.mxu0 0
  %4737 = vmatprep.subr.bf16.mxu0 0
  %4738 = vmatpush1.bf16.msra.mxu0 0
  %4739 = vmatprep.subr.bf16.mxu0 0
  %4740 = vmatpush1.bf16.msra.mxu0 0
  %4741 = vmatprep.subr.bf16.mxu0 0
  %4742 = vmatpush1.bf16.msra.mxu0 0
  %4743 = vmatprep.subr.bf16.mxu0 0
  %4744 = vmatpush1.bf16.msra.mxu0 0
  %4745 = vmatprep.subr.bf16.mxu0 0
  %4746 = vmatpush1.bf16.msra.mxu0 0
  %4747 = vmatprep.subr.bf16.mxu0 0
  %4748 = vmatpush1.bf16.msra.mxu0 0
  %4749 = vmatprep.subr.bf16.mxu0 0
  %4750 = vmatpush1.bf16.msra.mxu0 0
  %4751 = vmatprep.subr.bf16.mxu0 0
  %4752 = vmatpush1.bf16.msra.mxu0 0
  %4753 = vmatprep.mubr.bf16.mxu0 0
  %4754 = vmatmul.mubr.bf16.gmra.mrb[0].mxu0 %v4504
  %v4755 = vpop.f32.mrb[0].mxu0
  %v4756 = vadd.f32 %v4659, %v4755
  %v4757 = vpop.f32.mrb[0].mxu0
  %v4758 = vpop.f32.mrb[0].mxu0
  %v4759 = vadd.f32 %v4662, %v4758
  %v4760 = vpop.f32.mrb[0].mxu0
  %4761 = vmatprep.mubr.bf16.mxu0 0
  %4762 = vmatmul.mubr.bf16.gmra.mrb[0].mxu0 %v4507
  %v4763 = vpop.f32.mrb[0].mxu0
  %v4764 = vadd.f32 %v4667, %v4763
  %v4765 = vpop.f32.mrb[0].mxu0
  %v4766 = vpop.f32.mrb[0].mxu0
  %v4767 = vadd.f32 %v4670, %v4766
  %v4768 = vpop.f32.mrb[0].mxu0
  %4769 = vmatprep.mubr.bf16.mxu0 0
  %4770 = vmatmul.mubr.bf16.gmra.mrb[0].mxu0 %v4510
  %v4771 = vpop.f32.mrb[0].mxu0
  %v4772 = vadd.f32 %v4675, %v4771
  %v4773 = vpop.f32.mrb[0].mxu0
  %v4774 = vpop.f32.mrb[0].mxu0
  %v4775 = vadd.f32 %v4678, %v4774
  %v4776 = vpop.f32.mrb[0].mxu0
  %4777 = vmatprep.mubr.bf16.mxu0 0
  %4778 = vmatmul.mubr.bf16.gmra.mrb[0].mxu0 %v4513
  %v4779 = vpop.f32.mrb[0].mxu0
  %v4780 = vadd.f32 %v4683, %v4779
  %v4781 = vpop.f32.mrb[0].mxu0
  %v4782 = vpop.f32.mrb[0].mxu0
  %v4783 = vadd.f32 %v4686, %v4782
  %v4784 = vpop.f32.mrb[0].mxu0
  %4785 = vmatprep.mubr.bf16.mxu0 0
  %4786 = vmatmul.mubr.bf16.gmra.mrb[0].mxu0 %v4516
  %v4787 = vpop.f32.mrb[0].mxu0
  %v4788 = vadd.f32 %v4691, %v4787
  %v4789 = vpop.f32.mrb[0].mxu0
  %v4790 = vpop.f32.mrb[0].mxu0
  %v4791 = vadd.f32 %v4694, %v4790
  %v4792 = vpop.f32.mrb[0].mxu0
  %4793 = vmatprep.mubr.bf16.mxu0 0
  %4794 = vmatmul.mubr.bf16.gmra.mrb[0].mxu0 %v4519
  %v4795 = vpop.f32.mrb[0].mxu0
  %v4796 = vadd.f32 %v4699, %v4795
  %v4797 = vpop.f32.mrb[0].mxu0
  %v4798 = vpop.f32.mrb[0].mxu0
  %v4799 = vadd.f32 %v4702, %v4798
  %v4800 = vpop.f32.mrb[0].mxu0
  %4801 = vmatprep.mubr.bf16.mxu0 0
  %4802 = vmatmul.mubr.bf16.gmra.mrb[0].mxu0 %v4522
  %v4803 = vpop.f32.mrb[0].mxu0
  %v4804 = vadd.f32 %v4707, %v4803
  %v4805 = vpop.f32.mrb[0].mxu0
  %v4806 = vpop.f32.mrb[0].mxu0
  %v4807 = vadd.f32 %v4710, %v4806
  %v4808 = vpop.f32.mrb[0].mxu0
  %4809 = vmatprep.mubr.bf16.mxu0 0
  %4810 = vmatmul.mubr.bf16.gmra.mrb[0].mxu0 %v4525
  %v4811 = vpop.f32.mrb[0].mxu0
  %v4812 = vadd.f32 %v4715, %v4811
  %v4813 = vpop.f32.mrb[0].mxu0
  %v4814 = vpop.f32.mrb[0].mxu0
  %v4815 = vadd.f32 %v4718, %v4814
  %v4816 = vpop.f32.mrb[0].mxu0
  %4817 = vdwg.mxu0
  %v4818 = vmax.f32 %v4756, 0.0
  %v4819 = vmax.f32 %v4759, 0.0
  %v4820 = vmax.f32 %v4764, 0.0
  %v4821 = vmax.f32 %v4767, 0.0
  %v4822 = vmax.f32 %v4772, 0.0
  %v4823 = vmax.f32 %v4775, 0.0
  %v4824 = vmax.f32 %v4780, 0.0
  %v4825 = vmax.f32 %v4783, 0.0
  %v4826 = vmax.f32 %v4788, 0.0
  %v4827 = vmax.f32 %v4791, 0.0
  %v4828 = vmax.f32 %v4796, 0.0
  %v4829 = vmax.f32 %v4799, 0.0
  %v4830 = vmax.f32 %v4804, 0.0
  %v4831 = vmax.f32 %v4807, 0.0
  %v4832 = vmax.f32 %v4812, 0.0
  %v4833 = vmax.f32 %v4815, 0.0
  %v4834 = vpack.c.bf16 %v4819, %v4818
  %v4835 = vpack.c.bf16 %v4821, %v4820
  %v4836 = vpack.c.bf16 %v4823, %v4822
  %v4837 = vpack.c.bf16 %v4825, %v4824
  %v4838 = vpack.c.bf16 %v4827, %v4826
  %v4839 = vpack.c.bf16 %v4829, %v4828
  %v4840 = vpack.c.bf16 %v4831, %v4830
  %v4841 = vpack.c.bf16 %v4833, %v4832
  %v4842 = vld [vmem:[%s16] sm:$0xf]
  %v4843 = vld [vmem:[%s16 + $0x4] sm:$0xf]
  %v4844 = vld [vmem:[%s16 + $0x8] sm:$0xf]
  %v4845 = vld [vmem:[%s16 + $0xc] sm:$0xf]
  %v4850 = vunpack.c.l.b16 %v4842
  %v4851 = vunpack.c.l.b16 %v4843
  %v4852 = vunpack.c.l.b16 %v4844
  %v4853 = vunpack.c.l.b16 %v4845
  %v4854 = vpack.c.b16 %v4851, %v4850
  %v4855 = vpack.c.b16 %v4853, %v4852
  %4858 = vmatprep.subr.bf16.mxu0 0
  %4859 = vmatpush1.bf16.msra.mxu0 %v4854
  %4860 = vmatprep.subr.bf16.mxu0 0
  %4861 = vmatpush1.bf16.msra.mxu0 %v4855
  %4862 = vmatprep.subr.bf16.mxu0 0
  %4863 = vmatpush1.bf16.msra.mxu0 0
  %4864 = vmatprep.subr.bf16.mxu0 0
  %4865 = vmatpush1.bf16.msra.mxu0 0
  %4866 = vmatprep.subr.bf16.mxu0 0
  %4867 = vmatpush1.bf16.msra.mxu0 0
  %4868 = vmatprep.subr.bf16.mxu0 0
  %4869 = vmatpush1.bf16.msra.mxu0 0
  %4870 = vmatprep.subr.bf16.mxu0 0
  %4871 = vmatpush1.bf16.msra.mxu0 0
  %4872 = vmatprep.subr.bf16.mxu0 0
  %4873 = vmatpush1.bf16.msra.mxu0 0
  %4874 = vmatprep.subr.bf16.mxu0 0
  %4875 = vmatpush1.bf16.msra.mxu0 0
  %4876 = vmatprep.subr.bf16.mxu0 0
  %4877 = vmatpush1.bf16.msra.mxu0 0
  %4878 = vmatprep.subr.bf16.mxu0 0
  %4879 = vmatpush1.bf16.msra.mxu0 0
  %4880 = vmatprep.subr.bf16.mxu0 0
  %4881 = vmatpush1.bf16.msra.mxu0 0
  %4882 = vmatprep.subr.bf16.mxu0 0
  %4883 = vmatpush1.bf16.msra.mxu0 0
  %4884 = vmatprep.subr.bf16.mxu0 0
  %4885 = vmatpush1.bf16.msra.mxu0 0
  %4886 = vmatprep.subr.bf16.mxu0 0
  %4887 = vmatpush1.bf16.msra.mxu0 0
  %4888 = vmatprep.subr.bf16.mxu0 0
  %4889 = vmatpush1.bf16.msra.mxu0 0
  %4890 = vmatprep.mubr.bf16.mxu0 0
  %4891 = vmatmul.mubr.bf16.gmra.mrb[0].mxu0 %v3906
  %v4892 = vpop.f32.mrb[0].mxu0
  %v4893 = vadd.f32 0.0, %v4892
  %v4894 = vpop.f32.mrb[0].mxu0
  %v4895 = vpop.f32.mrb[0].mxu0
  %v4896 = vadd.f32 0.0, %v4895
  %v4897 = vpop.f32.mrb[0].mxu0
  %4898 = vmatprep.mubr.bf16.mxu0 0
  %4899 = vmatmul.mubr.bf16.gmra.mrb[0].mxu0 %v3909
  %v4900 = vpop.f32.mrb[0].mxu0
  %v4901 = vadd.f32 0.0, %v4900
  %v4902 = vpop.f32.mrb[0].mxu0
  %v4903 = vpop.f32.mrb[0].mxu0
  %v4904 = vadd.f32 0.0, %v4903
  %v4905 = vpop.f32.mrb[0].mxu0
  %4906 = vmatprep.mubr.bf16.mxu0 0
  %4907 = vmatmul.mubr.bf16.gmra.mrb[0].mxu0 %v3912
  %v4908 = vpop.f32.mrb[0].mxu0
  %v4909 = vadd.f32 0.0, %v4908
  %v4910 = vpop.f32.mrb[0].mxu0
  %v4911 = vpop.f32.mrb[0].mxu0
  %v4912 = vadd.f32 0.0, %v4911
  %v4913 = vpop.f32.mrb[0].mxu0
  %4914 = vmatprep.mubr.bf16.mxu0 0
  %4915 = vmatmul.mubr.bf16.gmra.mrb[0].mxu0 %v3915
  %v4916 = vpop.f32.mrb[0].mxu0
  %v4917 = vadd.f32 0.0, %v4916
  %v4918 = vpop.f32.mrb[0].mxu0
  %v4919 = vpop.f32.mrb[0].mxu0
  %v4920 = vadd.f32 0.0, %v4919
  %v4921 = vpop.f32.mrb[0].mxu0
  %4922 = vdwg.mxu0
  %v4923 = vpack.c.bf16 %v4896, %v4893
  %v4924 = vpack.c.bf16 %v4904, %v4901
  %v4925 = vpack.c.bf16 %v4912, %v4909
  %v4926 = vpack.c.bf16 %v4920, %v4917
  %4927 = vst.msk [vmem:[#allocation2] sm:$0xff] %vm3986, %v4923
  %4928 = vst.msk [vmem:[#allocation2 + $0x8] sm:$0xff] %vm3986, %v4924
  %4929 = vst.msk [vmem:[#allocation2 + $0x10] sm:$0xff] %vm3986, %v4925
  %4930 = vst.msk [vmem:[#allocation2 + $0x18] sm:$0xff] %vm3986, %v4926
  %v4931 = vld [vmem:[%s7] sm:$0xf]
  %v4932 = vld [vmem:[%s7 + $0x4] sm:$0xf]
  %v4933 = vld [vmem:[%s7 + $0x8] sm:$0xf]
  %v4934 = vld [vmem:[%s7 + $0xc] sm:$0xf]
  %v4935 = vld [vmem:[%s7 + $0x10] sm:$0xf]
  %v4936 = vld [vmem:[%s7 + $0x14] sm:$0xf]
  %v4937 = vld [vmem:[%s7 + $0x18] sm:$0xf]
  %v4938 = vld [vmem:[%s7 + $0x1c] sm:$0xf]
  %v4939 = vld [vmem:[%s7 + $0x20] sm:$0xf]
  %v4940 = vld [vmem:[%s7 + $0x24] sm:$0xf]
  %v4941 = vld [vmem:[%s7 + $0x28] sm:$0xf]
  %v4942 = vld [vmem:[%s7 + $0x2c] sm:$0xf]
  %v4943 = vld [vmem:[%s7 + $0x30] sm:$0xf]
  %v4944 = vld [vmem:[%s7 + $0x34] sm:$0xf]
  %v4945 = vld [vmem:[%s7 + $0x38] sm:$0xf]
  %v4946 = vld [vmem:[%s7 + $0x3c] sm:$0xf]
  %v4947 = vld [vmem:[#allocation2] sm:$0xff]
  %v4948 = vld [vmem:[#allocation2 + $0x8] sm:$0xff]
  %v4949 = vld [vmem:[#allocation2 + $0x10] sm:$0xff]
  %v4950 = vld [vmem:[#allocation2 + $0x18] sm:$0xff]
  %v4951 = vld [vmem:[%s12] sm:$0xff]
  %v4952 = vld [vmem:[%s12 + $0x8] sm:$0xff]
  %v4953 = vld [vmem:[%s12 + $0x10] sm:$0xff]
  %v4954 = vld [vmem:[%s12 + $0x18] sm:$0xff]
  %v4955 = vld [vmem:[%s12 + $0x20] sm:$0xff]
  %v4956 = vld [vmem:[%s12 + $0x28] sm:$0xff]
  %v4957 = vld [vmem:[%s12 + $0x30] sm:$0xff]
  %v4958 = vld [vmem:[%s12 + $0x38] sm:$0xff]
  %v4959 = vld [vmem:[%s12 + $0x40] sm:$0xff]
  %v4960 = vld [vmem:[%s12 + $0x48] sm:$0xff]
  %v4961 = vld [vmem:[%s12 + $0x50] sm:$0xff]
  %v4962 = vld [vmem:[%s12 + $0x58] sm:$0xff]
  %v4963 = vld [vmem:[%s12 + $0x60] sm:$0xff]
  %v4964 = vld [vmem:[%s12 + $0x68] sm:$0xff]
  %v4965 = vld [vmem:[%s12 + $0x70] sm:$0xff]
  %v4966 = vld [vmem:[%s12 + $0x78] sm:$0xff]
  %4968 = vset.pattern.permute.xlu0 6
  %4969 = vperm.xlu0 %4968, %v4951
  %v4970 = vpop.permute.xlu0 %4969
  %4973 = vset.pattern.permute.xlu0 6
  %4974 = vperm.xlu0 %4973, %v4952
  %v4975 = vpop.permute.xlu0 %4974
  %4978 = vset.pattern.permute.xlu0 6
  %4979 = vperm.xlu0 %4978, %v4953
  %v4980 = vpop.permute.xlu0 %4979
  %4983 = vset.pattern.permute.xlu0 6
  %4984 = vperm.xlu0 %4983, %v4954
  %v4985 = vpop.permute.xlu0 %4984
  %4988 = vset.pattern.permute.xlu0 6
  %4989 = vperm.xlu0 %4988, %v4955
  %v4990 = vpop.permute.xlu0 %4989
  %4993 = vset.pattern.permute.xlu0 6
  %4994 = vperm.xlu0 %4993, %v4956
  %v4995 = vpop.permute.xlu0 %4994
  %4998 = vset.pattern.permute.xlu0 6
  %4999 = vperm.xlu0 %4998, %v4957
  %v5000 = vpop.permute.xlu0 %4999
  %5003 = vset.pattern.permute.xlu0 6
  %5004 = vperm.xlu0 %5003, %v4958
  %v5005 = vpop.permute.xlu0 %5004
  %5008 = vset.pattern.permute.xlu0 6
  %5009 = vperm.xlu0 %5008, %v4959
  %v5010 = vpop.permute.xlu0 %5009
  %5013 = vset.pattern.permute.xlu0 6
  %5014 = vperm.xlu0 %5013, %v4960
  %v5015 = vpop.permute.xlu0 %5014
  %5018 = vset.pattern.permute.xlu0 6
  %5019 = vperm.xlu0 %5018, %v4961
  %v5020 = vpop.permute.xlu0 %5019
  %5023 = vset.pattern.permute.xlu0 6
  %5024 = vperm.xlu0 %5023, %v4962
  %v5025 = vpop.permute.xlu0 %5024
  %5028 = vset.pattern.permute.xlu0 6
  %5029 = vperm.xlu0 %5028, %v4963
  %v5030 = vpop.permute.xlu0 %5029
  %5033 = vset.pattern.permute.xlu0 6
  %5034 = vperm.xlu0 %5033, %v4964
  %v5035 = vpop.permute.xlu0 %5034
  %5038 = vset.pattern.permute.xlu0 6
  %5039 = vperm.xlu0 %5038, %v4965
  %v5040 = vpop.permute.xlu0 %5039
  %5043 = vset.pattern.permute.xlu0 6
  %5044 = vperm.xlu0 %5043, %v4966
  %v5045 = vpop.permute.xlu0 %5044
  %v5063 = vunpack.c.l.b16 %v4931
  %v5064 = vunpack.c.l.b16 %v4932
  %v5065 = vunpack.c.l.b16 %v4933
  %v5066 = vunpack.c.l.b16 %v4934
  %v5067 = vunpack.c.l.b16 %v4935
  %v5068 = vunpack.c.l.b16 %v4936
  %v5069 = vunpack.c.l.b16 %v4937
  %v5070 = vunpack.c.l.b16 %v4938
  %v5071 = vunpack.c.l.b16 %v4939
  %v5072 = vunpack.c.l.b16 %v4940
  %v5073 = vunpack.c.l.b16 %v4941
  %v5074 = vunpack.c.l.b16 %v4942
  %v5075 = vunpack.c.l.b16 %v4943
  %v5076 = vunpack.c.l.b16 %v4944
  %v5077 = vunpack.c.l.b16 %v4945
  %v5078 = vunpack.c.l.b16 %v4946
  %v5079 = vpack.c.b16 %v5064, %v5063
  %v5080 = vpack.c.b16 %v5066, %v5065
  %v5081 = vpack.c.b16 %v5068, %v5067
  %v5082 = vpack.c.b16 %v5070, %v5069
  %v5083 = vpack.c.b16 %v5072, %v5071
  %v5084 = vpack.c.b16 %v5074, %v5073
  %v5085 = vpack.c.b16 %v5076, %v5075
  %v5086 = vpack.c.b16 %v5078, %v5077
  %v5088 = vsel %vm1402, %v5079, 0
  %v5091 = vsel %vm1402, %v5080, 0
  %v5094 = vsel %vm1402, %v5081, 0
  %v5097 = vsel %vm1402, %v5082, 0
  %v5100 = vsel %vm1402, %v5083, 0
  %v5103 = vsel %vm1402, %v5084, 0
  %v5106 = vsel %vm1402, %v5085, 0
  %v5109 = vsel %vm1402, %v5086, 0
  %5111 = vmatprep.subr.bf16.mxu0 0
  %5112 = vmatpush1.bf16.msra.mxu0 %v4947
  %5113 = vmatprep.subr.bf16.mxu0 0
  %5114 = vmatpush1.bf16.msra.mxu0 %v4948
  %5115 = vmatprep.subr.bf16.mxu0 0
  %5116 = vmatpush1.bf16.msra.mxu0 %v4949
  %5117 = vmatprep.subr.bf16.mxu0 0
  %5118 = vmatpush1.bf16.msra.mxu0 %v4950
  %5119 = vmatprep.subr.bf16.mxu0 0
  %5120 = vmatpush1.bf16.msra.mxu0 0
  %5121 = vmatprep.subr.bf16.mxu0 0
  %5122 = vmatpush1.bf16.msra.mxu0 0
  %5123 = vmatprep.subr.bf16.mxu0 0
  %5124 = vmatpush1.bf16.msra.mxu0 0
  %5125 = vmatprep.subr.bf16.mxu0 0
  %5126 = vmatpush1.bf16.msra.mxu0 0
  %5127 = vmatprep.subr.bf16.mxu0 0
  %5128 = vmatpush1.bf16.msra.mxu0 0
  %5129 = vmatprep.subr.bf16.mxu0 0
  %5130 = vmatpush1.bf16.msra.mxu0 0
  %5131 = vmatprep.subr.bf16.mxu0 0
  %5132 = vmatpush1.bf16.msra.mxu0 0
  %5133 = vmatprep.subr.bf16.mxu0 0
  %5134 = vmatpush1.bf16.msra.mxu0 0
  %5135 = vmatprep.subr.bf16.mxu0 0
  %5136 = vmatpush1.bf16.msra.mxu0 0
  %5137 = vmatprep.subr.bf16.mxu0 0
  %5138 = vmatpush1.bf16.msra.mxu0 0
  %5139 = vmatprep.subr.bf16.mxu0 0
  %5140 = vmatpush1.bf16.msra.mxu0 0
  %5141 = vmatprep.subr.bf16.mxu0 0
  %5142 = vmatpush1.bf16.msra.mxu0 0
  %5143 = vmatprep.mubr.bf16.mxu0 0
  %5144 = vmatmul.mubr.bf16.gmra.mrb[0].mxu0 %v5088
  %v5145 = vpop.f32.mrb[0].mxu0
  %v5146 = vadd.f32 %v4970, %v5145
  %v5147 = vpop.f32.mrb[0].mxu0
  %v5148 = vpop.f32.mrb[0].mxu0
  %v5149 = vadd.f32 %v4975, %v5148
  %v5150 = vpop.f32.mrb[0].mxu0
  %5151 = vmatprep.mubr.bf16.mxu0 0
  %5152 = vmatmul.mubr.bf16.gmra.mrb[0].mxu0 %v5091
  %v5153 = vpop.f32.mrb[0].mxu0
  %v5154 = vadd.f32 %v4980, %v5153
  %v5155 = vpop.f32.mrb[0].mxu0
  %v5156 = vpop.f32.mrb[0].mxu0
  %v5157 = vadd.f32 %v4985, %v5156
  %v5158 = vpop.f32.mrb[0].mxu0
  %5159 = vmatprep.mubr.bf16.mxu0 0
  %5160 = vmatmul.mubr.bf16.gmra.mrb[0].mxu0 %v5094
  %v5161 = vpop.f32.mrb[0].mxu0
  %v5162 = vadd.f32 %v4990, %v5161
  %v5163 = vpop.f32.mrb[0].mxu0
  %v5164 = vpop.f32.mrb[0].mxu0
  %v5165 = vadd.f32 %v4995, %v5164
  %v5166 = vpop.f32.mrb[0].mxu0
  %5167 = vmatprep.mubr.bf16.mxu0 0
  %5168 = vmatmul.mubr.bf16.gmra.mrb[0].mxu0 %v5097
  %v5169 = vpop.f32.mrb[0].mxu0
  %v5170 = vadd.f32 %v5000, %v5169
  %v5171 = vpop.f32.mrb[0].mxu0
  %v5172 = vpop.f32.mrb[0].mxu0
  %v5173 = vadd.f32 %v5005, %v5172
  %v5174 = vpop.f32.mrb[0].mxu0
  %5175 = vmatprep.mubr.bf16.mxu0 0
  %5176 = vmatmul.mubr.bf16.gmra.mrb[0].mxu0 %v5100
  %v5177 = vpop.f32.mrb[0].mxu0
  %v5178 = vadd.f32 %v5010, %v5177
  %v5179 = vpop.f32.mrb[0].mxu0
  %v5180 = vpop.f32.mrb[0].mxu0
  %v5181 = vadd.f32 %v5015, %v5180
  %v5182 = vpop.f32.mrb[0].mxu0
  %5183 = vmatprep.mubr.bf16.mxu0 0
  %5184 = vmatmul.mubr.bf16.gmra.mrb[0].mxu0 %v5103
  %v5185 = vpop.f32.mrb[0].mxu0
  %v5186 = vadd.f32 %v5020, %v5185
  %v5187 = vpop.f32.mrb[0].mxu0
  %v5188 = vpop.f32.mrb[0].mxu0
  %v5189 = vadd.f32 %v5025, %v5188
  %v5190 = vpop.f32.mrb[0].mxu0
  %5191 = vmatprep.mubr.bf16.mxu0 0
  %5192 = vmatmul.mubr.bf16.gmra.mrb[0].mxu0 %v5106
  %v5193 = vpop.f32.mrb[0].mxu0
  %v5194 = vadd.f32 %v5030, %v5193
  %v5195 = vpop.f32.mrb[0].mxu0
  %v5196 = vpop.f32.mrb[0].mxu0
  %v5197 = vadd.f32 %v5035, %v5196
  %v5198 = vpop.f32.mrb[0].mxu0
  %5199 = vmatprep.mubr.bf16.mxu0 0
  %5200 = vmatmul.mubr.bf16.gmra.mrb[0].mxu0 %v5109
  %v5201 = vpop.f32.mrb[0].mxu0
  %v5202 = vadd.f32 %v5040, %v5201
  %v5203 = vpop.f32.mrb[0].mxu0
  %v5204 = vpop.f32.mrb[0].mxu0
  %v5205 = vadd.f32 %v5045, %v5204
  %v5206 = vpop.f32.mrb[0].mxu0
  %5207 = vdwg.mxu0
  %v5208 = vld [vmem:[%s17] sm:$0xf]
  %v5210 = vsel %vm3986, %v4834, 0
  %v5213 = vsel %vm3986, %v4835, 0
  %v5216 = vsel %vm3986, %v4836, 0
  %v5219 = vsel %vm3986, %v4837, 0
  %v5222 = vsel %vm3986, %v4838, 0
  %v5225 = vsel %vm3986, %v4839, 0
  %v5228 = vsel %vm3986, %v4840, 0
  %v5231 = vsel %vm3986, %v4841, 0
  %vm5233 = vcmask 1043456
  %v5235 = vsel %vm5233, %v5208, 0
  %5237 = vmatprep.subr.bf16.mxu0 0
  %5238 = vmatpush1.bf16.msra.mxu0 %v5235
  %5239 = vmatprep.subr.bf16.mxu0 0
  %5240 = vmatpush1.bf16.msra.mxu0 0
  %5241 = vmatprep.subr.bf16.mxu0 0
  %5242 = vmatpush1.bf16.msra.mxu0 0
  %5243 = vmatprep.subr.bf16.mxu0 0
  %5244 = vmatpush1.bf16.msra.mxu0 0
  %5245 = vmatprep.subr.bf16.mxu0 0
  %5246 = vmatpush1.bf16.msra.mxu0 0
  %5247 = vmatprep.subr.bf16.mxu0 0
  %5248 = vmatpush1.bf16.msra.mxu0 0
  %5249 = vmatprep.subr.bf16.mxu0 0
  %5250 = vmatpush1.bf16.msra.mxu0 0
  %5251 = vmatprep.subr.bf16.mxu0 0
  %5252 = vmatpush1.bf16.msra.mxu0 0
  %5253 = vmatprep.subr.bf16.mxu0 0
  %5254 = vmatpush1.bf16.msra.mxu0 0
  %5255 = vmatprep.subr.bf16.mxu0 0
  %5256 = vmatpush1.bf16.msra.mxu0 0
  %5257 = vmatprep.subr.bf16.mxu0 0
  %5258 = vmatpush1.bf16.msra.mxu0 0
  %5259 = vmatprep.subr.bf16.mxu0 0
  %5260 = vmatpush1.bf16.msra.mxu0 0
  %5261 = vmatprep.subr.bf16.mxu0 0
  %5262 = vmatpush1.bf16.msra.mxu0 0
  %5263 = vmatprep.subr.bf16.mxu0 0
  %5264 = vmatpush1.bf16.msra.mxu0 0
  %5265 = vmatprep.subr.bf16.mxu0 0
  %5266 = vmatpush1.bf16.msra.mxu0 0
  %5267 = vmatprep.subr.bf16.mxu0 0
  %5268 = vmatpush1.bf16.msra.mxu0 0
  %5269 = vmatprep.mubr.bf16.mxu0 0
  %5270 = vmatmul.mubr.bf16.gmra.mrb[0].mxu0 %v5210
  %v5271 = vpop.f32.mrb[0].mxu0
  %v5272 = vadd.f32 0.0, %v5271
  %v5273 = vpop.f32.mrb[0].mxu0
  %v5274 = vpop.f32.mrb[0].mxu0
  %v5275 = vadd.f32 0.0, %v5274
  %v5276 = vpop.f32.mrb[0].mxu0
  %5277 = vmatprep.mubr.bf16.mxu0 0
  %5278 = vmatmul.mubr.bf16.gmra.mrb[0].mxu0 %v5213
  %v5279 = vpop.f32.mrb[0].mxu0
  %v5280 = vadd.f32 0.0, %v5279
  %v5281 = vpop.f32.mrb[0].mxu0
  %v5282 = vpop.f32.mrb[0].mxu0
  %v5283 = vadd.f32 0.0, %v5282
  %v5284 = vpop.f32.mrb[0].mxu0
  %5285 = vmatprep.mubr.bf16.mxu0 0
  %5286 = vmatmul.mubr.bf16.gmra.mrb[0].mxu0 %v5216
  %v5287 = vpop.f32.mrb[0].mxu0
  %v5288 = vadd.f32 0.0, %v5287
  %v5289 = vpop.f32.mrb[0].mxu0
  %v5290 = vpop.f32.mrb[0].mxu0
  %v5291 = vadd.f32 0.0, %v5290
  %v5292 = vpop.f32.mrb[0].mxu0
  %5293 = vmatprep.mubr.bf16.mxu0 0
  %5294 = vmatmul.mubr.bf16.gmra.mrb[0].mxu0 %v5219
  %v5295 = vpop.f32.mrb[0].mxu0
  %v5296 = vadd.f32 0.0, %v5295
  %v5297 = vpop.f32.mrb[0].mxu0
  %v5298 = vpop.f32.mrb[0].mxu0
  %v5299 = vadd.f32 0.0, %v5298
  %v5300 = vpop.f32.mrb[0].mxu0
  %5301 = vmatprep.mubr.bf16.mxu0 0
  %5302 = vmatmul.mubr.bf16.gmra.mrb[0].mxu0 %v5222
  %v5303 = vpop.f32.mrb[0].mxu0
  %v5304 = vadd.f32 0.0, %v5303
  %v5305 = vpop.f32.mrb[0].mxu0
  %v5306 = vpop.f32.mrb[0].mxu0
  %v5307 = vadd.f32 0.0, %v5306
  %v5308 = vpop.f32.mrb[0].mxu0
  %5309 = vmatprep.mubr.bf16.mxu0 0
  %5310 = vmatmul.mubr.bf16.gmra.mrb[0].mxu0 %v5225
  %v5311 = vpop.f32.mrb[0].mxu0
  %v5312 = vadd.f32 0.0, %v5311
  %v5313 = vpop.f32.mrb[0].mxu0
  %v5314 = vpop.f32.mrb[0].mxu0
  %v5315 = vadd.f32 0.0, %v5314
  %v5316 = vpop.f32.mrb[0].mxu0
  %5317 = vmatprep.mubr.bf16.mxu0 0
  %5318 = vmatmul.mubr.bf16.gmra.mrb[0].mxu0 %v5228
  %v5319 = vpop.f32.mrb[0].mxu0
  %v5320 = vadd.f32 0.0, %v5319
  %v5321 = vpop.f32.mrb[0].mxu0
  %v5322 = vpop.f32.mrb[0].mxu0
  %v5323 = vadd.f32 0.0, %v5322
  %v5324 = vpop.f32.mrb[0].mxu0
  %5325 = vmatprep.mubr.bf16.mxu0 0
  %5326 = vmatmul.mubr.bf16.gmra.mrb[0].mxu0 %v5231
  %v5327 = vpop.f32.mrb[0].mxu0
  %v5328 = vadd.f32 0.0, %v5327
  %v5329 = vpop.f32.mrb[0].mxu0
  %v5330 = vpop.f32.mrb[0].mxu0
  %v5331 = vadd.f32 0.0, %v5330
  %v5332 = vpop.f32.mrb[0].mxu0
  %5333 = vdwg.mxu0
  %v5334 = vpack.c.bf16 %v5275, %v5272
  %v5335 = vpack.c.bf16 %v5283, %v5280
  %v5336 = vpack.c.bf16 %v5291, %v5288
  %v5337 = vpack.c.bf16 %v5299, %v5296
  %v5338 = vpack.c.bf16 %v5307, %v5304
  %v5339 = vpack.c.bf16 %v5315, %v5312
  %v5340 = vpack.c.bf16 %v5323, %v5320
  %v5341 = vpack.c.bf16 %v5331, %v5328
  %5342 = vst.msk [vmem:[#allocation2] sm:$0xff] %vm3986, %v5334
  %5343 = vst.msk [vmem:[#allocation2 + $0x8] sm:$0xff] %vm3986, %v5335
  %5344 = vst.msk [vmem:[#allocation2 + $0x10] sm:$0xff] %vm3986, %v5336
  %5345 = vst.msk [vmem:[#allocation2 + $0x18] sm:$0xff] %vm3986, %v5337
  %5346 = vst.msk [vmem:[#allocation2 + $0x20] sm:$0xff] %vm3986, %v5338
  %5347 = vst.msk [vmem:[#allocation2 + $0x28] sm:$0xff] %vm3986, %v5339
  %5348 = vst.msk [vmem:[#allocation2 + $0x30] sm:$0xff] %vm3986, %v5340
  %5349 = vst.msk [vmem:[#allocation2 + $0x38] sm:$0xff] %vm3986, %v5341
  %5358 = vrot.lane.b32.xlu0 %v5334, 120
  %v5359 = vpop.permute.xlu0 %5358
  %5360 = vrot.lane.b32.xlu0 %v5335, 120
  %v5361 = vpop.permute.xlu0 %5360
  %5362 = vrot.lane.b32.xlu0 %v5336, 120
  %v5363 = vpop.permute.xlu0 %5362
  %5364 = vrot.lane.b32.xlu0 %v5337, 120
  %v5365 = vpop.permute.xlu0 %5364
  %5366 = vrot.lane.b32.xlu0 %v5338, 120
  %v5367 = vpop.permute.xlu0 %5366
  %5368 = vrot.lane.b32.xlu0 %v5339, 120
  %v5369 = vpop.permute.xlu0 %5368
  %5370 = vrot.lane.b32.xlu0 %v5340, 120
  %v5371 = vpop.permute.xlu0 %5370
  %5372 = vrot.lane.b32.xlu0 %v5341, 120
  %v5373 = vpop.permute.xlu0 %5372
  %5382 = vst.msk [vmem:[#allocation2 + $0x40] sm:$0xff] %vm3986, %v5359
  %5383 = vst.msk [vmem:[#allocation2 + $0x48] sm:$0xff] %vm3986, %v5361
  %5384 = vst.msk [vmem:[#allocation2 + $0x50] sm:$0xff] %vm3986, %v5363
  %5385 = vst.msk [vmem:[#allocation2 + $0x58] sm:$0xff] %vm3986, %v5365
  %5386 = vst.msk [vmem:[#allocation2 + $0x60] sm:$0xff] %vm3986, %v5367
  %5387 = vst.msk [vmem:[#allocation2 + $0x68] sm:$0xff] %vm3986, %v5369
  %5388 = vst.msk [vmem:[#allocation2 + $0x70] sm:$0xff] %vm3986, %v5371
  %5389 = vst.msk [vmem:[#allocation2 + $0x78] sm:$0xff] %vm3986, %v5373
  %5390 = vrot.lane.b32.xlu0 %v5334, 112
  %v5391 = vpop.permute.xlu0 %5390
  %5392 = vrot.lane.b32.xlu0 %v5335, 112
  %v5393 = vpop.permute.xlu0 %5392
  %5394 = vrot.lane.b32.xlu0 %v5336, 112
  %v5395 = vpop.permute.xlu0 %5394
  %5396 = vrot.lane.b32.xlu0 %v5337, 112
  %v5397 = vpop.permute.xlu0 %5396
  %5398 = vrot.lane.b32.xlu0 %v5338, 112
  %v5399 = vpop.permute.xlu0 %5398
  %5400 = vrot.lane.b32.xlu0 %v5339, 112
  %v5401 = vpop.permute.xlu0 %5400
  %5402 = vrot.lane.b32.xlu0 %v5340, 112
  %v5403 = vpop.permute.xlu0 %5402
  %5404 = vrot.lane.b32.xlu0 %v5341, 112
  %v5405 = vpop.permute.xlu0 %5404
  %5414 = vst.msk [vmem:[#allocation2 + $0x80] sm:$0xff] %vm3986, %v5391
  %5415 = vst.msk [vmem:[#allocation2 + $0x88] sm:$0xff] %vm3986, %v5393
  %5416 = vst.msk [vmem:[#allocation2 + $0x90] sm:$0xff] %vm3986, %v5395
  %5417 = vst.msk [vmem:[#allocation2 + $0x98] sm:$0xff] %vm3986, %v5397
  %5418 = vst.msk [vmem:[#allocation2 + $0xa0] sm:$0xff] %vm3986, %v5399
  %5419 = vst.msk [vmem:[#allocation2 + $0xa8] sm:$0xff] %vm3986, %v5401
  %5420 = vst.msk [vmem:[#allocation2 + $0xb0] sm:$0xff] %vm3986, %v5403
  %5421 = vst.msk [vmem:[#allocation2 + $0xb8] sm:$0xff] %vm3986, %v5405
  %5422 = vrot.lane.b32.xlu0 %v5334, 104
  %v5423 = vpop.permute.xlu0 %5422
  %5424 = vrot.lane.b32.xlu0 %v5335, 104
  %v5425 = vpop.permute.xlu0 %5424
  %5426 = vrot.lane.b32.xlu0 %v5336, 104
  %v5427 = vpop.permute.xlu0 %5426
  %5428 = vrot.lane.b32.xlu0 %v5337, 104
  %v5429 = vpop.permute.xlu0 %5428
  %5430 = vrot.lane.b32.xlu0 %v5338, 104
  %v5431 = vpop.permute.xlu0 %5430
  %5432 = vrot.lane.b32.xlu0 %v5339, 104
  %v5433 = vpop.permute.xlu0 %5432
  %5434 = vrot.lane.b32.xlu0 %v5340, 104
  %v5435 = vpop.permute.xlu0 %5434
  %5436 = vrot.lane.b32.xlu0 %v5341, 104
  %v5437 = vpop.permute.xlu0 %5436
  %5446 = vst.msk [vmem:[#allocation2 + $0xc0] sm:$0xff] %vm3986, %v5423
  %5447 = vst.msk [vmem:[#allocation2 + $0xc8] sm:$0xff] %vm3986, %v5425
  %5448 = vst.msk [vmem:[#allocation2 + $0xd0] sm:$0xff] %vm3986, %v5427
  %5449 = vst.msk [vmem:[#allocation2 + $0xd8] sm:$0xff] %vm3986, %v5429
  %5450 = vst.msk [vmem:[#allocation2 + $0xe0] sm:$0xff] %vm3986, %v5431
  %5451 = vst.msk [vmem:[#allocation2 + $0xe8] sm:$0xff] %vm3986, %v5433
  %5452 = vst.msk [vmem:[#allocation2 + $0xf0] sm:$0xff] %vm3986, %v5435
  %5453 = vst.msk [vmem:[#allocation2 + $0xf8] sm:$0xff] %vm3986, %v5437
  %5454 = vrot.lane.b32.xlu0 %v5334, 96
  %v5455 = vpop.permute.xlu0 %5454
  %5456 = vrot.lane.b32.xlu0 %v5335, 96
  %v5457 = vpop.permute.xlu0 %5456
  %5458 = vrot.lane.b32.xlu0 %v5336, 96
  %v5459 = vpop.permute.xlu0 %5458
  %5460 = vrot.lane.b32.xlu0 %v5337, 96
  %v5461 = vpop.permute.xlu0 %5460
  %5462 = vrot.lane.b32.xlu0 %v5338, 96
  %v5463 = vpop.permute.xlu0 %5462
  %5464 = vrot.lane.b32.xlu0 %v5339, 96
  %v5465 = vpop.permute.xlu0 %5464
  %5466 = vrot.lane.b32.xlu0 %v5340, 96
  %v5467 = vpop.permute.xlu0 %5466
  %5468 = vrot.lane.b32.xlu0 %v5341, 96
  %v5469 = vpop.permute.xlu0 %5468
  %5478 = vst.msk [vmem:[#allocation2 + $0x100] sm:$0xff] %vm3986, %v5455
  %5479 = vst.msk [vmem:[#allocation2 + $0x108] sm:$0xff] %vm3986, %v5457
  %5480 = vst.msk [vmem:[#allocation2 + $0x110] sm:$0xff] %vm3986, %v5459
  %5481 = vst.msk [vmem:[#allocation2 + $0x118] sm:$0xff] %vm3986, %v5461
  %5482 = vst.msk [vmem:[#allocation2 + $0x120] sm:$0xff] %vm3986, %v5463
  %5483 = vst.msk [vmem:[#allocation2 + $0x128] sm:$0xff] %vm3986, %v5465
  %5484 = vst.msk [vmem:[#allocation2 + $0x130] sm:$0xff] %vm3986, %v5467
  %5485 = vst.msk [vmem:[#allocation2 + $0x138] sm:$0xff] %vm3986, %v5469
  %5486 = vrot.lane.b32.xlu0 %v5334, 88
  %v5487 = vpop.permute.xlu0 %5486
  %5488 = vrot.lane.b32.xlu0 %v5335, 88
  %v5489 = vpop.permute.xlu0 %5488
  %5490 = vrot.lane.b32.xlu0 %v5336, 88
  %v5491 = vpop.permute.xlu0 %5490
  %5492 = vrot.lane.b32.xlu0 %v5337, 88
  %v5493 = vpop.permute.xlu0 %5492
  %5494 = vrot.lane.b32.xlu0 %v5338, 88
  %v5495 = vpop.permute.xlu0 %5494
  %5496 = vrot.lane.b32.xlu0 %v5339, 88
  %v5497 = vpop.permute.xlu0 %5496
  %5498 = vrot.lane.b32.xlu0 %v5340, 88
  %v5499 = vpop.permute.xlu0 %5498
  %5500 = vrot.lane.b32.xlu0 %v5341, 88
  %v5501 = vpop.permute.xlu0 %5500
  %5510 = vst.msk [vmem:[#allocation2 + $0x140] sm:$0xff] %vm3986, %v5487
  %5511 = vst.msk [vmem:[#allocation2 + $0x148] sm:$0xff] %vm3986, %v5489
  %5512 = vst.msk [vmem:[#allocation2 + $0x150] sm:$0xff] %vm3986, %v5491
  %5513 = vst.msk [vmem:[#allocation2 + $0x158] sm:$0xff] %vm3986, %v5493
  %5514 = vst.msk [vmem:[#allocation2 + $0x160] sm:$0xff] %vm3986, %v5495
  %5515 = vst.msk [vmem:[#allocation2 + $0x168] sm:$0xff] %vm3986, %v5497
  %5516 = vst.msk [vmem:[#allocation2 + $0x170] sm:$0xff] %vm3986, %v5499
  %5517 = vst.msk [vmem:[#allocation2 + $0x178] sm:$0xff] %vm3986, %v5501
  %5518 = vrot.lane.b32.xlu0 %v5334, 80
  %v5519 = vpop.permute.xlu0 %5518
  %5520 = vrot.lane.b32.xlu0 %v5335, 80
  %v5521 = vpop.permute.xlu0 %5520
  %5522 = vrot.lane.b32.xlu0 %v5336, 80
  %v5523 = vpop.permute.xlu0 %5522
  %5524 = vrot.lane.b32.xlu0 %v5337, 80
  %v5525 = vpop.permute.xlu0 %5524
  %5526 = vrot.lane.b32.xlu0 %v5338, 80
  %v5527 = vpop.permute.xlu0 %5526
  %5528 = vrot.lane.b32.xlu0 %v5339, 80
  %v5529 = vpop.permute.xlu0 %5528
  %5530 = vrot.lane.b32.xlu0 %v5340, 80
  %v5531 = vpop.permute.xlu0 %5530
  %5532 = vrot.lane.b32.xlu0 %v5341, 80
  %v5533 = vpop.permute.xlu0 %5532
  %5542 = vst.msk [vmem:[#allocation2 + $0x180] sm:$0xff] %vm3986, %v5519
  %5543 = vst.msk [vmem:[#allocation2 + $0x188] sm:$0xff] %vm3986, %v5521
  %5544 = vst.msk [vmem:[#allocation2 + $0x190] sm:$0xff] %vm3986, %v5523
  %5545 = vst.msk [vmem:[#allocation2 + $0x198] sm:$0xff] %vm3986, %v5525
  %5546 = vst.msk [vmem:[#allocation2 + $0x1a0] sm:$0xff] %vm3986, %v5527
  %5547 = vst.msk [vmem:[#allocation2 + $0x1a8] sm:$0xff] %vm3986, %v5529
  %5548 = vst.msk [vmem:[#allocation2 + $0x1b0] sm:$0xff] %vm3986, %v5531
  %5549 = vst.msk [vmem:[#allocation2 + $0x1b8] sm:$0xff] %vm3986, %v5533
  %5550 = vrot.lane.b32.xlu0 %v5334, 72
  %v5551 = vpop.permute.xlu0 %5550
  %5552 = vrot.lane.b32.xlu0 %v5335, 72
  %v5553 = vpop.permute.xlu0 %5552
  %5554 = vrot.lane.b32.xlu0 %v5336, 72
  %v5555 = vpop.permute.xlu0 %5554
  %5556 = vrot.lane.b32.xlu0 %v5337, 72
  %v5557 = vpop.permute.xlu0 %5556
  %5558 = vrot.lane.b32.xlu0 %v5338, 72
  %v5559 = vpop.permute.xlu0 %5558
  %5560 = vrot.lane.b32.xlu0 %v5339, 72
  %v5561 = vpop.permute.xlu0 %5560
  %5562 = vrot.lane.b32.xlu0 %v5340, 72
  %v5563 = vpop.permute.xlu0 %5562
  %5564 = vrot.lane.b32.xlu0 %v5341, 72
  %v5565 = vpop.permute.xlu0 %5564
  %5574 = vst.msk [vmem:[#allocation2 + $0x1c0] sm:$0xff] %vm3986, %v5551
  %5575 = vst.msk [vmem:[#allocation2 + $0x1c8] sm:$0xff] %vm3986, %v5553
  %5576 = vst.msk [vmem:[#allocation2 + $0x1d0] sm:$0xff] %vm3986, %v5555
  %5577 = vst.msk [vmem:[#allocation2 + $0x1d8] sm:$0xff] %vm3986, %v5557
  %5578 = vst.msk [vmem:[#allocation2 + $0x1e0] sm:$0xff] %vm3986, %v5559
  %5579 = vst.msk [vmem:[#allocation2 + $0x1e8] sm:$0xff] %vm3986, %v5561
  %5580 = vst.msk [vmem:[#allocation2 + $0x1f0] sm:$0xff] %vm3986, %v5563
  %5581 = vst.msk [vmem:[#allocation2 + $0x1f8] sm:$0xff] %vm3986, %v5565
  %5582 = vrot.lane.b32.xlu0 %v5334, 64
  %v5583 = vpop.permute.xlu0 %5582
  %5584 = vrot.lane.b32.xlu0 %v5335, 64
  %v5585 = vpop.permute.xlu0 %5584
  %5586 = vrot.lane.b32.xlu0 %v5336, 64
  %v5587 = vpop.permute.xlu0 %5586
  %5588 = vrot.lane.b32.xlu0 %v5337, 64
  %v5589 = vpop.permute.xlu0 %5588
  %5590 = vrot.lane.b32.xlu0 %v5338, 64
  %v5591 = vpop.permute.xlu0 %5590
  %5592 = vrot.lane.b32.xlu0 %v5339, 64
  %v5593 = vpop.permute.xlu0 %5592
  %5594 = vrot.lane.b32.xlu0 %v5340, 64
  %v5595 = vpop.permute.xlu0 %5594
  %5596 = vrot.lane.b32.xlu0 %v5341, 64
  %v5597 = vpop.permute.xlu0 %5596
  %5606 = vst.msk [vmem:[#allocation2 + $0x200] sm:$0xff] %vm3986, %v5583
  %5607 = vst.msk [vmem:[#allocation2 + $0x208] sm:$0xff] %vm3986, %v5585
  %5608 = vst.msk [vmem:[#allocation2 + $0x210] sm:$0xff] %vm3986, %v5587
  %5609 = vst.msk [vmem:[#allocation2 + $0x218] sm:$0xff] %vm3986, %v5589
  %5610 = vst.msk [vmem:[#allocation2 + $0x220] sm:$0xff] %vm3986, %v5591
  %5611 = vst.msk [vmem:[#allocation2 + $0x228] sm:$0xff] %vm3986, %v5593
  %5612 = vst.msk [vmem:[#allocation2 + $0x230] sm:$0xff] %vm3986, %v5595
  %5613 = vst.msk [vmem:[#allocation2 + $0x238] sm:$0xff] %vm3986, %v5597
  %v5614 = vld [vmem:[%s8] sm:$0xff]
  %v5615 = vld [vmem:[%s8 + $0x8] sm:$0xff]
  %v5616 = vld [vmem:[%s8 + $0x10] sm:$0xff]
  %v5617 = vld [vmem:[%s8 + $0x18] sm:$0xff]
  %v5618 = vld [vmem:[%s8 + $0x20] sm:$0xf]
  %v5619 = vld [vmem:[%s8 + $0x24] sm:$0xff]
  %v5620 = vld [vmem:[%s8 + $0x2c] sm:$0xff]
  %v5621 = vld [vmem:[%s8 + $0x34] sm:$0xff]
  %v5622 = vld [vmem:[%s8 + $0x3c] sm:$0xff]
  %v5623 = vld [vmem:[%s8 + $0x44] sm:$0xf]
  %v5624 = vld [vmem:[%s8 + $0x48] sm:$0xff]
  %v5625 = vld [vmem:[%s8 + $0x50] sm:$0xff]
  %v5626 = vld [vmem:[%s8 + $0x58] sm:$0xff]
  %v5627 = vld [vmem:[%s8 + $0x60] sm:$0xff]
  %v5628 = vld [vmem:[%s8 + $0x68] sm:$0xf]
  %v5629 = vld [vmem:[%s8 + $0x6c] sm:$0xff]
  %v5630 = vld [vmem:[%s8 + $0x74] sm:$0xff]
  %v5631 = vld [vmem:[%s8 + $0x7c] sm:$0xff]
  %v5632 = vld [vmem:[%s8 + $0x84] sm:$0xff]
  %v5633 = vld [vmem:[%s8 + $0x8c] sm:$0xf]
  %v5634 = vld [vmem:[%s8 + $0x90] sm:$0xff]
  %v5635 = vld [vmem:[%s8 + $0x98] sm:$0xff]
  %v5636 = vld [vmem:[%s8 + $0xa0] sm:$0xff]
  %v5637 = vld [vmem:[%s8 + $0xa8] sm:$0xff]
  %v5638 = vld [vmem:[%s8 + $0xb0] sm:$0xf]
  %v5639 = vld [vmem:[%s8 + $0xb4] sm:$0xff]
  %v5640 = vld [vmem:[%s8 + $0xbc] sm:$0xff]
  %v5641 = vld [vmem:[%s8 + $0xc4] sm:$0xff]
  %v5642 = vld [vmem:[%s8 + $0xcc] sm:$0xff]
  %v5643 = vld [vmem:[%s8 + $0xd4] sm:$0xf]
  %v5644 = vld [vmem:[%s8 + $0xd8] sm:$0xff]
  %v5645 = vld [vmem:[%s8 + $0xe0] sm:$0xff]
  %v5646 = vld [vmem:[%s8 + $0xe8] sm:$0xff]
  %v5647 = vld [vmem:[%s8 + $0xf0] sm:$0xff]
  %v5648 = vld [vmem:[%s8 + $0xf8] sm:$0xf]
  %v5649 = vld [vmem:[%s8 + $0xfc] sm:$0xff]
  %v5650 = vld [vmem:[%s8 + $0x104] sm:$0xff]
  %v5651 = vld [vmem:[%s8 + $0x10c] sm:$0xff]
  %v5652 = vld [vmem:[%s8 + $0x114] sm:$0xff]
  %v5653 = vld [vmem:[%s8 + $0x11c] sm:$0xf]
  %v5654 = vld [vmem:[%s8 + $0x120] sm:$0xff]
  %v5655 = vld [vmem:[%s8 + $0x128] sm:$0xff]
  %v5656 = vld [vmem:[%s8 + $0x130] sm:$0xff]
  %v5657 = vld [vmem:[%s8 + $0x138] sm:$0xff]
  %v5658 = vld [vmem:[%s8 + $0x140] sm:$0xf]
  %v5659 = vld [vmem:[%s8 + $0x144] sm:$0xff]
  %v5660 = vld [vmem:[%s8 + $0x14c] sm:$0xff]
  %v5661 = vld [vmem:[%s8 + $0x154] sm:$0xff]
  %v5662 = vld [vmem:[%s8 + $0x15c] sm:$0xff]
  %v5663 = vld [vmem:[%s8 + $0x164] sm:$0xf]
  %v5664 = vld [vmem:[%s8 + $0x168] sm:$0xff]
  %v5665 = vld [vmem:[%s8 + $0x170] sm:$0xff]
  %v5666 = vld [vmem:[%s8 + $0x178] sm:$0xff]
  %v5667 = vld [vmem:[%s8 + $0x180] sm:$0xff]
  %v5668 = vld [vmem:[%s8 + $0x188] sm:$0xf]
  %v5669 = vld [vmem:[%s8 + $0x18c] sm:$0xff]
  %v5670 = vld [vmem:[%s8 + $0x194] sm:$0xff]
  %v5671 = vld [vmem:[%s8 + $0x19c] sm:$0xff]
  %v5672 = vld [vmem:[%s8 + $0x1a4] sm:$0xff]
  %v5673 = vld [vmem:[%s8 + $0x1ac] sm:$0xf]
  %v5674 = vld [vmem:[%s8 + $0x1b0] sm:$0xff]
  %v5675 = vld [vmem:[%s8 + $0x1b8] sm:$0xff]
  %v5676 = vld [vmem:[%s8 + $0x1c0] sm:$0xff]
  %v5677 = vld [vmem:[%s8 + $0x1c8] sm:$0xff]
  %v5678 = vld [vmem:[%s8 + $0x1d0] sm:$0xf]
  %v5679 = vld [vmem:[%s8 + $0x1d4] sm:$0xff]
  %v5680 = vld [vmem:[%s8 + $0x1dc] sm:$0xff]
  %v5681 = vld [vmem:[%s8 + $0x1e4] sm:$0xff]
  %v5682 = vld [vmem:[%s8 + $0x1ec] sm:$0xff]
  %v5683 = vld [vmem:[%s8 + $0x1f4] sm:$0xf]
  %v5684 = vld [vmem:[%s8 + $0x1f8] sm:$0xff]
  %v5685 = vld [vmem:[%s8 + $0x200] sm:$0xff]
  %v5686 = vld [vmem:[%s8 + $0x208] sm:$0xff]
  %v5687 = vld [vmem:[%s8 + $0x210] sm:$0xff]
  %v5688 = vld [vmem:[%s8 + $0x218] sm:$0xf]
  %v5689 = vld [vmem:[%s8 + $0x21c] sm:$0xff]
  %v5690 = vld [vmem:[%s8 + $0x224] sm:$0xff]
  %v5691 = vld [vmem:[%s8 + $0x22c] sm:$0xff]
  %v5692 = vld [vmem:[%s8 + $0x234] sm:$0xff]
  %v5693 = vld [vmem:[%s8 + $0x23c] sm:$0xf]
  %v5694 = vld [vmem:[#allocation2] sm:$0xff]
  %v5695 = vld [vmem:[#allocation2 + $0x8] sm:$0xff]
  %v5696 = vld [vmem:[#allocation2 + $0x10] sm:$0xff]
  %v5697 = vld [vmem:[#allocation2 + $0x18] sm:$0xff]
  %v5698 = vld [vmem:[#allocation2 + $0x20] sm:$0xff]
  %v5699 = vld [vmem:[#allocation2 + $0x28] sm:$0xff]
  %v5700 = vld [vmem:[#allocation2 + $0x30] sm:$0xff]
  %v5701 = vld [vmem:[#allocation2 + $0x38] sm:$0xff]
  %v5702 = vld [vmem:[#allocation2 + $0x40] sm:$0xff]
  %v5703 = vld [vmem:[#allocation2 + $0x48] sm:$0xff]
  %v5704 = vld [vmem:[#allocation2 + $0x50] sm:$0xff]
  %v5705 = vld [vmem:[#allocation2 + $0x58] sm:$0xff]
  %v5706 = vld [vmem:[#allocation2 + $0x60] sm:$0xff]
  %v5707 = vld [vmem:[#allocation2 + $0x68] sm:$0xff]
  %v5708 = vld [vmem:[#allocation2 + $0x70] sm:$0xff]
  %v5709 = vld [vmem:[#allocation2 + $0x78] sm:$0xff]
  %v5710 = vld [vmem:[#allocation2 + $0x80] sm:$0xff]
  %v5711 = vld [vmem:[#allocation2 + $0x88] sm:$0xff]
  %v5712 = vld [vmem:[#allocation2 + $0x90] sm:$0xff]
  %v5713 = vld [vmem:[#allocation2 + $0x98] sm:$0xff]
  %v5714 = vld [vmem:[#allocation2 + $0xa0] sm:$0xff]
  %v5715 = vld [vmem:[#allocation2 + $0xa8] sm:$0xff]
  %v5716 = vld [vmem:[#allocation2 + $0xb0] sm:$0xff]
  %v5717 = vld [vmem:[#allocation2 + $0xb8] sm:$0xff]
  %v5718 = vld [vmem:[#allocation2 + $0xc0] sm:$0xff]
  %v5719 = vld [vmem:[#allocation2 + $0xc8] sm:$0xff]
  %v5720 = vld [vmem:[#allocation2 + $0xd0] sm:$0xff]
  %v5721 = vld [vmem:[#allocation2 + $0xd8] sm:$0xff]
  %v5722 = vld [vmem:[#allocation2 + $0xe0] sm:$0xff]
  %v5723 = vld [vmem:[#allocation2 + $0xe8] sm:$0xff]
  %v5724 = vld [vmem:[#allocation2 + $0xf0] sm:$0xff]
  %v5725 = vld [vmem:[#allocation2 + $0xf8] sm:$0xff]
  %v5726 = vld [vmem:[#allocation2 + $0x100] sm:$0xff]
  %v5727 = vld [vmem:[#allocation2 + $0x108] sm:$0xff]
  %v5728 = vld [vmem:[#allocation2 + $0x110] sm:$0xff]
  %v5729 = vld [vmem:[#allocation2 + $0x118] sm:$0xff]
  %v5730 = vld [vmem:[#allocation2 + $0x120] sm:$0xff]
  %v5731 = vld [vmem:[#allocation2 + $0x128] sm:$0xff]
  %v5732 = vld [vmem:[#allocation2 + $0x130] sm:$0xff]
  %v5733 = vld [vmem:[#allocation2 + $0x138] sm:$0xff]
  %v5734 = vld [vmem:[#allocation2 + $0x140] sm:$0xff]
  %v5735 = vld [vmem:[#allocation2 + $0x148] sm:$0xff]
  %v5736 = vld [vmem:[#allocation2 + $0x150] sm:$0xff]
  %v5737 = vld [vmem:[#allocation2 + $0x158] sm:$0xff]
  %v5738 = vld [vmem:[#allocation2 + $0x160] sm:$0xff]
  %v5739 = vld [vmem:[#allocation2 + $0x168] sm:$0xff]
  %v5740 = vld [vmem:[#allocation2 + $0x170] sm:$0xff]
  %v5741 = vld [vmem:[#allocation2 + $0x178] sm:$0xff]
  %v5742 = vld [vmem:[#allocation2 + $0x180] sm:$0xff]
  %v5743 = vld [vmem:[#allocation2 + $0x188] sm:$0xff]
  %v5744 = vld [vmem:[#allocation2 + $0x190] sm:$0xff]
  %v5745 = vld [vmem:[#allocation2 + $0x198] sm:$0xff]
  %v5746 = vld [vmem:[#allocation2 + $0x1a0] sm:$0xff]
  %v5747 = vld [vmem:[#allocation2 + $0x1a8] sm:$0xff]
  %v5748 = vld [vmem:[#allocation2 + $0x1b0] sm:$0xff]
  %v5749 = vld [vmem:[#allocation2 + $0x1b8] sm:$0xff]
  %v5750 = vld [vmem:[#allocation2 + $0x1c0] sm:$0xff]
  %v5751 = vld [vmem:[#allocation2 + $0x1c8] sm:$0xff]
  %v5752 = vld [vmem:[#allocation2 + $0x1d0] sm:$0xff]
  %v5753 = vld [vmem:[#allocation2 + $0x1d8] sm:$0xff]
  %v5754 = vld [vmem:[#allocation2 + $0x1e0] sm:$0xff]
  %v5755 = vld [vmem:[#allocation2 + $0x1e8] sm:$0xff]
  %v5756 = vld [vmem:[#allocation2 + $0x1f0] sm:$0xff]
  %v5757 = vld [vmem:[#allocation2 + $0x1f8] sm:$0xff]
  %v5758 = vld [vmem:[#allocation2 + $0x200] sm:$0xff]
  %v5759 = vld [vmem:[#allocation2 + $0x208] sm:$0xff]
  %v5760 = vld [vmem:[#allocation2 + $0x210] sm:$0xff]
  %v5761 = vld [vmem:[#allocation2 + $0x218] sm:$0xff]
  %v5762 = vld [vmem:[#allocation2 + $0x220] sm:$0xff]
  %v5763 = vld [vmem:[#allocation2 + $0x228] sm:$0xff]
  %v5764 = vld [vmem:[#allocation2 + $0x230] sm:$0xff]
  %v5765 = vld [vmem:[#allocation2 + $0x238] sm:$0xff]
  %v5766 = vld [vmem:[%s12] sm:$0xff]
  %v5767 = vld [vmem:[%s12 + $0x8] sm:$0xff]
  %v5768 = vld [vmem:[%s12 + $0x10] sm:$0xff]
  %v5769 = vld [vmem:[%s12 + $0x18] sm:$0xff]
  %v5770 = vld [vmem:[%s12 + $0x20] sm:$0xff]
  %v5771 = vld [vmem:[%s12 + $0x28] sm:$0xff]
  %v5772 = vld [vmem:[%s12 + $0x30] sm:$0xff]
  %v5773 = vld [vmem:[%s12 + $0x38] sm:$0xff]
  %v5774 = vld [vmem:[%s12 + $0x40] sm:$0xff]
  %v5775 = vld [vmem:[%s12 + $0x48] sm:$0xff]
  %v5776 = vld [vmem:[%s12 + $0x50] sm:$0xff]
  %v5777 = vld [vmem:[%s12 + $0x58] sm:$0xff]
  %v5778 = vld [vmem:[%s12 + $0x60] sm:$0xff]
  %v5779 = vld [vmem:[%s12 + $0x68] sm:$0xff]
  %v5780 = vld [vmem:[%s12 + $0x70] sm:$0xff]
  %v5781 = vld [vmem:[%s12 + $0x78] sm:$0xff]
  %5783 = vset.pattern.permute.xlu0 7
  %5784 = vperm.xlu0 %5783, %v5766
  %v5785 = vpop.permute.xlu0 %5784
  %5788 = vset.pattern.permute.xlu0 7
  %5789 = vperm.xlu0 %5788, %v5767
  %v5790 = vpop.permute.xlu0 %5789
  %5793 = vset.pattern.permute.xlu0 7
  %5794 = vperm.xlu0 %5793, %v5768
  %v5795 = vpop.permute.xlu0 %5794
  %5798 = vset.pattern.permute.xlu0 7
  %5799 = vperm.xlu0 %5798, %v5769
  %v5800 = vpop.permute.xlu0 %5799
  %5803 = vset.pattern.permute.xlu0 7
  %5804 = vperm.xlu0 %5803, %v5770
  %v5805 = vpop.permute.xlu0 %5804
  %5808 = vset.pattern.permute.xlu0 7
  %5809 = vperm.xlu0 %5808, %v5771
  %v5810 = vpop.permute.xlu0 %5809
  %5813 = vset.pattern.permute.xlu0 7
  %5814 = vperm.xlu0 %5813, %v5772
  %v5815 = vpop.permute.xlu0 %5814
  %5818 = vset.pattern.permute.xlu0 7
  %5819 = vperm.xlu0 %5818, %v5773
  %v5820 = vpop.permute.xlu0 %5819
  %5823 = vset.pattern.permute.xlu0 7
  %5824 = vperm.xlu0 %5823, %v5774
  %v5825 = vpop.permute.xlu0 %5824
  %5828 = vset.pattern.permute.xlu0 7
  %5829 = vperm.xlu0 %5828, %v5775
  %v5830 = vpop.permute.xlu0 %5829
  %5833 = vset.pattern.permute.xlu0 7
  %5834 = vperm.xlu0 %5833, %v5776
  %v5835 = vpop.permute.xlu0 %5834
  %5838 = vset.pattern.permute.xlu0 7
  %5839 = vperm.xlu0 %5838, %v5777
  %v5840 = vpop.permute.xlu0 %5839
  %5843 = vset.pattern.permute.xlu0 7
  %5844 = vperm.xlu0 %5843, %v5778
  %v5845 = vpop.permute.xlu0 %5844
  %5848 = vset.pattern.permute.xlu0 7
  %5849 = vperm.xlu0 %5848, %v5779
  %v5850 = vpop.permute.xlu0 %5849
  %5853 = vset.pattern.permute.xlu0 7
  %5854 = vperm.xlu0 %5853, %v5780
  %v5855 = vpop.permute.xlu0 %5854
  %5858 = vset.pattern.permute.xlu0 7
  %5859 = vperm.xlu0 %5858, %v5781
  %v5860 = vpop.permute.xlu0 %5859
  %v5942 = vunpack.c.l.b16 %v5614
  %v5943 = vunpack.c.h.b16 %v5614
  %v5944 = vunpack.c.l.b16 %v5615
  %v5945 = vunpack.c.h.b16 %v5615
  %v5946 = vunpack.c.l.b16 %v5616
  %v5947 = vunpack.c.h.b16 %v5616
  %v5948 = vunpack.c.l.b16 %v5617
  %v5949 = vunpack.c.h.b16 %v5617
  %v5950 = vunpack.c.l.b16 %v5618
  %v5951 = vunpack.c.l.b16 %v5619
  %v5952 = vunpack.c.h.b16 %v5619
  %v5953 = vunpack.c.l.b16 %v5620
  %v5954 = vunpack.c.h.b16 %v5620
  %v5955 = vunpack.c.l.b16 %v5621
  %v5956 = vunpack.c.h.b16 %v5621
  %v5957 = vunpack.c.l.b16 %v5622
  %v5958 = vunpack.c.h.b16 %v5622
  %v5959 = vunpack.c.l.b16 %v5623
  %v5960 = vunpack.c.l.b16 %v5624
  %v5961 = vunpack.c.h.b16 %v5624
  %v5962 = vunpack.c.l.b16 %v5625
  %v5963 = vunpack.c.h.b16 %v5625
  %v5964 = vunpack.c.l.b16 %v5626
  %v5965 = vunpack.c.h.b16 %v5626
  %v5966 = vunpack.c.l.b16 %v5627
  %v5967 = vunpack.c.h.b16 %v5627
  %v5968 = vunpack.c.l.b16 %v5628
  %v5969 = vunpack.c.l.b16 %v5629
  %v5970 = vunpack.c.h.b16 %v5629
  %v5971 = vunpack.c.l.b16 %v5630
  %v5972 = vunpack.c.h.b16 %v5630
  %v5973 = vunpack.c.l.b16 %v5631
  %v5974 = vunpack.c.h.b16 %v5631
  %v5975 = vunpack.c.l.b16 %v5632
  %v5976 = vunpack.c.h.b16 %v5632
  %v5977 = vunpack.c.l.b16 %v5633
  %v5978 = vunpack.c.l.b16 %v5634
  %v5979 = vunpack.c.h.b16 %v5634
  %v5980 = vunpack.c.l.b16 %v5635
  %v5981 = vunpack.c.h.b16 %v5635
  %v5982 = vunpack.c.l.b16 %v5636
  %v5983 = vunpack.c.h.b16 %v5636
  %v5984 = vunpack.c.l.b16 %v5637
  %v5985 = vunpack.c.h.b16 %v5637
  %v5986 = vunpack.c.l.b16 %v5638
  %v5987 = vunpack.c.l.b16 %v5639
  %v5988 = vunpack.c.h.b16 %v5639
  %v5989 = vunpack.c.l.b16 %v5640
  %v5990 = vunpack.c.h.b16 %v5640
  %v5991 = vunpack.c.l.b16 %v5641
  %v5992 = vunpack.c.h.b16 %v5641
  %v5993 = vunpack.c.l.b16 %v5642
  %v5994 = vunpack.c.h.b16 %v5642
  %v5995 = vunpack.c.l.b16 %v5643
  %v5996 = vunpack.c.l.b16 %v5644
  %v5997 = vunpack.c.h.b16 %v5644
  %v5998 = vunpack.c.l.b16 %v5645
  %v5999 = vunpack.c.h.b16 %v5645
  %v6000 = vunpack.c.l.b16 %v5646
  %v6001 = vunpack.c.h.b16 %v5646
  %v6002 = vunpack.c.l.b16 %v5647
  %v6003 = vunpack.c.h.b16 %v5647
  %v6004 = vunpack.c.l.b16 %v5648
  %v6005 = vunpack.c.l.b16 %v5649
  %v6006 = vunpack.c.h.b16 %v5649
  %v6007 = vunpack.c.l.b16 %v5650
  %v6008 = vunpack.c.h.b16 %v5650
  %v6009 = vunpack.c.l.b16 %v5651
  %v6010 = vunpack.c.h.b16 %v5651
  %v6011 = vunpack.c.l.b16 %v5652
  %v6012 = vunpack.c.h.b16 %v5652
  %v6013 = vunpack.c.l.b16 %v5653
  %v6014 = vunpack.c.l.b16 %v5654
  %v6015 = vunpack.c.h.b16 %v5654
  %v6016 = vunpack.c.l.b16 %v5655
  %v6017 = vunpack.c.h.b16 %v5655
  %v6018 = vunpack.c.l.b16 %v5656
  %v6019 = vunpack.c.h.b16 %v5656
  %v6020 = vunpack.c.l.b16 %v5657
  %v6021 = vunpack.c.h.b16 %v5657
  %v6022 = vunpack.c.l.b16 %v5658
  %v6023 = vunpack.c.l.b16 %v5659
  %v6024 = vunpack.c.h.b16 %v5659
  %v6025 = vunpack.c.l.b16 %v5660
  %v6026 = vunpack.c.h.b16 %v5660
  %v6027 = vunpack.c.l.b16 %v5661
  %v6028 = vunpack.c.h.b16 %v5661
  %v6029 = vunpack.c.l.b16 %v5662
  %v6030 = vunpack.c.h.b16 %v5662
  %v6031 = vunpack.c.l.b16 %v5663
  %v6032 = vunpack.c.l.b16 %v5664
  %v6033 = vunpack.c.h.b16 %v5664
  %v6034 = vunpack.c.l.b16 %v5665
  %v6035 = vunpack.c.h.b16 %v5665
  %v6036 = vunpack.c.l.b16 %v5666
  %v6037 = vunpack.c.h.b16 %v5666
  %v6038 = vunpack.c.l.b16 %v5667
  %v6039 = vunpack.c.h.b16 %v5667
  %v6040 = vunpack.c.l.b16 %v5668
  %v6041 = vunpack.c.l.b16 %v5669
  %v6042 = vunpack.c.h.b16 %v5669
  %v6043 = vunpack.c.l.b16 %v5670
  %v6044 = vunpack.c.h.b16 %v5670
  %v6045 = vunpack.c.l.b16 %v5671
  %v6046 = vunpack.c.h.b16 %v5671
  %v6047 = vunpack.c.l.b16 %v5672
  %v6048 = vunpack.c.h.b16 %v5672
  %v6049 = vunpack.c.l.b16 %v5673
  %v6050 = vunpack.c.l.b16 %v5674
  %v6051 = vunpack.c.h.b16 %v5674
  %v6052 = vunpack.c.l.b16 %v5675
  %v6053 = vunpack.c.h.b16 %v5675
  %v6054 = vunpack.c.l.b16 %v5676
  %v6055 = vunpack.c.h.b16 %v5676
  %v6056 = vunpack.c.l.b16 %v5677
  %v6057 = vunpack.c.h.b16 %v5677
  %v6058 = vunpack.c.l.b16 %v5678
  %v6059 = vunpack.c.l.b16 %v5679
  %v6060 = vunpack.c.h.b16 %v5679
  %v6061 = vunpack.c.l.b16 %v5680
  %v6062 = vunpack.c.h.b16 %v5680
  %v6063 = vunpack.c.l.b16 %v5681
  %v6064 = vunpack.c.h.b16 %v5681
  %v6065 = vunpack.c.l.b16 %v5682
  %v6066 = vunpack.c.h.b16 %v5682
  %v6067 = vunpack.c.l.b16 %v5683
  %v6068 = vunpack.c.l.b16 %v5684
  %v6069 = vunpack.c.h.b16 %v5684
  %v6070 = vunpack.c.l.b16 %v5685
  %v6071 = vunpack.c.h.b16 %v5685
  %v6072 = vunpack.c.l.b16 %v5686
  %v6073 = vunpack.c.h.b16 %v5686
  %v6074 = vunpack.c.l.b16 %v5687
  %v6075 = vunpack.c.h.b16 %v5687
  %v6076 = vunpack.c.l.b16 %v5688
  %v6077 = vunpack.c.l.b16 %v5689
  %v6078 = vunpack.c.h.b16 %v5689
  %v6079 = vunpack.c.l.b16 %v5690
  %v6080 = vunpack.c.h.b16 %v5690
  %v6081 = vunpack.c.l.b16 %v5691
  %v6082 = vunpack.c.h.b16 %v5691
  %v6083 = vunpack.c.l.b16 %v5692
  %v6084 = vunpack.c.h.b16 %v5692
  %v6085 = vunpack.c.l.b16 %v5693
  %v6086 = vpack.c.b16 %v5951, %v5942
  %v6087 = vpack.c.b16 %v5952, %v5943
  %v6088 = vpack.c.b16 %v5953, %v5944
  %v6089 = vpack.c.b16 %v5954, %v5945
  %v6090 = vpack.c.b16 %v5955, %v5946
  %v6091 = vpack.c.b16 %v5956, %v5947
  %v6092 = vpack.c.b16 %v5957, %v5948
  %v6093 = vpack.c.b16 %v5958, %v5949
  %v6094 = vpack.c.b16 %v5959, %v5950
  %v6095 = vpack.c.b16 %v5969, %v5960
  %v6096 = vpack.c.b16 %v5970, %v5961
  %v6097 = vpack.c.b16 %v5971, %v5962
  %v6098 = vpack.c.b16 %v5972, %v5963
  %v6099 = vpack.c.b16 %v5973, %v5964
  %v6100 = vpack.c.b16 %v5974, %v5965
  %v6101 = vpack.c.b16 %v5975, %v5966
  %v6102 = vpack.c.b16 %v5976, %v5967
  %v6103 = vpack.c.b16 %v5977, %v5968
  %v6104 = vpack.c.b16 %v5987, %v5978
  %v6105 = vpack.c.b16 %v5988, %v5979
  %v6106 = vpack.c.b16 %v5989, %v5980
  %v6107 = vpack.c.b16 %v5990, %v5981
  %v6108 = vpack.c.b16 %v5991, %v5982
  %v6109 = vpack.c.b16 %v5992, %v5983
  %v6110 = vpack.c.b16 %v5993, %v5984
  %v6111 = vpack.c.b16 %v5994, %v5985
  %v6112 = vpack.c.b16 %v5995, %v5986
  %v6113 = vpack.c.b16 %v6005, %v5996
  %v6114 = vpack.c.b16 %v6006, %v5997
  %v6115 = vpack.c.b16 %v6007, %v5998
  %v6116 = vpack.c.b16 %v6008, %v5999
  %v6117 = vpack.c.b16 %v6009, %v6000
  %v6118 = vpack.c.b16 %v6010, %v6001
  %v6119 = vpack.c.b16 %v6011, %v6002
  %v6120 = vpack.c.b16 %v6012, %v6003
  %v6121 = vpack.c.b16 %v6013, %v6004
  %v6122 = vpack.c.b16 %v6023, %v6014
  %v6123 = vpack.c.b16 %v6024, %v6015
  %v6124 = vpack.c.b16 %v6025, %v6016
  %v6125 = vpack.c.b16 %v6026, %v6017
  %v6126 = vpack.c.b16 %v6027, %v6018
  %v6127 = vpack.c.b16 %v6028, %v6019
  %v6128 = vpack.c.b16 %v6029, %v6020
  %v6129 = vpack.c.b16 %v6030, %v6021
  %v6130 = vpack.c.b16 %v6031, %v6022
  %v6131 = vpack.c.b16 %v6041, %v6032
  %v6132 = vpack.c.b16 %v6042, %v6033
  %v6133 = vpack.c.b16 %v6043, %v6034
  %v6134 = vpack.c.b16 %v6044, %v6035
  %v6135 = vpack.c.b16 %v6045, %v6036
  %v6136 = vpack.c.b16 %v6046, %v6037
  %v6137 = vpack.c.b16 %v6047, %v6038
  %v6138 = vpack.c.b16 %v6048, %v6039
  %v6139 = vpack.c.b16 %v6049, %v6040
  %v6140 = vpack.c.b16 %v6059, %v6050
  %v6141 = vpack.c.b16 %v6060, %v6051
  %v6142 = vpack.c.b16 %v6061, %v6052
  %v6143 = vpack.c.b16 %v6062, %v6053
  %v6144 = vpack.c.b16 %v6063, %v6054
  %v6145 = vpack.c.b16 %v6064, %v6055
  %v6146 = vpack.c.b16 %v6065, %v6056
  %v6147 = vpack.c.b16 %v6066, %v6057
  %v6148 = vpack.c.b16 %v6067, %v6058
  %v6149 = vpack.c.b16 %v6077, %v6068
  %v6150 = vpack.c.b16 %v6078, %v6069
  %v6151 = vpack.c.b16 %v6079, %v6070
  %v6152 = vpack.c.b16 %v6080, %v6071
  %v6153 = vpack.c.b16 %v6081, %v6072
  %v6154 = vpack.c.b16 %v6082, %v6073
  %v6155 = vpack.c.b16 %v6083, %v6074
  %v6156 = vpack.c.b16 %v6084, %v6075
  %v6157 = vpack.c.b16 %v6085, %v6076
  %6230 = vmatprep.subr.bf16.mxu0 0
  %6231 = vmatpush1.bf16.msra.mxu0 %v5694
  %6232 = vmatprep.subr.bf16.mxu0 0
  %6233 = vmatpush1.bf16.msra.mxu0 %v5695
  %6234 = vmatprep.subr.bf16.mxu0 0
  %6235 = vmatpush1.bf16.msra.mxu0 %v5696
  %6236 = vmatprep.subr.bf16.mxu0 0
  %6237 = vmatpush1.bf16.msra.mxu0 %v5697
  %6238 = vmatprep.subr.bf16.mxu0 0
  %6239 = vmatpush1.bf16.msra.mxu0 %v5698
  %6240 = vmatprep.subr.bf16.mxu0 0
  %6241 = vmatpush1.bf16.msra.mxu0 %v5699
  %6242 = vmatprep.subr.bf16.mxu0 0
  %6243 = vmatpush1.bf16.msra.mxu0 %v5700
  %6244 = vmatprep.subr.bf16.mxu0 0
  %6245 = vmatpush1.bf16.msra.mxu0 %v5701
  %6246 = vmatprep.subr.bf16.mxu0 0
  %6247 = vmatpush1.bf16.msra.mxu0 %v5702
  %6248 = vmatprep.subr.bf16.mxu0 0
  %6249 = vmatpush1.bf16.msra.mxu0 %v5703
  %6250 = vmatprep.subr.bf16.mxu0 0
  %6251 = vmatpush1.bf16.msra.mxu0 %v5704
  %6252 = vmatprep.subr.bf16.mxu0 0
  %6253 = vmatpush1.bf16.msra.mxu0 %v5705
  %6254 = vmatprep.subr.bf16.mxu0 0
  %6255 = vmatpush1.bf16.msra.mxu0 %v5706
  %6256 = vmatprep.subr.bf16.mxu0 0
  %6257 = vmatpush1.bf16.msra.mxu0 %v5707
  %6258 = vmatprep.subr.bf16.mxu0 0
  %6259 = vmatpush1.bf16.msra.mxu0 %v5708
  %6260 = vmatprep.subr.bf16.mxu0 0
  %6261 = vmatpush1.bf16.msra.mxu0 %v5709
  %6262 = vmatprep.mubr.bf16.mxu0 %v6087
  %6263 = vmatmul.mubr.bf16.gmra.mrb[0].mxu0 %v6086
  %v6264 = vpop.f32.mrb[0].mxu0
  %v6265 = vadd.f32 %v5785, %v6264
  %v6266 = vpop.f32.mrb[0].mxu0
  %v6267 = vpop.f32.mrb[0].mxu0
  %v6268 = vadd.f32 %v5790, %v6267
  %v6269 = vpop.f32.mrb[0].mxu0
  %6270 = vmatprep.mubr.bf16.mxu0 %v6096
  %6271 = vmatmul.mubr.bf16.gmra.mrb[0].mxu0 %v6095
  %v6272 = vpop.f32.mrb[0].mxu0
  %v6273 = vadd.f32 %v5795, %v6272
  %v6274 = vpop.f32.mrb[0].mxu0
  %v6275 = vpop.f32.mrb[0].mxu0
  %v6276 = vadd.f32 %v5800, %v6275
  %v6277 = vpop.f32.mrb[0].mxu0
  %6278 = vmatprep.mubr.bf16.mxu0 %v6105
  %6279 = vmatmul.mubr.bf16.gmra.mrb[0].mxu0 %v6104
  %v6280 = vpop.f32.mrb[0].mxu0
  %v6281 = vadd.f32 %v5805, %v6280
  %v6282 = vpop.f32.mrb[0].mxu0
  %v6283 = vpop.f32.mrb[0].mxu0
  %v6284 = vadd.f32 %v5810, %v6283
  %v6285 = vpop.f32.mrb[0].mxu0
  %6286 = vmatprep.mubr.bf16.mxu0 %v6114
  %6287 = vmatmul.mubr.bf16.gmra.mrb[0].mxu0 %v6113
  %v6288 = vpop.f32.mrb[0].mxu0
  %v6289 = vadd.f32 %v5815, %v6288
  %v6290 = vpop.f32.mrb[0].mxu0
  %v6291 = vpop.f32.mrb[0].mxu0
  %v6292 = vadd.f32 %v5820, %v6291
  %v6293 = vpop.f32.mrb[0].mxu0
  %6294 = vmatprep.mubr.bf16.mxu0 %v6123
  %6295 = vmatmul.mubr.bf16.gmra.mrb[0].mxu0 %v6122
  %v6296 = vpop.f32.mrb[0].mxu0
  %v6297 = vadd.f32 %v5825, %v6296
  %v6298 = vpop.f32.mrb[0].mxu0
  %v6299 = vpop.f32.mrb[0].mxu0
  %v6300 = vadd.f32 %v5830, %v6299
  %v6301 = vpop.f32.mrb[0].mxu0
  %6302 = vmatprep.mubr.bf16.mxu0 %v6132
  %6303 = vmatmul.mubr.bf16.gmra.mrb[0].mxu0 %v6131
  %v6304 = vpop.f32.mrb[0].mxu0
  %v6305 = vadd.f32 %v5835, %v6304
  %v6306 = vpop.f32.mrb[0].mxu0
  %v6307 = vpop.f32.mrb[0].mxu0
  %v6308 = vadd.f32 %v5840, %v6307
  %v6309 = vpop.f32.mrb[0].mxu0
  %6310 = vmatprep.mubr.bf16.mxu0 %v6141
  %6311 = vmatmul.mubr.bf16.gmra.mrb[0].mxu0 %v6140
  %v6312 = vpop.f32.mrb[0].mxu0
  %v6313 = vadd.f32 %v5845, %v6312
  %v6314 = vpop.f32.mrb[0].mxu0
  %v6315 = vpop.f32.mrb[0].mxu0
  %v6316 = vadd.f32 %v5850, %v6315
  %v6317 = vpop.f32.mrb[0].mxu0
  %6318 = vmatprep.mubr.bf16.mxu0 %v6150
  %6319 = vmatmul.mubr.bf16.gmra.mrb[0].mxu0 %v6149
  %v6320 = vpop.f32.mrb[0].mxu0
  %v6321 = vadd.f32 %v5855, %v6320
  %v6322 = vpop.f32.mrb[0].mxu0
  %v6323 = vpop.f32.mrb[0].mxu0
  %v6324 = vadd.f32 %v5860, %v6323
  %v6325 = vpop.f32.mrb[0].mxu0
  %6326 = vdwg.mxu0
  %6327 = vmatprep.subr.bf16.mxu0 0
  %6328 = vmatpush1.bf16.msra.mxu0 %v5710
  %6329 = vmatprep.subr.bf16.mxu0 0
  %6330 = vmatpush1.bf16.msra.mxu0 %v5711
  %6331 = vmatprep.subr.bf16.mxu0 0
  %6332 = vmatpush1.bf16.msra.mxu0 %v5712
  %6333 = vmatprep.subr.bf16.mxu0 0
  %6334 = vmatpush1.bf16.msra.mxu0 %v5713
  %6335 = vmatprep.subr.bf16.mxu0 0
  %6336 = vmatpush1.bf16.msra.mxu0 %v5714
  %6337 = vmatprep.subr.bf16.mxu0 0
  %6338 = vmatpush1.bf16.msra.mxu0 %v5715
  %6339 = vmatprep.subr.bf16.mxu0 0
  %6340 = vmatpush1.bf16.msra.mxu0 %v5716
  %6341 = vmatprep.subr.bf16.mxu0 0
  %6342 = vmatpush1.bf16.msra.mxu0 %v5717
  %6343 = vmatprep.subr.bf16.mxu0 0
  %6344 = vmatpush1.bf16.msra.mxu0 %v5718
  %6345 = vmatprep.subr.bf16.mxu0 0
  %6346 = vmatpush1.bf16.msra.mxu0 %v5719
  %6347 = vmatprep.subr.bf16.mxu0 0
  %6348 = vmatpush1.bf16.msra.mxu0 %v5720
  %6349 = vmatprep.subr.bf16.mxu0 0
  %6350 = vmatpush1.bf16.msra.mxu0 %v5721
  %6351 = vmatprep.subr.bf16.mxu0 0
  %6352 = vmatpush1.bf16.msra.mxu0 %v5722
  %6353 = vmatprep.subr.bf16.mxu0 0
  %6354 = vmatpush1.bf16.msra.mxu0 %v5723
  %6355 = vmatprep.subr.bf16.mxu0 0
  %6356 = vmatpush1.bf16.msra.mxu0 %v5724
  %6357 = vmatprep.subr.bf16.mxu0 0
  %6358 = vmatpush1.bf16.msra.mxu0 %v5725
  %6359 = vmatprep.mubr.bf16.mxu0 %v6089
  %6360 = vmatmul.mubr.bf16.gmra.mrb[0].mxu0 %v6088
  %v6361 = vpop.f32.mrb[0].mxu0
  %v6362 = vadd.f32 %v6265, %v6361
  %v6363 = vpop.f32.mrb[0].mxu0
  %v6364 = vpop.f32.mrb[0].mxu0
  %v6365 = vadd.f32 %v6268, %v6364
  %v6366 = vpop.f32.mrb[0].mxu0
  %6367 = vmatprep.mubr.bf16.mxu0 %v6098
  %6368 = vmatmul.mubr.bf16.gmra.mrb[0].mxu0 %v6097
  %v6369 = vpop.f32.mrb[0].mxu0
  %v6370 = vadd.f32 %v6273, %v6369
  %v6371 = vpop.f32.mrb[0].mxu0
  %v6372 = vpop.f32.mrb[0].mxu0
  %v6373 = vadd.f32 %v6276, %v6372
  %v6374 = vpop.f32.mrb[0].mxu0
  %6375 = vmatprep.mubr.bf16.mxu0 %v6107
  %6376 = vmatmul.mubr.bf16.gmra.mrb[0].mxu0 %v6106
  %v6377 = vpop.f32.mrb[0].mxu0
  %v6378 = vadd.f32 %v6281, %v6377
  %v6379 = vpop.f32.mrb[0].mxu0
  %v6380 = vpop.f32.mrb[0].mxu0
  %v6381 = vadd.f32 %v6284, %v6380
  %v6382 = vpop.f32.mrb[0].mxu0
  %6383 = vmatprep.mubr.bf16.mxu0 %v6116
  %6384 = vmatmul.mubr.bf16.gmra.mrb[0].mxu0 %v6115
  %v6385 = vpop.f32.mrb[0].mxu0
  %v6386 = vadd.f32 %v6289, %v6385
  %v6387 = vpop.f32.mrb[0].mxu0
  %v6388 = vpop.f32.mrb[0].mxu0
  %v6389 = vadd.f32 %v6292, %v6388
  %v6390 = vpop.f32.mrb[0].mxu0
  %6391 = vmatprep.mubr.bf16.mxu0 %v6125
  %6392 = vmatmul.mubr.bf16.gmra.mrb[0].mxu0 %v6124
  %v6393 = vpop.f32.mrb[0].mxu0
  %v6394 = vadd.f32 %v6297, %v6393
  %v6395 = vpop.f32.mrb[0].mxu0
  %v6396 = vpop.f32.mrb[0].mxu0
  %v6397 = vadd.f32 %v6300, %v6396
  %v6398 = vpop.f32.mrb[0].mxu0
  %6399 = vmatprep.mubr.bf16.mxu0 %v6134
  %6400 = vmatmul.mubr.bf16.gmra.mrb[0].mxu0 %v6133
  %v6401 = vpop.f32.mrb[0].mxu0
  %v6402 = vadd.f32 %v6305, %v6401
  %v6403 = vpop.f32.mrb[0].mxu0
  %v6404 = vpop.f32.mrb[0].mxu0
  %v6405 = vadd.f32 %v6308, %v6404
  %v6406 = vpop.f32.mrb[0].mxu0
  %6407 = vmatprep.mubr.bf16.mxu0 %v6143
  %6408 = vmatmul.mubr.bf16.gmra.mrb[0].mxu0 %v6142
  %v6409 = vpop.f32.mrb[0].mxu0
  %v6410 = vadd.f32 %v6313, %v6409
  %v6411 = vpop.f32.mrb[0].mxu0
  %v6412 = vpop.f32.mrb[0].mxu0
  %v6413 = vadd.f32 %v6316, %v6412
  %v6414 = vpop.f32.mrb[0].mxu0
  %6415 = vmatprep.mubr.bf16.mxu0 %v6152
  %6416 = vmatmul.mubr.bf16.gmra.mrb[0].mxu0 %v6151
  %v6417 = vpop.f32.mrb[0].mxu0
  %v6418 = vadd.f32 %v6321, %v6417
  %v6419 = vpop.f32.mrb[0].mxu0
  %v6420 = vpop.f32.mrb[0].mxu0
  %v6421 = vadd.f32 %v6324, %v6420
  %v6422 = vpop.f32.mrb[0].mxu0
  %6423 = vdwg.mxu0
  %6424 = vmatprep.subr.bf16.mxu0 0
  %6425 = vmatpush1.bf16.msra.mxu0 %v5726
  %6426 = vmatprep.subr.bf16.mxu0 0
  %6427 = vmatpush1.bf16.msra.mxu0 %v5727
  %6428 = vmatprep.subr.bf16.mxu0 0
  %6429 = vmatpush1.bf16.msra.mxu0 %v5728
  %6430 = vmatprep.subr.bf16.mxu0 0
  %6431 = vmatpush1.bf16.msra.mxu0 %v5729
  %6432 = vmatprep.subr.bf16.mxu0 0
  %6433 = vmatpush1.bf16.msra.mxu0 %v5730
  %6434 = vmatprep.subr.bf16.mxu0 0
  %6435 = vmatpush1.bf16.msra.mxu0 %v5731
  %6436 = vmatprep.subr.bf16.mxu0 0
  %6437 = vmatpush1.bf16.msra.mxu0 %v5732
  %6438 = vmatprep.subr.bf16.mxu0 0
  %6439 = vmatpush1.bf16.msra.mxu0 %v5733
  %6440 = vmatprep.subr.bf16.mxu0 0
  %6441 = vmatpush1.bf16.msra.mxu0 %v5734
  %6442 = vmatprep.subr.bf16.mxu0 0
  %6443 = vmatpush1.bf16.msra.mxu0 %v5735
  %6444 = vmatprep.subr.bf16.mxu0 0
  %6445 = vmatpush1.bf16.msra.mxu0 %v5736
  %6446 = vmatprep.subr.bf16.mxu0 0
  %6447 = vmatpush1.bf16.msra.mxu0 %v5737
  %6448 = vmatprep.subr.bf16.mxu0 0
  %6449 = vmatpush1.bf16.msra.mxu0 %v5738
  %6450 = vmatprep.subr.bf16.mxu0 0
  %6451 = vmatpush1.bf16.msra.mxu0 %v5739
  %6452 = vmatprep.subr.bf16.mxu0 0
  %6453 = vmatpush1.bf16.msra.mxu0 %v5740
  %6454 = vmatprep.subr.bf16.mxu0 0
  %6455 = vmatpush1.bf16.msra.mxu0 %v5741
  %6456 = vmatprep.mubr.bf16.mxu0 %v6091
  %6457 = vmatmul.mubr.bf16.gmra.mrb[0].mxu0 %v6090
  %v6458 = vpop.f32.mrb[0].mxu0
  %v6459 = vadd.f32 %v6362, %v6458
  %v6460 = vpop.f32.mrb[0].mxu0
  %v6461 = vpop.f32.mrb[0].mxu0
  %v6462 = vadd.f32 %v6365, %v6461
  %v6463 = vpop.f32.mrb[0].mxu0
  %6464 = vmatprep.mubr.bf16.mxu0 %v6100
  %6465 = vmatmul.mubr.bf16.gmra.mrb[0].mxu0 %v6099
  %v6466 = vpop.f32.mrb[0].mxu0
  %v6467 = vadd.f32 %v6370, %v6466
  %v6468 = vpop.f32.mrb[0].mxu0
  %v6469 = vpop.f32.mrb[0].mxu0
  %v6470 = vadd.f32 %v6373, %v6469
  %v6471 = vpop.f32.mrb[0].mxu0
  %6472 = vmatprep.mubr.bf16.mxu0 %v6109
  %6473 = vmatmul.mubr.bf16.gmra.mrb[0].mxu0 %v6108
  %v6474 = vpop.f32.mrb[0].mxu0
  %v6475 = vadd.f32 %v6378, %v6474
  %v6476 = vpop.f32.mrb[0].mxu0
  %v6477 = vpop.f32.mrb[0].mxu0
  %v6478 = vadd.f32 %v6381, %v6477
  %v6479 = vpop.f32.mrb[0].mxu0
  %6480 = vmatprep.mubr.bf16.mxu0 %v6118
  %6481 = vmatmul.mubr.bf16.gmra.mrb[0].mxu0 %v6117
  %v6482 = vpop.f32.mrb[0].mxu0
  %v6483 = vadd.f32 %v6386, %v6482
  %v6484 = vpop.f32.mrb[0].mxu0
  %v6485 = vpop.f32.mrb[0].mxu0
  %v6486 = vadd.f32 %v6389, %v6485
  %v6487 = vpop.f32.mrb[0].mxu0
  %6488 = vmatprep.mubr.bf16.mxu0 %v6127
  %6489 = vmatmul.mubr.bf16.gmra.mrb[0].mxu0 %v6126
  %v6490 = vpop.f32.mrb[0].mxu0
  %v6491 = vadd.f32 %v6394, %v6490
  %v6492 = vpop.f32.mrb[0].mxu0
  %v6493 = vpop.f32.mrb[0].mxu0
  %v6494 = vadd.f32 %v6397, %v6493
  %v6495 = vpop.f32.mrb[0].mxu0
  %6496 = vmatprep.mubr.bf16.mxu0 %v6136
  %6497 = vmatmul.mubr.bf16.gmra.mrb[0].mxu0 %v6135
  %v6498 = vpop.f32.mrb[0].mxu0
  %v6499 = vadd.f32 %v6402, %v6498
  %v6500 = vpop.f32.mrb[0].mxu0
  %v6501 = vpop.f32.mrb[0].mxu0
  %v6502 = vadd.f32 %v6405, %v6501
  %v6503 = vpop.f32.mrb[0].mxu0
  %6504 = vmatprep.mubr.bf16.mxu0 %v6145
  %6505 = vmatmul.mubr.bf16.gmra.mrb[0].mxu0 %v6144
  %v6506 = vpop.f32.mrb[0].mxu0
  %v6507 = vadd.f32 %v6410, %v6506
  %v6508 = vpop.f32.mrb[0].mxu0
  %v6509 = vpop.f32.mrb[0].mxu0
  %v6510 = vadd.f32 %v6413, %v6509
  %v6511 = vpop.f32.mrb[0].mxu0
  %6512 = vmatprep.mubr.bf16.mxu0 %v6154
  %6513 = vmatmul.mubr.bf16.gmra.mrb[0].mxu0 %v6153
  %v6514 = vpop.f32.mrb[0].mxu0
  %v6515 = vadd.f32 %v6418, %v6514
  %v6516 = vpop.f32.mrb[0].mxu0
  %v6517 = vpop.f32.mrb[0].mxu0
  %v6518 = vadd.f32 %v6421, %v6517
  %v6519 = vpop.f32.mrb[0].mxu0
  %6520 = vdwg.mxu0
  %6521 = vmatprep.subr.bf16.mxu0 0
  %6522 = vmatpush1.bf16.msra.mxu0 %v5742
  %6523 = vmatprep.subr.bf16.mxu0 0
  %6524 = vmatpush1.bf16.msra.mxu0 %v5743
  %6525 = vmatprep.subr.bf16.mxu0 0
  %6526 = vmatpush1.bf16.msra.mxu0 %v5744
  %6527 = vmatprep.subr.bf16.mxu0 0
  %6528 = vmatpush1.bf16.msra.mxu0 %v5745
  %6529 = vmatprep.subr.bf16.mxu0 0
  %6530 = vmatpush1.bf16.msra.mxu0 %v5746
  %6531 = vmatprep.subr.bf16.mxu0 0
  %6532 = vmatpush1.bf16.msra.mxu0 %v5747
  %6533 = vmatprep.subr.bf16.mxu0 0
  %6534 = vmatpush1.bf16.msra.mxu0 %v5748
  %6535 = vmatprep.subr.bf16.mxu0 0
  %6536 = vmatpush1.bf16.msra.mxu0 %v5749
  %6537 = vmatprep.subr.bf16.mxu0 0
  %6538 = vmatpush1.bf16.msra.mxu0 %v5750
  %6539 = vmatprep.subr.bf16.mxu0 0
  %6540 = vmatpush1.bf16.msra.mxu0 %v5751
  %6541 = vmatprep.subr.bf16.mxu0 0
  %6542 = vmatpush1.bf16.msra.mxu0 %v5752
  %6543 = vmatprep.subr.bf16.mxu0 0
  %6544 = vmatpush1.bf16.msra.mxu0 %v5753
  %6545 = vmatprep.subr.bf16.mxu0 0
  %6546 = vmatpush1.bf16.msra.mxu0 %v5754
  %6547 = vmatprep.subr.bf16.mxu0 0
  %6548 = vmatpush1.bf16.msra.mxu0 %v5755
  %6549 = vmatprep.subr.bf16.mxu0 0
  %6550 = vmatpush1.bf16.msra.mxu0 %v5756
  %6551 = vmatprep.subr.bf16.mxu0 0
  %6552 = vmatpush1.bf16.msra.mxu0 %v5757
  %6553 = vmatprep.mubr.bf16.mxu0 %v6093
  %6554 = vmatmul.mubr.bf16.gmra.mrb[0].mxu0 %v6092
  %v6555 = vpop.f32.mrb[0].mxu0
  %v6556 = vadd.f32 %v6459, %v6555
  %v6557 = vpop.f32.mrb[0].mxu0
  %v6558 = vpop.f32.mrb[0].mxu0
  %v6559 = vadd.f32 %v6462, %v6558
  %v6560 = vpop.f32.mrb[0].mxu0
  %6561 = vmatprep.mubr.bf16.mxu0 %v6102
  %6562 = vmatmul.mubr.bf16.gmra.mrb[0].mxu0 %v6101
  %v6563 = vpop.f32.mrb[0].mxu0
  %v6564 = vadd.f32 %v6467, %v6563
  %v6565 = vpop.f32.mrb[0].mxu0
  %v6566 = vpop.f32.mrb[0].mxu0
  %v6567 = vadd.f32 %v6470, %v6566
  %v6568 = vpop.f32.mrb[0].mxu0
  %6569 = vmatprep.mubr.bf16.mxu0 %v6111
  %6570 = vmatmul.mubr.bf16.gmra.mrb[0].mxu0 %v6110
  %v6571 = vpop.f32.mrb[0].mxu0
  %v6572 = vadd.f32 %v6475, %v6571
  %v6573 = vpop.f32.mrb[0].mxu0
  %v6574 = vpop.f32.mrb[0].mxu0
  %v6575 = vadd.f32 %v6478, %v6574
  %v6576 = vpop.f32.mrb[0].mxu0
  %6577 = vmatprep.mubr.bf16.mxu0 %v6120
  %6578 = vmatmul.mubr.bf16.gmra.mrb[0].mxu0 %v6119
  %v6579 = vpop.f32.mrb[0].mxu0
  %v6580 = vadd.f32 %v6483, %v6579
  %v6581 = vpop.f32.mrb[0].mxu0
  %v6582 = vpop.f32.mrb[0].mxu0
  %v6583 = vadd.f32 %v6486, %v6582
  %v6584 = vpop.f32.mrb[0].mxu0
  %6585 = vmatprep.mubr.bf16.mxu0 %v6129
  %6586 = vmatmul.mubr.bf16.gmra.mrb[0].mxu0 %v6128
  %v6587 = vpop.f32.mrb[0].mxu0
  %v6588 = vadd.f32 %v6491, %v6587
  %v6589 = vpop.f32.mrb[0].mxu0
  %v6590 = vpop.f32.mrb[0].mxu0
  %v6591 = vadd.f32 %v6494, %v6590
  %v6592 = vpop.f32.mrb[0].mxu0
  %6593 = vmatprep.mubr.bf16.mxu0 %v6138
  %6594 = vmatmul.mubr.bf16.gmra.mrb[0].mxu0 %v6137
  %v6595 = vpop.f32.mrb[0].mxu0
  %v6596 = vadd.f32 %v6499, %v6595
  %v6597 = vpop.f32.mrb[0].mxu0
  %v6598 = vpop.f32.mrb[0].mxu0
  %v6599 = vadd.f32 %v6502, %v6598
  %v6600 = vpop.f32.mrb[0].mxu0
  %6601 = vmatprep.mubr.bf16.mxu0 %v6147
  %6602 = vmatmul.mubr.bf16.gmra.mrb[0].mxu0 %v6146
  %v6603 = vpop.f32.mrb[0].mxu0
  %v6604 = vadd.f32 %v6507, %v6603
  %v6605 = vpop.f32.mrb[0].mxu0
  %v6606 = vpop.f32.mrb[0].mxu0
  %v6607 = vadd.f32 %v6510, %v6606
  %v6608 = vpop.f32.mrb[0].mxu0
  %6609 = vmatprep.mubr.bf16.mxu0 %v6156
  %6610 = vmatmul.mubr.bf16.gmra.mrb[0].mxu0 %v6155
  %v6611 = vpop.f32.mrb[0].mxu0
  %v6612 = vadd.f32 %v6515, %v6611
  %v6613 = vpop.f32.mrb[0].mxu0
  %v6614 = vpop.f32.mrb[0].mxu0
  %v6615 = vadd.f32 %v6518, %v6614
  %v6616 = vpop.f32.mrb[0].mxu0
  %6617 = vdwg.mxu0
  %6618 = vmatprep.subr.bf16.mxu0 0
  %6619 = vmatpush1.bf16.msra.mxu0 %v5758
  %6620 = vmatprep.subr.bf16.mxu0 0
  %6621 = vmatpush1.bf16.msra.mxu0 %v5759
  %6622 = vmatprep.subr.bf16.mxu0 0
  %6623 = vmatpush1.bf16.msra.mxu0 %v5760
  %6624 = vmatprep.subr.bf16.mxu0 0
  %6625 = vmatpush1.bf16.msra.mxu0 %v5761
  %6626 = vmatprep.subr.bf16.mxu0 0
  %6627 = vmatpush1.bf16.msra.mxu0 %v5762
  %6628 = vmatprep.subr.bf16.mxu0 0
  %6629 = vmatpush1.bf16.msra.mxu0 %v5763
  %6630 = vmatprep.subr.bf16.mxu0 0
  %6631 = vmatpush1.bf16.msra.mxu0 %v5764
  %6632 = vmatprep.subr.bf16.mxu0 0
  %6633 = vmatpush1.bf16.msra.mxu0 %v5765
  %6634 = vmatprep.subr.bf16.mxu0 0
  %6635 = vmatpush1.bf16.msra.mxu0 0
  %6636 = vmatprep.subr.bf16.mxu0 0
  %6637 = vmatpush1.bf16.msra.mxu0 0
  %6638 = vmatprep.subr.bf16.mxu0 0
  %6639 = vmatpush1.bf16.msra.mxu0 0
  %6640 = vmatprep.subr.bf16.mxu0 0
  %6641 = vmatpush1.bf16.msra.mxu0 0
  %6642 = vmatprep.subr.bf16.mxu0 0
  %6643 = vmatpush1.bf16.msra.mxu0 0
  %6644 = vmatprep.subr.bf16.mxu0 0
  %6645 = vmatpush1.bf16.msra.mxu0 0
  %6646 = vmatprep.subr.bf16.mxu0 0
  %6647 = vmatpush1.bf16.msra.mxu0 0
  %6648 = vmatprep.subr.bf16.mxu0 0
  %6649 = vmatpush1.bf16.msra.mxu0 0
  %6650 = vmatprep.mubr.bf16.mxu0 0
  %6651 = vmatmul.mubr.bf16.gmra.mrb[0].mxu0 %v6094
  %v6652 = vpop.f32.mrb[0].mxu0
  %v6653 = vadd.f32 %v6556, %v6652
  %v6654 = vpop.f32.mrb[0].mxu0
  %v6655 = vpop.f32.mrb[0].mxu0
  %v6656 = vadd.f32 %v6559, %v6655
  %v6657 = vpop.f32.mrb[0].mxu0
  %6658 = vmatprep.mubr.bf16.mxu0 0
  %6659 = vmatmul.mubr.bf16.gmra.mrb[0].mxu0 %v6103
  %v6660 = vpop.f32.mrb[0].mxu0
  %v6661 = vadd.f32 %v6564, %v6660
  %v6662 = vpop.f32.mrb[0].mxu0
  %v6663 = vpop.f32.mrb[0].mxu0
  %v6664 = vadd.f32 %v6567, %v6663
  %v6665 = vpop.f32.mrb[0].mxu0
  %6666 = vmatprep.mubr.bf16.mxu0 0
  %6667 = vmatmul.mubr.bf16.gmra.mrb[0].mxu0 %v6112
  %v6668 = vpop.f32.mrb[0].mxu0
  %v6669 = vadd.f32 %v6572, %v6668
  %v6670 = vpop.f32.mrb[0].mxu0
  %v6671 = vpop.f32.mrb[0].mxu0
  %v6672 = vadd.f32 %v6575, %v6671
  %v6673 = vpop.f32.mrb[0].mxu0
  %6674 = vmatprep.mubr.bf16.mxu0 0
  %6675 = vmatmul.mubr.bf16.gmra.mrb[0].mxu0 %v6121
  %v6676 = vpop.f32.mrb[0].mxu0
  %v6677 = vadd.f32 %v6580, %v6676
  %v6678 = vpop.f32.mrb[0].mxu0
  %v6679 = vpop.f32.mrb[0].mxu0
  %v6680 = vadd.f32 %v6583, %v6679
  %v6681 = vpop.f32.mrb[0].mxu0
  %6682 = vmatprep.mubr.bf16.mxu0 0
  %6683 = vmatmul.mubr.bf16.gmra.mrb[0].mxu0 %v6130
  %v6684 = vpop.f32.mrb[0].mxu0
  %v6685 = vadd.f32 %v6588, %v6684
  %v6686 = vpop.f32.mrb[0].mxu0
  %v6687 = vpop.f32.mrb[0].mxu0
  %v6688 = vadd.f32 %v6591, %v6687
  %v6689 = vpop.f32.mrb[0].mxu0
  %6690 = vmatprep.mubr.bf16.mxu0 0
  %6691 = vmatmul.mubr.bf16.gmra.mrb[0].mxu0 %v6139
  %v6692 = vpop.f32.mrb[0].mxu0
  %v6693 = vadd.f32 %v6596, %v6692
  %v6694 = vpop.f32.mrb[0].mxu0
  %v6695 = vpop.f32.mrb[0].mxu0
  %v6696 = vadd.f32 %v6599, %v6695
  %v6697 = vpop.f32.mrb[0].mxu0
  %6698 = vmatprep.mubr.bf16.mxu0 0
  %6699 = vmatmul.mubr.bf16.gmra.mrb[0].mxu0 %v6148
  %v6700 = vpop.f32.mrb[0].mxu0
  %v6701 = vadd.f32 %v6604, %v6700
  %v6702 = vpop.f32.mrb[0].mxu0
  %v6703 = vpop.f32.mrb[0].mxu0
  %v6704 = vadd.f32 %v6607, %v6703
  %v6705 = vpop.f32.mrb[0].mxu0
  %6706 = vmatprep.mubr.bf16.mxu0 0
  %6707 = vmatmul.mubr.bf16.gmra.mrb[0].mxu0 %v6157
  %v6708 = vpop.f32.mrb[0].mxu0
  %v6709 = vadd.f32 %v6612, %v6708
  %v6710 = vpop.f32.mrb[0].mxu0
  %v6711 = vpop.f32.mrb[0].mxu0
  %v6712 = vadd.f32 %v6615, %v6711
  %v6713 = vpop.f32.mrb[0].mxu0
  %6714 = vdwg.mxu0
  %v6715 = vadd.f32 %v6653, %v5146
  %v6716 = vadd.f32 %v6656, %v5149
  %v6717 = vadd.f32 %v6661, %v5154
  %v6718 = vadd.f32 %v6664, %v5157
  %v6719 = vadd.f32 %v6669, %v5162
  %v6720 = vadd.f32 %v6672, %v5165
  %v6721 = vadd.f32 %v6677, %v5170
  %v6722 = vadd.f32 %v6680, %v5173
  %v6723 = vadd.f32 %v6685, %v5178
  %v6724 = vadd.f32 %v6688, %v5181
  %v6725 = vadd.f32 %v6693, %v5186
  %v6726 = vadd.f32 %v6696, %v5189
  %v6727 = vadd.f32 %v6701, %v5194
  %v6728 = vadd.f32 %v6704, %v5197
  %v6729 = vadd.f32 %v6709, %v5202
  %v6730 = vadd.f32 %v6712, %v5205
  %v6731 = vmax.f32 %v6715, 0.0
  %v6732 = vmax.f32 %v6716, 0.0
  %v6733 = vmax.f32 %v6717, 0.0
  %v6734 = vmax.f32 %v6718, 0.0
  %v6735 = vmax.f32 %v6719, 0.0
  %v6736 = vmax.f32 %v6720, 0.0
  %v6737 = vmax.f32 %v6721, 0.0
  %v6738 = vmax.f32 %v6722, 0.0
  %v6739 = vmax.f32 %v6723, 0.0
  %v6740 = vmax.f32 %v6724, 0.0
  %v6741 = vmax.f32 %v6725, 0.0
  %v6742 = vmax.f32 %v6726, 0.0
  %v6743 = vmax.f32 %v6727, 0.0
  %v6744 = vmax.f32 %v6728, 0.0
  %v6745 = vmax.f32 %v6729, 0.0
  %v6746 = vmax.f32 %v6730, 0.0
  %v6747 = vpack.c.bf16 %v6732, %v6731
  %v6748 = vpack.c.bf16 %v6734, %v6733
  %v6749 = vpack.c.bf16 %v6736, %v6735
  %v6750 = vpack.c.bf16 %v6738, %v6737
  %v6751 = vpack.c.bf16 %v6740, %v6739
  %v6752 = vpack.c.bf16 %v6742, %v6741
  %v6753 = vpack.c.bf16 %v6744, %v6743
  %v6754 = vpack.c.bf16 %v6746, %v6745
  %v6755 = vld [vmem:[%s17] sm:$0xf]
  %v6757 = vsel %vm3986, %v6747, 0
  %v6760 = vsel %vm3986, %v6748, 0
  %v6763 = vsel %vm3986, %v6749, 0
  %v6766 = vsel %vm3986, %v6750, 0
  %v6769 = vsel %vm3986, %v6751, 0
  %v6772 = vsel %vm3986, %v6752, 0
  %v6775 = vsel %vm3986, %v6753, 0
  %v6778 = vsel %vm3986, %v6754, 0
  %v6781 = vsel %vm5233, %v6755, 0
  %6783 = vmatprep.subr.bf16.mxu0 0
  %6784 = vmatpush1.bf16.msra.mxu0 %v6781
  %6785 = vmatprep.subr.bf16.mxu0 0
  %6786 = vmatpush1.bf16.msra.mxu0 0
  %6787 = vmatprep.subr.bf16.mxu0 0
  %6788 = vmatpush1.bf16.msra.mxu0 0
  %6789 = vmatprep.subr.bf16.mxu0 0
  %6790 = vmatpush1.bf16.msra.mxu0 0
  %6791 = vmatprep.subr.bf16.mxu0 0
  %6792 = vmatpush1.bf16.msra.mxu0 0
  %6793 = vmatprep.subr.bf16.mxu0 0
  %6794 = vmatpush1.bf16.msra.mxu0 0
  %6795 = vmatprep.subr.bf16.mxu0 0
  %6796 = vmatpush1.bf16.msra.mxu0 0
  %6797 = vmatprep.subr.bf16.mxu0 0
  %6798 = vmatpush1.bf16.msra.mxu0 0
  %6799 = vmatprep.subr.bf16.mxu0 0
  %6800 = vmatpush1.bf16.msra.mxu0 0
  %6801 = vmatprep.subr.bf16.mxu0 0
  %6802 = vmatpush1.bf16.msra.mxu0 0
  %6803 = vmatprep.subr.bf16.mxu0 0
  %6804 = vmatpush1.bf16.msra.mxu0 0
  %6805 = vmatprep.subr.bf16.mxu0 0
  %6806 = vmatpush1.bf16.msra.mxu0 0
  %6807 = vmatprep.subr.bf16.mxu0 0
  %6808 = vmatpush1.bf16.msra.mxu0 0
  %6809 = vmatprep.subr.bf16.mxu0 0
  %6810 = vmatpush1.bf16.msra.mxu0 0
  %6811 = vmatprep.subr.bf16.mxu0 0
  %6812 = vmatpush1.bf16.msra.mxu0 0
  %6813 = vmatprep.subr.bf16.mxu0 0
  %6814 = vmatpush1.bf16.msra.mxu0 0
  %6815 = vmatprep.mubr.bf16.mxu0 0
  %6816 = vmatmul.mubr.bf16.gmra.mrb[0].mxu0 %v6757
  %v6817 = vpop.f32.mrb[0].mxu0
  %v6818 = vadd.f32 0.0, %v6817
  %v6819 = vpop.f32.mrb[0].mxu0
  %v6820 = vpop.f32.mrb[0].mxu0
  %v6821 = vadd.f32 0.0, %v6820
  %v6822 = vpop.f32.mrb[0].mxu0
  %6823 = vmatprep.mubr.bf16.mxu0 0
  %6824 = vmatmul.mubr.bf16.gmra.mrb[0].mxu0 %v6760
  %v6825 = vpop.f32.mrb[0].mxu0
  %v6826 = vadd.f32 0.0, %v6825
  %v6827 = vpop.f32.mrb[0].mxu0
  %v6828 = vpop.f32.mrb[0].mxu0
  %v6829 = vadd.f32 0.0, %v6828
  %v6830 = vpop.f32.mrb[0].mxu0
  %6831 = vmatprep.mubr.bf16.mxu0 0
  %6832 = vmatmul.mubr.bf16.gmra.mrb[0].mxu0 %v6763
  %v6833 = vpop.f32.mrb[0].mxu0
  %v6834 = vadd.f32 0.0, %v6833
  %v6835 = vpop.f32.mrb[0].mxu0
  %v6836 = vpop.f32.mrb[0].mxu0
  %v6837 = vadd.f32 0.0, %v6836
  %v6838 = vpop.f32.mrb[0].mxu0
  %6839 = vmatprep.mubr.bf16.mxu0 0
  %6840 = vmatmul.mubr.bf16.gmra.mrb[0].mxu0 %v6766
  %v6841 = vpop.f32.mrb[0].mxu0
  %v6842 = vadd.f32 0.0, %v6841
  %v6843 = vpop.f32.mrb[0].mxu0
  %v6844 = vpop.f32.mrb[0].mxu0
  %v6845 = vadd.f32 0.0, %v6844
  %v6846 = vpop.f32.mrb[0].mxu0
  %6847 = vmatprep.mubr.bf16.mxu0 0
  %6848 = vmatmul.mubr.bf16.gmra.mrb[0].mxu0 %v6769
  %v6849 = vpop.f32.mrb[0].mxu0
  %v6850 = vadd.f32 0.0, %v6849
  %v6851 = vpop.f32.mrb[0].mxu0
  %v6852 = vpop.f32.mrb[0].mxu0
  %v6853 = vadd.f32 0.0, %v6852
  %v6854 = vpop.f32.mrb[0].mxu0
  %6855 = vmatprep.mubr.bf16.mxu0 0
  %6856 = vmatmul.mubr.bf16.gmra.mrb[0].mxu0 %v6772
  %v6857 = vpop.f32.mrb[0].mxu0
  %v6858 = vadd.f32 0.0, %v6857
  %v6859 = vpop.f32.mrb[0].mxu0
  %v6860 = vpop.f32.mrb[0].mxu0
  %v6861 = vadd.f32 0.0, %v6860
  %v6862 = vpop.f32.mrb[0].mxu0
  %6863 = vmatprep.mubr.bf16.mxu0 0
  %6864 = vmatmul.mubr.bf16.gmra.mrb[0].mxu0 %v6775
  %v6865 = vpop.f32.mrb[0].mxu0
  %v6866 = vadd.f32 0.0, %v6865
  %v6867 = vpop.f32.mrb[0].mxu0
  %v6868 = vpop.f32.mrb[0].mxu0
  %v6869 = vadd.f32 0.0, %v6868
  %v6870 = vpop.f32.mrb[0].mxu0
  %6871 = vmatprep.mubr.bf16.mxu0 0
  %6872 = vmatmul.mubr.bf16.gmra.mrb[0].mxu0 %v6778
  %v6873 = vpop.f32.mrb[0].mxu0
  %v6874 = vadd.f32 0.0, %v6873
  %v6875 = vpop.f32.mrb[0].mxu0
  %v6876 = vpop.f32.mrb[0].mxu0
  %v6877 = vadd.f32 0.0, %v6876
  %v6878 = vpop.f32.mrb[0].mxu0
  %6879 = vdwg.mxu0
  %v6880 = vpack.c.bf16 %v6821, %v6818
  %v6881 = vpack.c.bf16 %v6829, %v6826
  %v6882 = vpack.c.bf16 %v6837, %v6834
  %v6883 = vpack.c.bf16 %v6845, %v6842
  %v6884 = vpack.c.bf16 %v6853, %v6850
  %v6885 = vpack.c.bf16 %v6861, %v6858
  %v6886 = vpack.c.bf16 %v6869, %v6866
  %v6887 = vpack.c.bf16 %v6877, %v6874
  %6888 = vst.msk [vmem:[#allocation2] sm:$0xff] %vm3986, %v6880
  %6889 = vst.msk [vmem:[#allocation2 + $0x8] sm:$0xff] %vm3986, %v6881
  %6890 = vst.msk [vmem:[#allocation2 + $0x10] sm:$0xff] %vm3986, %v6882
  %6891 = vst.msk [vmem:[#allocation2 + $0x18] sm:$0xff] %vm3986, %v6883
  %6892 = vst.msk [vmem:[#allocation2 + $0x20] sm:$0xff] %vm3986, %v6884
  %6893 = vst.msk [vmem:[#allocation2 + $0x28] sm:$0xff] %vm3986, %v6885
  %6894 = vst.msk [vmem:[#allocation2 + $0x30] sm:$0xff] %vm3986, %v6886
  %6895 = vst.msk [vmem:[#allocation2 + $0x38] sm:$0xff] %vm3986, %v6887
  %6904 = vrot.lane.b32.xlu0 %v6880, 120
  %v6905 = vpop.permute.xlu0 %6904
  %6906 = vrot.lane.b32.xlu0 %v6881, 120
  %v6907 = vpop.permute.xlu0 %6906
  %6908 = vrot.lane.b32.xlu0 %v6882, 120
  %v6909 = vpop.permute.xlu0 %6908
  %6910 = vrot.lane.b32.xlu0 %v6883, 120
  %v6911 = vpop.permute.xlu0 %6910
  %6912 = vrot.lane.b32.xlu0 %v6884, 120
  %v6913 = vpop.permute.xlu0 %6912
  %6914 = vrot.lane.b32.xlu0 %v6885, 120
  %v6915 = vpop.permute.xlu0 %6914
  %6916 = vrot.lane.b32.xlu0 %v6886, 120
  %v6917 = vpop.permute.xlu0 %6916
  %6918 = vrot.lane.b32.xlu0 %v6887, 120
  %v6919 = vpop.permute.xlu0 %6918
  %6928 = vst.msk [vmem:[#allocation2 + $0x40] sm:$0xff] %vm3986, %v6905
  %6929 = vst.msk [vmem:[#allocation2 + $0x48] sm:$0xff] %vm3986, %v6907
  %6930 = vst.msk [vmem:[#allocation2 + $0x50] sm:$0xff] %vm3986, %v6909
  %6931 = vst.msk [vmem:[#allocation2 + $0x58] sm:$0xff] %vm3986, %v6911
  %6932 = vst.msk [vmem:[#allocation2 + $0x60] sm:$0xff] %vm3986, %v6913
  %6933 = vst.msk [vmem:[#allocation2 + $0x68] sm:$0xff] %vm3986, %v6915
  %6934 = vst.msk [vmem:[#allocation2 + $0x70] sm:$0xff] %vm3986, %v6917
  %6935 = vst.msk [vmem:[#allocation2 + $0x78] sm:$0xff] %vm3986, %v6919
  %6936 = vrot.lane.b32.xlu0 %v6880, 112
  %v6937 = vpop.permute.xlu0 %6936
  %6938 = vrot.lane.b32.xlu0 %v6881, 112
  %v6939 = vpop.permute.xlu0 %6938
  %6940 = vrot.lane.b32.xlu0 %v6882, 112
  %v6941 = vpop.permute.xlu0 %6940
  %6942 = vrot.lane.b32.xlu0 %v6883, 112
  %v6943 = vpop.permute.xlu0 %6942
  %6944 = vrot.lane.b32.xlu0 %v6884, 112
  %v6945 = vpop.permute.xlu0 %6944
  %6946 = vrot.lane.b32.xlu0 %v6885, 112
  %v6947 = vpop.permute.xlu0 %6946
  %6948 = vrot.lane.b32.xlu0 %v6886, 112
  %v6949 = vpop.permute.xlu0 %6948
  %6950 = vrot.lane.b32.xlu0 %v6887, 112
  %v6951 = vpop.permute.xlu0 %6950
  %6960 = vst.msk [vmem:[#allocation2 + $0x80] sm:$0xff] %vm3986, %v6937
  %6961 = vst.msk [vmem:[#allocation2 + $0x88] sm:$0xff] %vm3986, %v6939
  %6962 = vst.msk [vmem:[#allocation2 + $0x90] sm:$0xff] %vm3986, %v6941
  %6963 = vst.msk [vmem:[#allocation2 + $0x98] sm:$0xff] %vm3986, %v6943
  %6964 = vst.msk [vmem:[#allocation2 + $0xa0] sm:$0xff] %vm3986, %v6945
  %6965 = vst.msk [vmem:[#allocation2 + $0xa8] sm:$0xff] %vm3986, %v6947
  %6966 = vst.msk [vmem:[#allocation2 + $0xb0] sm:$0xff] %vm3986, %v6949
  %6967 = vst.msk [vmem:[#allocation2 + $0xb8] sm:$0xff] %vm3986, %v6951
  %6968 = vrot.lane.b32.xlu0 %v6880, 104
  %v6969 = vpop.permute.xlu0 %6968
  %6970 = vrot.lane.b32.xlu0 %v6881, 104
  %v6971 = vpop.permute.xlu0 %6970
  %6972 = vrot.lane.b32.xlu0 %v6882, 104
  %v6973 = vpop.permute.xlu0 %6972
  %6974 = vrot.lane.b32.xlu0 %v6883, 104
  %v6975 = vpop.permute.xlu0 %6974
  %6976 = vrot.lane.b32.xlu0 %v6884, 104
  %v6977 = vpop.permute.xlu0 %6976
  %6978 = vrot.lane.b32.xlu0 %v6885, 104
  %v6979 = vpop.permute.xlu0 %6978
  %6980 = vrot.lane.b32.xlu0 %v6886, 104
  %v6981 = vpop.permute.xlu0 %6980
  %6982 = vrot.lane.b32.xlu0 %v6887, 104
  %v6983 = vpop.permute.xlu0 %6982
  %6992 = vst.msk [vmem:[#allocation2 + $0xc0] sm:$0xff] %vm3986, %v6969
  %6993 = vst.msk [vmem:[#allocation2 + $0xc8] sm:$0xff] %vm3986, %v6971
  %6994 = vst.msk [vmem:[#allocation2 + $0xd0] sm:$0xff] %vm3986, %v6973
  %6995 = vst.msk [vmem:[#allocation2 + $0xd8] sm:$0xff] %vm3986, %v6975
  %6996 = vst.msk [vmem:[#allocation2 + $0xe0] sm:$0xff] %vm3986, %v6977
  %6997 = vst.msk [vmem:[#allocation2 + $0xe8] sm:$0xff] %vm3986, %v6979
  %6998 = vst.msk [vmem:[#allocation2 + $0xf0] sm:$0xff] %vm3986, %v6981
  %6999 = vst.msk [vmem:[#allocation2 + $0xf8] sm:$0xff] %vm3986, %v6983
  %7000 = vrot.lane.b32.xlu0 %v6880, 96
  %v7001 = vpop.permute.xlu0 %7000
  %7002 = vrot.lane.b32.xlu0 %v6881, 96
  %v7003 = vpop.permute.xlu0 %7002
  %7004 = vrot.lane.b32.xlu0 %v6882, 96
  %v7005 = vpop.permute.xlu0 %7004
  %7006 = vrot.lane.b32.xlu0 %v6883, 96
  %v7007 = vpop.permute.xlu0 %7006
  %7008 = vrot.lane.b32.xlu0 %v6884, 96
  %v7009 = vpop.permute.xlu0 %7008
  %7010 = vrot.lane.b32.xlu0 %v6885, 96
  %v7011 = vpop.permute.xlu0 %7010
  %7012 = vrot.lane.b32.xlu0 %v6886, 96
  %v7013 = vpop.permute.xlu0 %7012
  %7014 = vrot.lane.b32.xlu0 %v6887, 96
  %v7015 = vpop.permute.xlu0 %7014
  %7024 = vst.msk [vmem:[#allocation2 + $0x100] sm:$0xff] %vm3986, %v7001
  %7025 = vst.msk [vmem:[#allocation2 + $0x108] sm:$0xff] %vm3986, %v7003
  %7026 = vst.msk [vmem:[#allocation2 + $0x110] sm:$0xff] %vm3986, %v7005
  %7027 = vst.msk [vmem:[#allocation2 + $0x118] sm:$0xff] %vm3986, %v7007
  %7028 = vst.msk [vmem:[#allocation2 + $0x120] sm:$0xff] %vm3986, %v7009
  %7029 = vst.msk [vmem:[#allocation2 + $0x128] sm:$0xff] %vm3986, %v7011
  %7030 = vst.msk [vmem:[#allocation2 + $0x130] sm:$0xff] %vm3986, %v7013
  %7031 = vst.msk [vmem:[#allocation2 + $0x138] sm:$0xff] %vm3986, %v7015
  %7032 = vrot.lane.b32.xlu0 %v6880, 88
  %v7033 = vpop.permute.xlu0 %7032
  %7034 = vrot.lane.b32.xlu0 %v6881, 88
  %v7035 = vpop.permute.xlu0 %7034
  %7036 = vrot.lane.b32.xlu0 %v6882, 88
  %v7037 = vpop.permute.xlu0 %7036
  %7038 = vrot.lane.b32.xlu0 %v6883, 88
  %v7039 = vpop.permute.xlu0 %7038
  %7040 = vrot.lane.b32.xlu0 %v6884, 88
  %v7041 = vpop.permute.xlu0 %7040
  %7042 = vrot.lane.b32.xlu0 %v6885, 88
  %v7043 = vpop.permute.xlu0 %7042
  %7044 = vrot.lane.b32.xlu0 %v6886, 88
  %v7045 = vpop.permute.xlu0 %7044
  %7046 = vrot.lane.b32.xlu0 %v6887, 88
  %v7047 = vpop.permute.xlu0 %7046
  %7056 = vst.msk [vmem:[#allocation2 + $0x140] sm:$0xff] %vm3986, %v7033
  %7057 = vst.msk [vmem:[#allocation2 + $0x148] sm:$0xff] %vm3986, %v7035
  %7058 = vst.msk [vmem:[#allocation2 + $0x150] sm:$0xff] %vm3986, %v7037
  %7059 = vst.msk [vmem:[#allocation2 + $0x158] sm:$0xff] %vm3986, %v7039
  %7060 = vst.msk [vmem:[#allocation2 + $0x160] sm:$0xff] %vm3986, %v7041
  %7061 = vst.msk [vmem:[#allocation2 + $0x168] sm:$0xff] %vm3986, %v7043
  %7062 = vst.msk [vmem:[#allocation2 + $0x170] sm:$0xff] %vm3986, %v7045
  %7063 = vst.msk [vmem:[#allocation2 + $0x178] sm:$0xff] %vm3986, %v7047
  %7064 = vrot.lane.b32.xlu0 %v6880, 80
  %v7065 = vpop.permute.xlu0 %7064
  %7066 = vrot.lane.b32.xlu0 %v6881, 80
  %v7067 = vpop.permute.xlu0 %7066
  %7068 = vrot.lane.b32.xlu0 %v6882, 80
  %v7069 = vpop.permute.xlu0 %7068
  %7070 = vrot.lane.b32.xlu0 %v6883, 80
  %v7071 = vpop.permute.xlu0 %7070
  %7072 = vrot.lane.b32.xlu0 %v6884, 80
  %v7073 = vpop.permute.xlu0 %7072
  %7074 = vrot.lane.b32.xlu0 %v6885, 80
  %v7075 = vpop.permute.xlu0 %7074
  %7076 = vrot.lane.b32.xlu0 %v6886, 80
  %v7077 = vpop.permute.xlu0 %7076
  %7078 = vrot.lane.b32.xlu0 %v6887, 80
  %v7079 = vpop.permute.xlu0 %7078
  %7088 = vst.msk [vmem:[#allocation2 + $0x180] sm:$0xff] %vm3986, %v7065
  %7089 = vst.msk [vmem:[#allocation2 + $0x188] sm:$0xff] %vm3986, %v7067
  %7090 = vst.msk [vmem:[#allocation2 + $0x190] sm:$0xff] %vm3986, %v7069
  %7091 = vst.msk [vmem:[#allocation2 + $0x198] sm:$0xff] %vm3986, %v7071
  %7092 = vst.msk [vmem:[#allocation2 + $0x1a0] sm:$0xff] %vm3986, %v7073
  %7093 = vst.msk [vmem:[#allocation2 + $0x1a8] sm:$0xff] %vm3986, %v7075
  %7094 = vst.msk [vmem:[#allocation2 + $0x1b0] sm:$0xff] %vm3986, %v7077
  %7095 = vst.msk [vmem:[#allocation2 + $0x1b8] sm:$0xff] %vm3986, %v7079
  %7096 = vrot.lane.b32.xlu0 %v6880, 72
  %v7097 = vpop.permute.xlu0 %7096
  %7098 = vrot.lane.b32.xlu0 %v6881, 72
  %v7099 = vpop.permute.xlu0 %7098
  %7100 = vrot.lane.b32.xlu0 %v6882, 72
  %v7101 = vpop.permute.xlu0 %7100
  %7102 = vrot.lane.b32.xlu0 %v6883, 72
  %v7103 = vpop.permute.xlu0 %7102
  %7104 = vrot.lane.b32.xlu0 %v6884, 72
  %v7105 = vpop.permute.xlu0 %7104
  %7106 = vrot.lane.b32.xlu0 %v6885, 72
  %v7107 = vpop.permute.xlu0 %7106
  %7108 = vrot.lane.b32.xlu0 %v6886, 72
  %v7109 = vpop.permute.xlu0 %7108
  %7110 = vrot.lane.b32.xlu0 %v6887, 72
  %v7111 = vpop.permute.xlu0 %7110
  %7120 = vst.msk [vmem:[#allocation2 + $0x1c0] sm:$0xff] %vm3986, %v7097
  %7121 = vst.msk [vmem:[#allocation2 + $0x1c8] sm:$0xff] %vm3986, %v7099
  %7122 = vst.msk [vmem:[#allocation2 + $0x1d0] sm:$0xff] %vm3986, %v7101
  %7123 = vst.msk [vmem:[#allocation2 + $0x1d8] sm:$0xff] %vm3986, %v7103
  %7124 = vst.msk [vmem:[#allocation2 + $0x1e0] sm:$0xff] %vm3986, %v7105
  %7125 = vst.msk [vmem:[#allocation2 + $0x1e8] sm:$0xff] %vm3986, %v7107
  %7126 = vst.msk [vmem:[#allocation2 + $0x1f0] sm:$0xff] %vm3986, %v7109
  %7127 = vst.msk [vmem:[#allocation2 + $0x1f8] sm:$0xff] %vm3986, %v7111
  %7128 = vrot.lane.b32.xlu0 %v6880, 64
  %v7129 = vpop.permute.xlu0 %7128
  %7130 = vrot.lane.b32.xlu0 %v6881, 64
  %v7131 = vpop.permute.xlu0 %7130
  %7132 = vrot.lane.b32.xlu0 %v6882, 64
  %v7133 = vpop.permute.xlu0 %7132
  %7134 = vrot.lane.b32.xlu0 %v6883, 64
  %v7135 = vpop.permute.xlu0 %7134
  %7136 = vrot.lane.b32.xlu0 %v6884, 64
  %v7137 = vpop.permute.xlu0 %7136
  %7138 = vrot.lane.b32.xlu0 %v6885, 64
  %v7139 = vpop.permute.xlu0 %7138
  %7140 = vrot.lane.b32.xlu0 %v6886, 64
  %v7141 = vpop.permute.xlu0 %7140
  %7142 = vrot.lane.b32.xlu0 %v6887, 64
  %v7143 = vpop.permute.xlu0 %7142
  %7152 = vst.msk [vmem:[#allocation2 + $0x200] sm:$0xff] %vm3986, %v7129
  %7153 = vst.msk [vmem:[#allocation2 + $0x208] sm:$0xff] %vm3986, %v7131
  %7154 = vst.msk [vmem:[#allocation2 + $0x210] sm:$0xff] %vm3986, %v7133
  %7155 = vst.msk [vmem:[#allocation2 + $0x218] sm:$0xff] %vm3986, %v7135
  %7156 = vst.msk [vmem:[#allocation2 + $0x220] sm:$0xff] %vm3986, %v7137
  %7157 = vst.msk [vmem:[#allocation2 + $0x228] sm:$0xff] %vm3986, %v7139
  %7158 = vst.msk [vmem:[#allocation2 + $0x230] sm:$0xff] %vm3986, %v7141
  %7159 = vst.msk [vmem:[#allocation2 + $0x238] sm:$0xff] %vm3986, %v7143
  %v7160 = vld [vmem:[%s9] sm:$0xff]
  %v7161 = vld [vmem:[%s9 + $0x8] sm:$0xff]
  %v7162 = vld [vmem:[%s9 + $0x10] sm:$0xff]
  %v7163 = vld [vmem:[%s9 + $0x18] sm:$0xff]
  %v7164 = vld [vmem:[%s9 + $0x20] sm:$0xf]
  %v7165 = vld [vmem:[%s9 + $0x24] sm:$0xff]
  %v7166 = vld [vmem:[%s9 + $0x2c] sm:$0xff]
  %v7167 = vld [vmem:[%s9 + $0x34] sm:$0xff]
  %v7168 = vld [vmem:[%s9 + $0x3c] sm:$0xff]
  %v7169 = vld [vmem:[%s9 + $0x44] sm:$0xf]
  %v7170 = vld [vmem:[%s9 + $0x48] sm:$0xff]
  %v7171 = vld [vmem:[%s9 + $0x50] sm:$0xff]
  %v7172 = vld [vmem:[%s9 + $0x58] sm:$0xff]
  %v7173 = vld [vmem:[%s9 + $0x60] sm:$0xff]
  %v7174 = vld [vmem:[%s9 + $0x68] sm:$0xf]
  %v7175 = vld [vmem:[%s9 + $0x6c] sm:$0xff]
  %v7176 = vld [vmem:[%s9 + $0x74] sm:$0xff]
  %v7177 = vld [vmem:[%s9 + $0x7c] sm:$0xff]
  %v7178 = vld [vmem:[%s9 + $0x84] sm:$0xff]
  %v7179 = vld [vmem:[%s9 + $0x8c] sm:$0xf]
  %v7180 = vld [vmem:[%s9 + $0x90] sm:$0xff]
  %v7181 = vld [vmem:[%s9 + $0x98] sm:$0xff]
  %v7182 = vld [vmem:[%s9 + $0xa0] sm:$0xff]
  %v7183 = vld [vmem:[%s9 + $0xa8] sm:$0xff]
  %v7184 = vld [vmem:[%s9 + $0xb0] sm:$0xf]
  %v7185 = vld [vmem:[%s9 + $0xb4] sm:$0xff]
  %v7186 = vld [vmem:[%s9 + $0xbc] sm:$0xff]
  %v7187 = vld [vmem:[%s9 + $0xc4] sm:$0xff]
  %v7188 = vld [vmem:[%s9 + $0xcc] sm:$0xff]
  %v7189 = vld [vmem:[%s9 + $0xd4] sm:$0xf]
  %v7190 = vld [vmem:[%s9 + $0xd8] sm:$0xff]
  %v7191 = vld [vmem:[%s9 + $0xe0] sm:$0xff]
  %v7192 = vld [vmem:[%s9 + $0xe8] sm:$0xff]
  %v7193 = vld [vmem:[%s9 + $0xf0] sm:$0xff]
  %v7194 = vld [vmem:[%s9 + $0xf8] sm:$0xf]
  %v7195 = vld [vmem:[%s9 + $0xfc] sm:$0xff]
  %v7196 = vld [vmem:[%s9 + $0x104] sm:$0xff]
  %v7197 = vld [vmem:[%s9 + $0x10c] sm:$0xff]
  %v7198 = vld [vmem:[%s9 + $0x114] sm:$0xff]
  %v7199 = vld [vmem:[%s9 + $0x11c] sm:$0xf]
  %v7200 = vld [vmem:[%s9 + $0x120] sm:$0xff]
  %v7201 = vld [vmem:[%s9 + $0x128] sm:$0xff]
  %v7202 = vld [vmem:[%s9 + $0x130] sm:$0xff]
  %v7203 = vld [vmem:[%s9 + $0x138] sm:$0xff]
  %v7204 = vld [vmem:[%s9 + $0x140] sm:$0xf]
  %v7205 = vld [vmem:[%s9 + $0x144] sm:$0xff]
  %v7206 = vld [vmem:[%s9 + $0x14c] sm:$0xff]
  %v7207 = vld [vmem:[%s9 + $0x154] sm:$0xff]
  %v7208 = vld [vmem:[%s9 + $0x15c] sm:$0xff]
  %v7209 = vld [vmem:[%s9 + $0x164] sm:$0xf]
  %v7210 = vld [vmem:[%s9 + $0x168] sm:$0xff]
  %v7211 = vld [vmem:[%s9 + $0x170] sm:$0xff]
  %v7212 = vld [vmem:[%s9 + $0x178] sm:$0xff]
  %v7213 = vld [vmem:[%s9 + $0x180] sm:$0xff]
  %v7214 = vld [vmem:[%s9 + $0x188] sm:$0xf]
  %v7215 = vld [vmem:[%s9 + $0x18c] sm:$0xff]
  %v7216 = vld [vmem:[%s9 + $0x194] sm:$0xff]
  %v7217 = vld [vmem:[%s9 + $0x19c] sm:$0xff]
  %v7218 = vld [vmem:[%s9 + $0x1a4] sm:$0xff]
  %v7219 = vld [vmem:[%s9 + $0x1ac] sm:$0xf]
  %v7220 = vld [vmem:[%s9 + $0x1b0] sm:$0xff]
  %v7221 = vld [vmem:[%s9 + $0x1b8] sm:$0xff]
  %v7222 = vld [vmem:[%s9 + $0x1c0] sm:$0xff]
  %v7223 = vld [vmem:[%s9 + $0x1c8] sm:$0xff]
  %v7224 = vld [vmem:[%s9 + $0x1d0] sm:$0xf]
  %v7225 = vld [vmem:[%s9 + $0x1d4] sm:$0xff]
  %v7226 = vld [vmem:[%s9 + $0x1dc] sm:$0xff]
  %v7227 = vld [vmem:[%s9 + $0x1e4] sm:$0xff]
  %v7228 = vld [vmem:[%s9 + $0x1ec] sm:$0xff]
  %v7229 = vld [vmem:[%s9 + $0x1f4] sm:$0xf]
  %v7230 = vld [vmem:[%s9 + $0x1f8] sm:$0xff]
  %v7231 = vld [vmem:[%s9 + $0x200] sm:$0xff]
  %v7232 = vld [vmem:[%s9 + $0x208] sm:$0xff]
  %v7233 = vld [vmem:[%s9 + $0x210] sm:$0xff]
  %v7234 = vld [vmem:[%s9 + $0x218] sm:$0xf]
  %v7235 = vld [vmem:[%s9 + $0x21c] sm:$0xff]
  %v7236 = vld [vmem:[%s9 + $0x224] sm:$0xff]
  %v7237 = vld [vmem:[%s9 + $0x22c] sm:$0xff]
  %v7238 = vld [vmem:[%s9 + $0x234] sm:$0xff]
  %v7239 = vld [vmem:[%s9 + $0x23c] sm:$0xf]
  %v7240 = vld [vmem:[#allocation2] sm:$0xff]
  %v7241 = vld [vmem:[#allocation2 + $0x8] sm:$0xff]
  %v7242 = vld [vmem:[#allocation2 + $0x10] sm:$0xff]
  %v7243 = vld [vmem:[#allocation2 + $0x18] sm:$0xff]
  %v7244 = vld [vmem:[#allocation2 + $0x20] sm:$0xff]
  %v7245 = vld [vmem:[#allocation2 + $0x28] sm:$0xff]
  %v7246 = vld [vmem:[#allocation2 + $0x30] sm:$0xff]
  %v7247 = vld [vmem:[#allocation2 + $0x38] sm:$0xff]
  %v7248 = vld [vmem:[#allocation2 + $0x40] sm:$0xff]
  %v7249 = vld [vmem:[#allocation2 + $0x48] sm:$0xff]
  %v7250 = vld [vmem:[#allocation2 + $0x50] sm:$0xff]
  %v7251 = vld [vmem:[#allocation2 + $0x58] sm:$0xff]
  %v7252 = vld [vmem:[#allocation2 + $0x60] sm:$0xff]
  %v7253 = vld [vmem:[#allocation2 + $0x68] sm:$0xff]
  %v7254 = vld [vmem:[#allocation2 + $0x70] sm:$0xff]
  %v7255 = vld [vmem:[#allocation2 + $0x78] sm:$0xff]
  %v7256 = vld [vmem:[#allocation2 + $0x80] sm:$0xff]
  %v7257 = vld [vmem:[#allocation2 + $0x88] sm:$0xff]
  %v7258 = vld [vmem:[#allocation2 + $0x90] sm:$0xff]
  %v7259 = vld [vmem:[#allocation2 + $0x98] sm:$0xff]
  %v7260 = vld [vmem:[#allocation2 + $0xa0] sm:$0xff]
  %v7261 = vld [vmem:[#allocation2 + $0xa8] sm:$0xff]
  %v7262 = vld [vmem:[#allocation2 + $0xb0] sm:$0xff]
  %v7263 = vld [vmem:[#allocation2 + $0xb8] sm:$0xff]
  %v7264 = vld [vmem:[#allocation2 + $0xc0] sm:$0xff]
  %v7265 = vld [vmem:[#allocation2 + $0xc8] sm:$0xff]
  %v7266 = vld [vmem:[#allocation2 + $0xd0] sm:$0xff]
  %v7267 = vld [vmem:[#allocation2 + $0xd8] sm:$0xff]
  %v7268 = vld [vmem:[#allocation2 + $0xe0] sm:$0xff]
  %v7269 = vld [vmem:[#allocation2 + $0xe8] sm:$0xff]
  %v7270 = vld [vmem:[#allocation2 + $0xf0] sm:$0xff]
  %v7271 = vld [vmem:[#allocation2 + $0xf8] sm:$0xff]
  %v7272 = vld [vmem:[#allocation2 + $0x100] sm:$0xff]
  %v7273 = vld [vmem:[#allocation2 + $0x108] sm:$0xff]
  %v7274 = vld [vmem:[#allocation2 + $0x110] sm:$0xff]
  %v7275 = vld [vmem:[#allocation2 + $0x118] sm:$0xff]
  %v7276 = vld [vmem:[#allocation2 + $0x120] sm:$0xff]
  %v7277 = vld [vmem:[#allocation2 + $0x128] sm:$0xff]
  %v7278 = vld [vmem:[#allocation2 + $0x130] sm:$0xff]
  %v7279 = vld [vmem:[#allocation2 + $0x138] sm:$0xff]
  %v7280 = vld [vmem:[#allocation2 + $0x140] sm:$0xff]
  %v7281 = vld [vmem:[#allocation2 + $0x148] sm:$0xff]
  %v7282 = vld [vmem:[#allocation2 + $0x150] sm:$0xff]
  %v7283 = vld [vmem:[#allocation2 + $0x158] sm:$0xff]
  %v7284 = vld [vmem:[#allocation2 + $0x160] sm:$0xff]
  %v7285 = vld [vmem:[#allocation2 + $0x168] sm:$0xff]
  %v7286 = vld [vmem:[#allocation2 + $0x170] sm:$0xff]
  %v7287 = vld [vmem:[#allocation2 + $0x178] sm:$0xff]
  %v7288 = vld [vmem:[#allocation2 + $0x180] sm:$0xff]
  %v7289 = vld [vmem:[#allocation2 + $0x188] sm:$0xff]
  %v7290 = vld [vmem:[#allocation2 + $0x190] sm:$0xff]
  %v7291 = vld [vmem:[#allocation2 + $0x198] sm:$0xff]
  %v7292 = vld [vmem:[#allocation2 + $0x1a0] sm:$0xff]
  %v7293 = vld [vmem:[#allocation2 + $0x1a8] sm:$0xff]
  %v7294 = vld [vmem:[#allocation2 + $0x1b0] sm:$0xff]
  %v7295 = vld [vmem:[#allocation2 + $0x1b8] sm:$0xff]
  %v7296 = vld [vmem:[#allocation2 + $0x1c0] sm:$0xff]
  %v7297 = vld [vmem:[#allocation2 + $0x1c8] sm:$0xff]
  %v7298 = vld [vmem:[#allocation2 + $0x1d0] sm:$0xff]
  %v7299 = vld [vmem:[#allocation2 + $0x1d8] sm:$0xff]
  %v7300 = vld [vmem:[#allocation2 + $0x1e0] sm:$0xff]
  %v7301 = vld [vmem:[#allocation2 + $0x1e8] sm:$0xff]
  %v7302 = vld [vmem:[#allocation2 + $0x1f0] sm:$0xff]
  %v7303 = vld [vmem:[#allocation2 + $0x1f8] sm:$0xff]
  %v7304 = vld [vmem:[#allocation2 + $0x200] sm:$0xff]
  %v7305 = vld [vmem:[#allocation2 + $0x208] sm:$0xff]
  %v7306 = vld [vmem:[#allocation2 + $0x210] sm:$0xff]
  %v7307 = vld [vmem:[#allocation2 + $0x218] sm:$0xff]
  %v7308 = vld [vmem:[#allocation2 + $0x220] sm:$0xff]
  %v7309 = vld [vmem:[#allocation2 + $0x228] sm:$0xff]
  %v7310 = vld [vmem:[#allocation2 + $0x230] sm:$0xff]
  %v7311 = vld [vmem:[#allocation2 + $0x238] sm:$0xff]
  %v7312 = vld [vmem:[%s12] sm:$0xff]
  %v7313 = vld [vmem:[%s12 + $0x8] sm:$0xff]
  %v7314 = vld [vmem:[%s12 + $0x10] sm:$0xff]
  %v7315 = vld [vmem:[%s12 + $0x18] sm:$0xff]
  %v7316 = vld [vmem:[%s12 + $0x20] sm:$0xff]
  %v7317 = vld [vmem:[%s12 + $0x28] sm:$0xff]
  %v7318 = vld [vmem:[%s12 + $0x30] sm:$0xff]
  %v7319 = vld [vmem:[%s12 + $0x38] sm:$0xff]
  %v7320 = vld [vmem:[%s12 + $0x40] sm:$0xff]
  %v7321 = vld [vmem:[%s12 + $0x48] sm:$0xff]
  %v7322 = vld [vmem:[%s12 + $0x50] sm:$0xff]
  %v7323 = vld [vmem:[%s12 + $0x58] sm:$0xff]
  %v7324 = vld [vmem:[%s12 + $0x60] sm:$0xff]
  %v7325 = vld [vmem:[%s12 + $0x68] sm:$0xff]
  %v7326 = vld [vmem:[%s12 + $0x70] sm:$0xff]
  %v7327 = vld [vmem:[%s12 + $0x78] sm:$0xff]
  %7329 = vset.pattern.permute.xlu0 8
  %7330 = vperm.xlu0 %7329, %v7312
  %v7331 = vpop.permute.xlu0 %7330
  %7334 = vset.pattern.permute.xlu0 8
  %7335 = vperm.xlu0 %7334, %v7313
  %v7336 = vpop.permute.xlu0 %7335
  %7339 = vset.pattern.permute.xlu0 8
  %7340 = vperm.xlu0 %7339, %v7314
  %v7341 = vpop.permute.xlu0 %7340
  %7344 = vset.pattern.permute.xlu0 8
  %7345 = vperm.xlu0 %7344, %v7315
  %v7346 = vpop.permute.xlu0 %7345
  %7349 = vset.pattern.permute.xlu0 8
  %7350 = vperm.xlu0 %7349, %v7316
  %v7351 = vpop.permute.xlu0 %7350
  %7354 = vset.pattern.permute.xlu0 8
  %7355 = vperm.xlu0 %7354, %v7317
  %v7356 = vpop.permute.xlu0 %7355
  %7359 = vset.pattern.permute.xlu0 8
  %7360 = vperm.xlu0 %7359, %v7318
  %v7361 = vpop.permute.xlu0 %7360
  %7364 = vset.pattern.permute.xlu0 8
  %7365 = vperm.xlu0 %7364, %v7319
  %v7366 = vpop.permute.xlu0 %7365
  %7369 = vset.pattern.permute.xlu0 8
  %7370 = vperm.xlu0 %7369, %v7320
  %v7371 = vpop.permute.xlu0 %7370
  %7374 = vset.pattern.permute.xlu0 8
  %7375 = vperm.xlu0 %7374, %v7321
  %v7376 = vpop.permute.xlu0 %7375
  %7379 = vset.pattern.permute.xlu0 8
  %7380 = vperm.xlu0 %7379, %v7322
  %v7381 = vpop.permute.xlu0 %7380
  %7384 = vset.pattern.permute.xlu0 8
  %7385 = vperm.xlu0 %7384, %v7323
  %v7386 = vpop.permute.xlu0 %7385
  %7389 = vset.pattern.permute.xlu0 8
  %7390 = vperm.xlu0 %7389, %v7324
  %v7391 = vpop.permute.xlu0 %7390
  %7394 = vset.pattern.permute.xlu0 8
  %7395 = vperm.xlu0 %7394, %v7325
  %v7396 = vpop.permute.xlu0 %7395
  %7399 = vset.pattern.permute.xlu0 8
  %7400 = vperm.xlu0 %7399, %v7326
  %v7401 = vpop.permute.xlu0 %7400
  %7404 = vset.pattern.permute.xlu0 8
  %7405 = vperm.xlu0 %7404, %v7327
  %v7406 = vpop.permute.xlu0 %7405
  %v7488 = vunpack.c.l.b16 %v7160
  %v7489 = vunpack.c.h.b16 %v7160
  %v7490 = vunpack.c.l.b16 %v7161
  %v7491 = vunpack.c.h.b16 %v7161
  %v7492 = vunpack.c.l.b16 %v7162
  %v7493 = vunpack.c.h.b16 %v7162
  %v7494 = vunpack.c.l.b16 %v7163
  %v7495 = vunpack.c.h.b16 %v7163
  %v7496 = vunpack.c.l.b16 %v7164
  %v7497 = vunpack.c.l.b16 %v7165
  %v7498 = vunpack.c.h.b16 %v7165
  %v7499 = vunpack.c.l.b16 %v7166
  %v7500 = vunpack.c.h.b16 %v7166
  %v7501 = vunpack.c.l.b16 %v7167
  %v7502 = vunpack.c.h.b16 %v7167
  %v7503 = vunpack.c.l.b16 %v7168
  %v7504 = vunpack.c.h.b16 %v7168
  %v7505 = vunpack.c.l.b16 %v7169
  %v7506 = vunpack.c.l.b16 %v7170
  %v7507 = vunpack.c.h.b16 %v7170
  %v7508 = vunpack.c.l.b16 %v7171
  %v7509 = vunpack.c.h.b16 %v7171
  %v7510 = vunpack.c.l.b16 %v7172
  %v7511 = vunpack.c.h.b16 %v7172
  %v7512 = vunpack.c.l.b16 %v7173
  %v7513 = vunpack.c.h.b16 %v7173
  %v7514 = vunpack.c.l.b16 %v7174
  %v7515 = vunpack.c.l.b16 %v7175
  %v7516 = vunpack.c.h.b16 %v7175
  %v7517 = vunpack.c.l.b16 %v7176
  %v7518 = vunpack.c.h.b16 %v7176
  %v7519 = vunpack.c.l.b16 %v7177
  %v7520 = vunpack.c.h.b16 %v7177
  %v7521 = vunpack.c.l.b16 %v7178
  %v7522 = vunpack.c.h.b16 %v7178
  %v7523 = vunpack.c.l.b16 %v7179
  %v7524 = vunpack.c.l.b16 %v7180
  %v7525 = vunpack.c.h.b16 %v7180
  %v7526 = vunpack.c.l.b16 %v7181
  %v7527 = vunpack.c.h.b16 %v7181
  %v7528 = vunpack.c.l.b16 %v7182
  %v7529 = vunpack.c.h.b16 %v7182
  %v7530 = vunpack.c.l.b16 %v7183
  %v7531 = vunpack.c.h.b16 %v7183
  %v7532 = vunpack.c.l.b16 %v7184
  %v7533 = vunpack.c.l.b16 %v7185
  %v7534 = vunpack.c.h.b16 %v7185
  %v7535 = vunpack.c.l.b16 %v7186
  %v7536 = vunpack.c.h.b16 %v7186
  %v7537 = vunpack.c.l.b16 %v7187
  %v7538 = vunpack.c.h.b16 %v7187
  %v7539 = vunpack.c.l.b16 %v7188
  %v7540 = vunpack.c.h.b16 %v7188
  %v7541 = vunpack.c.l.b16 %v7189
  %v7542 = vunpack.c.l.b16 %v7190
  %v7543 = vunpack.c.h.b16 %v7190
  %v7544 = vunpack.c.l.b16 %v7191
  %v7545 = vunpack.c.h.b16 %v7191
  %v7546 = vunpack.c.l.b16 %v7192
  %v7547 = vunpack.c.h.b16 %v7192
  %v7548 = vunpack.c.l.b16 %v7193
  %v7549 = vunpack.c.h.b16 %v7193
  %v7550 = vunpack.c.l.b16 %v7194
  %v7551 = vunpack.c.l.b16 %v7195
  %v7552 = vunpack.c.h.b16 %v7195
  %v7553 = vunpack.c.l.b16 %v7196
  %v7554 = vunpack.c.h.b16 %v7196
  %v7555 = vunpack.c.l.b16 %v7197
  %v7556 = vunpack.c.h.b16 %v7197
  %v7557 = vunpack.c.l.b16 %v7198
  %v7558 = vunpack.c.h.b16 %v7198
  %v7559 = vunpack.c.l.b16 %v7199
  %v7560 = vunpack.c.l.b16 %v7200
  %v7561 = vunpack.c.h.b16 %v7200
  %v7562 = vunpack.c.l.b16 %v7201
  %v7563 = vunpack.c.h.b16 %v7201
  %v7564 = vunpack.c.l.b16 %v7202
  %v7565 = vunpack.c.h.b16 %v7202
  %v7566 = vunpack.c.l.b16 %v7203
  %v7567 = vunpack.c.h.b16 %v7203
  %v7568 = vunpack.c.l.b16 %v7204
  %v7569 = vunpack.c.l.b16 %v7205
  %v7570 = vunpack.c.h.b16 %v7205
  %v7571 = vunpack.c.l.b16 %v7206
  %v7572 = vunpack.c.h.b16 %v7206
  %v7573 = vunpack.c.l.b16 %v7207
  %v7574 = vunpack.c.h.b16 %v7207
  %v7575 = vunpack.c.l.b16 %v7208
  %v7576 = vunpack.c.h.b16 %v7208
  %v7577 = vunpack.c.l.b16 %v7209
  %v7578 = vunpack.c.l.b16 %v7210
  %v7579 = vunpack.c.h.b16 %v7210
  %v7580 = vunpack.c.l.b16 %v7211
  %v7581 = vunpack.c.h.b16 %v7211
  %v7582 = vunpack.c.l.b16 %v7212
  %v7583 = vunpack.c.h.b16 %v7212
  %v7584 = vunpack.c.l.b16 %v7213
  %v7585 = vunpack.c.h.b16 %v7213
  %v7586 = vunpack.c.l.b16 %v7214
  %v7587 = vunpack.c.l.b16 %v7215
  %v7588 = vunpack.c.h.b16 %v7215
  %v7589 = vunpack.c.l.b16 %v7216
  %v7590 = vunpack.c.h.b16 %v7216
  %v7591 = vunpack.c.l.b16 %v7217
  %v7592 = vunpack.c.h.b16 %v7217
  %v7593 = vunpack.c.l.b16 %v7218
  %v7594 = vunpack.c.h.b16 %v7218
  %v7595 = vunpack.c.l.b16 %v7219
  %v7596 = vunpack.c.l.b16 %v7220
  %v7597 = vunpack.c.h.b16 %v7220
  %v7598 = vunpack.c.l.b16 %v7221
  %v7599 = vunpack.c.h.b16 %v7221
  %v7600 = vunpack.c.l.b16 %v7222
  %v7601 = vunpack.c.h.b16 %v7222
  %v7602 = vunpack.c.l.b16 %v7223
  %v7603 = vunpack.c.h.b16 %v7223
  %v7604 = vunpack.c.l.b16 %v7224
  %v7605 = vunpack.c.l.b16 %v7225
  %v7606 = vunpack.c.h.b16 %v7225
  %v7607 = vunpack.c.l.b16 %v7226
  %v7608 = vunpack.c.h.b16 %v7226
  %v7609 = vunpack.c.l.b16 %v7227
  %v7610 = vunpack.c.h.b16 %v7227
  %v7611 = vunpack.c.l.b16 %v7228
  %v7612 = vunpack.c.h.b16 %v7228
  %v7613 = vunpack.c.l.b16 %v7229
  %v7614 = vunpack.c.l.b16 %v7230
  %v7615 = vunpack.c.h.b16 %v7230
  %v7616 = vunpack.c.l.b16 %v7231
  %v7617 = vunpack.c.h.b16 %v7231
  %v7618 = vunpack.c.l.b16 %v7232
  %v7619 = vunpack.c.h.b16 %v7232
  %v7620 = vunpack.c.l.b16 %v7233
  %v7621 = vunpack.c.h.b16 %v7233
  %v7622 = vunpack.c.l.b16 %v7234
  %v7623 = vunpack.c.l.b16 %v7235
  %v7624 = vunpack.c.h.b16 %v7235
  %v7625 = vunpack.c.l.b16 %v7236
  %v7626 = vunpack.c.h.b16 %v7236
  %v7627 = vunpack.c.l.b16 %v7237
  %v7628 = vunpack.c.h.b16 %v7237
  %v7629 = vunpack.c.l.b16 %v7238
  %v7630 = vunpack.c.h.b16 %v7238
  %v7631 = vunpack.c.l.b16 %v7239
  %v7632 = vpack.c.b16 %v7497, %v7488
  %v7633 = vpack.c.b16 %v7498, %v7489
  %v7634 = vpack.c.b16 %v7499, %v7490
  %v7635 = vpack.c.b16 %v7500, %v7491
  %v7636 = vpack.c.b16 %v7501, %v7492
  %v7637 = vpack.c.b16 %v7502, %v7493
  %v7638 = vpack.c.b16 %v7503, %v7494
  %v7639 = vpack.c.b16 %v7504, %v7495
  %v7640 = vpack.c.b16 %v7505, %v7496
  %v7641 = vpack.c.b16 %v7515, %v7506
  %v7642 = vpack.c.b16 %v7516, %v7507
  %v7643 = vpack.c.b16 %v7517, %v7508
  %v7644 = vpack.c.b16 %v7518, %v7509
  %v7645 = vpack.c.b16 %v7519, %v7510
  %v7646 = vpack.c.b16 %v7520, %v7511
  %v7647 = vpack.c.b16 %v7521, %v7512
  %v7648 = vpack.c.b16 %v7522, %v7513
  %v7649 = vpack.c.b16 %v7523, %v7514
  %v7650 = vpack.c.b16 %v7533, %v7524
  %v7651 = vpack.c.b16 %v7534, %v7525
  %v7652 = vpack.c.b16 %v7535, %v7526
  %v7653 = vpack.c.b16 %v7536, %v7527
  %v7654 = vpack.c.b16 %v7537, %v7528
  %v7655 = vpack.c.b16 %v7538, %v7529
  %v7656 = vpack.c.b16 %v7539, %v7530
  %v7657 = vpack.c.b16 %v7540, %v7531
  %v7658 = vpack.c.b16 %v7541, %v7532
  %v7659 = vpack.c.b16 %v7551, %v7542
  %v7660 = vpack.c.b16 %v7552, %v7543
  %v7661 = vpack.c.b16 %v7553, %v7544
  %v7662 = vpack.c.b16 %v7554, %v7545
  %v7663 = vpack.c.b16 %v7555, %v7546
  %v7664 = vpack.c.b16 %v7556, %v7547
  %v7665 = vpack.c.b16 %v7557, %v7548
  %v7666 = vpack.c.b16 %v7558, %v7549
  %v7667 = vpack.c.b16 %v7559, %v7550
  %v7668 = vpack.c.b16 %v7569, %v7560
  %v7669 = vpack.c.b16 %v7570, %v7561
  %v7670 = vpack.c.b16 %v7571, %v7562
  %v7671 = vpack.c.b16 %v7572, %v7563
  %v7672 = vpack.c.b16 %v7573, %v7564
  %v7673 = vpack.c.b16 %v7574, %v7565
  %v7674 = vpack.c.b16 %v7575, %v7566
  %v7675 = vpack.c.b16 %v7576, %v7567
  %v7676 = vpack.c.b16 %v7577, %v7568
  %v7677 = vpack.c.b16 %v7587, %v7578
  %v7678 = vpack.c.b16 %v7588, %v7579
  %v7679 = vpack.c.b16 %v7589, %v7580
  %v7680 = vpack.c.b16 %v7590, %v7581
  %v7681 = vpack.c.b16 %v7591, %v7582
  %v7682 = vpack.c.b16 %v7592, %v7583
  %v7683 = vpack.c.b16 %v7593, %v7584
  %v7684 = vpack.c.b16 %v7594, %v7585
  %v7685 = vpack.c.b16 %v7595, %v7586
  %v7686 = vpack.c.b16 %v7605, %v7596
  %v7687 = vpack.c.b16 %v7606, %v7597
  %v7688 = vpack.c.b16 %v7607, %v7598
  %v7689 = vpack.c.b16 %v7608, %v7599
  %v7690 = vpack.c.b16 %v7609, %v7600
  %v7691 = vpack.c.b16 %v7610, %v7601
  %v7692 = vpack.c.b16 %v7611, %v7602
  %v7693 = vpack.c.b16 %v7612, %v7603
  %v7694 = vpack.c.b16 %v7613, %v7604
  %v7695 = vpack.c.b16 %v7623, %v7614
  %v7696 = vpack.c.b16 %v7624, %v7615
  %v7697 = vpack.c.b16 %v7625, %v7616
  %v7698 = vpack.c.b16 %v7626, %v7617
  %v7699 = vpack.c.b16 %v7627, %v7618
  %v7700 = vpack.c.b16 %v7628, %v7619
  %v7701 = vpack.c.b16 %v7629, %v7620
  %v7702 = vpack.c.b16 %v7630, %v7621
  %v7703 = vpack.c.b16 %v7631, %v7622
  %7776 = vmatprep.subr.bf16.mxu0 0
  %7777 = vmatpush1.bf16.msra.mxu0 %v7240
  %7778 = vmatprep.subr.bf16.mxu0 0
  %7779 = vmatpush1.bf16.msra.mxu0 %v7241
  %7780 = vmatprep.subr.bf16.mxu0 0
  %7781 = vmatpush1.bf16.msra.mxu0 %v7242
  %7782 = vmatprep.subr.bf16.mxu0 0
  %7783 = vmatpush1.bf16.msra.mxu0 %v7243
  %7784 = vmatprep.subr.bf16.mxu0 0
  %7785 = vmatpush1.bf16.msra.mxu0 %v7244
  %7786 = vmatprep.subr.bf16.mxu0 0
  %7787 = vmatpush1.bf16.msra.mxu0 %v7245
  %7788 = vmatprep.subr.bf16.mxu0 0
  %7789 = vmatpush1.bf16.msra.mxu0 %v7246
  %7790 = vmatprep.subr.bf16.mxu0 0
  %7791 = vmatpush1.bf16.msra.mxu0 %v7247
  %7792 = vmatprep.subr.bf16.mxu0 0
  %7793 = vmatpush1.bf16.msra.mxu0 %v7248
  %7794 = vmatprep.subr.bf16.mxu0 0
  %7795 = vmatpush1.bf16.msra.mxu0 %v7249
  %7796 = vmatprep.subr.bf16.mxu0 0
  %7797 = vmatpush1.bf16.msra.mxu0 %v7250
  %7798 = vmatprep.subr.bf16.mxu0 0
  %7799 = vmatpush1.bf16.msra.mxu0 %v7251
  %7800 = vmatprep.subr.bf16.mxu0 0
  %7801 = vmatpush1.bf16.msra.mxu0 %v7252
  %7802 = vmatprep.subr.bf16.mxu0 0
  %7803 = vmatpush1.bf16.msra.mxu0 %v7253
  %7804 = vmatprep.subr.bf16.mxu0 0
  %7805 = vmatpush1.bf16.msra.mxu0 %v7254
  %7806 = vmatprep.subr.bf16.mxu0 0
  %7807 = vmatpush1.bf16.msra.mxu0 %v7255
  %7808 = vmatprep.mubr.bf16.mxu0 %v7633
  %7809 = vmatmul.mubr.bf16.gmra.mrb[0].mxu0 %v7632
  %v7810 = vpop.f32.mrb[0].mxu0
  %v7811 = vadd.f32 %v7331, %v7810
  %v7812 = vpop.f32.mrb[0].mxu0
  %v7813 = vpop.f32.mrb[0].mxu0
  %v7814 = vadd.f32 %v7336, %v7813
  %v7815 = vpop.f32.mrb[0].mxu0
  %7816 = vmatprep.mubr.bf16.mxu0 %v7642
  %7817 = vmatmul.mubr.bf16.gmra.mrb[0].mxu0 %v7641
  %v7818 = vpop.f32.mrb[0].mxu0
  %v7819 = vadd.f32 %v7341, %v7818
  %v7820 = vpop.f32.mrb[0].mxu0
  %v7821 = vpop.f32.mrb[0].mxu0
  %v7822 = vadd.f32 %v7346, %v7821
  %v7823 = vpop.f32.mrb[0].mxu0
  %7824 = vmatprep.mubr.bf16.mxu0 %v7651
  %7825 = vmatmul.mubr.bf16.gmra.mrb[0].mxu0 %v7650
  %v7826 = vpop.f32.mrb[0].mxu0
  %v7827 = vadd.f32 %v7351, %v7826
  %v7828 = vpop.f32.mrb[0].mxu0
  %v7829 = vpop.f32.mrb[0].mxu0
  %v7830 = vadd.f32 %v7356, %v7829
  %v7831 = vpop.f32.mrb[0].mxu0
  %7832 = vmatprep.mubr.bf16.mxu0 %v7660
  %7833 = vmatmul.mubr.bf16.gmra.mrb[0].mxu0 %v7659
  %v7834 = vpop.f32.mrb[0].mxu0
  %v7835 = vadd.f32 %v7361, %v7834
  %v7836 = vpop.f32.mrb[0].mxu0
  %v7837 = vpop.f32.mrb[0].mxu0
  %v7838 = vadd.f32 %v7366, %v7837
  %v7839 = vpop.f32.mrb[0].mxu0
  %7840 = vmatprep.mubr.bf16.mxu0 %v7669
  %7841 = vmatmul.mubr.bf16.gmra.mrb[0].mxu0 %v7668
  %v7842 = vpop.f32.mrb[0].mxu0
  %v7843 = vadd.f32 %v7371, %v7842
  %v7844 = vpop.f32.mrb[0].mxu0
  %v7845 = vpop.f32.mrb[0].mxu0
  %v7846 = vadd.f32 %v7376, %v7845
  %v7847 = vpop.f32.mrb[0].mxu0
  %7848 = vmatprep.mubr.bf16.mxu0 %v7678
  %7849 = vmatmul.mubr.bf16.gmra.mrb[0].mxu0 %v7677
  %v7850 = vpop.f32.mrb[0].mxu0
  %v7851 = vadd.f32 %v7381, %v7850
  %v7852 = vpop.f32.mrb[0].mxu0
  %v7853 = vpop.f32.mrb[0].mxu0
  %v7854 = vadd.f32 %v7386, %v7853
  %v7855 = vpop.f32.mrb[0].mxu0
  %7856 = vmatprep.mubr.bf16.mxu0 %v7687
  %7857 = vmatmul.mubr.bf16.gmra.mrb[0].mxu0 %v7686
  %v7858 = vpop.f32.mrb[0].mxu0
  %v7859 = vadd.f32 %v7391, %v7858
  %v7860 = vpop.f32.mrb[0].mxu0
  %v7861 = vpop.f32.mrb[0].mxu0
  %v7862 = vadd.f32 %v7396, %v7861
  %v7863 = vpop.f32.mrb[0].mxu0
  %7864 = vmatprep.mubr.bf16.mxu0 %v7696
  %7865 = vmatmul.mubr.bf16.gmra.mrb[0].mxu0 %v7695
  %v7866 = vpop.f32.mrb[0].mxu0
  %v7867 = vadd.f32 %v7401, %v7866
  %v7868 = vpop.f32.mrb[0].mxu0
  %v7869 = vpop.f32.mrb[0].mxu0
  %v7870 = vadd.f32 %v7406, %v7869
  %v7871 = vpop.f32.mrb[0].mxu0
  %7872 = vdwg.mxu0
  %7873 = vmatprep.subr.bf16.mxu0 0
  %7874 = vmatpush1.bf16.msra.mxu0 %v7256
  %7875 = vmatprep.subr.bf16.mxu0 0
  %7876 = vmatpush1.bf16.msra.mxu0 %v7257
  %7877 = vmatprep.subr.bf16.mxu0 0
  %7878 = vmatpush1.bf16.msra.mxu0 %v7258
  %7879 = vmatprep.subr.bf16.mxu0 0
  %7880 = vmatpush1.bf16.msra.mxu0 %v7259
  %7881 = vmatprep.subr.bf16.mxu0 0
  %7882 = vmatpush1.bf16.msra.mxu0 %v7260
  %7883 = vmatprep.subr.bf16.mxu0 0
  %7884 = vmatpush1.bf16.msra.mxu0 %v7261
  %7885 = vmatprep.subr.bf16.mxu0 0
  %7886 = vmatpush1.bf16.msra.mxu0 %v7262
  %7887 = vmatprep.subr.bf16.mxu0 0
  %7888 = vmatpush1.bf16.msra.mxu0 %v7263
  %7889 = vmatprep.subr.bf16.mxu0 0
  %7890 = vmatpush1.bf16.msra.mxu0 %v7264
  %7891 = vmatprep.subr.bf16.mxu0 0
  %7892 = vmatpush1.bf16.msra.mxu0 %v7265
  %7893 = vmatprep.subr.bf16.mxu0 0
  %7894 = vmatpush1.bf16.msra.mxu0 %v7266
  %7895 = vmatprep.subr.bf16.mxu0 0
  %7896 = vmatpush1.bf16.msra.mxu0 %v7267
  %7897 = vmatprep.subr.bf16.mxu0 0
  %7898 = vmatpush1.bf16.msra.mxu0 %v7268
  %7899 = vmatprep.subr.bf16.mxu0 0
  %7900 = vmatpush1.bf16.msra.mxu0 %v7269
  %7901 = vmatprep.subr.bf16.mxu0 0
  %7902 = vmatpush1.bf16.msra.mxu0 %v7270
  %7903 = vmatprep.subr.bf16.mxu0 0
  %7904 = vmatpush1.bf16.msra.mxu0 %v7271
  %7905 = vmatprep.mubr.bf16.mxu0 %v7635
  %7906 = vmatmul.mubr.bf16.gmra.mrb[0].mxu0 %v7634
  %v7907 = vpop.f32.mrb[0].mxu0
  %v7908 = vadd.f32 %v7811, %v7907
  %v7909 = vpop.f32.mrb[0].mxu0
  %v7910 = vpop.f32.mrb[0].mxu0
  %v7911 = vadd.f32 %v7814, %v7910
  %v7912 = vpop.f32.mrb[0].mxu0
  %7913 = vmatprep.mubr.bf16.mxu0 %v7644
  %7914 = vmatmul.mubr.bf16.gmra.mrb[0].mxu0 %v7643
  %v7915 = vpop.f32.mrb[0].mxu0
  %v7916 = vadd.f32 %v7819, %v7915
  %v7917 = vpop.f32.mrb[0].mxu0
  %v7918 = vpop.f32.mrb[0].mxu0
  %v7919 = vadd.f32 %v7822, %v7918
  %v7920 = vpop.f32.mrb[0].mxu0
  %7921 = vmatprep.mubr.bf16.mxu0 %v7653
  %7922 = vmatmul.mubr.bf16.gmra.mrb[0].mxu0 %v7652
  %v7923 = vpop.f32.mrb[0].mxu0
  %v7924 = vadd.f32 %v7827, %v7923
  %v7925 = vpop.f32.mrb[0].mxu0
  %v7926 = vpop.f32.mrb[0].mxu0
  %v7927 = vadd.f32 %v7830, %v7926
  %v7928 = vpop.f32.mrb[0].mxu0
  %7929 = vmatprep.mubr.bf16.mxu0 %v7662
  %7930 = vmatmul.mubr.bf16.gmra.mrb[0].mxu0 %v7661
  %v7931 = vpop.f32.mrb[0].mxu0
  %v7932 = vadd.f32 %v7835, %v7931
  %v7933 = vpop.f32.mrb[0].mxu0
  %v7934 = vpop.f32.mrb[0].mxu0
  %v7935 = vadd.f32 %v7838, %v7934
  %v7936 = vpop.f32.mrb[0].mxu0
  %7937 = vmatprep.mubr.bf16.mxu0 %v7671
  %7938 = vmatmul.mubr.bf16.gmra.mrb[0].mxu0 %v7670
  %v7939 = vpop.f32.mrb[0].mxu0
  %v7940 = vadd.f32 %v7843, %v7939
  %v7941 = vpop.f32.mrb[0].mxu0
  %v7942 = vpop.f32.mrb[0].mxu0
  %v7943 = vadd.f32 %v7846, %v7942
  %v7944 = vpop.f32.mrb[0].mxu0
  %7945 = vmatprep.mubr.bf16.mxu0 %v7680
  %7946 = vmatmul.mubr.bf16.gmra.mrb[0].mxu0 %v7679
  %v7947 = vpop.f32.mrb[0].mxu0
  %v7948 = vadd.f32 %v7851, %v7947
  %v7949 = vpop.f32.mrb[0].mxu0
  %v7950 = vpop.f32.mrb[0].mxu0
  %v7951 = vadd.f32 %v7854, %v7950
  %v7952 = vpop.f32.mrb[0].mxu0
  %7953 = vmatprep.mubr.bf16.mxu0 %v7689
  %7954 = vmatmul.mubr.bf16.gmra.mrb[0].mxu0 %v7688
  %v7955 = vpop.f32.mrb[0].mxu0
  %v7956 = vadd.f32 %v7859, %v7955
  %v7957 = vpop.f32.mrb[0].mxu0
  %v7958 = vpop.f32.mrb[0].mxu0
  %v7959 = vadd.f32 %v7862, %v7958
  %v7960 = vpop.f32.mrb[0].mxu0
  %7961 = vmatprep.mubr.bf16.mxu0 %v7698
  %7962 = vmatmul.mubr.bf16.gmra.mrb[0].mxu0 %v7697
  %v7963 = vpop.f32.mrb[0].mxu0
  %v7964 = vadd.f32 %v7867, %v7963
  %v7965 = vpop.f32.mrb[0].mxu0
  %v7966 = vpop.f32.mrb[0].mxu0
  %v7967 = vadd.f32 %v7870, %v7966
  %v7968 = vpop.f32.mrb[0].mxu0
  %7969 = vdwg.mxu0
  %7970 = vmatprep.subr.bf16.mxu0 0
  %7971 = vmatpush1.bf16.msra.mxu0 %v7272
  %7972 = vmatprep.subr.bf16.mxu0 0
  %7973 = vmatpush1.bf16.msra.mxu0 %v7273
  %7974 = vmatprep.subr.bf16.mxu0 0
  %7975 = vmatpush1.bf16.msra.mxu0 %v7274
  %7976 = vmatprep.subr.bf16.mxu0 0
  %7977 = vmatpush1.bf16.msra.mxu0 %v7275
  %7978 = vmatprep.subr.bf16.mxu0 0
  %7979 = vmatpush1.bf16.msra.mxu0 %v7276
  %7980 = vmatprep.subr.bf16.mxu0 0
  %7981 = vmatpush1.bf16.msra.mxu0 %v7277
  %7982 = vmatprep.subr.bf16.mxu0 0
  %7983 = vmatpush1.bf16.msra.mxu0 %v7278
  %7984 = vmatprep.subr.bf16.mxu0 0
  %7985 = vmatpush1.bf16.msra.mxu0 %v7279
  %7986 = vmatprep.subr.bf16.mxu0 0
  %7987 = vmatpush1.bf16.msra.mxu0 %v7280
  %7988 = vmatprep.subr.bf16.mxu0 0
  %7989 = vmatpush1.bf16.msra.mxu0 %v7281
  %7990 = vmatprep.subr.bf16.mxu0 0
  %7991 = vmatpush1.bf16.msra.mxu0 %v7282
  %7992 = vmatprep.subr.bf16.mxu0 0
  %7993 = vmatpush1.bf16.msra.mxu0 %v7283
  %7994 = vmatprep.subr.bf16.mxu0 0
  %7995 = vmatpush1.bf16.msra.mxu0 %v7284
  %7996 = vmatprep.subr.bf16.mxu0 0
  %7997 = vmatpush1.bf16.msra.mxu0 %v7285
  %7998 = vmatprep.subr.bf16.mxu0 0
  %7999 = vmatpush1.bf16.msra.mxu0 %v7286
  %8000 = vmatprep.subr.bf16.mxu0 0
  %8001 = vmatpush1.bf16.msra.mxu0 %v7287
  %8002 = vmatprep.mubr.bf16.mxu0 %v7637
  %8003 = vmatmul.mubr.bf16.gmra.mrb[0].mxu0 %v7636
  %v8004 = vpop.f32.mrb[0].mxu0
  %v8005 = vadd.f32 %v7908, %v8004
  %v8006 = vpop.f32.mrb[0].mxu0
  %v8007 = vpop.f32.mrb[0].mxu0
  %v8008 = vadd.f32 %v7911, %v8007
  %v8009 = vpop.f32.mrb[0].mxu0
  %8010 = vmatprep.mubr.bf16.mxu0 %v7646
  %8011 = vmatmul.mubr.bf16.gmra.mrb[0].mxu0 %v7645
  %v8012 = vpop.f32.mrb[0].mxu0
  %v8013 = vadd.f32 %v7916, %v8012
  %v8014 = vpop.f32.mrb[0].mxu0
  %v8015 = vpop.f32.mrb[0].mxu0
  %v8016 = vadd.f32 %v7919, %v8015
  %v8017 = vpop.f32.mrb[0].mxu0
  %8018 = vmatprep.mubr.bf16.mxu0 %v7655
  %8019 = vmatmul.mubr.bf16.gmra.mrb[0].mxu0 %v7654
  %v8020 = vpop.f32.mrb[0].mxu0
  %v8021 = vadd.f32 %v7924, %v8020
  %v8022 = vpop.f32.mrb[0].mxu0
  %v8023 = vpop.f32.mrb[0].mxu0
  %v8024 = vadd.f32 %v7927, %v8023
  %v8025 = vpop.f32.mrb[0].mxu0
  %8026 = vmatprep.mubr.bf16.mxu0 %v7664
  %8027 = vmatmul.mubr.bf16.gmra.mrb[0].mxu0 %v7663
  %v8028 = vpop.f32.mrb[0].mxu0
  %v8029 = vadd.f32 %v7932, %v8028
  %v8030 = vpop.f32.mrb[0].mxu0
  %v8031 = vpop.f32.mrb[0].mxu0
  %v8032 = vadd.f32 %v7935, %v8031
  %v8033 = vpop.f32.mrb[0].mxu0
  %8034 = vmatprep.mubr.bf16.mxu0 %v7673
  %8035 = vmatmul.mubr.bf16.gmra.mrb[0].mxu0 %v7672
  %v8036 = vpop.f32.mrb[0].mxu0
  %v8037 = vadd.f32 %v7940, %v8036
  %v8038 = vpop.f32.mrb[0].mxu0
  %v8039 = vpop.f32.mrb[0].mxu0
  %v8040 = vadd.f32 %v7943, %v8039
  %v8041 = vpop.f32.mrb[0].mxu0
  %8042 = vmatprep.mubr.bf16.mxu0 %v7682
  %8043 = vmatmul.mubr.bf16.gmra.mrb[0].mxu0 %v7681
  %v8044 = vpop.f32.mrb[0].mxu0
  %v8045 = vadd.f32 %v7948, %v8044
  %v8046 = vpop.f32.mrb[0].mxu0
  %v8047 = vpop.f32.mrb[0].mxu0
  %v8048 = vadd.f32 %v7951, %v8047
  %v8049 = vpop.f32.mrb[0].mxu0
  %8050 = vmatprep.mubr.bf16.mxu0 %v7691
  %8051 = vmatmul.mubr.bf16.gmra.mrb[0].mxu0 %v7690
  %v8052 = vpop.f32.mrb[0].mxu0
  %v8053 = vadd.f32 %v7956, %v8052
  %v8054 = vpop.f32.mrb[0].mxu0
  %v8055 = vpop.f32.mrb[0].mxu0
  %v8056 = vadd.f32 %v7959, %v8055
  %v8057 = vpop.f32.mrb[0].mxu0
  %8058 = vmatprep.mubr.bf16.mxu0 %v7700
  %8059 = vmatmul.mubr.bf16.gmra.mrb[0].mxu0 %v7699
  %v8060 = vpop.f32.mrb[0].mxu0
  %v8061 = vadd.f32 %v7964, %v8060
  %v8062 = vpop.f32.mrb[0].mxu0
  %v8063 = vpop.f32.mrb[0].mxu0
  %v8064 = vadd.f32 %v7967, %v8063
  %v8065 = vpop.f32.mrb[0].mxu0
  %8066 = vdwg.mxu0
  %8067 = vmatprep.subr.bf16.mxu0 0
  %8068 = vmatpush1.bf16.msra.mxu0 %v7288
  %8069 = vmatprep.subr.bf16.mxu0 0
  %8070 = vmatpush1.bf16.msra.mxu0 %v7289
  %8071 = vmatprep.subr.bf16.mxu0 0
  %8072 = vmatpush1.bf16.msra.mxu0 %v7290
  %8073 = vmatprep.subr.bf16.mxu0 0
  %8074 = vmatpush1.bf16.msra.mxu0 %v7291
  %8075 = vmatprep.subr.bf16.mxu0 0
  %8076 = vmatpush1.bf16.msra.mxu0 %v7292
  %8077 = vmatprep.subr.bf16.mxu0 0
  %8078 = vmatpush1.bf16.msra.mxu0 %v7293
  %8079 = vmatprep.subr.bf16.mxu0 0
  %8080 = vmatpush1.bf16.msra.mxu0 %v7294
  %8081 = vmatprep.subr.bf16.mxu0 0
  %8082 = vmatpush1.bf16.msra.mxu0 %v7295
  %8083 = vmatprep.subr.bf16.mxu0 0
  %8084 = vmatpush1.bf16.msra.mxu0 %v7296
  %8085 = vmatprep.subr.bf16.mxu0 0
  %8086 = vmatpush1.bf16.msra.mxu0 %v7297
  %8087 = vmatprep.subr.bf16.mxu0 0
  %8088 = vmatpush1.bf16.msra.mxu0 %v7298
  %8089 = vmatprep.subr.bf16.mxu0 0
  %8090 = vmatpush1.bf16.msra.mxu0 %v7299
  %8091 = vmatprep.subr.bf16.mxu0 0
  %8092 = vmatpush1.bf16.msra.mxu0 %v7300
  %8093 = vmatprep.subr.bf16.mxu0 0
  %8094 = vmatpush1.bf16.msra.mxu0 %v7301
  %8095 = vmatprep.subr.bf16.mxu0 0
  %8096 = vmatpush1.bf16.msra.mxu0 %v7302
  %8097 = vmatprep.subr.bf16.mxu0 0
  %8098 = vmatpush1.bf16.msra.mxu0 %v7303
  %8099 = vmatprep.mubr.bf16.mxu0 %v7639
  %8100 = vmatmul.mubr.bf16.gmra.mrb[0].mxu0 %v7638
  %v8101 = vpop.f32.mrb[0].mxu0
  %v8102 = vadd.f32 %v8005, %v8101
  %v8103 = vpop.f32.mrb[0].mxu0
  %v8104 = vpop.f32.mrb[0].mxu0
  %v8105 = vadd.f32 %v8008, %v8104
  %v8106 = vpop.f32.mrb[0].mxu0
  %8107 = vmatprep.mubr.bf16.mxu0 %v7648
  %8108 = vmatmul.mubr.bf16.gmra.mrb[0].mxu0 %v7647
  %v8109 = vpop.f32.mrb[0].mxu0
  %v8110 = vadd.f32 %v8013, %v8109
  %v8111 = vpop.f32.mrb[0].mxu0
  %v8112 = vpop.f32.mrb[0].mxu0
  %v8113 = vadd.f32 %v8016, %v8112
  %v8114 = vpop.f32.mrb[0].mxu0
  %8115 = vmatprep.mubr.bf16.mxu0 %v7657
  %8116 = vmatmul.mubr.bf16.gmra.mrb[0].mxu0 %v7656
  %v8117 = vpop.f32.mrb[0].mxu0
  %v8118 = vadd.f32 %v8021, %v8117
  %v8119 = vpop.f32.mrb[0].mxu0
  %v8120 = vpop.f32.mrb[0].mxu0
  %v8121 = vadd.f32 %v8024, %v8120
  %v8122 = vpop.f32.mrb[0].mxu0
  %8123 = vmatprep.mubr.bf16.mxu0 %v7666
  %8124 = vmatmul.mubr.bf16.gmra.mrb[0].mxu0 %v7665
  %v8125 = vpop.f32.mrb[0].mxu0
  %v8126 = vadd.f32 %v8029, %v8125
  %v8127 = vpop.f32.mrb[0].mxu0
  %v8128 = vpop.f32.mrb[0].mxu0
  %v8129 = vadd.f32 %v8032, %v8128
  %v8130 = vpop.f32.mrb[0].mxu0
  %8131 = vmatprep.mubr.bf16.mxu0 %v7675
  %8132 = vmatmul.mubr.bf16.gmra.mrb[0].mxu0 %v7674
  %v8133 = vpop.f32.mrb[0].mxu0
  %v8134 = vadd.f32 %v8037, %v8133
  %v8135 = vpop.f32.mrb[0].mxu0
  %v8136 = vpop.f32.mrb[0].mxu0
  %v8137 = vadd.f32 %v8040, %v8136
  %v8138 = vpop.f32.mrb[0].mxu0
  %8139 = vmatprep.mubr.bf16.mxu0 %v7684
  %8140 = vmatmul.mubr.bf16.gmra.mrb[0].mxu0 %v7683
  %v8141 = vpop.f32.mrb[0].mxu0
  %v8142 = vadd.f32 %v8045, %v8141
  %v8143 = vpop.f32.mrb[0].mxu0
  %v8144 = vpop.f32.mrb[0].mxu0
  %v8145 = vadd.f32 %v8048, %v8144
  %v8146 = vpop.f32.mrb[0].mxu0
  %8147 = vmatprep.mubr.bf16.mxu0 %v7693
  %8148 = vmatmul.mubr.bf16.gmra.mrb[0].mxu0 %v7692
  %v8149 = vpop.f32.mrb[0].mxu0
  %v8150 = vadd.f32 %v8053, %v8149
  %v8151 = vpop.f32.mrb[0].mxu0
  %v8152 = vpop.f32.mrb[0].mxu0
  %v8153 = vadd.f32 %v8056, %v8152
  %v8154 = vpop.f32.mrb[0].mxu0
  %8155 = vmatprep.mubr.bf16.mxu0 %v7702
  %8156 = vmatmul.mubr.bf16.gmra.mrb[0].mxu0 %v7701
  %v8157 = vpop.f32.mrb[0].mxu0
  %v8158 = vadd.f32 %v8061, %v8157
  %v8159 = vpop.f32.mrb[0].mxu0
  %v8160 = vpop.f32.mrb[0].mxu0
  %v8161 = vadd.f32 %v8064, %v8160
  %v8162 = vpop.f32.mrb[0].mxu0
  %8163 = vdwg.mxu0
  %8164 = vmatprep.subr.bf16.mxu0 0
  %8165 = vmatpush1.bf16.msra.mxu0 %v7304
  %8166 = vmatprep.subr.bf16.mxu0 0
  %8167 = vmatpush1.bf16.msra.mxu0 %v7305
  %8168 = vmatprep.subr.bf16.mxu0 0
  %8169 = vmatpush1.bf16.msra.mxu0 %v7306
  %8170 = vmatprep.subr.bf16.mxu0 0
  %8171 = vmatpush1.bf16.msra.mxu0 %v7307
  %8172 = vmatprep.subr.bf16.mxu0 0
  %8173 = vmatpush1.bf16.msra.mxu0 %v7308
  %8174 = vmatprep.subr.bf16.mxu0 0
  %8175 = vmatpush1.bf16.msra.mxu0 %v7309
  %8176 = vmatprep.subr.bf16.mxu0 0
  %8177 = vmatpush1.bf16.msra.mxu0 %v7310
  %8178 = vmatprep.subr.bf16.mxu0 0
  %8179 = vmatpush1.bf16.msra.mxu0 %v7311
  %8180 = vmatprep.subr.bf16.mxu0 0
  %8181 = vmatpush1.bf16.msra.mxu0 0
  %8182 = vmatprep.subr.bf16.mxu0 0
  %8183 = vmatpush1.bf16.msra.mxu0 0
  %8184 = vmatprep.subr.bf16.mxu0 0
  %8185 = vmatpush1.bf16.msra.mxu0 0
  %8186 = vmatprep.subr.bf16.mxu0 0
  %8187 = vmatpush1.bf16.msra.mxu0 0
  %8188 = vmatprep.subr.bf16.mxu0 0
  %8189 = vmatpush1.bf16.msra.mxu0 0
  %8190 = vmatprep.subr.bf16.mxu0 0
  %8191 = vmatpush1.bf16.msra.mxu0 0
  %8192 = vmatprep.subr.bf16.mxu0 0
  %8193 = vmatpush1.bf16.msra.mxu0 0
  %8194 = vmatprep.subr.bf16.mxu0 0
  %8195 = vmatpush1.bf16.msra.mxu0 0
  %8196 = vmatprep.mubr.bf16.mxu0 0
  %8197 = vmatmul.mubr.bf16.gmra.mrb[0].mxu0 %v7640
  %v8198 = vpop.f32.mrb[0].mxu0
  %v8199 = vadd.f32 %v8102, %v8198
  %v8200 = vpop.f32.mrb[0].mxu0
  %v8201 = vpop.f32.mrb[0].mxu0
  %v8202 = vadd.f32 %v8105, %v8201
  %v8203 = vpop.f32.mrb[0].mxu0
  %8204 = vmatprep.mubr.bf16.mxu0 0
  %8205 = vmatmul.mubr.bf16.gmra.mrb[0].mxu0 %v7649
  %v8206 = vpop.f32.mrb[0].mxu0
  %v8207 = vadd.f32 %v8110, %v8206
  %v8208 = vpop.f32.mrb[0].mxu0
  %v8209 = vpop.f32.mrb[0].mxu0
  %v8210 = vadd.f32 %v8113, %v8209
  %v8211 = vpop.f32.mrb[0].mxu0
  %8212 = vmatprep.mubr.bf16.mxu0 0
  %8213 = vmatmul.mubr.bf16.gmra.mrb[0].mxu0 %v7658
  %v8214 = vpop.f32.mrb[0].mxu0
  %v8215 = vadd.f32 %v8118, %v8214
  %v8216 = vpop.f32.mrb[0].mxu0
  %v8217 = vpop.f32.mrb[0].mxu0
  %v8218 = vadd.f32 %v8121, %v8217
  %v8219 = vpop.f32.mrb[0].mxu0
  %8220 = vmatprep.mubr.bf16.mxu0 0
  %8221 = vmatmul.mubr.bf16.gmra.mrb[0].mxu0 %v7667
  %v8222 = vpop.f32.mrb[0].mxu0
  %v8223 = vadd.f32 %v8126, %v8222
  %v8224 = vpop.f32.mrb[0].mxu0
  %v8225 = vpop.f32.mrb[0].mxu0
  %v8226 = vadd.f32 %v8129, %v8225
  %v8227 = vpop.f32.mrb[0].mxu0
  %8228 = vmatprep.mubr.bf16.mxu0 0
  %8229 = vmatmul.mubr.bf16.gmra.mrb[0].mxu0 %v7676
  %v8230 = vpop.f32.mrb[0].mxu0
  %v8231 = vadd.f32 %v8134, %v8230
  %v8232 = vpop.f32.mrb[0].mxu0
  %v8233 = vpop.f32.mrb[0].mxu0
  %v8234 = vadd.f32 %v8137, %v8233
  %v8235 = vpop.f32.mrb[0].mxu0
  %8236 = vmatprep.mubr.bf16.mxu0 0
  %8237 = vmatmul.mubr.bf16.gmra.mrb[0].mxu0 %v7685
  %v8238 = vpop.f32.mrb[0].mxu0
  %v8239 = vadd.f32 %v8142, %v8238
  %v8240 = vpop.f32.mrb[0].mxu0
  %v8241 = vpop.f32.mrb[0].mxu0
  %v8242 = vadd.f32 %v8145, %v8241
  %v8243 = vpop.f32.mrb[0].mxu0
  %8244 = vmatprep.mubr.bf16.mxu0 0
  %8245 = vmatmul.mubr.bf16.gmra.mrb[0].mxu0 %v7694
  %v8246 = vpop.f32.mrb[0].mxu0
  %v8247 = vadd.f32 %v8150, %v8246
  %v8248 = vpop.f32.mrb[0].mxu0
  %v8249 = vpop.f32.mrb[0].mxu0
  %v8250 = vadd.f32 %v8153, %v8249
  %v8251 = vpop.f32.mrb[0].mxu0
  %8252 = vmatprep.mubr.bf16.mxu0 0
  %8253 = vmatmul.mubr.bf16.gmra.mrb[0].mxu0 %v7703
  %v8254 = vpop.f32.mrb[0].mxu0
  %v8255 = vadd.f32 %v8158, %v8254
  %v8256 = vpop.f32.mrb[0].mxu0
  %v8257 = vpop.f32.mrb[0].mxu0
  %v8258 = vadd.f32 %v8161, %v8257
  %v8259 = vpop.f32.mrb[0].mxu0
  %8260 = vdwg.mxu0
  %v8261 = vmax.f32 %v8199, 0.0
  %v8262 = vmax.f32 %v8202, 0.0
  %v8263 = vmax.f32 %v8207, 0.0
  %v8264 = vmax.f32 %v8210, 0.0
  %v8265 = vmax.f32 %v8215, 0.0
  %v8266 = vmax.f32 %v8218, 0.0
  %v8267 = vmax.f32 %v8223, 0.0
  %v8268 = vmax.f32 %v8226, 0.0
  %v8269 = vmax.f32 %v8231, 0.0
  %v8270 = vmax.f32 %v8234, 0.0
  %v8271 = vmax.f32 %v8239, 0.0
  %v8272 = vmax.f32 %v8242, 0.0
  %v8273 = vmax.f32 %v8247, 0.0
  %v8274 = vmax.f32 %v8250, 0.0
  %v8275 = vmax.f32 %v8255, 0.0
  %v8276 = vmax.f32 %v8258, 0.0
  %v8277 = vpack.c.bf16 %v8262, %v8261
  %v8278 = vpack.c.bf16 %v8264, %v8263
  %v8279 = vpack.c.bf16 %v8266, %v8265
  %v8280 = vpack.c.bf16 %v8268, %v8267
  %v8281 = vpack.c.bf16 %v8270, %v8269
  %v8282 = vpack.c.bf16 %v8272, %v8271
  %v8283 = vpack.c.bf16 %v8274, %v8273
  %v8284 = vpack.c.bf16 %v8276, %v8275
  %v8285 = vunpack.c.l.bf16 %v6747
  %v8286 = vunpack.c.h.bf16 %v6747
  %v8287 = vunpack.c.l.bf16 %v6748
  %v8288 = vunpack.c.h.bf16 %v6748
  %v8289 = vunpack.c.l.bf16 %v6749
  %v8290 = vunpack.c.h.bf16 %v6749
  %v8291 = vunpack.c.l.bf16 %v6750
  %v8292 = vunpack.c.h.bf16 %v6750
  %v8293 = vunpack.c.l.bf16 %v6751
  %v8294 = vunpack.c.h.bf16 %v6751
  %v8295 = vunpack.c.l.bf16 %v6752
  %v8296 = vunpack.c.h.bf16 %v6752
  %v8297 = vunpack.c.l.bf16 %v6753
  %v8298 = vunpack.c.h.bf16 %v6753
  %v8299 = vunpack.c.l.bf16 %v6754
  %v8300 = vunpack.c.h.bf16 %v6754
  %v8301 = vld [vmem:[%s17] sm:$0xf]
  %v8303 = vsel %vm3986, %v8277, 0
  %v8306 = vsel %vm3986, %v8278, 0
  %v8309 = vsel %vm3986, %v8279, 0
  %v8312 = vsel %vm3986, %v8280, 0
  %v8315 = vsel %vm3986, %v8281, 0
  %v8318 = vsel %vm3986, %v8282, 0
  %v8321 = vsel %vm3986, %v8283, 0
  %v8324 = vsel %vm3986, %v8284, 0
  %v8327 = vsel %vm5233, %v8301, 0
  %8329 = vmatprep.subr.bf16.mxu0 0
  %8330 = vmatpush1.bf16.msra.mxu0 %v8327
  %8331 = vmatprep.subr.bf16.mxu0 0
  %8332 = vmatpush1.bf16.msra.mxu0 0
  %8333 = vmatprep.subr.bf16.mxu0 0
  %8334 = vmatpush1.bf16.msra.mxu0 0
  %8335 = vmatprep.subr.bf16.mxu0 0
  %8336 = vmatpush1.bf16.msra.mxu0 0
  %8337 = vmatprep.subr.bf16.mxu0 0
  %8338 = vmatpush1.bf16.msra.mxu0 0
  %8339 = vmatprep.subr.bf16.mxu0 0
  %8340 = vmatpush1.bf16.msra.mxu0 0
  %8341 = vmatprep.subr.bf16.mxu0 0
  %8342 = vmatpush1.bf16.msra.mxu0 0
  %8343 = vmatprep.subr.bf16.mxu0 0
  %8344 = vmatpush1.bf16.msra.mxu0 0
  %8345 = vmatprep.subr.bf16.mxu0 0
  %8346 = vmatpush1.bf16.msra.mxu0 0
  %8347 = vmatprep.subr.bf16.mxu0 0
  %8348 = vmatpush1.bf16.msra.mxu0 0
  %8349 = vmatprep.subr.bf16.mxu0 0
  %8350 = vmatpush1.bf16.msra.mxu0 0
  %8351 = vmatprep.subr.bf16.mxu0 0
  %8352 = vmatpush1.bf16.msra.mxu0 0
  %8353 = vmatprep.subr.bf16.mxu0 0
  %8354 = vmatpush1.bf16.msra.mxu0 0
  %8355 = vmatprep.subr.bf16.mxu0 0
  %8356 = vmatpush1.bf16.msra.mxu0 0
  %8357 = vmatprep.subr.bf16.mxu0 0
  %8358 = vmatpush1.bf16.msra.mxu0 0
  %8359 = vmatprep.subr.bf16.mxu0 0
  %8360 = vmatpush1.bf16.msra.mxu0 0
  %8361 = vmatprep.mubr.bf16.mxu0 0
  %8362 = vmatmul.mubr.bf16.gmra.mrb[0].mxu0 %v8303
  %v8363 = vpop.f32.mrb[0].mxu0
  %v8364 = vadd.f32 0.0, %v8363
  %v8365 = vpop.f32.mrb[0].mxu0
  %v8366 = vpop.f32.mrb[0].mxu0
  %v8367 = vadd.f32 0.0, %v8366
  %v8368 = vpop.f32.mrb[0].mxu0
  %8369 = vmatprep.mubr.bf16.mxu0 0
  %8370 = vmatmul.mubr.bf16.gmra.mrb[0].mxu0 %v8306
  %v8371 = vpop.f32.mrb[0].mxu0
  %v8372 = vadd.f32 0.0, %v8371
  %v8373 = vpop.f32.mrb[0].mxu0
  %v8374 = vpop.f32.mrb[0].mxu0
  %v8375 = vadd.f32 0.0, %v8374
  %v8376 = vpop.f32.mrb[0].mxu0
  %8377 = vmatprep.mubr.bf16.mxu0 0
  %8378 = vmatmul.mubr.bf16.gmra.mrb[0].mxu0 %v8309
  %v8379 = vpop.f32.mrb[0].mxu0
  %v8380 = vadd.f32 0.0, %v8379
  %v8381 = vpop.f32.mrb[0].mxu0
  %v8382 = vpop.f32.mrb[0].mxu0
  %v8383 = vadd.f32 0.0, %v8382
  %v8384 = vpop.f32.mrb[0].mxu0
  %8385 = vmatprep.mubr.bf16.mxu0 0
  %8386 = vmatmul.mubr.bf16.gmra.mrb[0].mxu0 %v8312
  %v8387 = vpop.f32.mrb[0].mxu0
  %v8388 = vadd.f32 0.0, %v8387
  %v8389 = vpop.f32.mrb[0].mxu0
  %v8390 = vpop.f32.mrb[0].mxu0
  %v8391 = vadd.f32 0.0, %v8390
  %v8392 = vpop.f32.mrb[0].mxu0
  %8393 = vmatprep.mubr.bf16.mxu0 0
  %8394 = vmatmul.mubr.bf16.gmra.mrb[0].mxu0 %v8315
  %v8395 = vpop.f32.mrb[0].mxu0
  %v8396 = vadd.f32 0.0, %v8395
  %v8397 = vpop.f32.mrb[0].mxu0
  %v8398 = vpop.f32.mrb[0].mxu0
  %v8399 = vadd.f32 0.0, %v8398
  %v8400 = vpop.f32.mrb[0].mxu0
  %8401 = vmatprep.mubr.bf16.mxu0 0
  %8402 = vmatmul.mubr.bf16.gmra.mrb[0].mxu0 %v8318
  %v8403 = vpop.f32.mrb[0].mxu0
  %v8404 = vadd.f32 0.0, %v8403
  %v8405 = vpop.f32.mrb[0].mxu0
  %v8406 = vpop.f32.mrb[0].mxu0
  %v8407 = vadd.f32 0.0, %v8406
  %v8408 = vpop.f32.mrb[0].mxu0
  %8409 = vmatprep.mubr.bf16.mxu0 0
  %8410 = vmatmul.mubr.bf16.gmra.mrb[0].mxu0 %v8321
  %v8411 = vpop.f32.mrb[0].mxu0
  %v8412 = vadd.f32 0.0, %v8411
  %v8413 = vpop.f32.mrb[0].mxu0
  %v8414 = vpop.f32.mrb[0].mxu0
  %v8415 = vadd.f32 0.0, %v8414
  %v8416 = vpop.f32.mrb[0].mxu0
  %8417 = vmatprep.mubr.bf16.mxu0 0
  %8418 = vmatmul.mubr.bf16.gmra.mrb[0].mxu0 %v8324
  %v8419 = vpop.f32.mrb[0].mxu0
  %v8420 = vadd.f32 0.0, %v8419
  %v8421 = vpop.f32.mrb[0].mxu0
  %v8422 = vpop.f32.mrb[0].mxu0
  %v8423 = vadd.f32 0.0, %v8422
  %v8424 = vpop.f32.mrb[0].mxu0
  %8425 = vdwg.mxu0
  %v8426 = vpack.c.bf16 %v8367, %v8364
  %v8427 = vpack.c.bf16 %v8375, %v8372
  %v8428 = vpack.c.bf16 %v8383, %v8380
  %v8429 = vpack.c.bf16 %v8391, %v8388
  %v8430 = vpack.c.bf16 %v8399, %v8396
  %v8431 = vpack.c.bf16 %v8407, %v8404
  %v8432 = vpack.c.bf16 %v8415, %v8412
  %v8433 = vpack.c.bf16 %v8423, %v8420
  %8434 = vst.msk [vmem:[#allocation2] sm:$0xff] %vm3986, %v8426
  %8435 = vst.msk [vmem:[#allocation2 + $0x8] sm:$0xff] %vm3986, %v8427
  %8436 = vst.msk [vmem:[#allocation2 + $0x10] sm:$0xff] %vm3986, %v8428
  %8437 = vst.msk [vmem:[#allocation2 + $0x18] sm:$0xff] %vm3986, %v8429
  %8438 = vst.msk [vmem:[#allocation2 + $0x20] sm:$0xff] %vm3986, %v8430
  %8439 = vst.msk [vmem:[#allocation2 + $0x28] sm:$0xff] %vm3986, %v8431
  %8440 = vst.msk [vmem:[#allocation2 + $0x30] sm:$0xff] %vm3986, %v8432
  %8441 = vst.msk [vmem:[#allocation2 + $0x38] sm:$0xff] %vm3986, %v8433
  %8450 = vrot.lane.b32.xlu0 %v8426, 120
  %v8451 = vpop.permute.xlu0 %8450
  %8452 = vrot.lane.b32.xlu0 %v8427, 120
  %v8453 = vpop.permute.xlu0 %8452
  %8454 = vrot.lane.b32.xlu0 %v8428, 120
  %v8455 = vpop.permute.xlu0 %8454
  %8456 = vrot.lane.b32.xlu0 %v8429, 120
  %v8457 = vpop.permute.xlu0 %8456
  %8458 = vrot.lane.b32.xlu0 %v8430, 120
  %v8459 = vpop.permute.xlu0 %8458
  %8460 = vrot.lane.b32.xlu0 %v8431, 120
  %v8461 = vpop.permute.xlu0 %8460
  %8462 = vrot.lane.b32.xlu0 %v8432, 120
  %v8463 = vpop.permute.xlu0 %8462
  %8464 = vrot.lane.b32.xlu0 %v8433, 120
  %v8465 = vpop.permute.xlu0 %8464
  %8474 = vst.msk [vmem:[#allocation2 + $0x40] sm:$0xff] %vm3986, %v8451
  %8475 = vst.msk [vmem:[#allocation2 + $0x48] sm:$0xff] %vm3986, %v8453
  %8476 = vst.msk [vmem:[#allocation2 + $0x50] sm:$0xff] %vm3986, %v8455
  %8477 = vst.msk [vmem:[#allocation2 + $0x58] sm:$0xff] %vm3986, %v8457
  %8478 = vst.msk [vmem:[#allocation2 + $0x60] sm:$0xff] %vm3986, %v8459
  %8479 = vst.msk [vmem:[#allocation2 + $0x68] sm:$0xff] %vm3986, %v8461
  %8480 = vst.msk [vmem:[#allocation2 + $0x70] sm:$0xff] %vm3986, %v8463
  %8481 = vst.msk [vmem:[#allocation2 + $0x78] sm:$0xff] %vm3986, %v8465
  %8482 = vrot.lane.b32.xlu0 %v8426, 112
  %v8483 = vpop.permute.xlu0 %8482
  %8484 = vrot.lane.b32.xlu0 %v8427, 112
  %v8485 = vpop.permute.xlu0 %8484
  %8486 = vrot.lane.b32.xlu0 %v8428, 112
  %v8487 = vpop.permute.xlu0 %8486
  %8488 = vrot.lane.b32.xlu0 %v8429, 112
  %v8489 = vpop.permute.xlu0 %8488
  %8490 = vrot.lane.b32.xlu0 %v8430, 112
  %v8491 = vpop.permute.xlu0 %8490
  %8492 = vrot.lane.b32.xlu0 %v8431, 112
  %v8493 = vpop.permute.xlu0 %8492
  %8494 = vrot.lane.b32.xlu0 %v8432, 112
  %v8495 = vpop.permute.xlu0 %8494
  %8496 = vrot.lane.b32.xlu0 %v8433, 112
  %v8497 = vpop.permute.xlu0 %8496
  %8506 = vst.msk [vmem:[#allocation2 + $0x80] sm:$0xff] %vm3986, %v8483
  %8507 = vst.msk [vmem:[#allocation2 + $0x88] sm:$0xff] %vm3986, %v8485
  %8508 = vst.msk [vmem:[#allocation2 + $0x90] sm:$0xff] %vm3986, %v8487
  %8509 = vst.msk [vmem:[#allocation2 + $0x98] sm:$0xff] %vm3986, %v8489
  %8510 = vst.msk [vmem:[#allocation2 + $0xa0] sm:$0xff] %vm3986, %v8491
  %8511 = vst.msk [vmem:[#allocation2 + $0xa8] sm:$0xff] %vm3986, %v8493
  %8512 = vst.msk [vmem:[#allocation2 + $0xb0] sm:$0xff] %vm3986, %v8495
  %8513 = vst.msk [vmem:[#allocation2 + $0xb8] sm:$0xff] %vm3986, %v8497
  %8514 = vrot.lane.b32.xlu0 %v8426, 104
  %v8515 = vpop.permute.xlu0 %8514
  %8516 = vrot.lane.b32.xlu0 %v8427, 104
  %v8517 = vpop.permute.xlu0 %8516
  %8518 = vrot.lane.b32.xlu0 %v8428, 104
  %v8519 = vpop.permute.xlu0 %8518
  %8520 = vrot.lane.b32.xlu0 %v8429, 104
  %v8521 = vpop.permute.xlu0 %8520
  %8522 = vrot.lane.b32.xlu0 %v8430, 104
  %v8523 = vpop.permute.xlu0 %8522
  %8524 = vrot.lane.b32.xlu0 %v8431, 104
  %v8525 = vpop.permute.xlu0 %8524
  %8526 = vrot.lane.b32.xlu0 %v8432, 104
  %v8527 = vpop.permute.xlu0 %8526
  %8528 = vrot.lane.b32.xlu0 %v8433, 104
  %v8529 = vpop.permute.xlu0 %8528
  %8538 = vst.msk [vmem:[#allocation2 + $0xc0] sm:$0xff] %vm3986, %v8515
  %8539 = vst.msk [vmem:[#allocation2 + $0xc8] sm:$0xff] %vm3986, %v8517
  %8540 = vst.msk [vmem:[#allocation2 + $0xd0] sm:$0xff] %vm3986, %v8519
  %8541 = vst.msk [vmem:[#allocation2 + $0xd8] sm:$0xff] %vm3986, %v8521
  %8542 = vst.msk [vmem:[#allocation2 + $0xe0] sm:$0xff] %vm3986, %v8523
  %8543 = vst.msk [vmem:[#allocation2 + $0xe8] sm:$0xff] %vm3986, %v8525
  %8544 = vst.msk [vmem:[#allocation2 + $0xf0] sm:$0xff] %vm3986, %v8527
  %8545 = vst.msk [vmem:[#allocation2 + $0xf8] sm:$0xff] %vm3986, %v8529
  %8546 = vrot.lane.b32.xlu0 %v8426, 96
  %v8547 = vpop.permute.xlu0 %8546
  %8548 = vrot.lane.b32.xlu0 %v8427, 96
  %v8549 = vpop.permute.xlu0 %8548
  %8550 = vrot.lane.b32.xlu0 %v8428, 96
  %v8551 = vpop.permute.xlu0 %8550
  %8552 = vrot.lane.b32.xlu0 %v8429, 96
  %v8553 = vpop.permute.xlu0 %8552
  %8554 = vrot.lane.b32.xlu0 %v8430, 96
  %v8555 = vpop.permute.xlu0 %8554
  %8556 = vrot.lane.b32.xlu0 %v8431, 96
  %v8557 = vpop.permute.xlu0 %8556
  %8558 = vrot.lane.b32.xlu0 %v8432, 96
  %v8559 = vpop.permute.xlu0 %8558
  %8560 = vrot.lane.b32.xlu0 %v8433, 96
  %v8561 = vpop.permute.xlu0 %8560
  %8570 = vst.msk [vmem:[#allocation2 + $0x100] sm:$0xff] %vm3986, %v8547
  %8571 = vst.msk [vmem:[#allocation2 + $0x108] sm:$0xff] %vm3986, %v8549
  %8572 = vst.msk [vmem:[#allocation2 + $0x110] sm:$0xff] %vm3986, %v8551
  %8573 = vst.msk [vmem:[#allocation2 + $0x118] sm:$0xff] %vm3986, %v8553
  %8574 = vst.msk [vmem:[#allocation2 + $0x120] sm:$0xff] %vm3986, %v8555
  %8575 = vst.msk [vmem:[#allocation2 + $0x128] sm:$0xff] %vm3986, %v8557
  %8576 = vst.msk [vmem:[#allocation2 + $0x130] sm:$0xff] %vm3986, %v8559
  %8577 = vst.msk [vmem:[#allocation2 + $0x138] sm:$0xff] %vm3986, %v8561
  %8578 = vrot.lane.b32.xlu0 %v8426, 88
  %v8579 = vpop.permute.xlu0 %8578
  %8580 = vrot.lane.b32.xlu0 %v8427, 88
  %v8581 = vpop.permute.xlu0 %8580
  %8582 = vrot.lane.b32.xlu0 %v8428, 88
  %v8583 = vpop.permute.xlu0 %8582
  %8584 = vrot.lane.b32.xlu0 %v8429, 88
  %v8585 = vpop.permute.xlu0 %8584
  %8586 = vrot.lane.b32.xlu0 %v8430, 88
  %v8587 = vpop.permute.xlu0 %8586
  %8588 = vrot.lane.b32.xlu0 %v8431, 88
  %v8589 = vpop.permute.xlu0 %8588
  %8590 = vrot.lane.b32.xlu0 %v8432, 88
  %v8591 = vpop.permute.xlu0 %8590
  %8592 = vrot.lane.b32.xlu0 %v8433, 88
  %v8593 = vpop.permute.xlu0 %8592
  %8602 = vst.msk [vmem:[#allocation2 + $0x140] sm:$0xff] %vm3986, %v8579
  %8603 = vst.msk [vmem:[#allocation2 + $0x148] sm:$0xff] %vm3986, %v8581
  %8604 = vst.msk [vmem:[#allocation2 + $0x150] sm:$0xff] %vm3986, %v8583
  %8605 = vst.msk [vmem:[#allocation2 + $0x158] sm:$0xff] %vm3986, %v8585
  %8606 = vst.msk [vmem:[#allocation2 + $0x160] sm:$0xff] %vm3986, %v8587
  %8607 = vst.msk [vmem:[#allocation2 + $0x168] sm:$0xff] %vm3986, %v8589
  %8608 = vst.msk [vmem:[#allocation2 + $0x170] sm:$0xff] %vm3986, %v8591
  %8609 = vst.msk [vmem:[#allocation2 + $0x178] sm:$0xff] %vm3986, %v8593
  %8610 = vrot.lane.b32.xlu0 %v8426, 80
  %v8611 = vpop.permute.xlu0 %8610
  %8612 = vrot.lane.b32.xlu0 %v8427, 80
  %v8613 = vpop.permute.xlu0 %8612
  %8614 = vrot.lane.b32.xlu0 %v8428, 80
  %v8615 = vpop.permute.xlu0 %8614
  %8616 = vrot.lane.b32.xlu0 %v8429, 80
  %v8617 = vpop.permute.xlu0 %8616
  %8618 = vrot.lane.b32.xlu0 %v8430, 80
  %v8619 = vpop.permute.xlu0 %8618
  %8620 = vrot.lane.b32.xlu0 %v8431, 80
  %v8621 = vpop.permute.xlu0 %8620
  %8622 = vrot.lane.b32.xlu0 %v8432, 80
  %v8623 = vpop.permute.xlu0 %8622
  %8624 = vrot.lane.b32.xlu0 %v8433, 80
  %v8625 = vpop.permute.xlu0 %8624
  %8634 = vst.msk [vmem:[#allocation2 + $0x180] sm:$0xff] %vm3986, %v8611
  %8635 = vst.msk [vmem:[#allocation2 + $0x188] sm:$0xff] %vm3986, %v8613
  %8636 = vst.msk [vmem:[#allocation2 + $0x190] sm:$0xff] %vm3986, %v8615
  %8637 = vst.msk [vmem:[#allocation2 + $0x198] sm:$0xff] %vm3986, %v8617
  %8638 = vst.msk [vmem:[#allocation2 + $0x1a0] sm:$0xff] %vm3986, %v8619
  %8639 = vst.msk [vmem:[#allocation2 + $0x1a8] sm:$0xff] %vm3986, %v8621
  %8640 = vst.msk [vmem:[#allocation2 + $0x1b0] sm:$0xff] %vm3986, %v8623
  %8641 = vst.msk [vmem:[#allocation2 + $0x1b8] sm:$0xff] %vm3986, %v8625
  %8642 = vrot.lane.b32.xlu0 %v8426, 72
  %v8643 = vpop.permute.xlu0 %8642
  %8644 = vrot.lane.b32.xlu0 %v8427, 72
  %v8645 = vpop.permute.xlu0 %8644
  %8646 = vrot.lane.b32.xlu0 %v8428, 72
  %v8647 = vpop.permute.xlu0 %8646
  %8648 = vrot.lane.b32.xlu0 %v8429, 72
  %v8649 = vpop.permute.xlu0 %8648
  %8650 = vrot.lane.b32.xlu0 %v8430, 72
  %v8651 = vpop.permute.xlu0 %8650
  %8652 = vrot.lane.b32.xlu0 %v8431, 72
  %v8653 = vpop.permute.xlu0 %8652
  %8654 = vrot.lane.b32.xlu0 %v8432, 72
  %v8655 = vpop.permute.xlu0 %8654
  %8656 = vrot.lane.b32.xlu0 %v8433, 72
  %v8657 = vpop.permute.xlu0 %8656
  %8666 = vst.msk [vmem:[#allocation2 + $0x1c0] sm:$0xff] %vm3986, %v8643
  %8667 = vst.msk [vmem:[#allocation2 + $0x1c8] sm:$0xff] %vm3986, %v8645
  %8668 = vst.msk [vmem:[#allocation2 + $0x1d0] sm:$0xff] %vm3986, %v8647
  %8669 = vst.msk [vmem:[#allocation2 + $0x1d8] sm:$0xff] %vm3986, %v8649
  %8670 = vst.msk [vmem:[#allocation2 + $0x1e0] sm:$0xff] %vm3986, %v8651
  %8671 = vst.msk [vmem:[#allocation2 + $0x1e8] sm:$0xff] %vm3986, %v8653
  %8672 = vst.msk [vmem:[#allocation2 + $0x1f0] sm:$0xff] %vm3986, %v8655
  %8673 = vst.msk [vmem:[#allocation2 + $0x1f8] sm:$0xff] %vm3986, %v8657
  %8674 = vrot.lane.b32.xlu0 %v8426, 64
  %v8675 = vpop.permute.xlu0 %8674
  %8676 = vrot.lane.b32.xlu0 %v8427, 64
  %v8677 = vpop.permute.xlu0 %8676
  %8678 = vrot.lane.b32.xlu0 %v8428, 64
  %v8679 = vpop.permute.xlu0 %8678
  %8680 = vrot.lane.b32.xlu0 %v8429, 64
  %v8681 = vpop.permute.xlu0 %8680
  %8682 = vrot.lane.b32.xlu0 %v8430, 64
  %v8683 = vpop.permute.xlu0 %8682
  %8684 = vrot.lane.b32.xlu0 %v8431, 64
  %v8685 = vpop.permute.xlu0 %8684
  %8686 = vrot.lane.b32.xlu0 %v8432, 64
  %v8687 = vpop.permute.xlu0 %8686
  %8688 = vrot.lane.b32.xlu0 %v8433, 64
  %v8689 = vpop.permute.xlu0 %8688
  %8698 = vst.msk [vmem:[#allocation2 + $0x200] sm:$0xff] %vm3986, %v8675
  %8699 = vst.msk [vmem:[#allocation2 + $0x208] sm:$0xff] %vm3986, %v8677
  %8700 = vst.msk [vmem:[#allocation2 + $0x210] sm:$0xff] %vm3986, %v8679
  %8701 = vst.msk [vmem:[#allocation2 + $0x218] sm:$0xff] %vm3986, %v8681
  %8702 = vst.msk [vmem:[#allocation2 + $0x220] sm:$0xff] %vm3986, %v8683
  %8703 = vst.msk [vmem:[#allocation2 + $0x228] sm:$0xff] %vm3986, %v8685
  %8704 = vst.msk [vmem:[#allocation2 + $0x230] sm:$0xff] %vm3986, %v8687
  %8705 = vst.msk [vmem:[#allocation2 + $0x238] sm:$0xff] %vm3986, %v8689
  %v8706 = vld [vmem:[%s10] sm:$0xff]
  %v8707 = vld [vmem:[%s10 + $0x8] sm:$0xff]
  %v8708 = vld [vmem:[%s10 + $0x10] sm:$0xff]
  %v8709 = vld [vmem:[%s10 + $0x18] sm:$0xff]
  %v8710 = vld [vmem:[%s10 + $0x20] sm:$0xf]
  %v8711 = vld [vmem:[%s10 + $0x24] sm:$0xff]
  %v8712 = vld [vmem:[%s10 + $0x2c] sm:$0xff]
  %v8713 = vld [vmem:[%s10 + $0x34] sm:$0xff]
  %v8714 = vld [vmem:[%s10 + $0x3c] sm:$0xff]
  %v8715 = vld [vmem:[%s10 + $0x44] sm:$0xf]
  %v8716 = vld [vmem:[%s10 + $0x48] sm:$0xff]
  %v8717 = vld [vmem:[%s10 + $0x50] sm:$0xff]
  %v8718 = vld [vmem:[%s10 + $0x58] sm:$0xff]
  %v8719 = vld [vmem:[%s10 + $0x60] sm:$0xff]
  %v8720 = vld [vmem:[%s10 + $0x68] sm:$0xf]
  %v8721 = vld [vmem:[%s10 + $0x6c] sm:$0xff]
  %v8722 = vld [vmem:[%s10 + $0x74] sm:$0xff]
  %v8723 = vld [vmem:[%s10 + $0x7c] sm:$0xff]
  %v8724 = vld [vmem:[%s10 + $0x84] sm:$0xff]
  %v8725 = vld [vmem:[%s10 + $0x8c] sm:$0xf]
  %v8726 = vld [vmem:[%s10 + $0x90] sm:$0xff]
  %v8727 = vld [vmem:[%s10 + $0x98] sm:$0xff]
  %v8728 = vld [vmem:[%s10 + $0xa0] sm:$0xff]
  %v8729 = vld [vmem:[%s10 + $0xa8] sm:$0xff]
  %v8730 = vld [vmem:[%s10 + $0xb0] sm:$0xf]
  %v8731 = vld [vmem:[%s10 + $0xb4] sm:$0xff]
  %v8732 = vld [vmem:[%s10 + $0xbc] sm:$0xff]
  %v8733 = vld [vmem:[%s10 + $0xc4] sm:$0xff]
  %v8734 = vld [vmem:[%s10 + $0xcc] sm:$0xff]
  %v8735 = vld [vmem:[%s10 + $0xd4] sm:$0xf]
  %v8736 = vld [vmem:[%s10 + $0xd8] sm:$0xff]
  %v8737 = vld [vmem:[%s10 + $0xe0] sm:$0xff]
  %v8738 = vld [vmem:[%s10 + $0xe8] sm:$0xff]
  %v8739 = vld [vmem:[%s10 + $0xf0] sm:$0xff]
  %v8740 = vld [vmem:[%s10 + $0xf8] sm:$0xf]
  %v8741 = vld [vmem:[%s10 + $0xfc] sm:$0xff]
  %v8742 = vld [vmem:[%s10 + $0x104] sm:$0xff]
  %v8743 = vld [vmem:[%s10 + $0x10c] sm:$0xff]
  %v8744 = vld [vmem:[%s10 + $0x114] sm:$0xff]
  %v8745 = vld [vmem:[%s10 + $0x11c] sm:$0xf]
  %v8746 = vld [vmem:[%s10 + $0x120] sm:$0xff]
  %v8747 = vld [vmem:[%s10 + $0x128] sm:$0xff]
  %v8748 = vld [vmem:[%s10 + $0x130] sm:$0xff]
  %v8749 = vld [vmem:[%s10 + $0x138] sm:$0xff]
  %v8750 = vld [vmem:[%s10 + $0x140] sm:$0xf]
  %v8751 = vld [vmem:[%s10 + $0x144] sm:$0xff]
  %v8752 = vld [vmem:[%s10 + $0x14c] sm:$0xff]
  %v8753 = vld [vmem:[%s10 + $0x154] sm:$0xff]
  %v8754 = vld [vmem:[%s10 + $0x15c] sm:$0xff]
  %v8755 = vld [vmem:[%s10 + $0x164] sm:$0xf]
  %v8756 = vld [vmem:[%s10 + $0x168] sm:$0xff]
  %v8757 = vld [vmem:[%s10 + $0x170] sm:$0xff]
  %v8758 = vld [vmem:[%s10 + $0x178] sm:$0xff]
  %v8759 = vld [vmem:[%s10 + $0x180] sm:$0xff]
  %v8760 = vld [vmem:[%s10 + $0x188] sm:$0xf]
  %v8761 = vld [vmem:[%s10 + $0x18c] sm:$0xff]
  %v8762 = vld [vmem:[%s10 + $0x194] sm:$0xff]
  %v8763 = vld [vmem:[%s10 + $0x19c] sm:$0xff]
  %v8764 = vld [vmem:[%s10 + $0x1a4] sm:$0xff]
  %v8765 = vld [vmem:[%s10 + $0x1ac] sm:$0xf]
  %v8766 = vld [vmem:[%s10 + $0x1b0] sm:$0xff]
  %v8767 = vld [vmem:[%s10 + $0x1b8] sm:$0xff]
  %v8768 = vld [vmem:[%s10 + $0x1c0] sm:$0xff]
  %v8769 = vld [vmem:[%s10 + $0x1c8] sm:$0xff]
  %v8770 = vld [vmem:[%s10 + $0x1d0] sm:$0xf]
  %v8771 = vld [vmem:[%s10 + $0x1d4] sm:$0xff]
  %v8772 = vld [vmem:[%s10 + $0x1dc] sm:$0xff]
  %v8773 = vld [vmem:[%s10 + $0x1e4] sm:$0xff]
  %v8774 = vld [vmem:[%s10 + $0x1ec] sm:$0xff]
  %v8775 = vld [vmem:[%s10 + $0x1f4] sm:$0xf]
  %v8776 = vld [vmem:[%s10 + $0x1f8] sm:$0xff]
  %v8777 = vld [vmem:[%s10 + $0x200] sm:$0xff]
  %v8778 = vld [vmem:[%s10 + $0x208] sm:$0xff]
  %v8779 = vld [vmem:[%s10 + $0x210] sm:$0xff]
  %v8780 = vld [vmem:[%s10 + $0x218] sm:$0xf]
  %v8781 = vld [vmem:[%s10 + $0x21c] sm:$0xff]
  %v8782 = vld [vmem:[%s10 + $0x224] sm:$0xff]
  %v8783 = vld [vmem:[%s10 + $0x22c] sm:$0xff]
  %v8784 = vld [vmem:[%s10 + $0x234] sm:$0xff]
  %v8785 = vld [vmem:[%s10 + $0x23c] sm:$0xf]
  %v8786 = vld [vmem:[#allocation2] sm:$0xff]
  %v8787 = vld [vmem:[#allocation2 + $0x8] sm:$0xff]
  %v8788 = vld [vmem:[#allocation2 + $0x10] sm:$0xff]
  %v8789 = vld [vmem:[#allocation2 + $0x18] sm:$0xff]
  %v8790 = vld [vmem:[#allocation2 + $0x20] sm:$0xff]
  %v8791 = vld [vmem:[#allocation2 + $0x28] sm:$0xff]
  %v8792 = vld [vmem:[#allocation2 + $0x30] sm:$0xff]
  %v8793 = vld [vmem:[#allocation2 + $0x38] sm:$0xff]
  %v8794 = vld [vmem:[#allocation2 + $0x40] sm:$0xff]
  %v8795 = vld [vmem:[#allocation2 + $0x48] sm:$0xff]
  %v8796 = vld [vmem:[#allocation2 + $0x50] sm:$0xff]
  %v8797 = vld [vmem:[#allocation2 + $0x58] sm:$0xff]
  %v8798 = vld [vmem:[#allocation2 + $0x60] sm:$0xff]
  %v8799 = vld [vmem:[#allocation2 + $0x68] sm:$0xff]
  %v8800 = vld [vmem:[#allocation2 + $0x70] sm:$0xff]
  %v8801 = vld [vmem:[#allocation2 + $0x78] sm:$0xff]
  %v8802 = vld [vmem:[#allocation2 + $0x80] sm:$0xff]
  %v8803 = vld [vmem:[#allocation2 + $0x88] sm:$0xff]
  %v8804 = vld [vmem:[#allocation2 + $0x90] sm:$0xff]
  %v8805 = vld [vmem:[#allocation2 + $0x98] sm:$0xff]
  %v8806 = vld [vmem:[#allocation2 + $0xa0] sm:$0xff]
  %v8807 = vld [vmem:[#allocation2 + $0xa8] sm:$0xff]
  %v8808 = vld [vmem:[#allocation2 + $0xb0] sm:$0xff]
  %v8809 = vld [vmem:[#allocation2 + $0xb8] sm:$0xff]
  %v8810 = vld [vmem:[#allocation2 + $0xc0] sm:$0xff]
  %v8811 = vld [vmem:[#allocation2 + $0xc8] sm:$0xff]
  %v8812 = vld [vmem:[#allocation2 + $0xd0] sm:$0xff]
  %v8813 = vld [vmem:[#allocation2 + $0xd8] sm:$0xff]
  %v8814 = vld [vmem:[#allocation2 + $0xe0] sm:$0xff]
  %v8815 = vld [vmem:[#allocation2 + $0xe8] sm:$0xff]
  %v8816 = vld [vmem:[#allocation2 + $0xf0] sm:$0xff]
  %v8817 = vld [vmem:[#allocation2 + $0xf8] sm:$0xff]
  %v8818 = vld [vmem:[#allocation2 + $0x100] sm:$0xff]
  %v8819 = vld [vmem:[#allocation2 + $0x108] sm:$0xff]
  %v8820 = vld [vmem:[#allocation2 + $0x110] sm:$0xff]
  %v8821 = vld [vmem:[#allocation2 + $0x118] sm:$0xff]
  %v8822 = vld [vmem:[#allocation2 + $0x120] sm:$0xff]
  %v8823 = vld [vmem:[#allocation2 + $0x128] sm:$0xff]
  %v8824 = vld [vmem:[#allocation2 + $0x130] sm:$0xff]
  %v8825 = vld [vmem:[#allocation2 + $0x138] sm:$0xff]
  %v8826 = vld [vmem:[#allocation2 + $0x140] sm:$0xff]
  %v8827 = vld [vmem:[#allocation2 + $0x148] sm:$0xff]
  %v8828 = vld [vmem:[#allocation2 + $0x150] sm:$0xff]
  %v8829 = vld [vmem:[#allocation2 + $0x158] sm:$0xff]
  %v8830 = vld [vmem:[#allocation2 + $0x160] sm:$0xff]
  %v8831 = vld [vmem:[#allocation2 + $0x168] sm:$0xff]
  %v8832 = vld [vmem:[#allocation2 + $0x170] sm:$0xff]
  %v8833 = vld [vmem:[#allocation2 + $0x178] sm:$0xff]
  %v8834 = vld [vmem:[#allocation2 + $0x180] sm:$0xff]
  %v8835 = vld [vmem:[#allocation2 + $0x188] sm:$0xff]
  %v8836 = vld [vmem:[#allocation2 + $0x190] sm:$0xff]
  %v8837 = vld [vmem:[#allocation2 + $0x198] sm:$0xff]
  %v8838 = vld [vmem:[#allocation2 + $0x1a0] sm:$0xff]
  %v8839 = vld [vmem:[#allocation2 + $0x1a8] sm:$0xff]
  %v8840 = vld [vmem:[#allocation2 + $0x1b0] sm:$0xff]
  %v8841 = vld [vmem:[#allocation2 + $0x1b8] sm:$0xff]
  %v8842 = vld [vmem:[#allocation2 + $0x1c0] sm:$0xff]
  %v8843 = vld [vmem:[#allocation2 + $0x1c8] sm:$0xff]
  %v8844 = vld [vmem:[#allocation2 + $0x1d0] sm:$0xff]
  %v8845 = vld [vmem:[#allocation2 + $0x1d8] sm:$0xff]
  %v8846 = vld [vmem:[#allocation2 + $0x1e0] sm:$0xff]
  %v8847 = vld [vmem:[#allocation2 + $0x1e8] sm:$0xff]
  %v8848 = vld [vmem:[#allocation2 + $0x1f0] sm:$0xff]
  %v8849 = vld [vmem:[#allocation2 + $0x1f8] sm:$0xff]
  %v8850 = vld [vmem:[#allocation2 + $0x200] sm:$0xff]
  %v8851 = vld [vmem:[#allocation2 + $0x208] sm:$0xff]
  %v8852 = vld [vmem:[#allocation2 + $0x210] sm:$0xff]
  %v8853 = vld [vmem:[#allocation2 + $0x218] sm:$0xff]
  %v8854 = vld [vmem:[#allocation2 + $0x220] sm:$0xff]
  %v8855 = vld [vmem:[#allocation2 + $0x228] sm:$0xff]
  %v8856 = vld [vmem:[#allocation2 + $0x230] sm:$0xff]
  %v8857 = vld [vmem:[#allocation2 + $0x238] sm:$0xff]
  %v8858 = vld [vmem:[%s12] sm:$0xff]
  %v8859 = vld [vmem:[%s12 + $0x8] sm:$0xff]
  %v8860 = vld [vmem:[%s12 + $0x10] sm:$0xff]
  %v8861 = vld [vmem:[%s12 + $0x18] sm:$0xff]
  %v8862 = vld [vmem:[%s12 + $0x20] sm:$0xff]
  %v8863 = vld [vmem:[%s12 + $0x28] sm:$0xff]
  %v8864 = vld [vmem:[%s12 + $0x30] sm:$0xff]
  %v8865 = vld [vmem:[%s12 + $0x38] sm:$0xff]
  %v8866 = vld [vmem:[%s12 + $0x40] sm:$0xff]
  %v8867 = vld [vmem:[%s12 + $0x48] sm:$0xff]
  %v8868 = vld [vmem:[%s12 + $0x50] sm:$0xff]
  %v8869 = vld [vmem:[%s12 + $0x58] sm:$0xff]
  %v8870 = vld [vmem:[%s12 + $0x60] sm:$0xff]
  %v8871 = vld [vmem:[%s12 + $0x68] sm:$0xff]
  %v8872 = vld [vmem:[%s12 + $0x70] sm:$0xff]
  %v8873 = vld [vmem:[%s12 + $0x78] sm:$0xff]
  %8875 = vset.pattern.permute.xlu0 9
  %8876 = vperm.xlu0 %8875, %v8858
  %v8877 = vpop.permute.xlu0 %8876
  %8880 = vset.pattern.permute.xlu0 9
  %8881 = vperm.xlu0 %8880, %v8859
  %v8882 = vpop.permute.xlu0 %8881
  %8885 = vset.pattern.permute.xlu0 9
  %8886 = vperm.xlu0 %8885, %v8860
  %v8887 = vpop.permute.xlu0 %8886
  %8890 = vset.pattern.permute.xlu0 9
  %8891 = vperm.xlu0 %8890, %v8861
  %v8892 = vpop.permute.xlu0 %8891
  %8895 = vset.pattern.permute.xlu0 9
  %8896 = vperm.xlu0 %8895, %v8862
  %v8897 = vpop.permute.xlu0 %8896
  %8900 = vset.pattern.permute.xlu0 9
  %8901 = vperm.xlu0 %8900, %v8863
  %v8902 = vpop.permute.xlu0 %8901
  %8905 = vset.pattern.permute.xlu0 9
  %8906 = vperm.xlu0 %8905, %v8864
  %v8907 = vpop.permute.xlu0 %8906
  %8910 = vset.pattern.permute.xlu0 9
  %8911 = vperm.xlu0 %8910, %v8865
  %v8912 = vpop.permute.xlu0 %8911
  %8915 = vset.pattern.permute.xlu0 9
  %8916 = vperm.xlu0 %8915, %v8866
  %v8917 = vpop.permute.xlu0 %8916
  %8920 = vset.pattern.permute.xlu0 9
  %8921 = vperm.xlu0 %8920, %v8867
  %v8922 = vpop.permute.xlu0 %8921
  %8925 = vset.pattern.permute.xlu0 9
  %8926 = vperm.xlu0 %8925, %v8868
  %v8927 = vpop.permute.xlu0 %8926
  %8930 = vset.pattern.permute.xlu0 9
  %8931 = vperm.xlu0 %8930, %v8869
  %v8932 = vpop.permute.xlu0 %8931
  %8935 = vset.pattern.permute.xlu0 9
  %8936 = vperm.xlu0 %8935, %v8870
  %v8937 = vpop.permute.xlu0 %8936
  %8940 = vset.pattern.permute.xlu0 9
  %8941 = vperm.xlu0 %8940, %v8871
  %v8942 = vpop.permute.xlu0 %8941
  %8945 = vset.pattern.permute.xlu0 9
  %8946 = vperm.xlu0 %8945, %v8872
  %v8947 = vpop.permute.xlu0 %8946
  %8950 = vset.pattern.permute.xlu0 9
  %8951 = vperm.xlu0 %8950, %v8873
  %v8952 = vpop.permute.xlu0 %8951
  %v9034 = vunpack.c.l.b16 %v8706
  %v9035 = vunpack.c.h.b16 %v8706
  %v9036 = vunpack.c.l.b16 %v8707
  %v9037 = vunpack.c.h.b16 %v8707
  %v9038 = vunpack.c.l.b16 %v8708
  %v9039 = vunpack.c.h.b16 %v8708
  %v9040 = vunpack.c.l.b16 %v8709
  %v9041 = vunpack.c.h.b16 %v8709
  %v9042 = vunpack.c.l.b16 %v8710
  %v9043 = vunpack.c.l.b16 %v8711
  %v9044 = vunpack.c.h.b16 %v8711
  %v9045 = vunpack.c.l.b16 %v8712
  %v9046 = vunpack.c.h.b16 %v8712
  %v9047 = vunpack.c.l.b16 %v8713
  %v9048 = vunpack.c.h.b16 %v8713
  %v9049 = vunpack.c.l.b16 %v8714
  %v9050 = vunpack.c.h.b16 %v8714
  %v9051 = vunpack.c.l.b16 %v8715
  %v9052 = vunpack.c.l.b16 %v8716
  %v9053 = vunpack.c.h.b16 %v8716
  %v9054 = vunpack.c.l.b16 %v8717
  %v9055 = vunpack.c.h.b16 %v8717
  %v9056 = vunpack.c.l.b16 %v8718
  %v9057 = vunpack.c.h.b16 %v8718
  %v9058 = vunpack.c.l.b16 %v8719
  %v9059 = vunpack.c.h.b16 %v8719
  %v9060 = vunpack.c.l.b16 %v8720
  %v9061 = vunpack.c.l.b16 %v8721
  %v9062 = vunpack.c.h.b16 %v8721
  %v9063 = vunpack.c.l.b16 %v8722
  %v9064 = vunpack.c.h.b16 %v8722
  %v9065 = vunpack.c.l.b16 %v8723
  %v9066 = vunpack.c.h.b16 %v8723
  %v9067 = vunpack.c.l.b16 %v8724
  %v9068 = vunpack.c.h.b16 %v8724
  %v9069 = vunpack.c.l.b16 %v8725
  %v9070 = vunpack.c.l.b16 %v8726
  %v9071 = vunpack.c.h.b16 %v8726
  %v9072 = vunpack.c.l.b16 %v8727
  %v9073 = vunpack.c.h.b16 %v8727
  %v9074 = vunpack.c.l.b16 %v8728
  %v9075 = vunpack.c.h.b16 %v8728
  %v9076 = vunpack.c.l.b16 %v8729
  %v9077 = vunpack.c.h.b16 %v8729
  %v9078 = vunpack.c.l.b16 %v8730
  %v9079 = vunpack.c.l.b16 %v8731
  %v9080 = vunpack.c.h.b16 %v8731
  %v9081 = vunpack.c.l.b16 %v8732
  %v9082 = vunpack.c.h.b16 %v8732
  %v9083 = vunpack.c.l.b16 %v8733
  %v9084 = vunpack.c.h.b16 %v8733
  %v9085 = vunpack.c.l.b16 %v8734
  %v9086 = vunpack.c.h.b16 %v8734
  %v9087 = vunpack.c.l.b16 %v8735
  %v9088 = vunpack.c.l.b16 %v8736
  %v9089 = vunpack.c.h.b16 %v8736
  %v9090 = vunpack.c.l.b16 %v8737
  %v9091 = vunpack.c.h.b16 %v8737
  %v9092 = vunpack.c.l.b16 %v8738
  %v9093 = vunpack.c.h.b16 %v8738
  %v9094 = vunpack.c.l.b16 %v8739
  %v9095 = vunpack.c.h.b16 %v8739
  %v9096 = vunpack.c.l.b16 %v8740
  %v9097 = vunpack.c.l.b16 %v8741
  %v9098 = vunpack.c.h.b16 %v8741
  %v9099 = vunpack.c.l.b16 %v8742
  %v9100 = vunpack.c.h.b16 %v8742
  %v9101 = vunpack.c.l.b16 %v8743
  %v9102 = vunpack.c.h.b16 %v8743
  %v9103 = vunpack.c.l.b16 %v8744
  %v9104 = vunpack.c.h.b16 %v8744
  %v9105 = vunpack.c.l.b16 %v8745
  %v9106 = vunpack.c.l.b16 %v8746
  %v9107 = vunpack.c.h.b16 %v8746
  %v9108 = vunpack.c.l.b16 %v8747
  %v9109 = vunpack.c.h.b16 %v8747
  %v9110 = vunpack.c.l.b16 %v8748
  %v9111 = vunpack.c.h.b16 %v8748
  %v9112 = vunpack.c.l.b16 %v8749
  %v9113 = vunpack.c.h.b16 %v8749
  %v9114 = vunpack.c.l.b16 %v8750
  %v9115 = vunpack.c.l.b16 %v8751
  %v9116 = vunpack.c.h.b16 %v8751
  %v9117 = vunpack.c.l.b16 %v8752
  %v9118 = vunpack.c.h.b16 %v8752
  %v9119 = vunpack.c.l.b16 %v8753
  %v9120 = vunpack.c.h.b16 %v8753
  %v9121 = vunpack.c.l.b16 %v8754
  %v9122 = vunpack.c.h.b16 %v8754
  %v9123 = vunpack.c.l.b16 %v8755
  %v9124 = vunpack.c.l.b16 %v8756
  %v9125 = vunpack.c.h.b16 %v8756
  %v9126 = vunpack.c.l.b16 %v8757
  %v9127 = vunpack.c.h.b16 %v8757
  %v9128 = vunpack.c.l.b16 %v8758
  %v9129 = vunpack.c.h.b16 %v8758
  %v9130 = vunpack.c.l.b16 %v8759
  %v9131 = vunpack.c.h.b16 %v8759
  %v9132 = vunpack.c.l.b16 %v8760
  %v9133 = vunpack.c.l.b16 %v8761
  %v9134 = vunpack.c.h.b16 %v8761
  %v9135 = vunpack.c.l.b16 %v8762
  %v9136 = vunpack.c.h.b16 %v8762
  %v9137 = vunpack.c.l.b16 %v8763
  %v9138 = vunpack.c.h.b16 %v8763
  %v9139 = vunpack.c.l.b16 %v8764
  %v9140 = vunpack.c.h.b16 %v8764
  %v9141 = vunpack.c.l.b16 %v8765
  %v9142 = vunpack.c.l.b16 %v8766
  %v9143 = vunpack.c.h.b16 %v8766
  %v9144 = vunpack.c.l.b16 %v8767
  %v9145 = vunpack.c.h.b16 %v8767
  %v9146 = vunpack.c.l.b16 %v8768
  %v9147 = vunpack.c.h.b16 %v8768
  %v9148 = vunpack.c.l.b16 %v8769
  %v9149 = vunpack.c.h.b16 %v8769
  %v9150 = vunpack.c.l.b16 %v8770
  %v9151 = vunpack.c.l.b16 %v8771
  %v9152 = vunpack.c.h.b16 %v8771
  %v9153 = vunpack.c.l.b16 %v8772
  %v9154 = vunpack.c.h.b16 %v8772
  %v9155 = vunpack.c.l.b16 %v8773
  %v9156 = vunpack.c.h.b16 %v8773
  %v9157 = vunpack.c.l.b16 %v8774
  %v9158 = vunpack.c.h.b16 %v8774
  %v9159 = vunpack.c.l.b16 %v8775
  %v9160 = vunpack.c.l.b16 %v8776
  %v9161 = vunpack.c.h.b16 %v8776
  %v9162 = vunpack.c.l.b16 %v8777
  %v9163 = vunpack.c.h.b16 %v8777
  %v9164 = vunpack.c.l.b16 %v8778
  %v9165 = vunpack.c.h.b16 %v8778
  %v9166 = vunpack.c.l.b16 %v8779
  %v9167 = vunpack.c.h.b16 %v8779
  %v9168 = vunpack.c.l.b16 %v8780
  %v9169 = vunpack.c.l.b16 %v8781
  %v9170 = vunpack.c.h.b16 %v8781
  %v9171 = vunpack.c.l.b16 %v8782
  %v9172 = vunpack.c.h.b16 %v8782
  %v9173 = vunpack.c.l.b16 %v8783
  %v9174 = vunpack.c.h.b16 %v8783
  %v9175 = vunpack.c.l.b16 %v8784
  %v9176 = vunpack.c.h.b16 %v8784
  %v9177 = vunpack.c.l.b16 %v8785
  %v9178 = vpack.c.b16 %v9043, %v9034
  %v9179 = vpack.c.b16 %v9044, %v9035
  %v9180 = vpack.c.b16 %v9045, %v9036
  %v9181 = vpack.c.b16 %v9046, %v9037
  %v9182 = vpack.c.b16 %v9047, %v9038
  %v9183 = vpack.c.b16 %v9048, %v9039
  %v9184 = vpack.c.b16 %v9049, %v9040
  %v9185 = vpack.c.b16 %v9050, %v9041
  %v9186 = vpack.c.b16 %v9051, %v9042
  %v9187 = vpack.c.b16 %v9061, %v9052
  %v9188 = vpack.c.b16 %v9062, %v9053
  %v9189 = vpack.c.b16 %v9063, %v9054
  %v9190 = vpack.c.b16 %v9064, %v9055
  %v9191 = vpack.c.b16 %v9065, %v9056
  %v9192 = vpack.c.b16 %v9066, %v9057
  %v9193 = vpack.c.b16 %v9067, %v9058
  %v9194 = vpack.c.b16 %v9068, %v9059
  %v9195 = vpack.c.b16 %v9069, %v9060
  %v9196 = vpack.c.b16 %v9079, %v9070
  %v9197 = vpack.c.b16 %v9080, %v9071
  %v9198 = vpack.c.b16 %v9081, %v9072
  %v9199 = vpack.c.b16 %v9082, %v9073
  %v9200 = vpack.c.b16 %v9083, %v9074
  %v9201 = vpack.c.b16 %v9084, %v9075
  %v9202 = vpack.c.b16 %v9085, %v9076
  %v9203 = vpack.c.b16 %v9086, %v9077
  %v9204 = vpack.c.b16 %v9087, %v9078
  %v9205 = vpack.c.b16 %v9097, %v9088
  %v9206 = vpack.c.b16 %v9098, %v9089
  %v9207 = vpack.c.b16 %v9099, %v9090
  %v9208 = vpack.c.b16 %v9100, %v9091
  %v9209 = vpack.c.b16 %v9101, %v9092
  %v9210 = vpack.c.b16 %v9102, %v9093
  %v9211 = vpack.c.b16 %v9103, %v9094
  %v9212 = vpack.c.b16 %v9104, %v9095
  %v9213 = vpack.c.b16 %v9105, %v9096
  %v9214 = vpack.c.b16 %v9115, %v9106
  %v9215 = vpack.c.b16 %v9116, %v9107
  %v9216 = vpack.c.b16 %v9117, %v9108
  %v9217 = vpack.c.b16 %v9118, %v9109
  %v9218 = vpack.c.b16 %v9119, %v9110
  %v9219 = vpack.c.b16 %v9120, %v9111
  %v9220 = vpack.c.b16 %v9121, %v9112
  %v9221 = vpack.c.b16 %v9122, %v9113
  %v9222 = vpack.c.b16 %v9123, %v9114
  %v9223 = vpack.c.b16 %v9133, %v9124
  %v9224 = vpack.c.b16 %v9134, %v9125
  %v9225 = vpack.c.b16 %v9135, %v9126
  %v9226 = vpack.c.b16 %v9136, %v9127
  %v9227 = vpack.c.b16 %v9137, %v9128
  %v9228 = vpack.c.b16 %v9138, %v9129
  %v9229 = vpack.c.b16 %v9139, %v9130
  %v9230 = vpack.c.b16 %v9140, %v9131
  %v9231 = vpack.c.b16 %v9141, %v9132
  %v9232 = vpack.c.b16 %v9151, %v9142
  %v9233 = vpack.c.b16 %v9152, %v9143
  %v9234 = vpack.c.b16 %v9153, %v9144
  %v9235 = vpack.c.b16 %v9154, %v9145
  %v9236 = vpack.c.b16 %v9155, %v9146
  %v9237 = vpack.c.b16 %v9156, %v9147
  %v9238 = vpack.c.b16 %v9157, %v9148
  %v9239 = vpack.c.b16 %v9158, %v9149
  %v9240 = vpack.c.b16 %v9159, %v9150
  %v9241 = vpack.c.b16 %v9169, %v9160
  %v9242 = vpack.c.b16 %v9170, %v9161
  %v9243 = vpack.c.b16 %v9171, %v9162
  %v9244 = vpack.c.b16 %v9172, %v9163
  %v9245 = vpack.c.b16 %v9173, %v9164
  %v9246 = vpack.c.b16 %v9174, %v9165
  %v9247 = vpack.c.b16 %v9175, %v9166
  %v9248 = vpack.c.b16 %v9176, %v9167
  %v9249 = vpack.c.b16 %v9177, %v9168
  %9322 = vmatprep.subr.bf16.mxu0 0
  %9323 = vmatpush1.bf16.msra.mxu0 %v8786
  %9324 = vmatprep.subr.bf16.mxu0 0
  %9325 = vmatpush1.bf16.msra.mxu0 %v8787
  %9326 = vmatprep.subr.bf16.mxu0 0
  %9327 = vmatpush1.bf16.msra.mxu0 %v8788
  %9328 = vmatprep.subr.bf16.mxu0 0
  %9329 = vmatpush1.bf16.msra.mxu0 %v8789
  %9330 = vmatprep.subr.bf16.mxu0 0
  %9331 = vmatpush1.bf16.msra.mxu0 %v8790
  %9332 = vmatprep.subr.bf16.mxu0 0
  %9333 = vmatpush1.bf16.msra.mxu0 %v8791
  %9334 = vmatprep.subr.bf16.mxu0 0
  %9335 = vmatpush1.bf16.msra.mxu0 %v8792
  %9336 = vmatprep.subr.bf16.mxu0 0
  %9337 = vmatpush1.bf16.msra.mxu0 %v8793
  %9338 = vmatprep.subr.bf16.mxu0 0
  %9339 = vmatpush1.bf16.msra.mxu0 %v8794
  %9340 = vmatprep.subr.bf16.mxu0 0
  %9341 = vmatpush1.bf16.msra.mxu0 %v8795
  %9342 = vmatprep.subr.bf16.mxu0 0
  %9343 = vmatpush1.bf16.msra.mxu0 %v8796
  %9344 = vmatprep.subr.bf16.mxu0 0
  %9345 = vmatpush1.bf16.msra.mxu0 %v8797
  %9346 = vmatprep.subr.bf16.mxu0 0
  %9347 = vmatpush1.bf16.msra.mxu0 %v8798
  %9348 = vmatprep.subr.bf16.mxu0 0
  %9349 = vmatpush1.bf16.msra.mxu0 %v8799
  %9350 = vmatprep.subr.bf16.mxu0 0
  %9351 = vmatpush1.bf16.msra.mxu0 %v8800
  %9352 = vmatprep.subr.bf16.mxu0 0
  %9353 = vmatpush1.bf16.msra.mxu0 %v8801
  %9354 = vmatprep.mubr.bf16.mxu0 %v9179
  %9355 = vmatmul.mubr.bf16.gmra.mrb[0].mxu0 %v9178
  %v9356 = vpop.f32.mrb[0].mxu0
  %v9357 = vadd.f32 %v8877, %v9356
  %v9358 = vpop.f32.mrb[0].mxu0
  %v9359 = vpop.f32.mrb[0].mxu0
  %v9360 = vadd.f32 %v8882, %v9359
  %v9361 = vpop.f32.mrb[0].mxu0
  %9362 = vmatprep.mubr.bf16.mxu0 %v9188
  %9363 = vmatmul.mubr.bf16.gmra.mrb[0].mxu0 %v9187
  %v9364 = vpop.f32.mrb[0].mxu0
  %v9365 = vadd.f32 %v8887, %v9364
  %v9366 = vpop.f32.mrb[0].mxu0
  %v9367 = vpop.f32.mrb[0].mxu0
  %v9368 = vadd.f32 %v8892, %v9367
  %v9369 = vpop.f32.mrb[0].mxu0
  %9370 = vmatprep.mubr.bf16.mxu0 %v9197
  %9371 = vmatmul.mubr.bf16.gmra.mrb[0].mxu0 %v9196
  %v9372 = vpop.f32.mrb[0].mxu0
  %v9373 = vadd.f32 %v8897, %v9372
  %v9374 = vpop.f32.mrb[0].mxu0
  %v9375 = vpop.f32.mrb[0].mxu0
  %v9376 = vadd.f32 %v8902, %v9375
  %v9377 = vpop.f32.mrb[0].mxu0
  %9378 = vmatprep.mubr.bf16.mxu0 %v9206
  %9379 = vmatmul.mubr.bf16.gmra.mrb[0].mxu0 %v9205
  %v9380 = vpop.f32.mrb[0].mxu0
  %v9381 = vadd.f32 %v8907, %v9380
  %v9382 = vpop.f32.mrb[0].mxu0
  %v9383 = vpop.f32.mrb[0].mxu0
  %v9384 = vadd.f32 %v8912, %v9383
  %v9385 = vpop.f32.mrb[0].mxu0
  %9386 = vmatprep.mubr.bf16.mxu0 %v9215
  %9387 = vmatmul.mubr.bf16.gmra.mrb[0].mxu0 %v9214
  %v9388 = vpop.f32.mrb[0].mxu0
  %v9389 = vadd.f32 %v8917, %v9388
  %v9390 = vpop.f32.mrb[0].mxu0
  %v9391 = vpop.f32.mrb[0].mxu0
  %v9392 = vadd.f32 %v8922, %v9391
  %v9393 = vpop.f32.mrb[0].mxu0
  %9394 = vmatprep.mubr.bf16.mxu0 %v9224
  %9395 = vmatmul.mubr.bf16.gmra.mrb[0].mxu0 %v9223
  %v9396 = vpop.f32.mrb[0].mxu0
  %v9397 = vadd.f32 %v8927, %v9396
  %v9398 = vpop.f32.mrb[0].mxu0
  %v9399 = vpop.f32.mrb[0].mxu0
  %v9400 = vadd.f32 %v8932, %v9399
  %v9401 = vpop.f32.mrb[0].mxu0
  %9402 = vmatprep.mubr.bf16.mxu0 %v9233
  %9403 = vmatmul.mubr.bf16.gmra.mrb[0].mxu0 %v9232
  %v9404 = vpop.f32.mrb[0].mxu0
  %v9405 = vadd.f32 %v8937, %v9404
  %v9406 = vpop.f32.mrb[0].mxu0
  %v9407 = vpop.f32.mrb[0].mxu0
  %v9408 = vadd.f32 %v8942, %v9407
  %v9409 = vpop.f32.mrb[0].mxu0
  %9410 = vmatprep.mubr.bf16.mxu0 %v9242
  %9411 = vmatmul.mubr.bf16.gmra.mrb[0].mxu0 %v9241
  %v9412 = vpop.f32.mrb[0].mxu0
  %v9413 = vadd.f32 %v8947, %v9412
  %v9414 = vpop.f32.mrb[0].mxu0
  %v9415 = vpop.f32.mrb[0].mxu0
  %v9416 = vadd.f32 %v8952, %v9415
  %v9417 = vpop.f32.mrb[0].mxu0
  %9418 = vdwg.mxu0
  %9419 = vmatprep.subr.bf16.mxu0 0
  %9420 = vmatpush1.bf16.msra.mxu0 %v8802
  %9421 = vmatprep.subr.bf16.mxu0 0
  %9422 = vmatpush1.bf16.msra.mxu0 %v8803
  %9423 = vmatprep.subr.bf16.mxu0 0
  %9424 = vmatpush1.bf16.msra.mxu0 %v8804
  %9425 = vmatprep.subr.bf16.mxu0 0
  %9426 = vmatpush1.bf16.msra.mxu0 %v8805
  %9427 = vmatprep.subr.bf16.mxu0 0
  %9428 = vmatpush1.bf16.msra.mxu0 %v8806
  %9429 = vmatprep.subr.bf16.mxu0 0
  %9430 = vmatpush1.bf16.msra.mxu0 %v8807
  %9431 = vmatprep.subr.bf16.mxu0 0
  %9432 = vmatpush1.bf16.msra.mxu0 %v8808
  %9433 = vmatprep.subr.bf16.mxu0 0
  %9434 = vmatpush1.bf16.msra.mxu0 %v8809
  %9435 = vmatprep.subr.bf16.mxu0 0
  %9436 = vmatpush1.bf16.msra.mxu0 %v8810
  %9437 = vmatprep.subr.bf16.mxu0 0
  %9438 = vmatpush1.bf16.msra.mxu0 %v8811
  %9439 = vmatprep.subr.bf16.mxu0 0
  %9440 = vmatpush1.bf16.msra.mxu0 %v8812
  %9441 = vmatprep.subr.bf16.mxu0 0
  %9442 = vmatpush1.bf16.msra.mxu0 %v8813
  %9443 = vmatprep.subr.bf16.mxu0 0
  %9444 = vmatpush1.bf16.msra.mxu0 %v8814
  %9445 = vmatprep.subr.bf16.mxu0 0
  %9446 = vmatpush1.bf16.msra.mxu0 %v8815
  %9447 = vmatprep.subr.bf16.mxu0 0
  %9448 = vmatpush1.bf16.msra.mxu0 %v8816
  %9449 = vmatprep.subr.bf16.mxu0 0
  %9450 = vmatpush1.bf16.msra.mxu0 %v8817
  %9451 = vmatprep.mubr.bf16.mxu0 %v9181
  %9452 = vmatmul.mubr.bf16.gmra.mrb[0].mxu0 %v9180
  %v9453 = vpop.f32.mrb[0].mxu0
  %v9454 = vadd.f32 %v9357, %v9453
  %v9455 = vpop.f32.mrb[0].mxu0
  %v9456 = vpop.f32.mrb[0].mxu0
  %v9457 = vadd.f32 %v9360, %v9456
  %v9458 = vpop.f32.mrb[0].mxu0
  %9459 = vmatprep.mubr.bf16.mxu0 %v9190
  %9460 = vmatmul.mubr.bf16.gmra.mrb[0].mxu0 %v9189
  %v9461 = vpop.f32.mrb[0].mxu0
  %v9462 = vadd.f32 %v9365, %v9461
  %v9463 = vpop.f32.mrb[0].mxu0
  %v9464 = vpop.f32.mrb[0].mxu0
  %v9465 = vadd.f32 %v9368, %v9464
  %v9466 = vpop.f32.mrb[0].mxu0
  %9467 = vmatprep.mubr.bf16.mxu0 %v9199
  %9468 = vmatmul.mubr.bf16.gmra.mrb[0].mxu0 %v9198
  %v9469 = vpop.f32.mrb[0].mxu0
  %v9470 = vadd.f32 %v9373, %v9469
  %v9471 = vpop.f32.mrb[0].mxu0
  %v9472 = vpop.f32.mrb[0].mxu0
  %v9473 = vadd.f32 %v9376, %v9472
  %v9474 = vpop.f32.mrb[0].mxu0
  %9475 = vmatprep.mubr.bf16.mxu0 %v9208
  %9476 = vmatmul.mubr.bf16.gmra.mrb[0].mxu0 %v9207
  %v9477 = vpop.f32.mrb[0].mxu0
  %v9478 = vadd.f32 %v9381, %v9477
  %v9479 = vpop.f32.mrb[0].mxu0
  %v9480 = vpop.f32.mrb[0].mxu0
  %v9481 = vadd.f32 %v9384, %v9480
  %v9482 = vpop.f32.mrb[0].mxu0
  %9483 = vmatprep.mubr.bf16.mxu0 %v9217
  %9484 = vmatmul.mubr.bf16.gmra.mrb[0].mxu0 %v9216
  %v9485 = vpop.f32.mrb[0].mxu0
  %v9486 = vadd.f32 %v9389, %v9485
  %v9487 = vpop.f32.mrb[0].mxu0
  %v9488 = vpop.f32.mrb[0].mxu0
  %v9489 = vadd.f32 %v9392, %v9488
  %v9490 = vpop.f32.mrb[0].mxu0
  %9491 = vmatprep.mubr.bf16.mxu0 %v9226
  %9492 = vmatmul.mubr.bf16.gmra.mrb[0].mxu0 %v9225
  %v9493 = vpop.f32.mrb[0].mxu0
  %v9494 = vadd.f32 %v9397, %v9493
  %v9495 = vpop.f32.mrb[0].mxu0
  %v9496 = vpop.f32.mrb[0].mxu0
  %v9497 = vadd.f32 %v9400, %v9496
  %v9498 = vpop.f32.mrb[0].mxu0
  %9499 = vmatprep.mubr.bf16.mxu0 %v9235
  %9500 = vmatmul.mubr.bf16.gmra.mrb[0].mxu0 %v9234
  %v9501 = vpop.f32.mrb[0].mxu0
  %v9502 = vadd.f32 %v9405, %v9501
  %v9503 = vpop.f32.mrb[0].mxu0
  %v9504 = vpop.f32.mrb[0].mxu0
  %v9505 = vadd.f32 %v9408, %v9504
  %v9506 = vpop.f32.mrb[0].mxu0
  %9507 = vmatprep.mubr.bf16.mxu0 %v9244
  %9508 = vmatmul.mubr.bf16.gmra.mrb[0].mxu0 %v9243
  %v9509 = vpop.f32.mrb[0].mxu0
  %v9510 = vadd.f32 %v9413, %v9509
  %v9511 = vpop.f32.mrb[0].mxu0
  %v9512 = vpop.f32.mrb[0].mxu0
  %v9513 = vadd.f32 %v9416, %v9512
  %v9514 = vpop.f32.mrb[0].mxu0
  %9515 = vdwg.mxu0
  %9516 = vmatprep.subr.bf16.mxu0 0
  %9517 = vmatpush1.bf16.msra.mxu0 %v8818
  %9518 = vmatprep.subr.bf16.mxu0 0
  %9519 = vmatpush1.bf16.msra.mxu0 %v8819
  %9520 = vmatprep.subr.bf16.mxu0 0
  %9521 = vmatpush1.bf16.msra.mxu0 %v8820
  %9522 = vmatprep.subr.bf16.mxu0 0
  %9523 = vmatpush1.bf16.msra.mxu0 %v8821
  %9524 = vmatprep.subr.bf16.mxu0 0
  %9525 = vmatpush1.bf16.msra.mxu0 %v8822
  %9526 = vmatprep.subr.bf16.mxu0 0
  %9527 = vmatpush1.bf16.msra.mxu0 %v8823
  %9528 = vmatprep.subr.bf16.mxu0 0
  %9529 = vmatpush1.bf16.msra.mxu0 %v8824
  %9530 = vmatprep.subr.bf16.mxu0 0
  %9531 = vmatpush1.bf16.msra.mxu0 %v8825
  %9532 = vmatprep.subr.bf16.mxu0 0
  %9533 = vmatpush1.bf16.msra.mxu0 %v8826
  %9534 = vmatprep.subr.bf16.mxu0 0
  %9535 = vmatpush1.bf16.msra.mxu0 %v8827
  %9536 = vmatprep.subr.bf16.mxu0 0
  %9537 = vmatpush1.bf16.msra.mxu0 %v8828
  %9538 = vmatprep.subr.bf16.mxu0 0
  %9539 = vmatpush1.bf16.msra.mxu0 %v8829
  %9540 = vmatprep.subr.bf16.mxu0 0
  %9541 = vmatpush1.bf16.msra.mxu0 %v8830
  %9542 = vmatprep.subr.bf16.mxu0 0
  %9543 = vmatpush1.bf16.msra.mxu0 %v8831
  %9544 = vmatprep.subr.bf16.mxu0 0
  %9545 = vmatpush1.bf16.msra.mxu0 %v8832
  %9546 = vmatprep.subr.bf16.mxu0 0
  %9547 = vmatpush1.bf16.msra.mxu0 %v8833
  %9548 = vmatprep.mubr.bf16.mxu0 %v9183
  %9549 = vmatmul.mubr.bf16.gmra.mrb[0].mxu0 %v9182
  %v9550 = vpop.f32.mrb[0].mxu0
  %v9551 = vadd.f32 %v9454, %v9550
  %v9552 = vpop.f32.mrb[0].mxu0
  %v9553 = vpop.f32.mrb[0].mxu0
  %v9554 = vadd.f32 %v9457, %v9553
  %v9555 = vpop.f32.mrb[0].mxu0
  %9556 = vmatprep.mubr.bf16.mxu0 %v9192
  %9557 = vmatmul.mubr.bf16.gmra.mrb[0].mxu0 %v9191
  %v9558 = vpop.f32.mrb[0].mxu0
  %v9559 = vadd.f32 %v9462, %v9558
  %v9560 = vpop.f32.mrb[0].mxu0
  %v9561 = vpop.f32.mrb[0].mxu0
  %v9562 = vadd.f32 %v9465, %v9561
  %v9563 = vpop.f32.mrb[0].mxu0
  %9564 = vmatprep.mubr.bf16.mxu0 %v9201
  %9565 = vmatmul.mubr.bf16.gmra.mrb[0].mxu0 %v9200
  %v9566 = vpop.f32.mrb[0].mxu0
  %v9567 = vadd.f32 %v9470, %v9566
  %v9568 = vpop.f32.mrb[0].mxu0
  %v9569 = vpop.f32.mrb[0].mxu0
  %v9570 = vadd.f32 %v9473, %v9569
  %v9571 = vpop.f32.mrb[0].mxu0
  %9572 = vmatprep.mubr.bf16.mxu0 %v9210
  %9573 = vmatmul.mubr.bf16.gmra.mrb[0].mxu0 %v9209
  %v9574 = vpop.f32.mrb[0].mxu0
  %v9575 = vadd.f32 %v9478, %v9574
  %v9576 = vpop.f32.mrb[0].mxu0
  %v9577 = vpop.f32.mrb[0].mxu0
  %v9578 = vadd.f32 %v9481, %v9577
  %v9579 = vpop.f32.mrb[0].mxu0
  %9580 = vmatprep.mubr.bf16.mxu0 %v9219
  %9581 = vmatmul.mubr.bf16.gmra.mrb[0].mxu0 %v9218
  %v9582 = vpop.f32.mrb[0].mxu0
  %v9583 = vadd.f32 %v9486, %v9582
  %v9584 = vpop.f32.mrb[0].mxu0
  %v9585 = vpop.f32.mrb[0].mxu0
  %v9586 = vadd.f32 %v9489, %v9585
  %v9587 = vpop.f32.mrb[0].mxu0
  %9588 = vmatprep.mubr.bf16.mxu0 %v9228
  %9589 = vmatmul.mubr.bf16.gmra.mrb[0].mxu0 %v9227
  %v9590 = vpop.f32.mrb[0].mxu0
  %v9591 = vadd.f32 %v9494, %v9590
  %v9592 = vpop.f32.mrb[0].mxu0
  %v9593 = vpop.f32.mrb[0].mxu0
  %v9594 = vadd.f32 %v9497, %v9593
  %v9595 = vpop.f32.mrb[0].mxu0
  %9596 = vmatprep.mubr.bf16.mxu0 %v9237
  %9597 = vmatmul.mubr.bf16.gmra.mrb[0].mxu0 %v9236
  %v9598 = vpop.f32.mrb[0].mxu0
  %v9599 = vadd.f32 %v9502, %v9598
  %v9600 = vpop.f32.mrb[0].mxu0
  %v9601 = vpop.f32.mrb[0].mxu0
  %v9602 = vadd.f32 %v9505, %v9601
  %v9603 = vpop.f32.mrb[0].mxu0
  %9604 = vmatprep.mubr.bf16.mxu0 %v9246
  %9605 = vmatmul.mubr.bf16.gmra.mrb[0].mxu0 %v9245
  %v9606 = vpop.f32.mrb[0].mxu0
  %v9607 = vadd.f32 %v9510, %v9606
  %v9608 = vpop.f32.mrb[0].mxu0
  %v9609 = vpop.f32.mrb[0].mxu0
  %v9610 = vadd.f32 %v9513, %v9609
  %v9611 = vpop.f32.mrb[0].mxu0
  %9612 = vdwg.mxu0
  %9613 = vmatprep.subr.bf16.mxu0 0
  %9614 = vmatpush1.bf16.msra.mxu0 %v8834
  %9615 = vmatprep.subr.bf16.mxu0 0
  %9616 = vmatpush1.bf16.msra.mxu0 %v8835
  %9617 = vmatprep.subr.bf16.mxu0 0
  %9618 = vmatpush1.bf16.msra.mxu0 %v8836
  %9619 = vmatprep.subr.bf16.mxu0 0
  %9620 = vmatpush1.bf16.msra.mxu0 %v8837
  %9621 = vmatprep.subr.bf16.mxu0 0
  %9622 = vmatpush1.bf16.msra.mxu0 %v8838
  %9623 = vmatprep.subr.bf16.mxu0 0
  %9624 = vmatpush1.bf16.msra.mxu0 %v8839
  %9625 = vmatprep.subr.bf16.mxu0 0
  %9626 = vmatpush1.bf16.msra.mxu0 %v8840
  %9627 = vmatprep.subr.bf16.mxu0 0
  %9628 = vmatpush1.bf16.msra.mxu0 %v8841
  %9629 = vmatprep.subr.bf16.mxu0 0
  %9630 = vmatpush1.bf16.msra.mxu0 %v8842
  %9631 = vmatprep.subr.bf16.mxu0 0
  %9632 = vmatpush1.bf16.msra.mxu0 %v8843
  %9633 = vmatprep.subr.bf16.mxu0 0
  %9634 = vmatpush1.bf16.msra.mxu0 %v8844
  %9635 = vmatprep.subr.bf16.mxu0 0
  %9636 = vmatpush1.bf16.msra.mxu0 %v8845
  %9637 = vmatprep.subr.bf16.mxu0 0
  %9638 = vmatpush1.bf16.msra.mxu0 %v8846
  %9639 = vmatprep.subr.bf16.mxu0 0
  %9640 = vmatpush1.bf16.msra.mxu0 %v8847
  %9641 = vmatprep.subr.bf16.mxu0 0
  %9642 = vmatpush1.bf16.msra.mxu0 %v8848
  %9643 = vmatprep.subr.bf16.mxu0 0
  %9644 = vmatpush1.bf16.msra.mxu0 %v8849
  %9645 = vmatprep.mubr.bf16.mxu0 %v9185
  %9646 = vmatmul.mubr.bf16.gmra.mrb[0].mxu0 %v9184
  %v9647 = vpop.f32.mrb[0].mxu0
  %v9648 = vadd.f32 %v9551, %v9647
  %v9649 = vpop.f32.mrb[0].mxu0
  %v9650 = vpop.f32.mrb[0].mxu0
  %v9651 = vadd.f32 %v9554, %v9650
  %v9652 = vpop.f32.mrb[0].mxu0
  %9653 = vmatprep.mubr.bf16.mxu0 %v9194
  %9654 = vmatmul.mubr.bf16.gmra.mrb[0].mxu0 %v9193
  %v9655 = vpop.f32.mrb[0].mxu0
  %v9656 = vadd.f32 %v9559, %v9655
  %v9657 = vpop.f32.mrb[0].mxu0
  %v9658 = vpop.f32.mrb[0].mxu0
  %v9659 = vadd.f32 %v9562, %v9658
  %v9660 = vpop.f32.mrb[0].mxu0
  %9661 = vmatprep.mubr.bf16.mxu0 %v9203
  %9662 = vmatmul.mubr.bf16.gmra.mrb[0].mxu0 %v9202
  %v9663 = vpop.f32.mrb[0].mxu0
  %v9664 = vadd.f32 %v9567, %v9663
  %v9665 = vpop.f32.mrb[0].mxu0
  %v9666 = vpop.f32.mrb[0].mxu0
  %v9667 = vadd.f32 %v9570, %v9666
  %v9668 = vpop.f32.mrb[0].mxu0
  %9669 = vmatprep.mubr.bf16.mxu0 %v9212
  %9670 = vmatmul.mubr.bf16.gmra.mrb[0].mxu0 %v9211
  %v9671 = vpop.f32.mrb[0].mxu0
  %v9672 = vadd.f32 %v9575, %v9671
  %v9673 = vpop.f32.mrb[0].mxu0
  %v9674 = vpop.f32.mrb[0].mxu0
  %v9675 = vadd.f32 %v9578, %v9674
  %v9676 = vpop.f32.mrb[0].mxu0
  %9677 = vmatprep.mubr.bf16.mxu0 %v9221
  %9678 = vmatmul.mubr.bf16.gmra.mrb[0].mxu0 %v9220
  %v9679 = vpop.f32.mrb[0].mxu0
  %v9680 = vadd.f32 %v9583, %v9679
  %v9681 = vpop.f32.mrb[0].mxu0
  %v9682 = vpop.f32.mrb[0].mxu0
  %v9683 = vadd.f32 %v9586, %v9682
  %v9684 = vpop.f32.mrb[0].mxu0
  %9685 = vmatprep.mubr.bf16.mxu0 %v9230
  %9686 = vmatmul.mubr.bf16.gmra.mrb[0].mxu0 %v9229
  %v9687 = vpop.f32.mrb[0].mxu0
  %v9688 = vadd.f32 %v9591, %v9687
  %v9689 = vpop.f32.mrb[0].mxu0
  %v9690 = vpop.f32.mrb[0].mxu0
  %v9691 = vadd.f32 %v9594, %v9690
  %v9692 = vpop.f32.mrb[0].mxu0
  %9693 = vmatprep.mubr.bf16.mxu0 %v9239
  %9694 = vmatmul.mubr.bf16.gmra.mrb[0].mxu0 %v9238
  %v9695 = vpop.f32.mrb[0].mxu0
  %v9696 = vadd.f32 %v9599, %v9695
  %v9697 = vpop.f32.mrb[0].mxu0
  %v9698 = vpop.f32.mrb[0].mxu0
  %v9699 = vadd.f32 %v9602, %v9698
  %v9700 = vpop.f32.mrb[0].mxu0
  %9701 = vmatprep.mubr.bf16.mxu0 %v9248
  %9702 = vmatmul.mubr.bf16.gmra.mrb[0].mxu0 %v9247
  %v9703 = vpop.f32.mrb[0].mxu0
  %v9704 = vadd.f32 %v9607, %v9703
  %v9705 = vpop.f32.mrb[0].mxu0
  %v9706 = vpop.f32.mrb[0].mxu0
  %v9707 = vadd.f32 %v9610, %v9706
  %v9708 = vpop.f32.mrb[0].mxu0
  %9709 = vdwg.mxu0
  %9710 = vmatprep.subr.bf16.mxu0 0
  %9711 = vmatpush1.bf16.msra.mxu0 %v8850
  %9712 = vmatprep.subr.bf16.mxu0 0
  %9713 = vmatpush1.bf16.msra.mxu0 %v8851
  %9714 = vmatprep.subr.bf16.mxu0 0
  %9715 = vmatpush1.bf16.msra.mxu0 %v8852
  %9716 = vmatprep.subr.bf16.mxu0 0
  %9717 = vmatpush1.bf16.msra.mxu0 %v8853
  %9718 = vmatprep.subr.bf16.mxu0 0
  %9719 = vmatpush1.bf16.msra.mxu0 %v8854
  %9720 = vmatprep.subr.bf16.mxu0 0
  %9721 = vmatpush1.bf16.msra.mxu0 %v8855
  %9722 = vmatprep.subr.bf16.mxu0 0
  %9723 = vmatpush1.bf16.msra.mxu0 %v8856
  %9724 = vmatprep.subr.bf16.mxu0 0
  %9725 = vmatpush1.bf16.msra.mxu0 %v8857
  %9726 = vmatprep.subr.bf16.mxu0 0
  %9727 = vmatpush1.bf16.msra.mxu0 0
  %9728 = vmatprep.subr.bf16.mxu0 0
  %9729 = vmatpush1.bf16.msra.mxu0 0
  %9730 = vmatprep.subr.bf16.mxu0 0
  %9731 = vmatpush1.bf16.msra.mxu0 0
  %9732 = vmatprep.subr.bf16.mxu0 0
  %9733 = vmatpush1.bf16.msra.mxu0 0
  %9734 = vmatprep.subr.bf16.mxu0 0
  %9735 = vmatpush1.bf16.msra.mxu0 0
  %9736 = vmatprep.subr.bf16.mxu0 0
  %9737 = vmatpush1.bf16.msra.mxu0 0
  %9738 = vmatprep.subr.bf16.mxu0 0
  %9739 = vmatpush1.bf16.msra.mxu0 0
  %9740 = vmatprep.subr.bf16.mxu0 0
  %9741 = vmatpush1.bf16.msra.mxu0 0
  %9742 = vmatprep.mubr.bf16.mxu0 0
  %9743 = vmatmul.mubr.bf16.gmra.mrb[0].mxu0 %v9186
  %v9744 = vpop.f32.mrb[0].mxu0
  %v9745 = vadd.f32 %v9648, %v9744
  %v9746 = vpop.f32.mrb[0].mxu0
  %v9747 = vpop.f32.mrb[0].mxu0
  %v9748 = vadd.f32 %v9651, %v9747
  %v9749 = vpop.f32.mrb[0].mxu0
  %9750 = vmatprep.mubr.bf16.mxu0 0
  %9751 = vmatmul.mubr.bf16.gmra.mrb[0].mxu0 %v9195
  %v9752 = vpop.f32.mrb[0].mxu0
  %v9753 = vadd.f32 %v9656, %v9752
  %v9754 = vpop.f32.mrb[0].mxu0
  %v9755 = vpop.f32.mrb[0].mxu0
  %v9756 = vadd.f32 %v9659, %v9755
  %v9757 = vpop.f32.mrb[0].mxu0
  %9758 = vmatprep.mubr.bf16.mxu0 0
  %9759 = vmatmul.mubr.bf16.gmra.mrb[0].mxu0 %v9204
  %v9760 = vpop.f32.mrb[0].mxu0
  %v9761 = vadd.f32 %v9664, %v9760
  %v9762 = vpop.f32.mrb[0].mxu0
  %v9763 = vpop.f32.mrb[0].mxu0
  %v9764 = vadd.f32 %v9667, %v9763
  %v9765 = vpop.f32.mrb[0].mxu0
  %9766 = vmatprep.mubr.bf16.mxu0 0
  %9767 = vmatmul.mubr.bf16.gmra.mrb[0].mxu0 %v9213
  %v9768 = vpop.f32.mrb[0].mxu0
  %v9769 = vadd.f32 %v9672, %v9768
  %v9770 = vpop.f32.mrb[0].mxu0
  %v9771 = vpop.f32.mrb[0].mxu0
  %v9772 = vadd.f32 %v9675, %v9771
  %v9773 = vpop.f32.mrb[0].mxu0
  %9774 = vmatprep.mubr.bf16.mxu0 0
  %9775 = vmatmul.mubr.bf16.gmra.mrb[0].mxu0 %v9222
  %v9776 = vpop.f32.mrb[0].mxu0
  %v9777 = vadd.f32 %v9680, %v9776
  %v9778 = vpop.f32.mrb[0].mxu0
  %v9779 = vpop.f32.mrb[0].mxu0
  %v9780 = vadd.f32 %v9683, %v9779
  %v9781 = vpop.f32.mrb[0].mxu0
  %9782 = vmatprep.mubr.bf16.mxu0 0
  %9783 = vmatmul.mubr.bf16.gmra.mrb[0].mxu0 %v9231
  %v9784 = vpop.f32.mrb[0].mxu0
  %v9785 = vadd.f32 %v9688, %v9784
  %v9786 = vpop.f32.mrb[0].mxu0
  %v9787 = vpop.f32.mrb[0].mxu0
  %v9788 = vadd.f32 %v9691, %v9787
  %v9789 = vpop.f32.mrb[0].mxu0
  %9790 = vmatprep.mubr.bf16.mxu0 0
  %9791 = vmatmul.mubr.bf16.gmra.mrb[0].mxu0 %v9240
  %v9792 = vpop.f32.mrb[0].mxu0
  %v9793 = vadd.f32 %v9696, %v9792
  %v9794 = vpop.f32.mrb[0].mxu0
  %v9795 = vpop.f32.mrb[0].mxu0
  %v9796 = vadd.f32 %v9699, %v9795
  %v9797 = vpop.f32.mrb[0].mxu0
  %9798 = vmatprep.mubr.bf16.mxu0 0
  %9799 = vmatmul.mubr.bf16.gmra.mrb[0].mxu0 %v9249
  %v9800 = vpop.f32.mrb[0].mxu0
  %v9801 = vadd.f32 %v9704, %v9800
  %v9802 = vpop.f32.mrb[0].mxu0
  %v9803 = vpop.f32.mrb[0].mxu0
  %v9804 = vadd.f32 %v9707, %v9803
  %v9805 = vpop.f32.mrb[0].mxu0
  %9806 = vdwg.mxu0
  %v9807 = vadd.f32 %v9745, %v8285
  %v9808 = vadd.f32 %v9748, %v8286
  %v9809 = vadd.f32 %v9753, %v8287
  %v9810 = vadd.f32 %v9756, %v8288
  %v9811 = vadd.f32 %v9761, %v8289
  %v9812 = vadd.f32 %v9764, %v8290
  %v9813 = vadd.f32 %v9769, %v8291
  %v9814 = vadd.f32 %v9772, %v8292
  %v9815 = vadd.f32 %v9777, %v8293
  %v9816 = vadd.f32 %v9780, %v8294
  %v9817 = vadd.f32 %v9785, %v8295
  %v9818 = vadd.f32 %v9788, %v8296
  %v9819 = vadd.f32 %v9793, %v8297
  %v9820 = vadd.f32 %v9796, %v8298
  %v9821 = vadd.f32 %v9801, %v8299
  %v9822 = vadd.f32 %v9804, %v8300
  %v9823 = vmax.f32 %v9807, 0.0
  %v9824 = vmax.f32 %v9808, 0.0
  %v9825 = vmax.f32 %v9809, 0.0
  %v9826 = vmax.f32 %v9810, 0.0
  %v9827 = vmax.f32 %v9811, 0.0
  %v9828 = vmax.f32 %v9812, 0.0
  %v9829 = vmax.f32 %v9813, 0.0
  %v9830 = vmax.f32 %v9814, 0.0
  %v9831 = vmax.f32 %v9815, 0.0
  %v9832 = vmax.f32 %v9816, 0.0
  %v9833 = vmax.f32 %v9817, 0.0
  %v9834 = vmax.f32 %v9818, 0.0
  %v9835 = vmax.f32 %v9819, 0.0
  %v9836 = vmax.f32 %v9820, 0.0
  %v9837 = vmax.f32 %v9821, 0.0
  %v9838 = vmax.f32 %v9822, 0.0
  %v9839 = vpack.c.bf16 %v9824, %v9823
  %v9840 = vpack.c.bf16 %v9826, %v9825
  %v9841 = vpack.c.bf16 %v9828, %v9827
  %v9842 = vpack.c.bf16 %v9830, %v9829
  %v9843 = vpack.c.bf16 %v9832, %v9831
  %v9844 = vpack.c.bf16 %v9834, %v9833
  %v9845 = vpack.c.bf16 %v9836, %v9835
  %v9846 = vpack.c.bf16 %v9838, %v9837
  %v9847 = vld [vmem:[%s18] sm:$0xf]
  %v9849 = vsel %vm3986, %v9839, 0
  %v9852 = vsel %vm3986, %v9840, 0
  %v9855 = vsel %vm3986, %v9841, 0
  %v9858 = vsel %vm3986, %v9842, 0
  %v9861 = vsel %vm3986, %v9843, 0
  %v9864 = vsel %vm3986, %v9844, 0
  %v9867 = vsel %vm3986, %v9845, 0
  %v9870 = vsel %vm3986, %v9846, 0
  %v9873 = vsel %vm5233, %v9847, 0
  %9875 = vmatprep.subr.bf16.mxu0 0
  %9876 = vmatpush1.bf16.msra.mxu0 %v9873
  %9877 = vmatprep.subr.bf16.mxu0 0
  %9878 = vmatpush1.bf16.msra.mxu0 0
  %9879 = vmatprep.subr.bf16.mxu0 0
  %9880 = vmatpush1.bf16.msra.mxu0 0
  %9881 = vmatprep.subr.bf16.mxu0 0
  %9882 = vmatpush1.bf16.msra.mxu0 0
  %9883 = vmatprep.subr.bf16.mxu0 0
  %9884 = vmatpush1.bf16.msra.mxu0 0
  %9885 = vmatprep.subr.bf16.mxu0 0
  %9886 = vmatpush1.bf16.msra.mxu0 0
  %9887 = vmatprep.subr.bf16.mxu0 0
  %9888 = vmatpush1.bf16.msra.mxu0 0
  %9889 = vmatprep.subr.bf16.mxu0 0
  %9890 = vmatpush1.bf16.msra.mxu0 0
  %9891 = vmatprep.subr.bf16.mxu0 0
  %9892 = vmatpush1.bf16.msra.mxu0 0
  %9893 = vmatprep.subr.bf16.mxu0 0
  %9894 = vmatpush1.bf16.msra.mxu0 0
  %9895 = vmatprep.subr.bf16.mxu0 0
  %9896 = vmatpush1.bf16.msra.mxu0 0
  %9897 = vmatprep.subr.bf16.mxu0 0
  %9898 = vmatpush1.bf16.msra.mxu0 0
  %9899 = vmatprep.subr.bf16.mxu0 0
  %9900 = vmatpush1.bf16.msra.mxu0 0
  %9901 = vmatprep.subr.bf16.mxu0 0
  %9902 = vmatpush1.bf16.msra.mxu0 0
  %9903 = vmatprep.subr.bf16.mxu0 0
  %9904 = vmatpush1.bf16.msra.mxu0 0
  %9905 = vmatprep.subr.bf16.mxu0 0
  %9906 = vmatpush1.bf16.msra.mxu0 0
  %9907 = vmatprep.mubr.bf16.mxu0 0
  %9908 = vmatmul.mubr.bf16.gmra.mrb[0].mxu0 %v9849
  %v9909 = vpop.f32.mrb[0].mxu0
  %v9910 = vadd.f32 0.0, %v9909
  %v9911 = vpop.f32.mrb[0].mxu0
  %v9912 = vpop.f32.mrb[0].mxu0
  %v9913 = vadd.f32 0.0, %v9912
  %v9914 = vpop.f32.mrb[0].mxu0
  %9915 = vmatprep.mubr.bf16.mxu0 0
  %9916 = vmatmul.mubr.bf16.gmra.mrb[0].mxu0 %v9852
  %v9917 = vpop.f32.mrb[0].mxu0
  %v9918 = vadd.f32 0.0, %v9917
  %v9919 = vpop.f32.mrb[0].mxu0
  %v9920 = vpop.f32.mrb[0].mxu0
  %v9921 = vadd.f32 0.0, %v9920
  %v9922 = vpop.f32.mrb[0].mxu0
  %9923 = vmatprep.mubr.bf16.mxu0 0
  %9924 = vmatmul.mubr.bf16.gmra.mrb[0].mxu0 %v9855
  %v9925 = vpop.f32.mrb[0].mxu0
  %v9926 = vadd.f32 0.0, %v9925
  %v9927 = vpop.f32.mrb[0].mxu0
  %v9928 = vpop.f32.mrb[0].mxu0
  %v9929 = vadd.f32 0.0, %v9928
  %v9930 = vpop.f32.mrb[0].mxu0
  %9931 = vmatprep.mubr.bf16.mxu0 0
  %9932 = vmatmul.mubr.bf16.gmra.mrb[0].mxu0 %v9858
  %v9933 = vpop.f32.mrb[0].mxu0
  %v9934 = vadd.f32 0.0, %v9933
  %v9935 = vpop.f32.mrb[0].mxu0
  %v9936 = vpop.f32.mrb[0].mxu0
  %v9937 = vadd.f32 0.0, %v9936
  %v9938 = vpop.f32.mrb[0].mxu0
  %9939 = vmatprep.mubr.bf16.mxu0 0
  %9940 = vmatmul.mubr.bf16.gmra.mrb[0].mxu0 %v9861
  %v9941 = vpop.f32.mrb[0].mxu0
  %v9942 = vadd.f32 0.0, %v9941
  %v9943 = vpop.f32.mrb[0].mxu0
  %v9944 = vpop.f32.mrb[0].mxu0
  %v9945 = vadd.f32 0.0, %v9944
  %v9946 = vpop.f32.mrb[0].mxu0
  %9947 = vmatprep.mubr.bf16.mxu0 0
  %9948 = vmatmul.mubr.bf16.gmra.mrb[0].mxu0 %v9864
  %v9949 = vpop.f32.mrb[0].mxu0
  %v9950 = vadd.f32 0.0, %v9949
  %v9951 = vpop.f32.mrb[0].mxu0
  %v9952 = vpop.f32.mrb[0].mxu0
  %v9953 = vadd.f32 0.0, %v9952
  %v9954 = vpop.f32.mrb[0].mxu0
  %9955 = vmatprep.mubr.bf16.mxu0 0
  %9956 = vmatmul.mubr.bf16.gmra.mrb[0].mxu0 %v9867
  %v9957 = vpop.f32.mrb[0].mxu0
  %v9958 = vadd.f32 0.0, %v9957
  %v9959 = vpop.f32.mrb[0].mxu0
  %v9960 = vpop.f32.mrb[0].mxu0
  %v9961 = vadd.f32 0.0, %v9960
  %v9962 = vpop.f32.mrb[0].mxu0
  %9963 = vmatprep.mubr.bf16.mxu0 0
  %9964 = vmatmul.mubr.bf16.gmra.mrb[0].mxu0 %v9870
  %v9965 = vpop.f32.mrb[0].mxu0
  %v9966 = vadd.f32 0.0, %v9965
  %v9967 = vpop.f32.mrb[0].mxu0
  %v9968 = vpop.f32.mrb[0].mxu0
  %v9969 = vadd.f32 0.0, %v9968
  %v9970 = vpop.f32.mrb[0].mxu0
  %9971 = vdwg.mxu0
  %v9972 = vpack.c.bf16 %v9913, %v9910
  %v9973 = vpack.c.bf16 %v9921, %v9918
  %v9974 = vpack.c.bf16 %v9929, %v9926
  %v9975 = vpack.c.bf16 %v9937, %v9934
  %v9976 = vpack.c.bf16 %v9945, %v9942
  %v9977 = vpack.c.bf16 %v9953, %v9950
  %v9978 = vpack.c.bf16 %v9961, %v9958
  %v9979 = vpack.c.bf16 %v9969, %v9966
  %vm9980 = vcmask 15360
  %9981 = vst.msk [vmem:[#allocation2] sm:$0xff] %vm9980, %v9972
  %9982 = vst.msk [vmem:[#allocation2 + $0x8] sm:$0xff] %vm9980, %v9973
  %9983 = vst.msk [vmem:[#allocation2 + $0x10] sm:$0xff] %vm9980, %v9974
  %9984 = vst.msk [vmem:[#allocation2 + $0x18] sm:$0xff] %vm9980, %v9975
  %9985 = vst.msk [vmem:[#allocation2 + $0x20] sm:$0xff] %vm9980, %v9976
  %9986 = vst.msk [vmem:[#allocation2 + $0x28] sm:$0xff] %vm9980, %v9977
  %9987 = vst.msk [vmem:[#allocation2 + $0x30] sm:$0xff] %vm9980, %v9978
  %9988 = vst.msk [vmem:[#allocation2 + $0x38] sm:$0xff] %vm9980, %v9979
  %9997 = vrot.lane.b32.xlu0 %v9972, 126
  %v9998 = vpop.permute.xlu0 %9997
  %9999 = vrot.lane.b32.xlu0 %v9973, 126
  %v10000 = vpop.permute.xlu0 %9999
  %10001 = vrot.lane.b32.xlu0 %v9974, 126
  %v10002 = vpop.permute.xlu0 %10001
  %10003 = vrot.lane.b32.xlu0 %v9975, 126
  %v10004 = vpop.permute.xlu0 %10003
  %10005 = vrot.lane.b32.xlu0 %v9976, 126
  %v10006 = vpop.permute.xlu0 %10005
  %10007 = vrot.lane.b32.xlu0 %v9977, 126
  %v10008 = vpop.permute.xlu0 %10007
  %10009 = vrot.lane.b32.xlu0 %v9978, 126
  %v10010 = vpop.permute.xlu0 %10009
  %10011 = vrot.lane.b32.xlu0 %v9979, 126
  %v10012 = vpop.permute.xlu0 %10011
  %10021 = vst.msk [vmem:[#allocation2 + $0x40] sm:$0xff] %vm9980, %v9998
  %10022 = vst.msk [vmem:[#allocation2 + $0x48] sm:$0xff] %vm9980, %v10000
  %10023 = vst.msk [vmem:[#allocation2 + $0x50] sm:$0xff] %vm9980, %v10002
  %10024 = vst.msk [vmem:[#allocation2 + $0x58] sm:$0xff] %vm9980, %v10004
  %10025 = vst.msk [vmem:[#allocation2 + $0x60] sm:$0xff] %vm9980, %v10006
  %10026 = vst.msk [vmem:[#allocation2 + $0x68] sm:$0xff] %vm9980, %v10008
  %10027 = vst.msk [vmem:[#allocation2 + $0x70] sm:$0xff] %vm9980, %v10010
  %10028 = vst.msk [vmem:[#allocation2 + $0x78] sm:$0xff] %vm9980, %v10012
  %10029 = vrot.lane.b32.xlu0 %v9972, 124
  %v10030 = vpop.permute.xlu0 %10029
  %10031 = vrot.lane.b32.xlu0 %v9973, 124
  %v10032 = vpop.permute.xlu0 %10031
  %10033 = vrot.lane.b32.xlu0 %v9974, 124
  %v10034 = vpop.permute.xlu0 %10033
  %10035 = vrot.lane.b32.xlu0 %v9975, 124
  %v10036 = vpop.permute.xlu0 %10035
  %10037 = vrot.lane.b32.xlu0 %v9976, 124
  %v10038 = vpop.permute.xlu0 %10037
  %10039 = vrot.lane.b32.xlu0 %v9977, 124
  %v10040 = vpop.permute.xlu0 %10039
  %10041 = vrot.lane.b32.xlu0 %v9978, 124
  %v10042 = vpop.permute.xlu0 %10041
  %10043 = vrot.lane.b32.xlu0 %v9979, 124
  %v10044 = vpop.permute.xlu0 %10043
  %10053 = vst.msk [vmem:[#allocation2 + $0x80] sm:$0xff] %vm9980, %v10030
  %10054 = vst.msk [vmem:[#allocation2 + $0x88] sm:$0xff] %vm9980, %v10032
  %10055 = vst.msk [vmem:[#allocation2 + $0x90] sm:$0xff] %vm9980, %v10034
  %10056 = vst.msk [vmem:[#allocation2 + $0x98] sm:$0xff] %vm9980, %v10036
  %10057 = vst.msk [vmem:[#allocation2 + $0xa0] sm:$0xff] %vm9980, %v10038
  %10058 = vst.msk [vmem:[#allocation2 + $0xa8] sm:$0xff] %vm9980, %v10040
  %10059 = vst.msk [vmem:[#allocation2 + $0xb0] sm:$0xff] %vm9980, %v10042
  %10060 = vst.msk [vmem:[#allocation2 + $0xb8] sm:$0xff] %vm9980, %v10044
  %10061 = vrot.lane.b32.xlu0 %v9972, 122
  %v10062 = vpop.permute.xlu0 %10061
  %10063 = vrot.lane.b32.xlu0 %v9973, 122
  %v10064 = vpop.permute.xlu0 %10063
  %10065 = vrot.lane.b32.xlu0 %v9974, 122
  %v10066 = vpop.permute.xlu0 %10065
  %10067 = vrot.lane.b32.xlu0 %v9975, 122
  %v10068 = vpop.permute.xlu0 %10067
  %10069 = vrot.lane.b32.xlu0 %v9976, 122
  %v10070 = vpop.permute.xlu0 %10069
  %10071 = vrot.lane.b32.xlu0 %v9977, 122
  %v10072 = vpop.permute.xlu0 %10071
  %10073 = vrot.lane.b32.xlu0 %v9978, 122
  %v10074 = vpop.permute.xlu0 %10073
  %10075 = vrot.lane.b32.xlu0 %v9979, 122
  %v10076 = vpop.permute.xlu0 %10075
  %10085 = vst.msk [vmem:[#allocation2 + $0xc0] sm:$0xff] %vm9980, %v10062
  %10086 = vst.msk [vmem:[#allocation2 + $0xc8] sm:$0xff] %vm9980, %v10064
  %10087 = vst.msk [vmem:[#allocation2 + $0xd0] sm:$0xff] %vm9980, %v10066
  %10088 = vst.msk [vmem:[#allocation2 + $0xd8] sm:$0xff] %vm9980, %v10068
  %10089 = vst.msk [vmem:[#allocation2 + $0xe0] sm:$0xff] %vm9980, %v10070
  %10090 = vst.msk [vmem:[#allocation2 + $0xe8] sm:$0xff] %vm9980, %v10072
  %10091 = vst.msk [vmem:[#allocation2 + $0xf0] sm:$0xff] %vm9980, %v10074
  %10092 = vst.msk [vmem:[#allocation2 + $0xf8] sm:$0xff] %vm9980, %v10076
  %10093 = vrot.lane.b32.xlu0 %v9972, 120
  %v10094 = vpop.permute.xlu0 %10093
  %10095 = vrot.lane.b32.xlu0 %v9973, 120
  %v10096 = vpop.permute.xlu0 %10095
  %10097 = vrot.lane.b32.xlu0 %v9974, 120
  %v10098 = vpop.permute.xlu0 %10097
  %10099 = vrot.lane.b32.xlu0 %v9975, 120
  %v10100 = vpop.permute.xlu0 %10099
  %10101 = vrot.lane.b32.xlu0 %v9976, 120
  %v10102 = vpop.permute.xlu0 %10101
  %10103 = vrot.lane.b32.xlu0 %v9977, 120
  %v10104 = vpop.permute.xlu0 %10103
  %10105 = vrot.lane.b32.xlu0 %v9978, 120
  %v10106 = vpop.permute.xlu0 %10105
  %10107 = vrot.lane.b32.xlu0 %v9979, 120
  %v10108 = vpop.permute.xlu0 %10107
  %10117 = vst.msk [vmem:[#allocation2 + $0x100] sm:$0xff] %vm9980, %v10094
  %10118 = vst.msk [vmem:[#allocation2 + $0x108] sm:$0xff] %vm9980, %v10096
  %10119 = vst.msk [vmem:[#allocation2 + $0x110] sm:$0xff] %vm9980, %v10098
  %10120 = vst.msk [vmem:[#allocation2 + $0x118] sm:$0xff] %vm9980, %v10100
  %10121 = vst.msk [vmem:[#allocation2 + $0x120] sm:$0xff] %vm9980, %v10102
  %10122 = vst.msk [vmem:[#allocation2 + $0x128] sm:$0xff] %vm9980, %v10104
  %10123 = vst.msk [vmem:[#allocation2 + $0x130] sm:$0xff] %vm9980, %v10106
  %10124 = vst.msk [vmem:[#allocation2 + $0x138] sm:$0xff] %vm9980, %v10108
  %10125 = vrot.lane.b32.xlu0 %v9972, 118
  %v10126 = vpop.permute.xlu0 %10125
  %10127 = vrot.lane.b32.xlu0 %v9973, 118
  %v10128 = vpop.permute.xlu0 %10127
  %10129 = vrot.lane.b32.xlu0 %v9974, 118
  %v10130 = vpop.permute.xlu0 %10129
  %10131 = vrot.lane.b32.xlu0 %v9975, 118
  %v10132 = vpop.permute.xlu0 %10131
  %10133 = vrot.lane.b32.xlu0 %v9976, 118
  %v10134 = vpop.permute.xlu0 %10133
  %10135 = vrot.lane.b32.xlu0 %v9977, 118
  %v10136 = vpop.permute.xlu0 %10135
  %10137 = vrot.lane.b32.xlu0 %v9978, 118
  %v10138 = vpop.permute.xlu0 %10137
  %10139 = vrot.lane.b32.xlu0 %v9979, 118
  %v10140 = vpop.permute.xlu0 %10139
  %10149 = vst.msk [vmem:[#allocation2 + $0x140] sm:$0xff] %vm9980, %v10126
  %10150 = vst.msk [vmem:[#allocation2 + $0x148] sm:$0xff] %vm9980, %v10128
  %10151 = vst.msk [vmem:[#allocation2 + $0x150] sm:$0xff] %vm9980, %v10130
  %10152 = vst.msk [vmem:[#allocation2 + $0x158] sm:$0xff] %vm9980, %v10132
  %10153 = vst.msk [vmem:[#allocation2 + $0x160] sm:$0xff] %vm9980, %v10134
  %10154 = vst.msk [vmem:[#allocation2 + $0x168] sm:$0xff] %vm9980, %v10136
  %10155 = vst.msk [vmem:[#allocation2 + $0x170] sm:$0xff] %vm9980, %v10138
  %10156 = vst.msk [vmem:[#allocation2 + $0x178] sm:$0xff] %vm9980, %v10140
  %10157 = vrot.lane.b32.xlu0 %v9972, 116
  %v10158 = vpop.permute.xlu0 %10157
  %10159 = vrot.lane.b32.xlu0 %v9973, 116
  %v10160 = vpop.permute.xlu0 %10159
  %10161 = vrot.lane.b32.xlu0 %v9974, 116
  %v10162 = vpop.permute.xlu0 %10161
  %10163 = vrot.lane.b32.xlu0 %v9975, 116
  %v10164 = vpop.permute.xlu0 %10163
  %10165 = vrot.lane.b32.xlu0 %v9976, 116
  %v10166 = vpop.permute.xlu0 %10165
  %10167 = vrot.lane.b32.xlu0 %v9977, 116
  %v10168 = vpop.permute.xlu0 %10167
  %10169 = vrot.lane.b32.xlu0 %v9978, 116
  %v10170 = vpop.permute.xlu0 %10169
  %10171 = vrot.lane.b32.xlu0 %v9979, 116
  %v10172 = vpop.permute.xlu0 %10171
  %10181 = vst.msk [vmem:[#allocation2 + $0x180] sm:$0xff] %vm9980, %v10158
  %10182 = vst.msk [vmem:[#allocation2 + $0x188] sm:$0xff] %vm9980, %v10160
  %10183 = vst.msk [vmem:[#allocation2 + $0x190] sm:$0xff] %vm9980, %v10162
  %10184 = vst.msk [vmem:[#allocation2 + $0x198] sm:$0xff] %vm9980, %v10164
  %10185 = vst.msk [vmem:[#allocation2 + $0x1a0] sm:$0xff] %vm9980, %v10166
  %10186 = vst.msk [vmem:[#allocation2 + $0x1a8] sm:$0xff] %vm9980, %v10168
  %10187 = vst.msk [vmem:[#allocation2 + $0x1b0] sm:$0xff] %vm9980, %v10170
  %10188 = vst.msk [vmem:[#allocation2 + $0x1b8] sm:$0xff] %vm9980, %v10172
  %10189 = vrot.lane.b32.xlu0 %v9972, 114
  %v10190 = vpop.permute.xlu0 %10189
  %10191 = vrot.lane.b32.xlu0 %v9973, 114
  %v10192 = vpop.permute.xlu0 %10191
  %10193 = vrot.lane.b32.xlu0 %v9974, 114
  %v10194 = vpop.permute.xlu0 %10193
  %10195 = vrot.lane.b32.xlu0 %v9975, 114
  %v10196 = vpop.permute.xlu0 %10195
  %10197 = vrot.lane.b32.xlu0 %v9976, 114
  %v10198 = vpop.permute.xlu0 %10197
  %10199 = vrot.lane.b32.xlu0 %v9977, 114
  %v10200 = vpop.permute.xlu0 %10199
  %10201 = vrot.lane.b32.xlu0 %v9978, 114
  %v10202 = vpop.permute.xlu0 %10201
  %10203 = vrot.lane.b32.xlu0 %v9979, 114
  %v10204 = vpop.permute.xlu0 %10203
  %10213 = vst.msk [vmem:[#allocation2 + $0x1c0] sm:$0xff] %vm9980, %v10190
  %10214 = vst.msk [vmem:[#allocation2 + $0x1c8] sm:$0xff] %vm9980, %v10192
  %10215 = vst.msk [vmem:[#allocation2 + $0x1d0] sm:$0xff] %vm9980, %v10194
  %10216 = vst.msk [vmem:[#allocation2 + $0x1d8] sm:$0xff] %vm9980, %v10196
  %10217 = vst.msk [vmem:[#allocation2 + $0x1e0] sm:$0xff] %vm9980, %v10198
  %10218 = vst.msk [vmem:[#allocation2 + $0x1e8] sm:$0xff] %vm9980, %v10200
  %10219 = vst.msk [vmem:[#allocation2 + $0x1f0] sm:$0xff] %vm9980, %v10202
  %10220 = vst.msk [vmem:[#allocation2 + $0x1f8] sm:$0xff] %vm9980, %v10204
  %10221 = vrot.lane.b32.xlu0 %v9972, 112
  %v10222 = vpop.permute.xlu0 %10221
  %10223 = vrot.lane.b32.xlu0 %v9973, 112
  %v10224 = vpop.permute.xlu0 %10223
  %10225 = vrot.lane.b32.xlu0 %v9974, 112
  %v10226 = vpop.permute.xlu0 %10225
  %10227 = vrot.lane.b32.xlu0 %v9975, 112
  %v10228 = vpop.permute.xlu0 %10227
  %10229 = vrot.lane.b32.xlu0 %v9976, 112
  %v10230 = vpop.permute.xlu0 %10229
  %10231 = vrot.lane.b32.xlu0 %v9977, 112
  %v10232 = vpop.permute.xlu0 %10231
  %10233 = vrot.lane.b32.xlu0 %v9978, 112
  %v10234 = vpop.permute.xlu0 %10233
  %10235 = vrot.lane.b32.xlu0 %v9979, 112
  %v10236 = vpop.permute.xlu0 %10235
  %10245 = vst.msk [vmem:[#allocation2 + $0x200] sm:$0xff] %vm9980, %v10222
  %10246 = vst.msk [vmem:[#allocation2 + $0x208] sm:$0xff] %vm9980, %v10224
  %10247 = vst.msk [vmem:[#allocation2 + $0x210] sm:$0xff] %vm9980, %v10226
  %10248 = vst.msk [vmem:[#allocation2 + $0x218] sm:$0xff] %vm9980, %v10228
  %10249 = vst.msk [vmem:[#allocation2 + $0x220] sm:$0xff] %vm9980, %v10230
  %10250 = vst.msk [vmem:[#allocation2 + $0x228] sm:$0xff] %vm9980, %v10232
  %10251 = vst.msk [vmem:[#allocation2 + $0x230] sm:$0xff] %vm9980, %v10234
  %10252 = vst.msk [vmem:[#allocation2 + $0x238] sm:$0xff] %vm9980, %v10236
  %v10253 = vld [vmem:[%s11] sm:$0xff]
  %v10254 = vld [vmem:[%s11 + $0x8] sm:$0xff]
  %v10255 = vld [vmem:[%s11 + $0x10] sm:$0xff]
  %v10256 = vld [vmem:[%s11 + $0x18] sm:$0xff]
  %v10257 = vld [vmem:[%s11 + $0x20] sm:$0xf]
  %v10258 = vld [vmem:[%s11 + $0x24] sm:$0xff]
  %v10259 = vld [vmem:[%s11 + $0x2c] sm:$0xff]
  %v10260 = vld [vmem:[%s11 + $0x34] sm:$0xff]
  %v10261 = vld [vmem:[%s11 + $0x3c] sm:$0xff]
  %v10262 = vld [vmem:[%s11 + $0x44] sm:$0xf]
  %v10263 = vld [vmem:[%s11 + $0x48] sm:$0xff]
  %v10264 = vld [vmem:[%s11 + $0x50] sm:$0xff]
  %v10265 = vld [vmem:[%s11 + $0x58] sm:$0xff]
  %v10266 = vld [vmem:[%s11 + $0x60] sm:$0xff]
  %v10267 = vld [vmem:[%s11 + $0x68] sm:$0xf]
  %v10268 = vld [vmem:[%s11 + $0x6c] sm:$0xff]
  %v10269 = vld [vmem:[%s11 + $0x74] sm:$0xff]
  %v10270 = vld [vmem:[%s11 + $0x7c] sm:$0xff]
  %v10271 = vld [vmem:[%s11 + $0x84] sm:$0xff]
  %v10272 = vld [vmem:[%s11 + $0x8c] sm:$0xf]
  %v10273 = vld [vmem:[#allocation2] sm:$0xff]
  %v10274 = vld [vmem:[#allocation2 + $0x8] sm:$0xff]
  %v10275 = vld [vmem:[#allocation2 + $0x10] sm:$0xff]
  %v10276 = vld [vmem:[#allocation2 + $0x18] sm:$0xff]
  %v10277 = vld [vmem:[#allocation2 + $0x20] sm:$0xff]
  %v10278 = vld [vmem:[#allocation2 + $0x28] sm:$0xff]
  %v10279 = vld [vmem:[#allocation2 + $0x30] sm:$0xff]
  %v10280 = vld [vmem:[#allocation2 + $0x38] sm:$0xff]
  %v10281 = vld [vmem:[#allocation2 + $0x40] sm:$0xff]
  %v10282 = vld [vmem:[#allocation2 + $0x48] sm:$0xff]
  %v10283 = vld [vmem:[#allocation2 + $0x50] sm:$0xff]
  %v10284 = vld [vmem:[#allocation2 + $0x58] sm:$0xff]
  %v10285 = vld [vmem:[#allocation2 + $0x60] sm:$0xff]
  %v10286 = vld [vmem:[#allocation2 + $0x68] sm:$0xff]
  %v10287 = vld [vmem:[#allocation2 + $0x70] sm:$0xff]
  %v10288 = vld [vmem:[#allocation2 + $0x78] sm:$0xff]
  %v10289 = vld [vmem:[#allocation2 + $0x80] sm:$0xff]
  %v10290 = vld [vmem:[#allocation2 + $0x88] sm:$0xff]
  %v10291 = vld [vmem:[#allocation2 + $0x90] sm:$0xff]
  %v10292 = vld [vmem:[#allocation2 + $0x98] sm:$0xff]
  %v10293 = vld [vmem:[#allocation2 + $0xa0] sm:$0xff]
  %v10294 = vld [vmem:[#allocation2 + $0xa8] sm:$0xff]
  %v10295 = vld [vmem:[#allocation2 + $0xb0] sm:$0xff]
  %v10296 = vld [vmem:[#allocation2 + $0xb8] sm:$0xff]
  %v10297 = vld [vmem:[#allocation2 + $0xc0] sm:$0xff]
  %v10298 = vld [vmem:[#allocation2 + $0xc8] sm:$0xff]
  %v10299 = vld [vmem:[#allocation2 + $0xd0] sm:$0xff]
  %v10300 = vld [vmem:[#allocation2 + $0xd8] sm:$0xff]
  %v10301 = vld [vmem:[#allocation2 + $0xe0] sm:$0xff]
  %v10302 = vld [vmem:[#allocation2 + $0xe8] sm:$0xff]
  %v10303 = vld [vmem:[#allocation2 + $0xf0] sm:$0xff]
  %v10304 = vld [vmem:[#allocation2 + $0xf8] sm:$0xff]
  %v10305 = vld [vmem:[#allocation2 + $0x100] sm:$0xff]
  %v10306 = vld [vmem:[#allocation2 + $0x108] sm:$0xff]
  %v10307 = vld [vmem:[#allocation2 + $0x110] sm:$0xff]
  %v10308 = vld [vmem:[#allocation2 + $0x118] sm:$0xff]
  %v10309 = vld [vmem:[#allocation2 + $0x120] sm:$0xff]
  %v10310 = vld [vmem:[#allocation2 + $0x128] sm:$0xff]
  %v10311 = vld [vmem:[#allocation2 + $0x130] sm:$0xff]
  %v10312 = vld [vmem:[#allocation2 + $0x138] sm:$0xff]
  %v10313 = vld [vmem:[#allocation2 + $0x140] sm:$0xff]
  %v10314 = vld [vmem:[#allocation2 + $0x148] sm:$0xff]
  %v10315 = vld [vmem:[#allocation2 + $0x150] sm:$0xff]
  %v10316 = vld [vmem:[#allocation2 + $0x158] sm:$0xff]
  %v10317 = vld [vmem:[#allocation2 + $0x160] sm:$0xff]
  %v10318 = vld [vmem:[#allocation2 + $0x168] sm:$0xff]
  %v10319 = vld [vmem:[#allocation2 + $0x170] sm:$0xff]
  %v10320 = vld [vmem:[#allocation2 + $0x178] sm:$0xff]
  %v10321 = vld [vmem:[#allocation2 + $0x180] sm:$0xff]
  %v10322 = vld [vmem:[#allocation2 + $0x188] sm:$0xff]
  %v10323 = vld [vmem:[#allocation2 + $0x190] sm:$0xff]
  %v10324 = vld [vmem:[#allocation2 + $0x198] sm:$0xff]
  %v10325 = vld [vmem:[#allocation2 + $0x1a0] sm:$0xff]
  %v10326 = vld [vmem:[#allocation2 + $0x1a8] sm:$0xff]
  %v10327 = vld [vmem:[#allocation2 + $0x1b0] sm:$0xff]
  %v10328 = vld [vmem:[#allocation2 + $0x1b8] sm:$0xff]
  %v10329 = vld [vmem:[#allocation2 + $0x1c0] sm:$0xff]
  %v10330 = vld [vmem:[#allocation2 + $0x1c8] sm:$0xff]
  %v10331 = vld [vmem:[#allocation2 + $0x1d0] sm:$0xff]
  %v10332 = vld [vmem:[#allocation2 + $0x1d8] sm:$0xff]
  %v10333 = vld [vmem:[#allocation2 + $0x1e0] sm:$0xff]
  %v10334 = vld [vmem:[#allocation2 + $0x1e8] sm:$0xff]
  %v10335 = vld [vmem:[#allocation2 + $0x1f0] sm:$0xff]
  %v10336 = vld [vmem:[#allocation2 + $0x1f8] sm:$0xff]
  %v10337 = vld [vmem:[#allocation2 + $0x200] sm:$0xff]
  %v10338 = vld [vmem:[#allocation2 + $0x208] sm:$0xff]
  %v10339 = vld [vmem:[#allocation2 + $0x210] sm:$0xff]
  %v10340 = vld [vmem:[#allocation2 + $0x218] sm:$0xff]
  %v10341 = vld [vmem:[#allocation2 + $0x220] sm:$0xff]
  %v10342 = vld [vmem:[#allocation2 + $0x228] sm:$0xff]
  %v10343 = vld [vmem:[#allocation2 + $0x230] sm:$0xff]
  %v10344 = vld [vmem:[#allocation2 + $0x238] sm:$0xff]
  %v10365 = vunpack.c.l.b16 %v10253
  %v10366 = vunpack.c.h.b16 %v10253
  %v10367 = vunpack.c.l.b16 %v10254
  %v10368 = vunpack.c.h.b16 %v10254
  %v10369 = vunpack.c.l.b16 %v10255
  %v10370 = vunpack.c.h.b16 %v10255
  %v10371 = vunpack.c.l.b16 %v10256
  %v10372 = vunpack.c.h.b16 %v10256
  %v10373 = vunpack.c.l.b16 %v10257
  %v10374 = vunpack.c.l.b16 %v10258
  %v10375 = vunpack.c.h.b16 %v10258
  %v10376 = vunpack.c.l.b16 %v10259
  %v10377 = vunpack.c.h.b16 %v10259
  %v10378 = vunpack.c.l.b16 %v10260
  %v10379 = vunpack.c.h.b16 %v10260
  %v10380 = vunpack.c.l.b16 %v10261
  %v10381 = vunpack.c.h.b16 %v10261
  %v10382 = vunpack.c.l.b16 %v10262
  %v10383 = vunpack.c.l.b16 %v10263
  %v10384 = vunpack.c.h.b16 %v10263
  %v10385 = vunpack.c.l.b16 %v10264
  %v10386 = vunpack.c.h.b16 %v10264
  %v10387 = vunpack.c.l.b16 %v10265
  %v10388 = vunpack.c.h.b16 %v10265
  %v10389 = vunpack.c.l.b16 %v10266
  %v10390 = vunpack.c.h.b16 %v10266
  %v10391 = vunpack.c.l.b16 %v10267
  %v10392 = vunpack.c.l.b16 %v10268
  %v10393 = vunpack.c.h.b16 %v10268
  %v10394 = vunpack.c.l.b16 %v10269
  %v10395 = vunpack.c.h.b16 %v10269
  %v10396 = vunpack.c.l.b16 %v10270
  %v10397 = vunpack.c.h.b16 %v10270
  %v10398 = vunpack.c.l.b16 %v10271
  %v10399 = vunpack.c.h.b16 %v10271
  %v10400 = vunpack.c.l.b16 %v10272
  %v10401 = vpack.c.b16 %v10374, %v10365
  %v10402 = vpack.c.b16 %v10375, %v10366
  %v10403 = vpack.c.b16 %v10376, %v10367
  %v10404 = vpack.c.b16 %v10377, %v10368
  %v10405 = vpack.c.b16 %v10378, %v10369
  %v10406 = vpack.c.b16 %v10379, %v10370
  %v10407 = vpack.c.b16 %v10380, %v10371
  %v10408 = vpack.c.b16 %v10381, %v10372
  %v10409 = vpack.c.b16 %v10382, %v10373
  %v10410 = vpack.c.b16 %v10392, %v10383
  %v10411 = vpack.c.b16 %v10393, %v10384
  %v10412 = vpack.c.b16 %v10394, %v10385
  %v10413 = vpack.c.b16 %v10395, %v10386
  %v10414 = vpack.c.b16 %v10396, %v10387
  %v10415 = vpack.c.b16 %v10397, %v10388
  %v10416 = vpack.c.b16 %v10398, %v10389
  %v10417 = vpack.c.b16 %v10399, %v10390
  %v10418 = vpack.c.b16 %v10400, %v10391
  %10437 = vmatprep.subr.bf16.mxu0 0
  %10438 = vmatpush1.bf16.msra.mxu0 %v10273
  %10439 = vmatprep.subr.bf16.mxu0 0
  %10440 = vmatpush1.bf16.msra.mxu0 %v10274
  %10441 = vmatprep.subr.bf16.mxu0 0
  %10442 = vmatpush1.bf16.msra.mxu0 %v10275
  %10443 = vmatprep.subr.bf16.mxu0 0
  %10444 = vmatpush1.bf16.msra.mxu0 %v10276
  %10445 = vmatprep.subr.bf16.mxu0 0
  %10446 = vmatpush1.bf16.msra.mxu0 %v10277
  %10447 = vmatprep.subr.bf16.mxu0 0
  %10448 = vmatpush1.bf16.msra.mxu0 %v10278
  %10449 = vmatprep.subr.bf16.mxu0 0
  %10450 = vmatpush1.bf16.msra.mxu0 %v10279
  %10451 = vmatprep.subr.bf16.mxu0 0
  %10452 = vmatpush1.bf16.msra.mxu0 %v10280
  %10453 = vmatprep.subr.bf16.mxu0 0
  %10454 = vmatpush1.bf16.msra.mxu0 %v10281
  %10455 = vmatprep.subr.bf16.mxu0 0
  %10456 = vmatpush1.bf16.msra.mxu0 %v10282
  %10457 = vmatprep.subr.bf16.mxu0 0
  %10458 = vmatpush1.bf16.msra.mxu0 %v10283
  %10459 = vmatprep.subr.bf16.mxu0 0
  %10460 = vmatpush1.bf16.msra.mxu0 %v10284
  %10461 = vmatprep.subr.bf16.mxu0 0
  %10462 = vmatpush1.bf16.msra.mxu0 %v10285
  %10463 = vmatprep.subr.bf16.mxu0 0
  %10464 = vmatpush1.bf16.msra.mxu0 %v10286
  %10465 = vmatprep.subr.bf16.mxu0 0
  %10466 = vmatpush1.bf16.msra.mxu0 %v10287
  %10467 = vmatprep.subr.bf16.mxu0 0
  %10468 = vmatpush1.bf16.msra.mxu0 %v10288
  %10469 = vmatprep.mubr.bf16.mxu0 %v10402
  %10470 = vmatmul.mubr.bf16.gmra.mrb[0].mxu0 %v10401
  %v10471 = vpop.f32.mrb[0].mxu0
  %v10472 = vadd.f32 0.0, %v10471
  %v10473 = vpop.f32.mrb[0].mxu0
  %v10474 = vpop.f32.mrb[0].mxu0
  %v10475 = vadd.f32 0.0, %v10474
  %v10476 = vpop.f32.mrb[0].mxu0
  %10477 = vmatprep.mubr.bf16.mxu0 %v10411
  %10478 = vmatmul.mubr.bf16.gmra.mrb[0].mxu0 %v10410
  %v10479 = vpop.f32.mrb[0].mxu0
  %v10480 = vadd.f32 0.0, %v10479
  %v10481 = vpop.f32.mrb[0].mxu0
  %v10482 = vpop.f32.mrb[0].mxu0
  %v10483 = vadd.f32 0.0, %v10482
  %v10484 = vpop.f32.mrb[0].mxu0
  %10485 = vdwg.mxu0
  %10486 = vmatprep.subr.bf16.mxu0 0
  %10487 = vmatpush1.bf16.msra.mxu0 %v10289
  %10488 = vmatprep.subr.bf16.mxu0 0
  %10489 = vmatpush1.bf16.msra.mxu0 %v10290
  %10490 = vmatprep.subr.bf16.mxu0 0
  %10491 = vmatpush1.bf16.msra.mxu0 %v10291
  %10492 = vmatprep.subr.bf16.mxu0 0
  %10493 = vmatpush1.bf16.msra.mxu0 %v10292
  %10494 = vmatprep.subr.bf16.mxu0 0
  %10495 = vmatpush1.bf16.msra.mxu0 %v10293
  %10496 = vmatprep.subr.bf16.mxu0 0
  %10497 = vmatpush1.bf16.msra.mxu0 %v10294
  %10498 = vmatprep.subr.bf16.mxu0 0
  %10499 = vmatpush1.bf16.msra.mxu0 %v10295
  %10500 = vmatprep.subr.bf16.mxu0 0
  %10501 = vmatpush1.bf16.msra.mxu0 %v10296
  %10502 = vmatprep.subr.bf16.mxu0 0
  %10503 = vmatpush1.bf16.msra.mxu0 %v10297
  %10504 = vmatprep.subr.bf16.mxu0 0
  %10505 = vmatpush1.bf16.msra.mxu0 %v10298
  %10506 = vmatprep.subr.bf16.mxu0 0
  %10507 = vmatpush1.bf16.msra.mxu0 %v10299
  %10508 = vmatprep.subr.bf16.mxu0 0
  %10509 = vmatpush1.bf16.msra.mxu0 %v10300
  %10510 = vmatprep.subr.bf16.mxu0 0
  %10511 = vmatpush1.bf16.msra.mxu0 %v10301
  %10512 = vmatprep.subr.bf16.mxu0 0
  %10513 = vmatpush1.bf16.msra.mxu0 %v10302
  %10514 = vmatprep.subr.bf16.mxu0 0
  %10515 = vmatpush1.bf16.msra.mxu0 %v10303
  %10516 = vmatprep.subr.bf16.mxu0 0
  %10517 = vmatpush1.bf16.msra.mxu0 %v10304
  %10518 = vmatprep.mubr.bf16.mxu0 %v10404
  %10519 = vmatmul.mubr.bf16.gmra.mrb[0].mxu0 %v10403
  %v10520 = vpop.f32.mrb[0].mxu0
  %v10521 = vadd.f32 %v10472, %v10520
  %v10522 = vpop.f32.mrb[0].mxu0
  %v10523 = vpop.f32.mrb[0].mxu0
  %v10524 = vadd.f32 %v10475, %v10523
  %v10525 = vpop.f32.mrb[0].mxu0
  %10526 = vmatprep.mubr.bf16.mxu0 %v10413
  %10527 = vmatmul.mubr.bf16.gmra.mrb[0].mxu0 %v10412
  %v10528 = vpop.f32.mrb[0].mxu0
  %v10529 = vadd.f32 %v10480, %v10528
  %v10530 = vpop.f32.mrb[0].mxu0
  %v10531 = vpop.f32.mrb[0].mxu0
  %v10532 = vadd.f32 %v10483, %v10531
  %v10533 = vpop.f32.mrb[0].mxu0
  %10534 = vdwg.mxu0
  %10535 = vmatprep.subr.bf16.mxu0 0
  %10536 = vmatpush1.bf16.msra.mxu0 %v10305
  %10537 = vmatprep.subr.bf16.mxu0 0
  %10538 = vmatpush1.bf16.msra.mxu0 %v10306
  %10539 = vmatprep.subr.bf16.mxu0 0
  %10540 = vmatpush1.bf16.msra.mxu0 %v10307
  %10541 = vmatprep.subr.bf16.mxu0 0
  %10542 = vmatpush1.bf16.msra.mxu0 %v10308
  %10543 = vmatprep.subr.bf16.mxu0 0
  %10544 = vmatpush1.bf16.msra.mxu0 %v10309
  %10545 = vmatprep.subr.bf16.mxu0 0
  %10546 = vmatpush1.bf16.msra.mxu0 %v10310
  %10547 = vmatprep.subr.bf16.mxu0 0
  %10548 = vmatpush1.bf16.msra.mxu0 %v10311
  %10549 = vmatprep.subr.bf16.mxu0 0
  %10550 = vmatpush1.bf16.msra.mxu0 %v10312
  %10551 = vmatprep.subr.bf16.mxu0 0
  %10552 = vmatpush1.bf16.msra.mxu0 %v10313
  %10553 = vmatprep.subr.bf16.mxu0 0
  %10554 = vmatpush1.bf16.msra.mxu0 %v10314
  %10555 = vmatprep.subr.bf16.mxu0 0
  %10556 = vmatpush1.bf16.msra.mxu0 %v10315
  %10557 = vmatprep.subr.bf16.mxu0 0
  %10558 = vmatpush1.bf16.msra.mxu0 %v10316
  %10559 = vmatprep.subr.bf16.mxu0 0
  %10560 = vmatpush1.bf16.msra.mxu0 %v10317
  %10561 = vmatprep.subr.bf16.mxu0 0
  %10562 = vmatpush1.bf16.msra.mxu0 %v10318
  %10563 = vmatprep.subr.bf16.mxu0 0
  %10564 = vmatpush1.bf16.msra.mxu0 %v10319
  %10565 = vmatprep.subr.bf16.mxu0 0
  %10566 = vmatpush1.bf16.msra.mxu0 %v10320
  %10567 = vmatprep.mubr.bf16.mxu0 %v10406
  %10568 = vmatmul.mubr.bf16.gmra.mrb[0].mxu0 %v10405
  %v10569 = vpop.f32.mrb[0].mxu0
  %v10570 = vadd.f32 %v10521, %v10569
  %v10571 = vpop.f32.mrb[0].mxu0
  %v10572 = vpop.f32.mrb[0].mxu0
  %v10573 = vadd.f32 %v10524, %v10572
  %v10574 = vpop.f32.mrb[0].mxu0
  %10575 = vmatprep.mubr.bf16.mxu0 %v10415
  %10576 = vmatmul.mubr.bf16.gmra.mrb[0].mxu0 %v10414
  %v10577 = vpop.f32.mrb[0].mxu0
  %v10578 = vadd.f32 %v10529, %v10577
  %v10579 = vpop.f32.mrb[0].mxu0
  %v10580 = vpop.f32.mrb[0].mxu0
  %v10581 = vadd.f32 %v10532, %v10580
  %v10582 = vpop.f32.mrb[0].mxu0
  %10583 = vdwg.mxu0
  %10584 = vmatprep.subr.bf16.mxu0 0
  %10585 = vmatpush1.bf16.msra.mxu0 %v10321
  %10586 = vmatprep.subr.bf16.mxu0 0
  %10587 = vmatpush1.bf16.msra.mxu0 %v10322
  %10588 = vmatprep.subr.bf16.mxu0 0
  %10589 = vmatpush1.bf16.msra.mxu0 %v10323
  %10590 = vmatprep.subr.bf16.mxu0 0
  %10591 = vmatpush1.bf16.msra.mxu0 %v10324
  %10592 = vmatprep.subr.bf16.mxu0 0
  %10593 = vmatpush1.bf16.msra.mxu0 %v10325
  %10594 = vmatprep.subr.bf16.mxu0 0
  %10595 = vmatpush1.bf16.msra.mxu0 %v10326
  %10596 = vmatprep.subr.bf16.mxu0 0
  %10597 = vmatpush1.bf16.msra.mxu0 %v10327
  %10598 = vmatprep.subr.bf16.mxu0 0
  %10599 = vmatpush1.bf16.msra.mxu0 %v10328
  %10600 = vmatprep.subr.bf16.mxu0 0
  %10601 = vmatpush1.bf16.msra.mxu0 %v10329
  %10602 = vmatprep.subr.bf16.mxu0 0
  %10603 = vmatpush1.bf16.msra.mxu0 %v10330
  %10604 = vmatprep.subr.bf16.mxu0 0
  %10605 = vmatpush1.bf16.msra.mxu0 %v10331
  %10606 = vmatprep.subr.bf16.mxu0 0
  %10607 = vmatpush1.bf16.msra.mxu0 %v10332
  %10608 = vmatprep.subr.bf16.mxu0 0
  %10609 = vmatpush1.bf16.msra.mxu0 %v10333
  %10610 = vmatprep.subr.bf16.mxu0 0
  %10611 = vmatpush1.bf16.msra.mxu0 %v10334
  %10612 = vmatprep.subr.bf16.mxu0 0
  %10613 = vmatpush1.bf16.msra.mxu0 %v10335
  %10614 = vmatprep.subr.bf16.mxu0 0
  %10615 = vmatpush1.bf16.msra.mxu0 %v10336
  %10616 = vmatprep.mubr.bf16.mxu0 %v10408
  %10617 = vmatmul.mubr.bf16.gmra.mrb[0].mxu0 %v10407
  %v10618 = vpop.f32.mrb[0].mxu0
  %v10619 = vadd.f32 %v10570, %v10618
  %v10620 = vpop.f32.mrb[0].mxu0
  %v10621 = vpop.f32.mrb[0].mxu0
  %v10622 = vadd.f32 %v10573, %v10621
  %v10623 = vpop.f32.mrb[0].mxu0
  %10624 = vmatprep.mubr.bf16.mxu0 %v10417
  %10625 = vmatmul.mubr.bf16.gmra.mrb[0].mxu0 %v10416
  %v10626 = vpop.f32.mrb[0].mxu0
  %v10627 = vadd.f32 %v10578, %v10626
  %v10628 = vpop.f32.mrb[0].mxu0
  %v10629 = vpop.f32.mrb[0].mxu0
  %v10630 = vadd.f32 %v10581, %v10629
  %v10631 = vpop.f32.mrb[0].mxu0
  %10632 = vdwg.mxu0
  %10633 = vmatprep.subr.bf16.mxu0 0
  %10634 = vmatpush1.bf16.msra.mxu0 %v10337
  %10635 = vmatprep.subr.bf16.mxu0 0
  %10636 = vmatpush1.bf16.msra.mxu0 %v10338
  %10637 = vmatprep.subr.bf16.mxu0 0
  %10638 = vmatpush1.bf16.msra.mxu0 %v10339
  %10639 = vmatprep.subr.bf16.mxu0 0
  %10640 = vmatpush1.bf16.msra.mxu0 %v10340
  %10641 = vmatprep.subr.bf16.mxu0 0
  %10642 = vmatpush1.bf16.msra.mxu0 %v10341
  %10643 = vmatprep.subr.bf16.mxu0 0
  %10644 = vmatpush1.bf16.msra.mxu0 %v10342
  %10645 = vmatprep.subr.bf16.mxu0 0
  %10646 = vmatpush1.bf16.msra.mxu0 %v10343
  %10647 = vmatprep.subr.bf16.mxu0 0
  %10648 = vmatpush1.bf16.msra.mxu0 %v10344
  %10649 = vmatprep.subr.bf16.mxu0 0
  %10650 = vmatpush1.bf16.msra.mxu0 0
  %10651 = vmatprep.subr.bf16.mxu0 0
  %10652 = vmatpush1.bf16.msra.mxu0 0
  %10653 = vmatprep.subr.bf16.mxu0 0
  %10654 = vmatpush1.bf16.msra.mxu0 0
  %10655 = vmatprep.subr.bf16.mxu0 0
  %10656 = vmatpush1.bf16.msra.mxu0 0
  %10657 = vmatprep.subr.bf16.mxu0 0
  %10658 = vmatpush1.bf16.msra.mxu0 0
  %10659 = vmatprep.subr.bf16.mxu0 0
  %10660 = vmatpush1.bf16.msra.mxu0 0
  %10661 = vmatprep.subr.bf16.mxu0 0
  %10662 = vmatpush1.bf16.msra.mxu0 0
  %10663 = vmatprep.subr.bf16.mxu0 0
  %10664 = vmatpush1.bf16.msra.mxu0 0
  %10665 = vmatprep.mubr.bf16.mxu0 0
  %10666 = vmatmul.mubr.bf16.gmra.mrb[0].mxu0 %v10409
  %v10667 = vpop.f32.mrb[0].mxu0
  %v10668 = vadd.f32 %v10619, %v10667
  %v10669 = vpop.f32.mrb[0].mxu0
  %v10670 = vpop.f32.mrb[0].mxu0
  %v10671 = vadd.f32 %v10622, %v10670
  %v10672 = vpop.f32.mrb[0].mxu0
  %10673 = vmatprep.mubr.bf16.mxu0 0
  %10674 = vmatmul.mubr.bf16.gmra.mrb[0].mxu0 %v10418
  %v10675 = vpop.f32.mrb[0].mxu0
  %v10676 = vadd.f32 %v10627, %v10675
  %v10677 = vpop.f32.mrb[0].mxu0
  %v10678 = vpop.f32.mrb[0].mxu0
  %v10679 = vadd.f32 %v10630, %v10678
  %v10680 = vpop.f32.mrb[0].mxu0
  %10681 = vdwg.mxu0
  %10682 = vst.msk [vmem:[%s19] sm:$0xff] %vm9980, %v10668
  %10683 = vst.msk [vmem:[%s19 + $0x8] sm:$0xff] %vm9980, %v10671
  %10684 = vst.msk [vmem:[%s19 + $0x10] sm:$0xff] %vm9980, %v10676
  %10685 = vst.msk [vmem:[%s19 + $0x18] sm:$0xff] %vm9980, %v10679
  // Predicated region
  $region78: #{map_encoder_forward.1} parent=0 // pred_check
    _
  $region79: #{map_encoder_forward.1} parent=0 // pred_check_branch
    %10687 = sbr.rel (0) target = $region81
  $region80: #{map_encoder_forward.1} parent=0 // pred_region
    _
  $region81: #{map_encoder_forward.1} parent=0 // pred_fallthru
    _
  // Predicated region
  $region82: #{map_encoder_forward.1} parent=0 // pred_check
    _
  $region83: #{map_encoder_forward.1} parent=0 // pred_check_branch
    %10689 = sbr.rel (0) target = $region85
  $region84: #{map_encoder_forward.1} parent=0 // pred_region
    _
  $region85: #{map_encoder_forward.1} parent=0 // pred_fallthru
    _

</llo_original>
